<compile_context>
chip_gen: v7x
topology: tpu7x:2x2x1
jax: 0.10.0
libtpu: 0.0.40
codegen_flags: <defaults>
</compile_context>

<pallas_src>
import functools

import jax
import jax.numpy as jnp
import numpy as np
from jax.experimental import pallas as pl
from jax.experimental.pallas import tpu as pltpu

_SENTINEL = 1 << 20   # out-of-vocab id -> all-zero one-hot == conv zero padding


def _char_cnn_kernel(idx_ref, *refs, kernel_sizes, V, T, C, K_max):
    """One block of rows: fused gather + conv (all K) + max-pool + bias + ReLU.

    idx_ref:  (block_n, T_ext) int32, time padded with sentinel on both sides
    refs:     [tab_ref per K]  (K*V padded to x8, C) f32 folded emb@W tables
              bias_ref         (1, C * n_kernels) f32
              out_ref          (block_n, C * n_kernels) f32
    """
    n_k = len(kernel_sizes)
    tab_refs = refs[:n_k]
    bias_ref = refs[n_k]
    out_ref = refs[n_k + 1]

    idx = idx_ref[...]                                   # (bn, T_ext) int32
    bn = idx.shape[0]

    pooled = []
    for kk, K in enumerate(kernel_sizes):
        tab = tab_refs[kk][...]                          # (KV_pad, C) f32
        kv_pad = tab.shape[0]
        t_out = T + K - 1                                # conv out length (pad = K-1)
        base = K_max - K                                 # column of padded time pos 0
        j_iota = jax.lax.broadcasted_iota(jnp.int32, (bn, kv_pad), 1)

        m = None                                         # running max over t, (bn, C)
        for t in range(t_out):                           # static unrolled loop
            match = None
            for k in range(K):
                col = base + t + k
                tgt = idx[:, col:col + 1] + k * V        # (bn, 1); sentinel never matches
                eq = j_iota == tgt
                match = eq if match is None else (match | eq)
            onehot = match.astype(jnp.float32)           # (bn, KV_pad)
            conv_t = jnp.dot(onehot, tab,
                             preferred_element_type=jnp.float32)  # (bn, C)
            m = conv_t if m is None else jnp.maximum(m, conv_t)
        pooled.append(m)

    feat = jnp.concatenate(pooled, axis=1) if n_k > 1 else pooled[0]
    # bias add + ReLU after the pool (identical to relu(conv+b) then max).
    out_ref[...] = jnp.maximum(feat + bias_ref[...], 0.0)


def char_cnn_forward(char_idx, emb_table, conv_ws, conv_bs, kernel_sizes,
                     *, block_n=256):
    """Full CharCNN forward.

    char_idx: (B, S, T) int32 character indices
    returns:  (B, S, out_channels * len(kernel_sizes)) float32
    """
    B, S, T = char_idx.shape
    V, D = emb_table.shape
    C = conv_ws[0].shape[0]
    n_k = len(kernel_sizes)
    K_max = max(kernel_sizes)
    pad_max = K_max - 1
    T_ext = T + 2 * pad_max
    C_total = C * n_k

    N = B * S
    n_blocks = int(pl.cdiv(N, block_n))
    N_pad = n_blocks * block_n

    # int32 indices, padded rows + sentinel time padding (== conv zero padding).
    flat_idx = char_idx.reshape(N, T).astype(jnp.int32)
    idx_pad = jnp.pad(flat_idx, ((0, N_pad - N), (pad_max, pad_max)),
                      constant_values=_SENTINEL)

    # dropout on embeddings -> identity (eval mode)

    # Fold the embedding table into each conv weight (exact f32):
    #   tab_K[k*V + v, c] = emb[v, :] . W_K[k, :, c]
    tabs = []
    for K, w in zip(kernel_sizes, conv_ws):
        w_kdc = jnp.transpose(w[:, 0, :, :], (1, 2, 0))            # (K, D, C)
        tab = jnp.einsum("vd,kdc->kvc", emb_table, w_kdc,
                         precision=jax.lax.Precision.HIGHEST)
        tab = tab.reshape(K * V, C).astype(jnp.float32)
        kv_pad = ((K * V + 7) // 8) * 8                            # pad rows to x8
        tab = jnp.pad(tab, ((0, kv_pad - K * V), (0, 0)))
        tabs.append(tab)

    bias = jnp.concatenate(list(conv_bs)).reshape(1, C_total).astype(jnp.float32)

    kernel = functools.partial(_char_cnn_kernel, kernel_sizes=tuple(kernel_sizes),
                               V=V, T=T, C=C, K_max=K_max)

    in_specs = [pl.BlockSpec((block_n, T_ext), lambda i: (i, 0))]
    for tab in tabs:                                               # VMEM-resident consts
        in_specs.append(pl.BlockSpec(tab.shape, lambda i: (0, 0)))
    in_specs.append(pl.BlockSpec((1, C_total), lambda i: (0, 0)))

    out = pl.pallas_call(
        kernel,
        out_shape=jax.ShapeDtypeStruct((N_pad, C_total), jnp.float32),
        grid=(n_blocks,),
        in_specs=in_specs,
        out_specs=pl.BlockSpec((block_n, C_total), lambda i: (i, 0)),
        compiler_params=pltpu.CompilerParams(
            dimension_semantics=("parallel",)),
    )(idx_pad, *tabs, bias)

    # dropout on pooled features -> identity (eval mode)
    return out[:N].reshape(B, S, C_total)


def _reference_forward(char_idx, emb_table, conv_ws, conv_bs, kernel_sizes):
    """Pure-JAX reference replicating PyTorch semantics (for verification)."""
    B, S, T = char_idx.shape
    D = emb_table.shape[1]
    N = B * S
    emb = emb_table[char_idx.reshape(N, T)]
    pooled = []
    for K, w, b in zip(kernel_sizes, conv_ws, conv_bs):
        C = w.shape[0]
        w_flat = jnp.transpose(w[:, 0, :, :], (1, 2, 0)).reshape(K * D, C)
        pad = K - 1
        emb_pad = jnp.pad(emb, ((0, 0), (pad, pad), (0, 0)))
        T_out = T + K - 1
        cols = []
        for t in range(T_out):
            win = emb_pad[:, t:t + K, :].reshape(N, K * D)
            cols.append(jnp.dot(win, w_flat,
                                precision=jax.lax.Precision.HIGHEST) + b[None, :])
        conv = jnp.stack(cols, axis=1)                   # (N, T_out, C)
        conv = jnp.maximum(conv, 0.0)
        pooled.append(jnp.max(conv, axis=1))             # (N, C)
    return jnp.concatenate(pooled, axis=1).reshape(B, S, -1)


if __name__ == "__main__":
    # Module config (small, consistent with the PyTorch __init__)
    char_vocab_size = 20
    char_dims = 16
    out_channels = 8
    kernel_sizes = [2, 3]
    padding_idx = 0

    key = jax.random.PRNGKey(0)
    k_emb, k_w, k_idx, k_idx2 = jax.random.split(key, 4)

    emb_table = jax.random.normal(k_emb, (char_vocab_size, char_dims),
                                  dtype=jnp.float32)
    emb_table = emb_table.at[padding_idx].set(0.0)       # padding_idx row = 0

    conv_ws, conv_bs = [], []
    wkeys = jax.random.split(k_w, 2 * len(kernel_sizes))
    for i, K in enumerate(kernel_sizes):
        conv_ws.append(0.1 * jax.random.normal(
            wkeys[2 * i], (out_channels, 1, K, char_dims), dtype=jnp.float32))
        conv_bs.append(0.1 * jax.random.normal(
            wkeys[2 * i + 1], (out_channels,), dtype=jnp.float32))

    # --- primary check: (batch=2, sent=8, chars=8), single padded 256-row block
    B, S, T = 2, 8, 8
    char_idx = jax.random.randint(k_idx, (B, S, T), 0, char_vocab_size,
                                  dtype=jnp.int32)
    out = char_cnn_forward(char_idx, emb_table, conv_ws, conv_bs, kernel_sizes,
                           block_n=256)
    out = jax.block_until_ready(out)
    ref = _reference_forward(char_idx, emb_table, conv_ws, conv_bs, kernel_sizes)
    assert out.shape == (B, S, out_channels * len(kernel_sizes)), out.shape
    np.testing.assert_allclose(np.asarray(out), np.asarray(ref),
                               rtol=1e-4, atol=1e-5)

    # --- second check: N not a multiple of block_n, multi-step parallel grid
    B2, S2 = 4, 70                                       # N = 280 -> 3 blocks of 128
    char_idx2 = jax.random.randint(k_idx2, (B2, S2, T), 0, char_vocab_size,
                                   dtype=jnp.int32)
    out2 = jax.block_until_ready(
        char_cnn_forward(char_idx2, emb_table, conv_ws, conv_bs, kernel_sizes,
                         block_n=128))
    ref2 = _reference_forward(char_idx2, emb_table, conv_ws, conv_bs, kernel_sizes)
    np.testing.assert_allclose(np.asarray(out2), np.asarray(ref2),
                               rtol=1e-4, atol=1e-5)

    print("KERNEL_OK")
</pallas_src>

<mosaic_0001>
module attributes {stable_mosaic.version = 11 : i64} {
  func.func @_char_cnn_kernel(%arg0: i32, %arg1: memref<256x12xi32, #tpu.memory_space<vmem>>, %arg2: memref<40x8xf32, #tpu.memory_space<vmem>>, %arg3: memref<64x8xf32, #tpu.memory_space<vmem>>, %arg4: memref<1x16xf32, #tpu.memory_space<vmem>>, %arg5: memref<256x16xf32, #tpu.memory_space<vmem>>) attributes {dimension_semantics = [#tpu.dimension_semantics<parallel>], iteration_bounds = array<i64: 1>, scalar_prefetch = 0 : i64, scratch_operands = 0 : i64, tpu.core_type = #tpu.core_type<tc>, window_params = [{transform_indices = @transform_0, window_bounds = array<i64: 256, 12>}, {pipeline_mode = #tpu.pipeline_mode<synchronous>, transform_indices = @transform_1, window_bounds = array<i64: 40, 8>}, {pipeline_mode = #tpu.pipeline_mode<synchronous>, transform_indices = @transform_2, window_bounds = array<i64: 64, 8>}, {pipeline_mode = #tpu.pipeline_mode<synchronous>, transform_indices = @transform_3, window_bounds = array<i64: 1, 16>}, {transform_indices = @transform_4, window_bounds = array<i64: 256, 16>}]} {
    %c0 = arith.constant 0 : index
    %c0_0 = arith.constant 0 : index
    %0 = vector.load %arg1[%c0, %c0_0] : memref<256x12xi32, #tpu.memory_space<vmem>>, vector<256x12xi32>
    %c0_1 = arith.constant 0 : index
    %c0_2 = arith.constant 0 : index
    %1 = vector.load %arg2[%c0_1, %c0_2] : memref<40x8xf32, #tpu.memory_space<vmem>>, vector<40x8xf32>
    %2 = tpu.iota {dimensions = array<i32: 1>} : vector<256x40xi32>
    %3 = vector.extract_strided_slice %0 {offsets = [0, 1], sizes = [256, 1], strides = [1, 1]} : vector<256x12xi32> to vector<256x1xi32>
    %c0_i32 = arith.constant 0 : i32
    %4 = vector.broadcast %c0_i32 : i32 to vector<256x1xi32>
    %5 = arith.addi %3, %4 : vector<256x1xi32>
    %6 = vector.broadcast %5 : vector<256x1xi32> to vector<256x40xi32>
    %7 = arith.cmpi eq, %2, %6 : vector<256x40xi32>
    %8 = vector.extract_strided_slice %0 {offsets = [0, 2], sizes = [256, 1], strides = [1, 1]} : vector<256x12xi32> to vector<256x1xi32>
    %c20_i32 = arith.constant 20 : i32
    %9 = vector.broadcast %c20_i32 : i32 to vector<256x1xi32>
    %10 = arith.addi %8, %9 : vector<256x1xi32>
    %11 = vector.broadcast %10 : vector<256x1xi32> to vector<256x40xi32>
    %12 = arith.cmpi eq, %2, %11 : vector<256x40xi32>
    %13 = arith.ori %7, %12 : vector<256x40xi1>
    %14 = arith.extui %13 : vector<256x40xi1> to vector<256x40xi32>
    %15 = arith.sitofp %14 : vector<256x40xi32> to vector<256x40xf32>
    %cst = arith.constant dense<0.000000e+00> : vector<256x8xf32>
    %16 = tpu.matmul %15, %1, %cst {dimension_numbers = #tpu.dot_dimension_numbers<[1], [0], [0], [1], [0, 0, 1, 1], [], []>} : vector<256x40xf32>, vector<40x8xf32>, vector<256x8xf32> -> vector<256x8xf32>
    %17 = vector.extract_strided_slice %0 {offsets = [0, 2], sizes = [256, 1], strides = [1, 1]} : vector<256x12xi32> to vector<256x1xi32>
    %c0_i32_3 = arith.constant 0 : i32
    %18 = vector.broadcast %c0_i32_3 : i32 to vector<256x1xi32>
    %19 = arith.addi %17, %18 : vector<256x1xi32>
    %20 = vector.broadcast %19 : vector<256x1xi32> to vector<256x40xi32>
    %21 = arith.cmpi eq, %2, %20 : vector<256x40xi32>
    %22 = vector.extract_strided_slice %0 {offsets = [0, 3], sizes = [256, 1], strides = [1, 1]} : vector<256x12xi32> to vector<256x1xi32>
    %c20_i32_4 = arith.constant 20 : i32
    %23 = vector.broadcast %c20_i32_4 : i32 to vector<256x1xi32>
    %24 = arith.addi %22, %23 : vector<256x1xi32>
    %25 = vector.broadcast %24 : vector<256x1xi32> to vector<256x40xi32>
    %26 = arith.cmpi eq, %2, %25 : vector<256x40xi32>
    %27 = arith.ori %21, %26 : vector<256x40xi1>
    %28 = arith.extui %27 : vector<256x40xi1> to vector<256x40xi32>
    %29 = arith.sitofp %28 : vector<256x40xi32> to vector<256x40xf32>
    %cst_5 = arith.constant dense<0.000000e+00> : vector<256x8xf32>
    %30 = tpu.matmul %29, %1, %cst_5 {dimension_numbers = #tpu.dot_dimension_numbers<[1], [0], [0], [1], [0, 0, 1, 1], [], []>} : vector<256x40xf32>, vector<40x8xf32>, vector<256x8xf32> -> vector<256x8xf32>
    %31 = arith.maximumf %16, %30 : vector<256x8xf32>
    %32 = vector.extract_strided_slice %0 {offsets = [0, 3], sizes = [256, 1], strides = [1, 1]} : vector<256x12xi32> to vector<256x1xi32>
    %c0_i32_6 = arith.constant 0 : i32
    %33 = vector.broadcast %c0_i32_6 : i32 to vector<256x1xi32>
    %34 = arith.addi %32, %33 : vector<256x1xi32>
    %35 = vector.broadcast %34 : vector<256x1xi32> to vector<256x40xi32>
    %36 = arith.cmpi eq, %2, %35 : vector<256x40xi32>
    %37 = vector.extract_strided_slice %0 {offsets = [0, 4], sizes = [256, 1], strides = [1, 1]} : vector<256x12xi32> to vector<256x1xi32>
    %c20_i32_7 = arith.constant 20 : i32
    %38 = vector.broadcast %c20_i32_7 : i32 to vector<256x1xi32>
    %39 = arith.addi %37, %38 : vector<256x1xi32>
    %40 = vector.broadcast %39 : vector<256x1xi32> to vector<256x40xi32>
    %41 = arith.cmpi eq, %2, %40 : vector<256x40xi32>
    %42 = arith.ori %36, %41 : vector<256x40xi1>
    %43 = arith.extui %42 : vector<256x40xi1> to vector<256x40xi32>
    %44 = arith.sitofp %43 : vector<256x40xi32> to vector<256x40xf32>
    %cst_8 = arith.constant dense<0.000000e+00> : vector<256x8xf32>
    %45 = tpu.matmul %44, %1, %cst_8 {dimension_numbers = #tpu.dot_dimension_numbers<[1], [0], [0], [1], [0, 0, 1, 1], [], []>} : vector<256x40xf32>, vector<40x8xf32>, vector<256x8xf32> -> vector<256x8xf32>
    %46 = arith.maximumf %31, %45 : vector<256x8xf32>
    %47 = vector.extract_strided_slice %0 {offsets = [0, 4], sizes = [256, 1], strides = [1, 1]} : vector<256x12xi32> to vector<256x1xi32>
    %c0_i32_9 = arith.constant 0 : i32
    %48 = vector.broadcast %c0_i32_9 : i32 to vector<256x1xi32>
    %49 = arith.addi %47, %48 : vector<256x1xi32>
    %50 = vector.broadcast %49 : vector<256x1xi32> to vector<256x40xi32>
    %51 = arith.cmpi eq, %2, %50 : vector<256x40xi32>
    %52 = vector.extract_strided_slice %0 {offsets = [0, 5], sizes = [256, 1], strides = [1, 1]} : vector<256x12xi32> to vector<256x1xi32>
    %c20_i32_10 = arith.constant 20 : i32
    %53 = vector.broadcast %c20_i32_10 : i32 to vector<256x1xi32>
    %54 = arith.addi %52, %53 : vector<256x1xi32>
    %55 = vector.broadcast %54 : vector<256x1xi32> to vector<256x40xi32>
    %56 = arith.cmpi eq, %2, %55 : vector<256x40xi32>
    %57 = arith.ori %51, %56 : vector<256x40xi1>
    %58 = arith.extui %57 : vector<256x40xi1> to vector<256x40xi32>
    %59 = arith.sitofp %58 : vector<256x40xi32> to vector<256x40xf32>
    %cst_11 = arith.constant dense<0.000000e+00> : vector<256x8xf32>
    %60 = tpu.matmul %59, %1, %cst_11 {dimension_numbers = #tpu.dot_dimension_numbers<[1], [0], [0], [1], [0, 0, 1, 1], [], []>} : vector<256x40xf32>, vector<40x8xf32>, vector<256x8xf32> -> vector<256x8xf32>
    %61 = arith.maximumf %46, %60 : vector<256x8xf32>
    %62 = vector.extract_strided_slice %0 {offsets = [0, 5], sizes = [256, 1], strides = [1, 1]} : vector<256x12xi32> to vector<256x1xi32>
    %c0_i32_12 = arith.constant 0 : i32
    %63 = vector.broadcast %c0_i32_12 : i32 to vector<256x1xi32>
    %64 = arith.addi %62, %63 : vector<256x1xi32>
    %65 = vector.broadcast %64 : vector<256x1xi32> to vector<256x40xi32>
    %66 = arith.cmpi eq, %2, %65 : vector<256x40xi32>
    %67 = vector.extract_strided_slice %0 {offsets = [0, 6], sizes = [256, 1], strides = [1, 1]} : vector<256x12xi32> to vector<256x1xi32>
    %c20_i32_13 = arith.constant 20 : i32
    %68 = vector.broadcast %c20_i32_13 : i32 to vector<256x1xi32>
    %69 = arith.addi %67, %68 : vector<256x1xi32>
    %70 = vector.broadcast %69 : vector<256x1xi32> to vector<256x40xi32>
    %71 = arith.cmpi eq, %2, %70 : vector<256x40xi32>
    %72 = arith.ori %66, %71 : vector<256x40xi1>
    %73 = arith.extui %72 : vector<256x40xi1> to vector<256x40xi32>
    %74 = arith.sitofp %73 : vector<256x40xi32> to vector<256x40xf32>
    %cst_14 = arith.constant dense<0.000000e+00> : vector<256x8xf32>
    %75 = tpu.matmul %74, %1, %cst_14 {dimension_numbers = #tpu.dot_dimension_numbers<[1], [0], [0], [1], [0, 0, 1, 1], [], []>} : vector<256x40xf32>, vector<40x8xf32>, vector<256x8xf32> -> vector<256x8xf32>
    %76 = arith.maximumf %61, %75 : vector<256x8xf32>
    %77 = vector.extract_strided_slice %0 {offsets = [0, 6], sizes = [256, 1], strides = [1, 1]} : vector<256x12xi32> to vector<256x1xi32>
    %c0_i32_15 = arith.constant 0 : i32
    %78 = vector.broadcast %c0_i32_15 : i32 to vector<256x1xi32>
    %79 = arith.addi %77, %78 : vector<256x1xi32>
    %80 = vector.broadcast %79 : vector<256x1xi32> to vector<256x40xi32>
    %81 = arith.cmpi eq, %2, %80 : vector<256x40xi32>
    %82 = vector.extract_strided_slice %0 {offsets = [0, 7], sizes = [256, 1], strides = [1, 1]} : vector<256x12xi32> to vector<256x1xi32>
    %c20_i32_16 = arith.constant 20 : i32
    %83 = vector.broadcast %c20_i32_16 : i32 to vector<256x1xi32>
    %84 = arith.addi %82, %83 : vector<256x1xi32>
    %85 = vector.broadcast %84 : vector<256x1xi32> to vector<256x40xi32>
    %86 = arith.cmpi eq, %2, %85 : vector<256x40xi32>
    %87 = arith.ori %81, %86 : vector<256x40xi1>
    %88 = arith.extui %87 : vector<256x40xi1> to vector<256x40xi32>
    %89 = arith.sitofp %88 : vector<256x40xi32> to vector<256x40xf32>
    %cst_17 = arith.constant dense<0.000000e+00> : vector<256x8xf32>
    %90 = tpu.matmul %89, %1, %cst_17 {dimension_numbers = #tpu.dot_dimension_numbers<[1], [0], [0], [1], [0, 0, 1, 1], [], []>} : vector<256x40xf32>, vector<40x8xf32>, vector<256x8xf32> -> vector<256x8xf32>
    %91 = arith.maximumf %76, %90 : vector<256x8xf32>
    %92 = vector.extract_strided_slice %0 {offsets = [0, 7], sizes = [256, 1], strides = [1, 1]} : vector<256x12xi32> to vector<256x1xi32>
    %c0_i32_18 = arith.constant 0 : i32
    %93 = vector.broadcast %c0_i32_18 : i32 to vector<256x1xi32>
    %94 = arith.addi %92, %93 : vector<256x1xi32>
    %95 = vector.broadcast %94 : vector<256x1xi32> to vector<256x40xi32>
    %96 = arith.cmpi eq, %2, %95 : vector<256x40xi32>
    %97 = vector.extract_strided_slice %0 {offsets = [0, 8], sizes = [256, 1], strides = [1, 1]} : vector<256x12xi32> to vector<256x1xi32>
    %c20_i32_19 = arith.constant 20 : i32
    %98 = vector.broadcast %c20_i32_19 : i32 to vector<256x1xi32>
    %99 = arith.addi %97, %98 : vector<256x1xi32>
    %100 = vector.broadcast %99 : vector<256x1xi32> to vector<256x40xi32>
    %101 = arith.cmpi eq, %2, %100 : vector<256x40xi32>
    %102 = arith.ori %96, %101 : vector<256x40xi1>
    %103 = arith.extui %102 : vector<256x40xi1> to vector<256x40xi32>
    %104 = arith.sitofp %103 : vector<256x40xi32> to vector<256x40xf32>
    %cst_20 = arith.constant dense<0.000000e+00> : vector<256x8xf32>
    %105 = tpu.matmul %104, %1, %cst_20 {dimension_numbers = #tpu.dot_dimension_numbers<[1], [0], [0], [1], [0, 0, 1, 1], [], []>} : vector<256x40xf32>, vector<40x8xf32>, vector<256x8xf32> -> vector<256x8xf32>
    %106 = arith.maximumf %91, %105 : vector<256x8xf32>
    %107 = vector.extract_strided_slice %0 {offsets = [0, 8], sizes = [256, 1], strides = [1, 1]} : vector<256x12xi32> to vector<256x1xi32>
    %c0_i32_21 = arith.constant 0 : i32
    %108 = vector.broadcast %c0_i32_21 : i32 to vector<256x1xi32>
    %109 = arith.addi %107, %108 : vector<256x1xi32>
    %110 = vector.broadcast %109 : vector<256x1xi32> to vector<256x40xi32>
    %111 = arith.cmpi eq, %2, %110 : vector<256x40xi32>
    %112 = vector.extract_strided_slice %0 {offsets = [0, 9], sizes = [256, 1], strides = [1, 1]} : vector<256x12xi32> to vector<256x1xi32>
    %c20_i32_22 = arith.constant 20 : i32
    %113 = vector.broadcast %c20_i32_22 : i32 to vector<256x1xi32>
    %114 = arith.addi %112, %113 : vector<256x1xi32>
    %115 = vector.broadcast %114 : vector<256x1xi32> to vector<256x40xi32>
    %116 = arith.cmpi eq, %2, %115 : vector<256x40xi32>
    %117 = arith.ori %111, %116 : vector<256x40xi1>
    %118 = arith.extui %117 : vector<256x40xi1> to vector<256x40xi32>
    %119 = arith.sitofp %118 : vector<256x40xi32> to vector<256x40xf32>
    %cst_23 = arith.constant dense<0.000000e+00> : vector<256x8xf32>
    %120 = tpu.matmul %119, %1, %cst_23 {dimension_numbers = #tpu.dot_dimension_numbers<[1], [0], [0], [1], [0, 0, 1, 1], [], []>} : vector<256x40xf32>, vector<40x8xf32>, vector<256x8xf32> -> vector<256x8xf32>
    %121 = arith.maximumf %106, %120 : vector<256x8xf32>
    %122 = vector.extract_strided_slice %0 {offsets = [0, 9], sizes = [256, 1], strides = [1, 1]} : vector<256x12xi32> to vector<256x1xi32>
    %c0_i32_24 = arith.constant 0 : i32
    %123 = vector.broadcast %c0_i32_24 : i32 to vector<256x1xi32>
    %124 = arith.addi %122, %123 : vector<256x1xi32>
    %125 = vector.broadcast %124 : vector<256x1xi32> to vector<256x40xi32>
    %126 = arith.cmpi eq, %2, %125 : vector<256x40xi32>
    %127 = vector.extract_strided_slice %0 {offsets = [0, 10], sizes = [256, 1], strides = [1, 1]} : vector<256x12xi32> to vector<256x1xi32>
    %c20_i32_25 = arith.constant 20 : i32
    %128 = vector.broadcast %c20_i32_25 : i32 to vector<256x1xi32>
    %129 = arith.addi %127, %128 : vector<256x1xi32>
    %130 = vector.broadcast %129 : vector<256x1xi32> to vector<256x40xi32>
    %131 = arith.cmpi eq, %2, %130 : vector<256x40xi32>
    %132 = arith.ori %126, %131 : vector<256x40xi1>
    %133 = arith.extui %132 : vector<256x40xi1> to vector<256x40xi32>
    %134 = arith.sitofp %133 : vector<256x40xi32> to vector<256x40xf32>
    %cst_26 = arith.constant dense<0.000000e+00> : vector<256x8xf32>
    %135 = tpu.matmul %134, %1, %cst_26 {dimension_numbers = #tpu.dot_dimension_numbers<[1], [0], [0], [1], [0, 0, 1, 1], [], []>} : vector<256x40xf32>, vector<40x8xf32>, vector<256x8xf32> -> vector<256x8xf32>
    %136 = arith.maximumf %121, %135 : vector<256x8xf32>
    %c0_27 = arith.constant 0 : index
    %c0_28 = arith.constant 0 : index
    %137 = vector.load %arg3[%c0_27, %c0_28] : memref<64x8xf32, #tpu.memory_space<vmem>>, vector<64x8xf32>
    %138 = tpu.iota {dimensions = array<i32: 1>} : vector<256x64xi32>
    %139 = vector.extract_strided_slice %0 {offsets = [0, 0], sizes = [256, 1], strides = [1, 1]} : vector<256x12xi32> to vector<256x1xi32>
    %c0_i32_29 = arith.constant 0 : i32
    %140 = vector.broadcast %c0_i32_29 : i32 to vector<256x1xi32>
    %141 = arith.addi %139, %140 : vector<256x1xi32>
    %142 = vector.broadcast %141 : vector<256x1xi32> to vector<256x64xi32>
    %143 = arith.cmpi eq, %138, %142 : vector<256x64xi32>
    %144 = vector.extract_strided_slice %0 {offsets = [0, 1], sizes = [256, 1], strides = [1, 1]} : vector<256x12xi32> to vector<256x1xi32>
    %c20_i32_30 = arith.constant 20 : i32
    %145 = vector.broadcast %c20_i32_30 : i32 to vector<256x1xi32>
    %146 = arith.addi %144, %145 : vector<256x1xi32>
    %147 = vector.broadcast %146 : vector<256x1xi32> to vector<256x64xi32>
    %148 = arith.cmpi eq, %138, %147 : vector<256x64xi32>
    %149 = arith.ori %143, %148 : vector<256x64xi1>
    %150 = vector.extract_strided_slice %0 {offsets = [0, 2], sizes = [256, 1], strides = [1, 1]} : vector<256x12xi32> to vector<256x1xi32>
    %c40_i32 = arith.constant 40 : i32
    %151 = vector.broadcast %c40_i32 : i32 to vector<256x1xi32>
    %152 = arith.addi %150, %151 : vector<256x1xi32>
    %153 = vector.broadcast %152 : vector<256x1xi32> to vector<256x64xi32>
    %154 = arith.cmpi eq, %138, %153 : vector<256x64xi32>
    %155 = arith.ori %149, %154 : vector<256x64xi1>
    %156 = arith.extui %155 : vector<256x64xi1> to vector<256x64xi32>
    %157 = arith.sitofp %156 : vector<256x64xi32> to vector<256x64xf32>
    %cst_31 = arith.constant dense<0.000000e+00> : vector<256x8xf32>
    %158 = tpu.matmul %157, %137, %cst_31 {dimension_numbers = #tpu.dot_dimension_numbers<[1], [0], [0], [1], [0, 0, 1, 1], [], []>} : vector<256x64xf32>, vector<64x8xf32>, vector<256x8xf32> -> vector<256x8xf32>
    %159 = vector.extract_strided_slice %0 {offsets = [0, 1], sizes = [256, 1], strides = [1, 1]} : vector<256x12xi32> to vector<256x1xi32>
    %c0_i32_32 = arith.constant 0 : i32
    %160 = vector.broadcast %c0_i32_32 : i32 to vector<256x1xi32>
    %161 = arith.addi %159, %160 : vector<256x1xi32>
    %162 = vector.broadcast %161 : vector<256x1xi32> to vector<256x64xi32>
    %163 = arith.cmpi eq, %138, %162 : vector<256x64xi32>
    %164 = vector.extract_strided_slice %0 {offsets = [0, 2], sizes = [256, 1], strides = [1, 1]} : vector<256x12xi32> to vector<256x1xi32>
    %c20_i32_33 = arith.constant 20 : i32
    %165 = vector.broadcast %c20_i32_33 : i32 to vector<256x1xi32>
    %166 = arith.addi %164, %165 : vector<256x1xi32>
    %167 = vector.broadcast %166 : vector<256x1xi32> to vector<256x64xi32>
    %168 = arith.cmpi eq, %138, %167 : vector<256x64xi32>
    %169 = arith.ori %163, %168 : vector<256x64xi1>
    %170 = vector.extract_strided_slice %0 {offsets = [0, 3], sizes = [256, 1], strides = [1, 1]} : vector<256x12xi32> to vector<256x1xi32>
    %c40_i32_34 = arith.constant 40 : i32
    %171 = vector.broadcast %c40_i32_34 : i32 to vector<256x1xi32>
    %172 = arith.addi %170, %171 : vector<256x1xi32>
    %173 = vector.broadcast %172 : vector<256x1xi32> to vector<256x64xi32>
    %174 = arith.cmpi eq, %138, %173 : vector<256x64xi32>
    %175 = arith.ori %169, %174 : vector<256x64xi1>
    %176 = arith.extui %175 : vector<256x64xi1> to vector<256x64xi32>
    %177 = arith.sitofp %176 : vector<256x64xi32> to vector<256x64xf32>
    %cst_35 = arith.constant dense<0.000000e+00> : vector<256x8xf32>
    %178 = tpu.matmul %177, %137, %cst_35 {dimension_numbers = #tpu.dot_dimension_numbers<[1], [0], [0], [1], [0, 0, 1, 1], [], []>} : vector<256x64xf32>, vector<64x8xf32>, vector<256x8xf32> -> vector<256x8xf32>
    %179 = arith.maximumf %158, %178 : vector<256x8xf32>
    %180 = vector.extract_strided_slice %0 {offsets = [0, 2], sizes = [256, 1], strides = [1, 1]} : vector<256x12xi32> to vector<256x1xi32>
    %c0_i32_36 = arith.constant 0 : i32
    %181 = vector.broadcast %c0_i32_36 : i32 to vector<256x1xi32>
    %182 = arith.addi %180, %181 : vector<256x1xi32>
    %183 = vector.broadcast %182 : vector<256x1xi32> to vector<256x64xi32>
    %184 = arith.cmpi eq, %138, %183 : vector<256x64xi32>
    %185 = vector.extract_strided_slice %0 {offsets = [0, 3], sizes = [256, 1], strides = [1, 1]} : vector<256x12xi32> to vector<256x1xi32>
    %c20_i32_37 = arith.constant 20 : i32
    %186 = vector.broadcast %c20_i32_37 : i32 to vector<256x1xi32>
    %187 = arith.addi %185, %186 : vector<256x1xi32>
    %188 = vector.broadcast %187 : vector<256x1xi32> to vector<256x64xi32>
    %189 = arith.cmpi eq, %138, %188 : vector<256x64xi32>
    %190 = arith.ori %184, %189 : vector<256x64xi1>
    %191 = vector.extract_strided_slice %0 {offsets = [0, 4], sizes = [256, 1], strides = [1, 1]} : vector<256x12xi32> to vector<256x1xi32>
    %c40_i32_38 = arith.constant 40 : i32
    %192 = vector.broadcast %c40_i32_38 : i32 to vector<256x1xi32>
    %193 = arith.addi %191, %192 : vector<256x1xi32>
    %194 = vector.broadcast %193 : vector<256x1xi32> to vector<256x64xi32>
    %195 = arith.cmpi eq, %138, %194 : vector<256x64xi32>
    %196 = arith.ori %190, %195 : vector<256x64xi1>
    %197 = arith.extui %196 : vector<256x64xi1> to vector<256x64xi32>
    %198 = arith.sitofp %197 : vector<256x64xi32> to vector<256x64xf32>
    %cst_39 = arith.constant dense<0.000000e+00> : vector<256x8xf32>
    %199 = tpu.matmul %198, %137, %cst_39 {dimension_numbers = #tpu.dot_dimension_numbers<[1], [0], [0], [1], [0, 0, 1, 1], [], []>} : vector<256x64xf32>, vector<64x8xf32>, vector<256x8xf32> -> vector<256x8xf32>
    %200 = arith.maximumf %179, %199 : vector<256x8xf32>
    %201 = vector.extract_strided_slice %0 {offsets = [0, 3], sizes = [256, 1], strides = [1, 1]} : vector<256x12xi32> to vector<256x1xi32>
    %c0_i32_40 = arith.constant 0 : i32
    %202 = vector.broadcast %c0_i32_40 : i32 to vector<256x1xi32>
    %203 = arith.addi %201, %202 : vector<256x1xi32>
    %204 = vector.broadcast %203 : vector<256x1xi32> to vector<256x64xi32>
    %205 = arith.cmpi eq, %138, %204 : vector<256x64xi32>
    %206 = vector.extract_strided_slice %0 {offsets = [0, 4], sizes = [256, 1], strides = [1, 1]} : vector<256x12xi32> to vector<256x1xi32>
    %c20_i32_41 = arith.constant 20 : i32
    %207 = vector.broadcast %c20_i32_41 : i32 to vector<256x1xi32>
    %208 = arith.addi %206, %207 : vector<256x1xi32>
    %209 = vector.broadcast %208 : vector<256x1xi32> to vector<256x64xi32>
    %210 = arith.cmpi eq, %138, %209 : vector<256x64xi32>
    %211 = arith.ori %205, %210 : vector<256x64xi1>
    %212 = vector.extract_strided_slice %0 {offsets = [0, 5], sizes = [256, 1], strides = [1, 1]} : vector<256x12xi32> to vector<256x1xi32>
    %c40_i32_42 = arith.constant 40 : i32
    %213 = vector.broadcast %c40_i32_42 : i32 to vector<256x1xi32>
    %214 = arith.addi %212, %213 : vector<256x1xi32>
    %215 = vector.broadcast %214 : vector<256x1xi32> to vector<256x64xi32>
    %216 = arith.cmpi eq, %138, %215 : vector<256x64xi32>
    %217 = arith.ori %211, %216 : vector<256x64xi1>
    %218 = arith.extui %217 : vector<256x64xi1> to vector<256x64xi32>
    %219 = arith.sitofp %218 : vector<256x64xi32> to vector<256x64xf32>
    %cst_43 = arith.constant dense<0.000000e+00> : vector<256x8xf32>
    %220 = tpu.matmul %219, %137, %cst_43 {dimension_numbers = #tpu.dot_dimension_numbers<[1], [0], [0], [1], [0, 0, 1, 1], [], []>} : vector<256x64xf32>, vector<64x8xf32>, vector<256x8xf32> -> vector<256x8xf32>
    %221 = arith.maximumf %200, %220 : vector<256x8xf32>
    %222 = vector.extract_strided_slice %0 {offsets = [0, 4], sizes = [256, 1], strides = [1, 1]} : vector<256x12xi32> to vector<256x1xi32>
    %c0_i32_44 = arith.constant 0 : i32
    %223 = vector.broadcast %c0_i32_44 : i32 to vector<256x1xi32>
    %224 = arith.addi %222, %223 : vector<256x1xi32>
    %225 = vector.broadcast %224 : vector<256x1xi32> to vector<256x64xi32>
    %226 = arith.cmpi eq, %138, %225 : vector<256x64xi32>
    %227 = vector.extract_strided_slice %0 {offsets = [0, 5], sizes = [256, 1], strides = [1, 1]} : vector<256x12xi32> to vector<256x1xi32>
    %c20_i32_45 = arith.constant 20 : i32
    %228 = vector.broadcast %c20_i32_45 : i32 to vector<256x1xi32>
    %229 = arith.addi %227, %228 : vector<256x1xi32>
    %230 = vector.broadcast %229 : vector<256x1xi32> to vector<256x64xi32>
    %231 = arith.cmpi eq, %138, %230 : vector<256x64xi32>
    %232 = arith.ori %226, %231 : vector<256x64xi1>
    %233 = vector.extract_strided_slice %0 {offsets = [0, 6], sizes = [256, 1], strides = [1, 1]} : vector<256x12xi32> to vector<256x1xi32>
    %c40_i32_46 = arith.constant 40 : i32
    %234 = vector.broadcast %c40_i32_46 : i32 to vector<256x1xi32>
    %235 = arith.addi %233, %234 : vector<256x1xi32>
    %236 = vector.broadcast %235 : vector<256x1xi32> to vector<256x64xi32>
    %237 = arith.cmpi eq, %138, %236 : vector<256x64xi32>
    %238 = arith.ori %232, %237 : vector<256x64xi1>
    %239 = arith.extui %238 : vector<256x64xi1> to vector<256x64xi32>
    %240 = arith.sitofp %239 : vector<256x64xi32> to vector<256x64xf32>
    %cst_47 = arith.constant dense<0.000000e+00> : vector<256x8xf32>
    %241 = tpu.matmul %240, %137, %cst_47 {dimension_numbers = #tpu.dot_dimension_numbers<[1], [0], [0], [1], [0, 0, 1, 1], [], []>} : vector<256x64xf32>, vector<64x8xf32>, vector<256x8xf32> -> vector<256x8xf32>
    %242 = arith.maximumf %221, %241 : vector<256x8xf32>
    %243 = vector.extract_strided_slice %0 {offsets = [0, 5], sizes = [256, 1], strides = [1, 1]} : vector<256x12xi32> to vector<256x1xi32>
    %c0_i32_48 = arith.constant 0 : i32
    %244 = vector.broadcast %c0_i32_48 : i32 to vector<256x1xi32>
    %245 = arith.addi %243, %244 : vector<256x1xi32>
    %246 = vector.broadcast %245 : vector<256x1xi32> to vector<256x64xi32>
    %247 = arith.cmpi eq, %138, %246 : vector<256x64xi32>
    %248 = vector.extract_strided_slice %0 {offsets = [0, 6], sizes = [256, 1], strides = [1, 1]} : vector<256x12xi32> to vector<256x1xi32>
    %c20_i32_49 = arith.constant 20 : i32
    %249 = vector.broadcast %c20_i32_49 : i32 to vector<256x1xi32>
    %250 = arith.addi %248, %249 : vector<256x1xi32>
    %251 = vector.broadcast %250 : vector<256x1xi32> to vector<256x64xi32>
    %252 = arith.cmpi eq, %138, %251 : vector<256x64xi32>
    %253 = arith.ori %247, %252 : vector<256x64xi1>
    %254 = vector.extract_strided_slice %0 {offsets = [0, 7], sizes = [256, 1], strides = [1, 1]} : vector<256x12xi32> to vector<256x1xi32>
    %c40_i32_50 = arith.constant 40 : i32
    %255 = vector.broadcast %c40_i32_50 : i32 to vector<256x1xi32>
    %256 = arith.addi %254, %255 : vector<256x1xi32>
    %257 = vector.broadcast %256 : vector<256x1xi32> to vector<256x64xi32>
    %258 = arith.cmpi eq, %138, %257 : vector<256x64xi32>
    %259 = arith.ori %253, %258 : vector<256x64xi1>
    %260 = arith.extui %259 : vector<256x64xi1> to vector<256x64xi32>
    %261 = arith.sitofp %260 : vector<256x64xi32> to vector<256x64xf32>
    %cst_51 = arith.constant dense<0.000000e+00> : vector<256x8xf32>
    %262 = tpu.matmul %261, %137, %cst_51 {dimension_numbers = #tpu.dot_dimension_numbers<[1], [0], [0], [1], [0, 0, 1, 1], [], []>} : vector<256x64xf32>, vector<64x8xf32>, vector<256x8xf32> -> vector<256x8xf32>
    %263 = arith.maximumf %242, %262 : vector<256x8xf32>
    %264 = vector.extract_strided_slice %0 {offsets = [0, 6], sizes = [256, 1], strides = [1, 1]} : vector<256x12xi32> to vector<256x1xi32>
    %c0_i32_52 = arith.constant 0 : i32
    %265 = vector.broadcast %c0_i32_52 : i32 to vector<256x1xi32>
    %266 = arith.addi %264, %265 : vector<256x1xi32>
    %267 = vector.broadcast %266 : vector<256x1xi32> to vector<256x64xi32>
    %268 = arith.cmpi eq, %138, %267 : vector<256x64xi32>
    %269 = vector.extract_strided_slice %0 {offsets = [0, 7], sizes = [256, 1], strides = [1, 1]} : vector<256x12xi32> to vector<256x1xi32>
    %c20_i32_53 = arith.constant 20 : i32
    %270 = vector.broadcast %c20_i32_53 : i32 to vector<256x1xi32>
    %271 = arith.addi %269, %270 : vector<256x1xi32>
    %272 = vector.broadcast %271 : vector<256x1xi32> to vector<256x64xi32>
    %273 = arith.cmpi eq, %138, %272 : vector<256x64xi32>
    %274 = arith.ori %268, %273 : vector<256x64xi1>
    %275 = vector.extract_strided_slice %0 {offsets = [0, 8], sizes = [256, 1], strides = [1, 1]} : vector<256x12xi32> to vector<256x1xi32>
    %c40_i32_54 = arith.constant 40 : i32
    %276 = vector.broadcast %c40_i32_54 : i32 to vector<256x1xi32>
    %277 = arith.addi %275, %276 : vector<256x1xi32>
    %278 = vector.broadcast %277 : vector<256x1xi32> to vector<256x64xi32>
    %279 = arith.cmpi eq, %138, %278 : vector<256x64xi32>
    %280 = arith.ori %274, %279 : vector<256x64xi1>
    %281 = arith.extui %280 : vector<256x64xi1> to vector<256x64xi32>
    %282 = arith.sitofp %281 : vector<256x64xi32> to vector<256x64xf32>
    %cst_55 = arith.constant dense<0.000000e+00> : vector<256x8xf32>
    %283 = tpu.matmul %282, %137, %cst_55 {dimension_numbers = #tpu.dot_dimension_numbers<[1], [0], [0], [1], [0, 0, 1, 1], [], []>} : vector<256x64xf32>, vector<64x8xf32>, vector<256x8xf32> -> vector<256x8xf32>
    %284 = arith.maximumf %263, %283 : vector<256x8xf32>
    %285 = vector.extract_strided_slice %0 {offsets = [0, 7], sizes = [256, 1], strides = [1, 1]} : vector<256x12xi32> to vector<256x1xi32>
    %c0_i32_56 = arith.constant 0 : i32
    %286 = vector.broadcast %c0_i32_56 : i32 to vector<256x1xi32>
    %287 = arith.addi %285, %286 : vector<256x1xi32>
    %288 = vector.broadcast %287 : vector<256x1xi32> to vector<256x64xi32>
    %289 = arith.cmpi eq, %138, %288 : vector<256x64xi32>
    %290 = vector.extract_strided_slice %0 {offsets = [0, 8], sizes = [256, 1], strides = [1, 1]} : vector<256x12xi32> to vector<256x1xi32>
    %c20_i32_57 = arith.constant 20 : i32
    %291 = vector.broadcast %c20_i32_57 : i32 to vector<256x1xi32>
    %292 = arith.addi %290, %291 : vector<256x1xi32>
    %293 = vector.broadcast %292 : vector<256x1xi32> to vector<256x64xi32>
    %294 = arith.cmpi eq, %138, %293 : vector<256x64xi32>
    %295 = arith.ori %289, %294 : vector<256x64xi1>
    %296 = vector.extract_strided_slice %0 {offsets = [0, 9], sizes = [256, 1], strides = [1, 1]} : vector<256x12xi32> to vector<256x1xi32>
    %c40_i32_58 = arith.constant 40 : i32
    %297 = vector.broadcast %c40_i32_58 : i32 to vector<256x1xi32>
    %298 = arith.addi %296, %297 : vector<256x1xi32>
    %299 = vector.broadcast %298 : vector<256x1xi32> to vector<256x64xi32>
    %300 = arith.cmpi eq, %138, %299 : vector<256x64xi32>
    %301 = arith.ori %295, %300 : vector<256x64xi1>
    %302 = arith.extui %301 : vector<256x64xi1> to vector<256x64xi32>
    %303 = arith.sitofp %302 : vector<256x64xi32> to vector<256x64xf32>
    %cst_59 = arith.constant dense<0.000000e+00> : vector<256x8xf32>
    %304 = tpu.matmul %303, %137, %cst_59 {dimension_numbers = #tpu.dot_dimension_numbers<[1], [0], [0], [1], [0, 0, 1, 1], [], []>} : vector<256x64xf32>, vector<64x8xf32>, vector<256x8xf32> -> vector<256x8xf32>
    %305 = arith.maximumf %284, %304 : vector<256x8xf32>
    %306 = vector.extract_strided_slice %0 {offsets = [0, 8], sizes = [256, 1], strides = [1, 1]} : vector<256x12xi32> to vector<256x1xi32>
    %c0_i32_60 = arith.constant 0 : i32
    %307 = vector.broadcast %c0_i32_60 : i32 to vector<256x1xi32>
    %308 = arith.addi %306, %307 : vector<256x1xi32>
    %309 = vector.broadcast %308 : vector<256x1xi32> to vector<256x64xi32>
    %310 = arith.cmpi eq, %138, %309 : vector<256x64xi32>
    %311 = vector.extract_strided_slice %0 {offsets = [0, 9], sizes = [256, 1], strides = [1, 1]} : vector<256x12xi32> to vector<256x1xi32>
    %c20_i32_61 = arith.constant 20 : i32
    %312 = vector.broadcast %c20_i32_61 : i32 to vector<256x1xi32>
    %313 = arith.addi %311, %312 : vector<256x1xi32>
    %314 = vector.broadcast %313 : vector<256x1xi32> to vector<256x64xi32>
    %315 = arith.cmpi eq, %138, %314 : vector<256x64xi32>
    %316 = arith.ori %310, %315 : vector<256x64xi1>
    %317 = vector.extract_strided_slice %0 {offsets = [0, 10], sizes = [256, 1], strides = [1, 1]} : vector<256x12xi32> to vector<256x1xi32>
    %c40_i32_62 = arith.constant 40 : i32
    %318 = vector.broadcast %c40_i32_62 : i32 to vector<256x1xi32>
    %319 = arith.addi %317, %318 : vector<256x1xi32>
    %320 = vector.broadcast %319 : vector<256x1xi32> to vector<256x64xi32>
    %321 = arith.cmpi eq, %138, %320 : vector<256x64xi32>
    %322 = arith.ori %316, %321 : vector<256x64xi1>
    %323 = arith.extui %322 : vector<256x64xi1> to vector<256x64xi32>
    %324 = arith.sitofp %323 : vector<256x64xi32> to vector<256x64xf32>
    %cst_63 = arith.constant dense<0.000000e+00> : vector<256x8xf32>
    %325 = tpu.matmul %324, %137, %cst_63 {dimension_numbers = #tpu.dot_dimension_numbers<[1], [0], [0], [1], [0, 0, 1, 1], [], []>} : vector<256x64xf32>, vector<64x8xf32>, vector<256x8xf32> -> vector<256x8xf32>
    %326 = arith.maximumf %305, %325 : vector<256x8xf32>
    %327 = vector.extract_strided_slice %0 {offsets = [0, 9], sizes = [256, 1], strides = [1, 1]} : vector<256x12xi32> to vector<256x1xi32>
    %c0_i32_64 = arith.constant 0 : i32
    %328 = vector.broadcast %c0_i32_64 : i32 to vector<256x1xi32>
    %329 = arith.addi %327, %328 : vector<256x1xi32>
    %330 = vector.broadcast %329 : vector<256x1xi32> to vector<256x64xi32>
    %331 = arith.cmpi eq, %138, %330 : vector<256x64xi32>
    %332 = vector.extract_strided_slice %0 {offsets = [0, 10], sizes = [256, 1], strides = [1, 1]} : vector<256x12xi32> to vector<256x1xi32>
    %c20_i32_65 = arith.constant 20 : i32
    %333 = vector.broadcast %c20_i32_65 : i32 to vector<256x1xi32>
    %334 = arith.addi %332, %333 : vector<256x1xi32>
    %335 = vector.broadcast %334 : vector<256x1xi32> to vector<256x64xi32>
    %336 = arith.cmpi eq, %138, %335 : vector<256x64xi32>
    %337 = arith.ori %331, %336 : vector<256x64xi1>
    %338 = vector.extract_strided_slice %0 {offsets = [0, 11], sizes = [256, 1], strides = [1, 1]} : vector<256x12xi32> to vector<256x1xi32>
    %c40_i32_66 = arith.constant 40 : i32
    %339 = vector.broadcast %c40_i32_66 : i32 to vector<256x1xi32>
    %340 = arith.addi %338, %339 : vector<256x1xi32>
    %341 = vector.broadcast %340 : vector<256x1xi32> to vector<256x64xi32>
    %342 = arith.cmpi eq, %138, %341 : vector<256x64xi32>
    %343 = arith.ori %337, %342 : vector<256x64xi1>
    %344 = arith.extui %343 : vector<256x64xi1> to vector<256x64xi32>
    %345 = arith.sitofp %344 : vector<256x64xi32> to vector<256x64xf32>
    %cst_67 = arith.constant dense<0.000000e+00> : vector<256x8xf32>
    %346 = tpu.matmul %345, %137, %cst_67 {dimension_numbers = #tpu.dot_dimension_numbers<[1], [0], [0], [1], [0, 0, 1, 1], [], []>} : vector<256x64xf32>, vector<64x8xf32>, vector<256x8xf32> -> vector<256x8xf32>
    %347 = arith.maximumf %326, %346 : vector<256x8xf32>
    %348 = tpu.concatenate %136, %347 in 1 : vector<256x8xf32>, vector<256x8xf32> -> vector<256x16xf32>
    %c0_68 = arith.constant 0 : index
    %c0_69 = arith.constant 0 : index
    %349 = vector.load %arg4[%c0_68, %c0_69] : memref<1x16xf32, #tpu.memory_space<vmem>>, vector<1x16xf32>
    %350 = vector.broadcast %349 : vector<1x16xf32> to vector<256x16xf32>
    %351 = arith.addf %348, %350 : vector<256x16xf32>
    %cst_70 = arith.constant 0.000000e+00 : f32
    %352 = vector.broadcast %cst_70 : f32 to vector<256x16xf32>
    %353 = arith.maximumf %351, %352 : vector<256x16xf32>
    %c0_71 = arith.constant 0 : index
    %c0_72 = arith.constant 0 : index
    %354 = vector.load %arg5[%c0_71, %c0_72] : memref<256x16xf32, #tpu.memory_space<vmem>>, vector<256x16xf32>
    tpu.vector_store %arg5[%c0_71, %c0_72], %353 {strides = array<i32>} : memref<256x16xf32, #tpu.memory_space<vmem>>, vector<256x16xf32>,
    return
  }
  func.func @transform_0(%arg0: i32) -> (i32, i32) {
    %c0_i32 = arith.constant 0 : i32
    %c0_i32_0 = arith.constant 0 : i32
    return %arg0, %c0_i32 : i32, i32
  }
  func.func @transform_1(%arg0: i32) -> (i32, i32) {
    %c0_i32 = arith.constant 0 : i32
    %c0_i32_0 = arith.constant 0 : i32
    %c0_i32_1 = arith.constant 0 : i32
    return %c0_i32, %c0_i32_0 : i32, i32
  }
  func.func @transform_2(%arg0: i32) -> (i32, i32) {
    %c0_i32 = arith.constant 0 : i32
    %c0_i32_0 = arith.constant 0 : i32
    %c0_i32_1 = arith.constant 0 : i32
    return %c0_i32, %c0_i32_0 : i32, i32
  }
  func.func @transform_3(%arg0: i32) -> (i32, i32) {
    %c0_i32 = arith.constant 0 : i32
    %c0_i32_0 = arith.constant 0 : i32
    %c0_i32_1 = arith.constant 0 : i32
    return %c0_i32, %c0_i32_0 : i32, i32
  }
  func.func @transform_4(%arg0: i32) -> (i32, i32) {
    %c0_i32 = arith.constant 0 : i32
    %c0_i32_0 = arith.constant 0 : i32
    return %arg0, %c0_i32 : i32, i32
  }
}

</mosaic_0001>

<llo_original>
// kernel: tpu_custom_call.1
$region0: #{tpu_custom_call.1}
  #allocation0 [shape = 'u32[]', space=smem, size = 0x4, offset = 0x4, fixed_abs, tag = 'smem constant byte address 0x4 - core index']
  #allocation1 [shape = 'u32[144,128]{1,0:T(1,128)}', space=vmem, size = 0x12000, scoped, tag = 'internal scratch']
  %s0 = inlined_call_operand.vmem [shape: s32[256,12], index: 0, kind: input, shape index: {}]
  %s1 = inlined_call_operand.vmem [shape: f32[40,8], index: 1, kind: input, shape index: {}]
  %s2 = inlined_call_operand.vmem [shape: f32[64,8], index: 2, kind: input, shape index: {}]
  %s3 = inlined_call_operand.vmem [shape: f32[1,16], index: 3, kind: input, shape index: {}]
  %s4 = inlined_call_operand.vmem [shape: f32[256,16], index: 4, kind: output, shape index: {}]
  %s5 = sld [smem:[#allocation0]]
  $region26: #{tpu_custom_call.1} parent=0
    _
  %s7 = ssub.s32 1, %s5
  %s8 = scalar_select 0, %s7, %s5
  // Predicated region
  $region2: #{tpu_custom_call.1} parent=0 // pred_check
    _
  $region3: #{tpu_custom_call.1} parent=0 // pred_check_branch
    %10 = sbr.rel (0) target = $region5
  $region4: #{tpu_custom_call.1} parent=0 // pred_region
    _
  $region5: #{tpu_custom_call.1} parent=0 // pred_fallthru
    _
  // Predicated region
  $region6: #{tpu_custom_call.1} parent=0 // pred_check
    _
  $region7: #{tpu_custom_call.1} parent=0 // pred_check_branch
    %12 = sbr.rel (0) target = $region9
  $region8: #{tpu_custom_call.1} parent=0 // pred_region
    _
  $region9: #{tpu_custom_call.1} parent=0 // pred_fallthru
    _
  // Predicated region
  $region10: #{tpu_custom_call.1} parent=0 // pred_check
    _
  $region11: #{tpu_custom_call.1} parent=0 // pred_check_branch
    %14 = sbr.rel (0) target = $region13
  $region12: #{tpu_custom_call.1} parent=0 // pred_region
    _
  $region13: #{tpu_custom_call.1} parent=0 // pred_fallthru
    _
  // Predicated region
  $region14: #{tpu_custom_call.1} parent=0 // pred_check
    _
  $region15: #{tpu_custom_call.1} parent=0 // pred_check_branch
    %16 = sbr.rel (0) target = $region17
  $region16: #{tpu_custom_call.1} parent=0 // pred_region
    _
  $region17: #{tpu_custom_call.1} parent=0 // pred_fallthru
    _
  %v17 = vld [vmem:[%s0] sm:$0xff]
  %v18 = vld [vmem:[%s0 + $0x8] sm:$0xff]
  %v19 = vld [vmem:[%s0 + $0x10] sm:$0xff]
  %v20 = vld [vmem:[%s0 + $0x18] sm:$0xff]
  %v21 = vld [vmem:[%s0 + $0x20] sm:$0xff]
  %v22 = vld [vmem:[%s0 + $0x28] sm:$0xff]
  %v23 = vld [vmem:[%s0 + $0x30] sm:$0xff]
  %v24 = vld [vmem:[%s0 + $0x38] sm:$0xff]
  %v25 = vld [vmem:[%s0 + $0x40] sm:$0xff]
  %v26 = vld [vmem:[%s0 + $0x48] sm:$0xff]
  %v27 = vld [vmem:[%s0 + $0x50] sm:$0xff]
  %v28 = vld [vmem:[%s0 + $0x58] sm:$0xff]
  %v29 = vld [vmem:[%s0 + $0x60] sm:$0xff]
  %v30 = vld [vmem:[%s0 + $0x68] sm:$0xff]
  %v31 = vld [vmem:[%s0 + $0x70] sm:$0xff]
  %v32 = vld [vmem:[%s0 + $0x78] sm:$0xff]
  %v33 = vld [vmem:[%s0 + $0x80] sm:$0xff]
  %v34 = vld [vmem:[%s0 + $0x88] sm:$0xff]
  %v35 = vld [vmem:[%s0 + $0x90] sm:$0xff]
  %v36 = vld [vmem:[%s0 + $0x98] sm:$0xff]
  %v37 = vld [vmem:[%s0 + $0xa0] sm:$0xff]
  %v38 = vld [vmem:[%s0 + $0xa8] sm:$0xff]
  %v39 = vld [vmem:[%s0 + $0xb0] sm:$0xff]
  %v40 = vld [vmem:[%s0 + $0xb8] sm:$0xff]
  %v41 = vld [vmem:[%s0 + $0xc0] sm:$0xff]
  %v42 = vld [vmem:[%s0 + $0xc8] sm:$0xff]
  %v43 = vld [vmem:[%s0 + $0xd0] sm:$0xff]
  %v44 = vld [vmem:[%s0 + $0xd8] sm:$0xff]
  %v45 = vld [vmem:[%s0 + $0xe0] sm:$0xff]
  %v46 = vld [vmem:[%s0 + $0xe8] sm:$0xff]
  %v47 = vld [vmem:[%s0 + $0xf0] sm:$0xff]
  %v48 = vld [vmem:[%s0 + $0xf8] sm:$0xff]
  %v49 = vld [vmem:[%s1] sm:$0xff]
  %v50 = vld [vmem:[%s1 + $0x8] sm:$0xff]
  %v51 = vld [vmem:[%s1 + $0x10] sm:$0xff]
  %v52 = vld [vmem:[%s1 + $0x18] sm:$0xff]
  %v53 = vld [vmem:[%s1 + $0x20] sm:$0xff]
  %v54 = vlaneseq
  %v55 = vand.u32 %v54, 127
  %56 = vset.pattern.permute.xlu0 1
  %57 = vperm.xlu0 %56, %v17
  %v58 = vpop.permute.xlu0 %57
  %59 = vset.pattern.permute.xlu0 1
  %60 = vperm.xlu0 %59, %v18
  %v61 = vpop.permute.xlu0 %60
  %62 = vset.pattern.permute.xlu0 1
  %63 = vperm.xlu0 %62, %v19
  %v64 = vpop.permute.xlu0 %63
  %65 = vset.pattern.permute.xlu0 1
  %66 = vperm.xlu0 %65, %v20
  %v67 = vpop.permute.xlu0 %66
  %68 = vset.pattern.permute.xlu0 1
  %69 = vperm.xlu0 %68, %v21
  %v70 = vpop.permute.xlu0 %69
  %71 = vset.pattern.permute.xlu0 1
  %72 = vperm.xlu0 %71, %v22
  %v73 = vpop.permute.xlu0 %72
  %74 = vset.pattern.permute.xlu0 1
  %75 = vperm.xlu0 %74, %v23
  %v76 = vpop.permute.xlu0 %75
  %77 = vset.pattern.permute.xlu0 1
  %78 = vperm.xlu0 %77, %v24
  %v79 = vpop.permute.xlu0 %78
  %80 = vset.pattern.permute.xlu0 1
  %81 = vperm.xlu0 %80, %v25
  %v82 = vpop.permute.xlu0 %81
  %83 = vset.pattern.permute.xlu0 1
  %84 = vperm.xlu0 %83, %v26
  %v85 = vpop.permute.xlu0 %84
  %86 = vset.pattern.permute.xlu0 1
  %87 = vperm.xlu0 %86, %v27
  %v88 = vpop.permute.xlu0 %87
  %89 = vset.pattern.permute.xlu0 1
  %90 = vperm.xlu0 %89, %v28
  %v91 = vpop.permute.xlu0 %90
  %92 = vset.pattern.permute.xlu0 1
  %93 = vperm.xlu0 %92, %v29
  %v94 = vpop.permute.xlu0 %93
  %95 = vset.pattern.permute.xlu0 1
  %96 = vperm.xlu0 %95, %v30
  %v97 = vpop.permute.xlu0 %96
  %98 = vset.pattern.permute.xlu0 1
  %99 = vperm.xlu0 %98, %v31
  %v100 = vpop.permute.xlu0 %99
  %101 = vset.pattern.permute.xlu0 1
  %102 = vperm.xlu0 %101, %v32
  %v103 = vpop.permute.xlu0 %102
  %104 = vset.pattern.permute.xlu0 1
  %105 = vperm.xlu0 %104, %v33
  %v106 = vpop.permute.xlu0 %105
  %107 = vset.pattern.permute.xlu0 1
  %108 = vperm.xlu0 %107, %v34
  %v109 = vpop.permute.xlu0 %108
  %110 = vset.pattern.permute.xlu0 1
  %111 = vperm.xlu0 %110, %v35
  %v112 = vpop.permute.xlu0 %111
  %113 = vset.pattern.permute.xlu0 1
  %114 = vperm.xlu0 %113, %v36
  %v115 = vpop.permute.xlu0 %114
  %116 = vset.pattern.permute.xlu0 1
  %117 = vperm.xlu0 %116, %v37
  %v118 = vpop.permute.xlu0 %117
  %119 = vset.pattern.permute.xlu0 1
  %120 = vperm.xlu0 %119, %v38
  %v121 = vpop.permute.xlu0 %120
  %122 = vset.pattern.permute.xlu0 1
  %123 = vperm.xlu0 %122, %v39
  %v124 = vpop.permute.xlu0 %123
  %125 = vset.pattern.permute.xlu0 1
  %126 = vperm.xlu0 %125, %v40
  %v127 = vpop.permute.xlu0 %126
  %128 = vset.pattern.permute.xlu0 1
  %129 = vperm.xlu0 %128, %v41
  %v130 = vpop.permute.xlu0 %129
  %131 = vset.pattern.permute.xlu0 1
  %132 = vperm.xlu0 %131, %v42
  %v133 = vpop.permute.xlu0 %132
  %134 = vset.pattern.permute.xlu0 1
  %135 = vperm.xlu0 %134, %v43
  %v136 = vpop.permute.xlu0 %135
  %137 = vset.pattern.permute.xlu0 1
  %138 = vperm.xlu0 %137, %v44
  %v139 = vpop.permute.xlu0 %138
  %140 = vset.pattern.permute.xlu0 1
  %141 = vperm.xlu0 %140, %v45
  %v142 = vpop.permute.xlu0 %141
  %143 = vset.pattern.permute.xlu0 1
  %144 = vperm.xlu0 %143, %v46
  %v145 = vpop.permute.xlu0 %144
  %146 = vset.pattern.permute.xlu0 1
  %147 = vperm.xlu0 %146, %v47
  %v148 = vpop.permute.xlu0 %147
  %149 = vset.pattern.permute.xlu0 1
  %150 = vperm.xlu0 %149, %v48
  %v151 = vpop.permute.xlu0 %150
  %vm152 = vcmp.eq.s32.totalorder %v55, %v58
  %vm153 = vcmp.eq.s32.totalorder %v55, %v61
  %vm154 = vcmp.eq.s32.totalorder %v55, %v64
  %vm155 = vcmp.eq.s32.totalorder %v55, %v67
  %vm156 = vcmp.eq.s32.totalorder %v55, %v70
  %vm157 = vcmp.eq.s32.totalorder %v55, %v73
  %vm158 = vcmp.eq.s32.totalorder %v55, %v76
  %vm159 = vcmp.eq.s32.totalorder %v55, %v79
  %vm160 = vcmp.eq.s32.totalorder %v55, %v82
  %vm161 = vcmp.eq.s32.totalorder %v55, %v85
  %vm162 = vcmp.eq.s32.totalorder %v55, %v88
  %vm163 = vcmp.eq.s32.totalorder %v55, %v91
  %vm164 = vcmp.eq.s32.totalorder %v55, %v94
  %vm165 = vcmp.eq.s32.totalorder %v55, %v97
  %vm166 = vcmp.eq.s32.totalorder %v55, %v100
  %vm167 = vcmp.eq.s32.totalorder %v55, %v103
  %vm168 = vcmp.eq.s32.totalorder %v55, %v106
  %vm169 = vcmp.eq.s32.totalorder %v55, %v109
  %vm170 = vcmp.eq.s32.totalorder %v55, %v112
  %vm171 = vcmp.eq.s32.totalorder %v55, %v115
  %vm172 = vcmp.eq.s32.totalorder %v55, %v118
  %vm173 = vcmp.eq.s32.totalorder %v55, %v121
  %vm174 = vcmp.eq.s32.totalorder %v55, %v124
  %vm175 = vcmp.eq.s32.totalorder %v55, %v127
  %vm176 = vcmp.eq.s32.totalorder %v55, %v130
  %vm177 = vcmp.eq.s32.totalorder %v55, %v133
  %vm178 = vcmp.eq.s32.totalorder %v55, %v136
  %vm179 = vcmp.eq.s32.totalorder %v55, %v139
  %vm180 = vcmp.eq.s32.totalorder %v55, %v142
  %vm181 = vcmp.eq.s32.totalorder %v55, %v145
  %vm182 = vcmp.eq.s32.totalorder %v55, %v148
  %vm183 = vcmp.eq.s32.totalorder %v55, %v151
  %v184 = vadd.s32 %v17, 20
  %v185 = vadd.s32 %v18, 20
  %v186 = vadd.s32 %v19, 20
  %v187 = vadd.s32 %v20, 20
  %v188 = vadd.s32 %v21, 20
  %v189 = vadd.s32 %v22, 20
  %v190 = vadd.s32 %v23, 20
  %v191 = vadd.s32 %v24, 20
  %v192 = vadd.s32 %v25, 20
  %v193 = vadd.s32 %v26, 20
  %v194 = vadd.s32 %v27, 20
  %v195 = vadd.s32 %v28, 20
  %v196 = vadd.s32 %v29, 20
  %v197 = vadd.s32 %v30, 20
  %v198 = vadd.s32 %v31, 20
  %v199 = vadd.s32 %v32, 20
  %v200 = vadd.s32 %v33, 20
  %v201 = vadd.s32 %v34, 20
  %v202 = vadd.s32 %v35, 20
  %v203 = vadd.s32 %v36, 20
  %v204 = vadd.s32 %v37, 20
  %v205 = vadd.s32 %v38, 20
  %v206 = vadd.s32 %v39, 20
  %v207 = vadd.s32 %v40, 20
  %v208 = vadd.s32 %v41, 20
  %v209 = vadd.s32 %v42, 20
  %v210 = vadd.s32 %v43, 20
  %v211 = vadd.s32 %v44, 20
  %v212 = vadd.s32 %v45, 20
  %v213 = vadd.s32 %v46, 20
  %v214 = vadd.s32 %v47, 20
  %v215 = vadd.s32 %v48, 20
  %216 = vset.pattern.permute.xlu0 2
  %217 = vperm.xlu0 %216, %v184
  %v218 = vpop.permute.xlu0 %217
  %219 = vset.pattern.permute.xlu0 2
  %220 = vperm.xlu0 %219, %v185
  %v221 = vpop.permute.xlu0 %220
  %222 = vset.pattern.permute.xlu0 2
  %223 = vperm.xlu0 %222, %v186
  %v224 = vpop.permute.xlu0 %223
  %225 = vset.pattern.permute.xlu0 2
  %226 = vperm.xlu0 %225, %v187
  %v227 = vpop.permute.xlu0 %226
  %228 = vset.pattern.permute.xlu0 2
  %229 = vperm.xlu0 %228, %v188
  %v230 = vpop.permute.xlu0 %229
  %231 = vset.pattern.permute.xlu0 2
  %232 = vperm.xlu0 %231, %v189
  %v233 = vpop.permute.xlu0 %232
  %234 = vset.pattern.permute.xlu0 2
  %235 = vperm.xlu0 %234, %v190
  %v236 = vpop.permute.xlu0 %235
  %237 = vset.pattern.permute.xlu0 2
  %238 = vperm.xlu0 %237, %v191
  %v239 = vpop.permute.xlu0 %238
  %240 = vset.pattern.permute.xlu0 2
  %241 = vperm.xlu0 %240, %v192
  %v242 = vpop.permute.xlu0 %241
  %243 = vset.pattern.permute.xlu0 2
  %244 = vperm.xlu0 %243, %v193
  %v245 = vpop.permute.xlu0 %244
  %246 = vset.pattern.permute.xlu0 2
  %247 = vperm.xlu0 %246, %v194
  %v248 = vpop.permute.xlu0 %247
  %249 = vset.pattern.permute.xlu0 2
  %250 = vperm.xlu0 %249, %v195
  %v251 = vpop.permute.xlu0 %250
  %252 = vset.pattern.permute.xlu0 2
  %253 = vperm.xlu0 %252, %v196
  %v254 = vpop.permute.xlu0 %253
  %255 = vset.pattern.permute.xlu0 2
  %256 = vperm.xlu0 %255, %v197
  %v257 = vpop.permute.xlu0 %256
  %258 = vset.pattern.permute.xlu0 2
  %259 = vperm.xlu0 %258, %v198
  %v260 = vpop.permute.xlu0 %259
  %261 = vset.pattern.permute.xlu0 2
  %262 = vperm.xlu0 %261, %v199
  %v263 = vpop.permute.xlu0 %262
  %264 = vset.pattern.permute.xlu0 2
  %265 = vperm.xlu0 %264, %v200
  %v266 = vpop.permute.xlu0 %265
  %267 = vset.pattern.permute.xlu0 2
  %268 = vperm.xlu0 %267, %v201
  %v269 = vpop.permute.xlu0 %268
  %270 = vset.pattern.permute.xlu0 2
  %271 = vperm.xlu0 %270, %v202
  %v272 = vpop.permute.xlu0 %271
  %273 = vset.pattern.permute.xlu0 2
  %274 = vperm.xlu0 %273, %v203
  %v275 = vpop.permute.xlu0 %274
  %276 = vset.pattern.permute.xlu0 2
  %277 = vperm.xlu0 %276, %v204
  %v278 = vpop.permute.xlu0 %277
  %279 = vset.pattern.permute.xlu0 2
  %280 = vperm.xlu0 %279, %v205
  %v281 = vpop.permute.xlu0 %280
  %282 = vset.pattern.permute.xlu0 2
  %283 = vperm.xlu0 %282, %v206
  %v284 = vpop.permute.xlu0 %283
  %285 = vset.pattern.permute.xlu0 2
  %286 = vperm.xlu0 %285, %v207
  %v287 = vpop.permute.xlu0 %286
  %288 = vset.pattern.permute.xlu0 2
  %289 = vperm.xlu0 %288, %v208
  %v290 = vpop.permute.xlu0 %289
  %291 = vset.pattern.permute.xlu0 2
  %292 = vperm.xlu0 %291, %v209
  %v293 = vpop.permute.xlu0 %292
  %294 = vset.pattern.permute.xlu0 2
  %295 = vperm.xlu0 %294, %v210
  %v296 = vpop.permute.xlu0 %295
  %297 = vset.pattern.permute.xlu0 2
  %298 = vperm.xlu0 %297, %v211
  %v299 = vpop.permute.xlu0 %298
  %300 = vset.pattern.permute.xlu0 2
  %301 = vperm.xlu0 %300, %v212
  %v302 = vpop.permute.xlu0 %301
  %303 = vset.pattern.permute.xlu0 2
  %304 = vperm.xlu0 %303, %v213
  %v305 = vpop.permute.xlu0 %304
  %306 = vset.pattern.permute.xlu0 2
  %307 = vperm.xlu0 %306, %v214
  %v308 = vpop.permute.xlu0 %307
  %309 = vset.pattern.permute.xlu0 2
  %310 = vperm.xlu0 %309, %v215
  %v311 = vpop.permute.xlu0 %310
  %vm312 = vcmp.eq.s32.totalorder %v55, %v218
  %vm313 = vcmp.eq.s32.totalorder %v55, %v221
  %vm314 = vcmp.eq.s32.totalorder %v55, %v224
  %vm315 = vcmp.eq.s32.totalorder %v55, %v227
  %vm316 = vcmp.eq.s32.totalorder %v55, %v230
  %vm317 = vcmp.eq.s32.totalorder %v55, %v233
  %vm318 = vcmp.eq.s32.totalorder %v55, %v236
  %vm319 = vcmp.eq.s32.totalorder %v55, %v239
  %vm320 = vcmp.eq.s32.totalorder %v55, %v242
  %vm321 = vcmp.eq.s32.totalorder %v55, %v245
  %vm322 = vcmp.eq.s32.totalorder %v55, %v248
  %vm323 = vcmp.eq.s32.totalorder %v55, %v251
  %vm324 = vcmp.eq.s32.totalorder %v55, %v254
  %vm325 = vcmp.eq.s32.totalorder %v55, %v257
  %vm326 = vcmp.eq.s32.totalorder %v55, %v260
  %vm327 = vcmp.eq.s32.totalorder %v55, %v263
  %vm328 = vcmp.eq.s32.totalorder %v55, %v266
  %vm329 = vcmp.eq.s32.totalorder %v55, %v269
  %vm330 = vcmp.eq.s32.totalorder %v55, %v272
  %vm331 = vcmp.eq.s32.totalorder %v55, %v275
  %vm332 = vcmp.eq.s32.totalorder %v55, %v278
  %vm333 = vcmp.eq.s32.totalorder %v55, %v281
  %vm334 = vcmp.eq.s32.totalorder %v55, %v284
  %vm335 = vcmp.eq.s32.totalorder %v55, %v287
  %vm336 = vcmp.eq.s32.totalorder %v55, %v290
  %vm337 = vcmp.eq.s32.totalorder %v55, %v293
  %vm338 = vcmp.eq.s32.totalorder %v55, %v296
  %vm339 = vcmp.eq.s32.totalorder %v55, %v299
  %vm340 = vcmp.eq.s32.totalorder %v55, %v302
  %vm341 = vcmp.eq.s32.totalorder %v55, %v305
  %vm342 = vcmp.eq.s32.totalorder %v55, %v308
  %vm343 = vcmp.eq.s32.totalorder %v55, %v311
  %vm344 = vmor %vm152, %vm312
  %vm345 = vmor %vm153, %vm313
  %vm346 = vmor %vm154, %vm314
  %vm347 = vmor %vm155, %vm315
  %vm348 = vmor %vm156, %vm316
  %vm349 = vmor %vm157, %vm317
  %vm350 = vmor %vm158, %vm318
  %vm351 = vmor %vm159, %vm319
  %vm352 = vmor %vm160, %vm320
  %vm353 = vmor %vm161, %vm321
  %vm354 = vmor %vm162, %vm322
  %vm355 = vmor %vm163, %vm323
  %vm356 = vmor %vm164, %vm324
  %vm357 = vmor %vm165, %vm325
  %vm358 = vmor %vm166, %vm326
  %vm359 = vmor %vm167, %vm327
  %vm360 = vmor %vm168, %vm328
  %vm361 = vmor %vm169, %vm329
  %vm362 = vmor %vm170, %vm330
  %vm363 = vmor %vm171, %vm331
  %vm364 = vmor %vm172, %vm332
  %vm365 = vmor %vm173, %vm333
  %vm366 = vmor %vm174, %vm334
  %vm367 = vmor %vm175, %vm335
  %vm368 = vmor %vm176, %vm336
  %vm369 = vmor %vm177, %vm337
  %vm370 = vmor %vm178, %vm338
  %vm371 = vmor %vm179, %vm339
  %vm372 = vmor %vm180, %vm340
  %vm373 = vmor %vm181, %vm341
  %vm374 = vmor %vm182, %vm342
  %vm375 = vmor %vm183, %vm343
  %v376 = vsel %vm344, 1, 0
  %v377 = vsel %vm345, 1, 0
  %v378 = vsel %vm346, 1, 0
  %v379 = vsel %vm347, 1, 0
  %v380 = vsel %vm348, 1, 0
  %v381 = vsel %vm349, 1, 0
  %v382 = vsel %vm350, 1, 0
  %v383 = vsel %vm351, 1, 0
  %v384 = vsel %vm352, 1, 0
  %v385 = vsel %vm353, 1, 0
  %v386 = vsel %vm354, 1, 0
  %v387 = vsel %vm355, 1, 0
  %v388 = vsel %vm356, 1, 0
  %v389 = vsel %vm357, 1, 0
  %v390 = vsel %vm358, 1, 0
  %v391 = vsel %vm359, 1, 0
  %v392 = vsel %vm360, 1, 0
  %v393 = vsel %vm361, 1, 0
  %v394 = vsel %vm362, 1, 0
  %v395 = vsel %vm363, 1, 0
  %v396 = vsel %vm364, 1, 0
  %v397 = vsel %vm365, 1, 0
  %v398 = vsel %vm366, 1, 0
  %v399 = vsel %vm367, 1, 0
  %v400 = vsel %vm368, 1, 0
  %v401 = vsel %vm369, 1, 0
  %v402 = vsel %vm370, 1, 0
  %v403 = vsel %vm371, 1, 0
  %v404 = vsel %vm372, 1, 0
  %v405 = vsel %vm373, 1, 0
  %v406 = vsel %vm374, 1, 0
  %v407 = vsel %vm375, 1, 0
  %v408 = vcvt.s32.f32 %v376
  %v409 = vcvt.s32.f32 %v377
  %v410 = vcvt.s32.f32 %v378
  %v411 = vcvt.s32.f32 %v379
  %v412 = vcvt.s32.f32 %v380
  %v413 = vcvt.s32.f32 %v381
  %v414 = vcvt.s32.f32 %v382
  %v415 = vcvt.s32.f32 %v383
  %v416 = vcvt.s32.f32 %v384
  %v417 = vcvt.s32.f32 %v385
  %v418 = vcvt.s32.f32 %v386
  %v419 = vcvt.s32.f32 %v387
  %v420 = vcvt.s32.f32 %v388
  %v421 = vcvt.s32.f32 %v389
  %v422 = vcvt.s32.f32 %v390
  %v423 = vcvt.s32.f32 %v391
  %v424 = vcvt.s32.f32 %v392
  %v425 = vcvt.s32.f32 %v393
  %v426 = vcvt.s32.f32 %v394
  %v427 = vcvt.s32.f32 %v395
  %v428 = vcvt.s32.f32 %v396
  %v429 = vcvt.s32.f32 %v397
  %v430 = vcvt.s32.f32 %v398
  %v431 = vcvt.s32.f32 %v399
  %v432 = vcvt.s32.f32 %v400
  %v433 = vcvt.s32.f32 %v401
  %v434 = vcvt.s32.f32 %v402
  %v435 = vcvt.s32.f32 %v403
  %v436 = vcvt.s32.f32 %v404
  %v437 = vcvt.s32.f32 %v405
  %v438 = vcvt.s32.f32 %v406
  %v439 = vcvt.s32.f32 %v407
  %vm440 = vcmask 326656
  %v442 = vsel %vm440, %v408, 0
  %v445 = vsel %vm440, %v409, 0
  %v448 = vsel %vm440, %v410, 0
  %v451 = vsel %vm440, %v411, 0
  %v454 = vsel %vm440, %v412, 0
  %v457 = vsel %vm440, %v413, 0
  %v460 = vsel %vm440, %v414, 0
  %v463 = vsel %vm440, %v415, 0
  %v466 = vsel %vm440, %v416, 0
  %v469 = vsel %vm440, %v417, 0
  %v472 = vsel %vm440, %v418, 0
  %v475 = vsel %vm440, %v419, 0
  %v478 = vsel %vm440, %v420, 0
  %v481 = vsel %vm440, %v421, 0
  %v484 = vsel %vm440, %v422, 0
  %v487 = vsel %vm440, %v423, 0
  %v490 = vsel %vm440, %v424, 0
  %v493 = vsel %vm440, %v425, 0
  %v496 = vsel %vm440, %v426, 0
  %v499 = vsel %vm440, %v427, 0
  %v502 = vsel %vm440, %v428, 0
  %v505 = vsel %vm440, %v429, 0
  %v508 = vsel %vm440, %v430, 0
  %v511 = vsel %vm440, %v431, 0
  %v514 = vsel %vm440, %v432, 0
  %v517 = vsel %vm440, %v433, 0
  %v520 = vsel %vm440, %v434, 0
  %v523 = vsel %vm440, %v435, 0
  %v526 = vsel %vm440, %v436, 0
  %v529 = vsel %vm440, %v437, 0
  %v532 = vsel %vm440, %v438, 0
  %v535 = vsel %vm440, %v439, 0
  %537 = vmatprep.subr.mxu0 0.0
  %538 = vmatpush1.msra.mxu0 %v49
  %539 = vmatprep.subr.mxu0 0.0
  %540 = vmatpush1.msra.mxu0 %v50
  %541 = vmatprep.subr.mxu0 0.0
  %542 = vmatpush1.msra.mxu0 %v51
  %543 = vmatprep.subr.mxu0 0.0
  %544 = vmatpush1.msra.mxu0 %v52
  %545 = vmatprep.subr.mxu0 0.0
  %546 = vmatpush1.msra.mxu0 %v53
  %547 = vmatprep.subr.mxu0 0.0
  %548 = vmatpush1.msra.mxu0 0.0
  %549 = vmatprep.subr.mxu0 0.0
  %550 = vmatpush1.msra.mxu0 0.0
  %551 = vmatprep.subr.mxu0 0.0
  %552 = vmatpush1.msra.mxu0 0.0
  %553 = vmatprep.subr.mxu0 0.0
  %554 = vmatpush1.msra.mxu0 0.0
  %555 = vmatprep.subr.mxu0 0.0
  %556 = vmatpush1.msra.mxu0 0.0
  %557 = vmatprep.subr.mxu0 0.0
  %558 = vmatpush1.msra.mxu0 0.0
  %559 = vmatprep.subr.mxu0 0.0
  %560 = vmatpush1.msra.mxu0 0.0
  %561 = vmatprep.subr.mxu0 0.0
  %562 = vmatpush1.msra.mxu0 0.0
  %563 = vmatprep.subr.mxu0 0.0
  %564 = vmatpush1.msra.mxu0 0.0
  %565 = vmatprep.subr.mxu0 0.0
  %566 = vmatpush1.msra.mxu0 0.0
  %567 = vmatprep.subr.mxu0 0.0
  %568 = vmatpush1.msra.mxu0 0.0
  %569 = vmatprep.subr.mxu0 0.0
  %570 = vmatpush1.msra.mxu0 0.0
  %571 = vmatprep.subr.mxu0 0.0
  %572 = vmatpush1.msra.mxu0 0.0
  %573 = vmatprep.subr.mxu0 0.0
  %574 = vmatpush1.msra.mxu0 0.0
  %575 = vmatprep.subr.mxu0 0.0
  %576 = vmatpush1.msra.mxu0 0.0
  %577 = vmatprep.subr.mxu0 0.0
  %578 = vmatpush1.msra.mxu0 0.0
  %579 = vmatprep.subr.mxu0 0.0
  %580 = vmatpush1.msra.mxu0 0.0
  %581 = vmatprep.subr.mxu0 0.0
  %582 = vmatpush1.msra.mxu0 0.0
  %583 = vmatprep.subr.mxu0 0.0
  %584 = vmatpush1.msra.mxu0 0.0
  %585 = vmatprep.subr.mxu0 0.0
  %586 = vmatpush1.msra.mxu0 0.0
  %587 = vmatprep.subr.mxu0 0.0
  %588 = vmatpush1.msra.mxu0 0.0
  %589 = vmatprep.subr.mxu0 0.0
  %590 = vmatpush1.msra.mxu0 0.0
  %591 = vmatprep.subr.mxu0 0.0
  %592 = vmatpush1.msra.mxu0 0.0
  %593 = vmatprep.subr.mxu0 0.0
  %594 = vmatpush1.msra.mxu0 0.0
  %595 = vmatprep.subr.mxu0 0.0
  %596 = vmatpush1.msra.mxu0 0.0
  %597 = vmatprep.subr.mxu0 0.0
  %598 = vmatpush1.msra.mxu0 0.0
  %599 = vmatprep.subr.mxu0 0.0
  %600 = vmatpush1.msra.mxu0 0.0
  %601 = vmatprep.mubr.f32.mxu0 0.0
  %602 = vmatmul.mubr.f32.gmra.mrb[0].mxu0 %v442
  %v603 = vpop.f32.mrb[0].mxu0
  %v604 = vadd.f32 0.0, %v603
  %v605 = vpop.f32.mrb[0].mxu0
  %606 = vmatprep.mubr.f32.mxu0 0.0
  %607 = vmatmul.mubr.f32.gmra.mrb[0].mxu0 %v445
  %v608 = vpop.f32.mrb[0].mxu0
  %v609 = vadd.f32 0.0, %v608
  %v610 = vpop.f32.mrb[0].mxu0
  %611 = vmatprep.mubr.f32.mxu0 0.0
  %612 = vmatmul.mubr.f32.gmra.mrb[0].mxu0 %v448
  %v613 = vpop.f32.mrb[0].mxu0
  %v614 = vadd.f32 0.0, %v613
  %v615 = vpop.f32.mrb[0].mxu0
  %616 = vmatprep.mubr.f32.mxu0 0.0
  %617 = vmatmul.mubr.f32.gmra.mrb[0].mxu0 %v451
  %v618 = vpop.f32.mrb[0].mxu0
  %v619 = vadd.f32 0.0, %v618
  %v620 = vpop.f32.mrb[0].mxu0
  %621 = vmatprep.mubr.f32.mxu0 0.0
  %622 = vmatmul.mubr.f32.gmra.mrb[0].mxu0 %v454
  %v623 = vpop.f32.mrb[0].mxu0
  %v624 = vadd.f32 0.0, %v623
  %v625 = vpop.f32.mrb[0].mxu0
  %626 = vmatprep.mubr.f32.mxu0 0.0
  %627 = vmatmul.mubr.f32.gmra.mrb[0].mxu0 %v457
  %v628 = vpop.f32.mrb[0].mxu0
  %v629 = vadd.f32 0.0, %v628
  %v630 = vpop.f32.mrb[0].mxu0
  %631 = vmatprep.mubr.f32.mxu0 0.0
  %632 = vmatmul.mubr.f32.gmra.mrb[0].mxu0 %v460
  %v633 = vpop.f32.mrb[0].mxu0
  %v634 = vadd.f32 0.0, %v633
  %v635 = vpop.f32.mrb[0].mxu0
  %636 = vmatprep.mubr.f32.mxu0 0.0
  %637 = vmatmul.mubr.f32.gmra.mrb[0].mxu0 %v463
  %v638 = vpop.f32.mrb[0].mxu0
  %v639 = vadd.f32 0.0, %v638
  %v640 = vpop.f32.mrb[0].mxu0
  %641 = vmatprep.mubr.f32.mxu0 0.0
  %642 = vmatmul.mubr.f32.gmra.mrb[0].mxu0 %v466
  %v643 = vpop.f32.mrb[0].mxu0
  %v644 = vadd.f32 0.0, %v643
  %v645 = vpop.f32.mrb[0].mxu0
  %646 = vmatprep.mubr.f32.mxu0 0.0
  %647 = vmatmul.mubr.f32.gmra.mrb[0].mxu0 %v469
  %v648 = vpop.f32.mrb[0].mxu0
  %v649 = vadd.f32 0.0, %v648
  %v650 = vpop.f32.mrb[0].mxu0
  %651 = vmatprep.mubr.f32.mxu0 0.0
  %652 = vmatmul.mubr.f32.gmra.mrb[0].mxu0 %v472
  %v653 = vpop.f32.mrb[0].mxu0
  %v654 = vadd.f32 0.0, %v653
  %v655 = vpop.f32.mrb[0].mxu0
  %656 = vmatprep.mubr.f32.mxu0 0.0
  %657 = vmatmul.mubr.f32.gmra.mrb[0].mxu0 %v475
  %v658 = vpop.f32.mrb[0].mxu0
  %v659 = vadd.f32 0.0, %v658
  %v660 = vpop.f32.mrb[0].mxu0
  %661 = vmatprep.mubr.f32.mxu0 0.0
  %662 = vmatmul.mubr.f32.gmra.mrb[0].mxu0 %v478
  %v663 = vpop.f32.mrb[0].mxu0
  %v664 = vadd.f32 0.0, %v663
  %v665 = vpop.f32.mrb[0].mxu0
  %666 = vmatprep.mubr.f32.mxu0 0.0
  %667 = vmatmul.mubr.f32.gmra.mrb[0].mxu0 %v481
  %v668 = vpop.f32.mrb[0].mxu0
  %v669 = vadd.f32 0.0, %v668
  %v670 = vpop.f32.mrb[0].mxu0
  %671 = vmatprep.mubr.f32.mxu0 0.0
  %672 = vmatmul.mubr.f32.gmra.mrb[0].mxu0 %v484
  %v673 = vpop.f32.mrb[0].mxu0
  %v674 = vadd.f32 0.0, %v673
  %v675 = vpop.f32.mrb[0].mxu0
  %676 = vmatprep.mubr.f32.mxu0 0.0
  %677 = vmatmul.mubr.f32.gmra.mrb[0].mxu0 %v487
  %v678 = vpop.f32.mrb[0].mxu0
  %v679 = vadd.f32 0.0, %v678
  %v680 = vpop.f32.mrb[0].mxu0
  %681 = vmatprep.mubr.f32.mxu0 0.0
  %682 = vmatmul.mubr.f32.gmra.mrb[0].mxu0 %v490
  %v683 = vpop.f32.mrb[0].mxu0
  %v684 = vadd.f32 0.0, %v683
  %v685 = vpop.f32.mrb[0].mxu0
  %686 = vmatprep.mubr.f32.mxu0 0.0
  %687 = vmatmul.mubr.f32.gmra.mrb[0].mxu0 %v493
  %v688 = vpop.f32.mrb[0].mxu0
  %v689 = vadd.f32 0.0, %v688
  %v690 = vpop.f32.mrb[0].mxu0
  %691 = vmatprep.mubr.f32.mxu0 0.0
  %692 = vmatmul.mubr.f32.gmra.mrb[0].mxu0 %v496
  %v693 = vpop.f32.mrb[0].mxu0
  %v694 = vadd.f32 0.0, %v693
  %v695 = vpop.f32.mrb[0].mxu0
  %696 = vmatprep.mubr.f32.mxu0 0.0
  %697 = vmatmul.mubr.f32.gmra.mrb[0].mxu0 %v499
  %v698 = vpop.f32.mrb[0].mxu0
  %v699 = vadd.f32 0.0, %v698
  %v700 = vpop.f32.mrb[0].mxu0
  %701 = vmatprep.mubr.f32.mxu0 0.0
  %702 = vmatmul.mubr.f32.gmra.mrb[0].mxu0 %v502
  %v703 = vpop.f32.mrb[0].mxu0
  %v704 = vadd.f32 0.0, %v703
  %v705 = vpop.f32.mrb[0].mxu0
  %706 = vmatprep.mubr.f32.mxu0 0.0
  %707 = vmatmul.mubr.f32.gmra.mrb[0].mxu0 %v505
  %v708 = vpop.f32.mrb[0].mxu0
  %v709 = vadd.f32 0.0, %v708
  %v710 = vpop.f32.mrb[0].mxu0
  %711 = vmatprep.mubr.f32.mxu0 0.0
  %712 = vmatmul.mubr.f32.gmra.mrb[0].mxu0 %v508
  %v713 = vpop.f32.mrb[0].mxu0
  %v714 = vadd.f32 0.0, %v713
  %v715 = vpop.f32.mrb[0].mxu0
  %716 = vmatprep.mubr.f32.mxu0 0.0
  %717 = vmatmul.mubr.f32.gmra.mrb[0].mxu0 %v511
  %v718 = vpop.f32.mrb[0].mxu0
  %v719 = vadd.f32 0.0, %v718
  %v720 = vpop.f32.mrb[0].mxu0
  %721 = vmatprep.mubr.f32.mxu0 0.0
  %722 = vmatmul.mubr.f32.gmra.mrb[0].mxu0 %v514
  %v723 = vpop.f32.mrb[0].mxu0
  %v724 = vadd.f32 0.0, %v723
  %v725 = vpop.f32.mrb[0].mxu0
  %726 = vmatprep.mubr.f32.mxu0 0.0
  %727 = vmatmul.mubr.f32.gmra.mrb[0].mxu0 %v517
  %v728 = vpop.f32.mrb[0].mxu0
  %v729 = vadd.f32 0.0, %v728
  %v730 = vpop.f32.mrb[0].mxu0
  %731 = vmatprep.mubr.f32.mxu0 0.0
  %732 = vmatmul.mubr.f32.gmra.mrb[0].mxu0 %v520
  %v733 = vpop.f32.mrb[0].mxu0
  %v734 = vadd.f32 0.0, %v733
  %v735 = vpop.f32.mrb[0].mxu0
  %736 = vmatprep.mubr.f32.mxu0 0.0
  %737 = vmatmul.mubr.f32.gmra.mrb[0].mxu0 %v523
  %v738 = vpop.f32.mrb[0].mxu0
  %v739 = vadd.f32 0.0, %v738
  %v740 = vpop.f32.mrb[0].mxu0
  %741 = vmatprep.mubr.f32.mxu0 0.0
  %742 = vmatmul.mubr.f32.gmra.mrb[0].mxu0 %v526
  %v743 = vpop.f32.mrb[0].mxu0
  %v744 = vadd.f32 0.0, %v743
  %v745 = vpop.f32.mrb[0].mxu0
  %746 = vmatprep.mubr.f32.mxu0 0.0
  %747 = vmatmul.mubr.f32.gmra.mrb[0].mxu0 %v529
  %v748 = vpop.f32.mrb[0].mxu0
  %v749 = vadd.f32 0.0, %v748
  %v750 = vpop.f32.mrb[0].mxu0
  %751 = vmatprep.mubr.f32.mxu0 0.0
  %752 = vmatmul.mubr.f32.gmra.mrb[0].mxu0 %v532
  %v753 = vpop.f32.mrb[0].mxu0
  %v754 = vadd.f32 0.0, %v753
  %v755 = vpop.f32.mrb[0].mxu0
  %756 = vmatprep.mubr.f32.mxu0 0.0
  %757 = vmatmul.mubr.f32.gmra.mrb[0].mxu0 %v535
  %v758 = vpop.f32.mrb[0].mxu0
  %v759 = vadd.f32 0.0, %v758
  %v760 = vpop.f32.mrb[0].mxu0
  %761 = vdwg.mxu0
  %762 = vset.pattern.permute.xlu0 2
  %763 = vperm.xlu0 %762, %v17
  %v764 = vpop.permute.xlu0 %763
  %765 = vset.pattern.permute.xlu0 2
  %766 = vperm.xlu0 %765, %v18
  %v767 = vpop.permute.xlu0 %766
  %768 = vset.pattern.permute.xlu0 2
  %769 = vperm.xlu0 %768, %v19
  %v770 = vpop.permute.xlu0 %769
  %771 = vset.pattern.permute.xlu0 2
  %772 = vperm.xlu0 %771, %v20
  %v773 = vpop.permute.xlu0 %772
  %774 = vset.pattern.permute.xlu0 2
  %775 = vperm.xlu0 %774, %v21
  %v776 = vpop.permute.xlu0 %775
  %777 = vset.pattern.permute.xlu0 2
  %778 = vperm.xlu0 %777, %v22
  %v779 = vpop.permute.xlu0 %778
  %780 = vset.pattern.permute.xlu0 2
  %781 = vperm.xlu0 %780, %v23
  %v782 = vpop.permute.xlu0 %781
  %783 = vset.pattern.permute.xlu0 2
  %784 = vperm.xlu0 %783, %v24
  %v785 = vpop.permute.xlu0 %784
  %786 = vset.pattern.permute.xlu0 2
  %787 = vperm.xlu0 %786, %v25
  %v788 = vpop.permute.xlu0 %787
  %789 = vset.pattern.permute.xlu0 2
  %790 = vperm.xlu0 %789, %v26
  %v791 = vpop.permute.xlu0 %790
  %792 = vset.pattern.permute.xlu0 2
  %793 = vperm.xlu0 %792, %v27
  %v794 = vpop.permute.xlu0 %793
  %795 = vset.pattern.permute.xlu0 2
  %796 = vperm.xlu0 %795, %v28
  %v797 = vpop.permute.xlu0 %796
  %798 = vset.pattern.permute.xlu0 2
  %799 = vperm.xlu0 %798, %v29
  %v800 = vpop.permute.xlu0 %799
  %801 = vset.pattern.permute.xlu0 2
  %802 = vperm.xlu0 %801, %v30
  %v803 = vpop.permute.xlu0 %802
  %804 = vset.pattern.permute.xlu0 2
  %805 = vperm.xlu0 %804, %v31
  %v806 = vpop.permute.xlu0 %805
  %807 = vset.pattern.permute.xlu0 2
  %808 = vperm.xlu0 %807, %v32
  %v809 = vpop.permute.xlu0 %808
  %810 = vset.pattern.permute.xlu0 2
  %811 = vperm.xlu0 %810, %v33
  %v812 = vpop.permute.xlu0 %811
  %813 = vset.pattern.permute.xlu0 2
  %814 = vperm.xlu0 %813, %v34
  %v815 = vpop.permute.xlu0 %814
  %816 = vset.pattern.permute.xlu0 2
  %817 = vperm.xlu0 %816, %v35
  %v818 = vpop.permute.xlu0 %817
  %819 = vset.pattern.permute.xlu0 2
  %820 = vperm.xlu0 %819, %v36
  %v821 = vpop.permute.xlu0 %820
  %822 = vset.pattern.permute.xlu0 2
  %823 = vperm.xlu0 %822, %v37
  %v824 = vpop.permute.xlu0 %823
  %825 = vset.pattern.permute.xlu0 2
  %826 = vperm.xlu0 %825, %v38
  %v827 = vpop.permute.xlu0 %826
  %828 = vset.pattern.permute.xlu0 2
  %829 = vperm.xlu0 %828, %v39
  %v830 = vpop.permute.xlu0 %829
  %831 = vset.pattern.permute.xlu0 2
  %832 = vperm.xlu0 %831, %v40
  %v833 = vpop.permute.xlu0 %832
  %834 = vset.pattern.permute.xlu0 2
  %835 = vperm.xlu0 %834, %v41
  %v836 = vpop.permute.xlu0 %835
  %837 = vset.pattern.permute.xlu0 2
  %838 = vperm.xlu0 %837, %v42
  %v839 = vpop.permute.xlu0 %838
  %840 = vset.pattern.permute.xlu0 2
  %841 = vperm.xlu0 %840, %v43
  %v842 = vpop.permute.xlu0 %841
  %843 = vset.pattern.permute.xlu0 2
  %844 = vperm.xlu0 %843, %v44
  %v845 = vpop.permute.xlu0 %844
  %846 = vset.pattern.permute.xlu0 2
  %847 = vperm.xlu0 %846, %v45
  %v848 = vpop.permute.xlu0 %847
  %849 = vset.pattern.permute.xlu0 2
  %850 = vperm.xlu0 %849, %v46
  %v851 = vpop.permute.xlu0 %850
  %852 = vset.pattern.permute.xlu0 2
  %853 = vperm.xlu0 %852, %v47
  %v854 = vpop.permute.xlu0 %853
  %855 = vset.pattern.permute.xlu0 2
  %856 = vperm.xlu0 %855, %v48
  %v857 = vpop.permute.xlu0 %856
  %vm858 = vcmp.eq.s32.totalorder %v55, %v764
  %vm859 = vcmp.eq.s32.totalorder %v55, %v767
  %vm860 = vcmp.eq.s32.totalorder %v55, %v770
  %vm861 = vcmp.eq.s32.totalorder %v55, %v773
  %vm862 = vcmp.eq.s32.totalorder %v55, %v776
  %vm863 = vcmp.eq.s32.totalorder %v55, %v779
  %vm864 = vcmp.eq.s32.totalorder %v55, %v782
  %vm865 = vcmp.eq.s32.totalorder %v55, %v785
  %vm866 = vcmp.eq.s32.totalorder %v55, %v788
  %vm867 = vcmp.eq.s32.totalorder %v55, %v791
  %vm868 = vcmp.eq.s32.totalorder %v55, %v794
  %vm869 = vcmp.eq.s32.totalorder %v55, %v797
  %vm870 = vcmp.eq.s32.totalorder %v55, %v800
  %vm871 = vcmp.eq.s32.totalorder %v55, %v803
  %vm872 = vcmp.eq.s32.totalorder %v55, %v806
  %vm873 = vcmp.eq.s32.totalorder %v55, %v809
  %vm874 = vcmp.eq.s32.totalorder %v55, %v812
  %vm875 = vcmp.eq.s32.totalorder %v55, %v815
  %vm876 = vcmp.eq.s32.totalorder %v55, %v818
  %vm877 = vcmp.eq.s32.totalorder %v55, %v821
  %vm878 = vcmp.eq.s32.totalorder %v55, %v824
  %vm879 = vcmp.eq.s32.totalorder %v55, %v827
  %vm880 = vcmp.eq.s32.totalorder %v55, %v830
  %vm881 = vcmp.eq.s32.totalorder %v55, %v833
  %vm882 = vcmp.eq.s32.totalorder %v55, %v836
  %vm883 = vcmp.eq.s32.totalorder %v55, %v839
  %vm884 = vcmp.eq.s32.totalorder %v55, %v842
  %vm885 = vcmp.eq.s32.totalorder %v55, %v845
  %vm886 = vcmp.eq.s32.totalorder %v55, %v848
  %vm887 = vcmp.eq.s32.totalorder %v55, %v851
  %vm888 = vcmp.eq.s32.totalorder %v55, %v854
  %vm889 = vcmp.eq.s32.totalorder %v55, %v857
  %890 = vset.pattern.permute.xlu0 3
  %891 = vperm.xlu0 %890, %v184
  %v892 = vpop.permute.xlu0 %891
  %893 = vset.pattern.permute.xlu0 3
  %894 = vperm.xlu0 %893, %v185
  %v895 = vpop.permute.xlu0 %894
  %896 = vset.pattern.permute.xlu0 3
  %897 = vperm.xlu0 %896, %v186
  %v898 = vpop.permute.xlu0 %897
  %899 = vset.pattern.permute.xlu0 3
  %900 = vperm.xlu0 %899, %v187
  %v901 = vpop.permute.xlu0 %900
  %902 = vset.pattern.permute.xlu0 3
  %903 = vperm.xlu0 %902, %v188
  %v904 = vpop.permute.xlu0 %903
  %905 = vset.pattern.permute.xlu0 3
  %906 = vperm.xlu0 %905, %v189
  %v907 = vpop.permute.xlu0 %906
  %908 = vset.pattern.permute.xlu0 3
  %909 = vperm.xlu0 %908, %v190
  %v910 = vpop.permute.xlu0 %909
  %911 = vset.pattern.permute.xlu0 3
  %912 = vperm.xlu0 %911, %v191
  %v913 = vpop.permute.xlu0 %912
  %914 = vset.pattern.permute.xlu0 3
  %915 = vperm.xlu0 %914, %v192
  %v916 = vpop.permute.xlu0 %915
  %917 = vset.pattern.permute.xlu0 3
  %918 = vperm.xlu0 %917, %v193
  %v919 = vpop.permute.xlu0 %918
  %920 = vset.pattern.permute.xlu0 3
  %921 = vperm.xlu0 %920, %v194
  %v922 = vpop.permute.xlu0 %921
  %923 = vset.pattern.permute.xlu0 3
  %924 = vperm.xlu0 %923, %v195
  %v925 = vpop.permute.xlu0 %924
  %926 = vset.pattern.permute.xlu0 3
  %927 = vperm.xlu0 %926, %v196
  %v928 = vpop.permute.xlu0 %927
  %929 = vset.pattern.permute.xlu0 3
  %930 = vperm.xlu0 %929, %v197
  %v931 = vpop.permute.xlu0 %930
  %932 = vset.pattern.permute.xlu0 3
  %933 = vperm.xlu0 %932, %v198
  %v934 = vpop.permute.xlu0 %933
  %935 = vset.pattern.permute.xlu0 3
  %936 = vperm.xlu0 %935, %v199
  %v937 = vpop.permute.xlu0 %936
  %938 = vset.pattern.permute.xlu0 3
  %939 = vperm.xlu0 %938, %v200
  %v940 = vpop.permute.xlu0 %939
  %941 = vset.pattern.permute.xlu0 3
  %942 = vperm.xlu0 %941, %v201
  %v943 = vpop.permute.xlu0 %942
  %944 = vset.pattern.permute.xlu0 3
  %945 = vperm.xlu0 %944, %v202
  %v946 = vpop.permute.xlu0 %945
  %947 = vset.pattern.permute.xlu0 3
  %948 = vperm.xlu0 %947, %v203
  %v949 = vpop.permute.xlu0 %948
  %950 = vset.pattern.permute.xlu0 3
  %951 = vperm.xlu0 %950, %v204
  %v952 = vpop.permute.xlu0 %951
  %953 = vset.pattern.permute.xlu0 3
  %954 = vperm.xlu0 %953, %v205
  %v955 = vpop.permute.xlu0 %954
  %956 = vset.pattern.permute.xlu0 3
  %957 = vperm.xlu0 %956, %v206
  %v958 = vpop.permute.xlu0 %957
  %959 = vset.pattern.permute.xlu0 3
  %960 = vperm.xlu0 %959, %v207
  %v961 = vpop.permute.xlu0 %960
  %962 = vset.pattern.permute.xlu0 3
  %963 = vperm.xlu0 %962, %v208
  %v964 = vpop.permute.xlu0 %963
  %965 = vset.pattern.permute.xlu0 3
  %966 = vperm.xlu0 %965, %v209
  %v967 = vpop.permute.xlu0 %966
  %968 = vset.pattern.permute.xlu0 3
  %969 = vperm.xlu0 %968, %v210
  %v970 = vpop.permute.xlu0 %969
  %971 = vset.pattern.permute.xlu0 3
  %972 = vperm.xlu0 %971, %v211
  %v973 = vpop.permute.xlu0 %972
  %974 = vset.pattern.permute.xlu0 3
  %975 = vperm.xlu0 %974, %v212
  %v976 = vpop.permute.xlu0 %975
  %977 = vset.pattern.permute.xlu0 3
  %978 = vperm.xlu0 %977, %v213
  %v979 = vpop.permute.xlu0 %978
  %980 = vset.pattern.permute.xlu0 3
  %981 = vperm.xlu0 %980, %v214
  %v982 = vpop.permute.xlu0 %981
  %983 = vset.pattern.permute.xlu0 3
  %984 = vperm.xlu0 %983, %v215
  %v985 = vpop.permute.xlu0 %984
  %vm986 = vcmp.eq.s32.totalorder %v55, %v892
  %vm987 = vcmp.eq.s32.totalorder %v55, %v895
  %vm988 = vcmp.eq.s32.totalorder %v55, %v898
  %vm989 = vcmp.eq.s32.totalorder %v55, %v901
  %vm990 = vcmp.eq.s32.totalorder %v55, %v904
  %vm991 = vcmp.eq.s32.totalorder %v55, %v907
  %vm992 = vcmp.eq.s32.totalorder %v55, %v910
  %vm993 = vcmp.eq.s32.totalorder %v55, %v913
  %vm994 = vcmp.eq.s32.totalorder %v55, %v916
  %vm995 = vcmp.eq.s32.totalorder %v55, %v919
  %vm996 = vcmp.eq.s32.totalorder %v55, %v922
  %vm997 = vcmp.eq.s32.totalorder %v55, %v925
  %vm998 = vcmp.eq.s32.totalorder %v55, %v928
  %vm999 = vcmp.eq.s32.totalorder %v55, %v931
  %vm1000 = vcmp.eq.s32.totalorder %v55, %v934
  %vm1001 = vcmp.eq.s32.totalorder %v55, %v937
  %vm1002 = vcmp.eq.s32.totalorder %v55, %v940
  %vm1003 = vcmp.eq.s32.totalorder %v55, %v943
  %vm1004 = vcmp.eq.s32.totalorder %v55, %v946
  %vm1005 = vcmp.eq.s32.totalorder %v55, %v949
  %vm1006 = vcmp.eq.s32.totalorder %v55, %v952
  %vm1007 = vcmp.eq.s32.totalorder %v55, %v955
  %vm1008 = vcmp.eq.s32.totalorder %v55, %v958
  %vm1009 = vcmp.eq.s32.totalorder %v55, %v961
  %vm1010 = vcmp.eq.s32.totalorder %v55, %v964
  %vm1011 = vcmp.eq.s32.totalorder %v55, %v967
  %vm1012 = vcmp.eq.s32.totalorder %v55, %v970
  %vm1013 = vcmp.eq.s32.totalorder %v55, %v973
  %vm1014 = vcmp.eq.s32.totalorder %v55, %v976
  %vm1015 = vcmp.eq.s32.totalorder %v55, %v979
  %vm1016 = vcmp.eq.s32.totalorder %v55, %v982
  %vm1017 = vcmp.eq.s32.totalorder %v55, %v985
  %vm1018 = vmor %vm858, %vm986
  %vm1019 = vmor %vm859, %vm987
  %vm1020 = vmor %vm860, %vm988
  %vm1021 = vmor %vm861, %vm989
  %vm1022 = vmor %vm862, %vm990
  %vm1023 = vmor %vm863, %vm991
  %vm1024 = vmor %vm864, %vm992
  %vm1025 = vmor %vm865, %vm993
  %vm1026 = vmor %vm866, %vm994
  %vm1027 = vmor %vm867, %vm995
  %vm1028 = vmor %vm868, %vm996
  %vm1029 = vmor %vm869, %vm997
  %vm1030 = vmor %vm870, %vm998
  %vm1031 = vmor %vm871, %vm999
  %vm1032 = vmor %vm872, %vm1000
  %vm1033 = vmor %vm873, %vm1001
  %vm1034 = vmor %vm874, %vm1002
  %vm1035 = vmor %vm875, %vm1003
  %vm1036 = vmor %vm876, %vm1004
  %vm1037 = vmor %vm877, %vm1005
  %vm1038 = vmor %vm878, %vm1006
  %vm1039 = vmor %vm879, %vm1007
  %vm1040 = vmor %vm880, %vm1008
  %vm1041 = vmor %vm881, %vm1009
  %vm1042 = vmor %vm882, %vm1010
  %vm1043 = vmor %vm883, %vm1011
  %vm1044 = vmor %vm884, %vm1012
  %vm1045 = vmor %vm885, %vm1013
  %vm1046 = vmor %vm886, %vm1014
  %vm1047 = vmor %vm887, %vm1015
  %vm1048 = vmor %vm888, %vm1016
  %vm1049 = vmor %vm889, %vm1017
  %v1050 = vsel %vm1018, 1, 0
  %v1051 = vsel %vm1019, 1, 0
  %v1052 = vsel %vm1020, 1, 0
  %v1053 = vsel %vm1021, 1, 0
  %v1054 = vsel %vm1022, 1, 0
  %v1055 = vsel %vm1023, 1, 0
  %v1056 = vsel %vm1024, 1, 0
  %v1057 = vsel %vm1025, 1, 0
  %v1058 = vsel %vm1026, 1, 0
  %v1059 = vsel %vm1027, 1, 0
  %v1060 = vsel %vm1028, 1, 0
  %v1061 = vsel %vm1029, 1, 0
  %v1062 = vsel %vm1030, 1, 0
  %v1063 = vsel %vm1031, 1, 0
  %v1064 = vsel %vm1032, 1, 0
  %v1065 = vsel %vm1033, 1, 0
  %v1066 = vsel %vm1034, 1, 0
  %v1067 = vsel %vm1035, 1, 0
  %v1068 = vsel %vm1036, 1, 0
  %v1069 = vsel %vm1037, 1, 0
  %v1070 = vsel %vm1038, 1, 0
  %v1071 = vsel %vm1039, 1, 0
  %v1072 = vsel %vm1040, 1, 0
  %v1073 = vsel %vm1041, 1, 0
  %v1074 = vsel %vm1042, 1, 0
  %v1075 = vsel %vm1043, 1, 0
  %v1076 = vsel %vm1044, 1, 0
  %v1077 = vsel %vm1045, 1, 0
  %v1078 = vsel %vm1046, 1, 0
  %v1079 = vsel %vm1047, 1, 0
  %v1080 = vsel %vm1048, 1, 0
  %v1081 = vsel %vm1049, 1, 0
  %v1082 = vcvt.s32.f32 %v1050
  %v1083 = vcvt.s32.f32 %v1051
  %v1084 = vcvt.s32.f32 %v1052
  %v1085 = vcvt.s32.f32 %v1053
  %v1086 = vcvt.s32.f32 %v1054
  %v1087 = vcvt.s32.f32 %v1055
  %v1088 = vcvt.s32.f32 %v1056
  %v1089 = vcvt.s32.f32 %v1057
  %v1090 = vcvt.s32.f32 %v1058
  %v1091 = vcvt.s32.f32 %v1059
  %v1092 = vcvt.s32.f32 %v1060
  %v1093 = vcvt.s32.f32 %v1061
  %v1094 = vcvt.s32.f32 %v1062
  %v1095 = vcvt.s32.f32 %v1063
  %v1096 = vcvt.s32.f32 %v1064
  %v1097 = vcvt.s32.f32 %v1065
  %v1098 = vcvt.s32.f32 %v1066
  %v1099 = vcvt.s32.f32 %v1067
  %v1100 = vcvt.s32.f32 %v1068
  %v1101 = vcvt.s32.f32 %v1069
  %v1102 = vcvt.s32.f32 %v1070
  %v1103 = vcvt.s32.f32 %v1071
  %v1104 = vcvt.s32.f32 %v1072
  %v1105 = vcvt.s32.f32 %v1073
  %v1106 = vcvt.s32.f32 %v1074
  %v1107 = vcvt.s32.f32 %v1075
  %v1108 = vcvt.s32.f32 %v1076
  %v1109 = vcvt.s32.f32 %v1077
  %v1110 = vcvt.s32.f32 %v1078
  %v1111 = vcvt.s32.f32 %v1079
  %v1112 = vcvt.s32.f32 %v1080
  %v1113 = vcvt.s32.f32 %v1081
  %v1115 = vsel %vm440, %v1082, 0
  %v1118 = vsel %vm440, %v1083, 0
  %v1121 = vsel %vm440, %v1084, 0
  %v1124 = vsel %vm440, %v1085, 0
  %v1127 = vsel %vm440, %v1086, 0
  %v1130 = vsel %vm440, %v1087, 0
  %v1133 = vsel %vm440, %v1088, 0
  %v1136 = vsel %vm440, %v1089, 0
  %v1139 = vsel %vm440, %v1090, 0
  %v1142 = vsel %vm440, %v1091, 0
  %v1145 = vsel %vm440, %v1092, 0
  %v1148 = vsel %vm440, %v1093, 0
  %v1151 = vsel %vm440, %v1094, 0
  %v1154 = vsel %vm440, %v1095, 0
  %v1157 = vsel %vm440, %v1096, 0
  %v1160 = vsel %vm440, %v1097, 0
  %v1163 = vsel %vm440, %v1098, 0
  %v1166 = vsel %vm440, %v1099, 0
  %v1169 = vsel %vm440, %v1100, 0
  %v1172 = vsel %vm440, %v1101, 0
  %v1175 = vsel %vm440, %v1102, 0
  %v1178 = vsel %vm440, %v1103, 0
  %v1181 = vsel %vm440, %v1104, 0
  %v1184 = vsel %vm440, %v1105, 0
  %v1187 = vsel %vm440, %v1106, 0
  %v1190 = vsel %vm440, %v1107, 0
  %v1193 = vsel %vm440, %v1108, 0
  %v1196 = vsel %vm440, %v1109, 0
  %v1199 = vsel %vm440, %v1110, 0
  %v1202 = vsel %vm440, %v1111, 0
  %v1205 = vsel %vm440, %v1112, 0
  %v1208 = vsel %vm440, %v1113, 0
  %1210 = vmatprep.subr.mxu0 0.0
  %1211 = vmatpush1.msra.mxu0 %v49
  %1212 = vmatprep.subr.mxu0 0.0
  %1213 = vmatpush1.msra.mxu0 %v50
  %1214 = vmatprep.subr.mxu0 0.0
  %1215 = vmatpush1.msra.mxu0 %v51
  %1216 = vmatprep.subr.mxu0 0.0
  %1217 = vmatpush1.msra.mxu0 %v52
  %1218 = vmatprep.subr.mxu0 0.0
  %1219 = vmatpush1.msra.mxu0 %v53
  %1220 = vmatprep.subr.mxu0 0.0
  %1221 = vmatpush1.msra.mxu0 0.0
  %1222 = vmatprep.subr.mxu0 0.0
  %1223 = vmatpush1.msra.mxu0 0.0
  %1224 = vmatprep.subr.mxu0 0.0
  %1225 = vmatpush1.msra.mxu0 0.0
  %1226 = vmatprep.subr.mxu0 0.0
  %1227 = vmatpush1.msra.mxu0 0.0
  %1228 = vmatprep.subr.mxu0 0.0
  %1229 = vmatpush1.msra.mxu0 0.0
  %1230 = vmatprep.subr.mxu0 0.0
  %1231 = vmatpush1.msra.mxu0 0.0
  %1232 = vmatprep.subr.mxu0 0.0
  %1233 = vmatpush1.msra.mxu0 0.0
  %1234 = vmatprep.subr.mxu0 0.0
  %1235 = vmatpush1.msra.mxu0 0.0
  %1236 = vmatprep.subr.mxu0 0.0
  %1237 = vmatpush1.msra.mxu0 0.0
  %1238 = vmatprep.subr.mxu0 0.0
  %1239 = vmatpush1.msra.mxu0 0.0
  %1240 = vmatprep.subr.mxu0 0.0
  %1241 = vmatpush1.msra.mxu0 0.0
  %1242 = vmatprep.subr.mxu0 0.0
  %1243 = vmatpush1.msra.mxu0 0.0
  %1244 = vmatprep.subr.mxu0 0.0
  %1245 = vmatpush1.msra.mxu0 0.0
  %1246 = vmatprep.subr.mxu0 0.0
  %1247 = vmatpush1.msra.mxu0 0.0
  %1248 = vmatprep.subr.mxu0 0.0
  %1249 = vmatpush1.msra.mxu0 0.0
  %1250 = vmatprep.subr.mxu0 0.0
  %1251 = vmatpush1.msra.mxu0 0.0
  %1252 = vmatprep.subr.mxu0 0.0
  %1253 = vmatpush1.msra.mxu0 0.0
  %1254 = vmatprep.subr.mxu0 0.0
  %1255 = vmatpush1.msra.mxu0 0.0
  %1256 = vmatprep.subr.mxu0 0.0
  %1257 = vmatpush1.msra.mxu0 0.0
  %1258 = vmatprep.subr.mxu0 0.0
  %1259 = vmatpush1.msra.mxu0 0.0
  %1260 = vmatprep.subr.mxu0 0.0
  %1261 = vmatpush1.msra.mxu0 0.0
  %1262 = vmatprep.subr.mxu0 0.0
  %1263 = vmatpush1.msra.mxu0 0.0
  %1264 = vmatprep.subr.mxu0 0.0
  %1265 = vmatpush1.msra.mxu0 0.0
  %1266 = vmatprep.subr.mxu0 0.0
  %1267 = vmatpush1.msra.mxu0 0.0
  %1268 = vmatprep.subr.mxu0 0.0
  %1269 = vmatpush1.msra.mxu0 0.0
  %1270 = vmatprep.subr.mxu0 0.0
  %1271 = vmatpush1.msra.mxu0 0.0
  %1272 = vmatprep.subr.mxu0 0.0
  %1273 = vmatpush1.msra.mxu0 0.0
  %1274 = vmatprep.mubr.f32.mxu0 0.0
  %1275 = vmatmul.mubr.f32.gmra.mrb[0].mxu0 %v1115
  %v1276 = vpop.f32.mrb[0].mxu0
  %v1277 = vadd.f32 0.0, %v1276
  %v1278 = vpop.f32.mrb[0].mxu0
  %1279 = vmatprep.mubr.f32.mxu0 0.0
  %1280 = vmatmul.mubr.f32.gmra.mrb[0].mxu0 %v1118
  %v1281 = vpop.f32.mrb[0].mxu0
  %v1282 = vadd.f32 0.0, %v1281
  %v1283 = vpop.f32.mrb[0].mxu0
  %1284 = vmatprep.mubr.f32.mxu0 0.0
  %1285 = vmatmul.mubr.f32.gmra.mrb[0].mxu0 %v1121
  %v1286 = vpop.f32.mrb[0].mxu0
  %v1287 = vadd.f32 0.0, %v1286
  %v1288 = vpop.f32.mrb[0].mxu0
  %1289 = vmatprep.mubr.f32.mxu0 0.0
  %1290 = vmatmul.mubr.f32.gmra.mrb[0].mxu0 %v1124
  %v1291 = vpop.f32.mrb[0].mxu0
  %v1292 = vadd.f32 0.0, %v1291
  %v1293 = vpop.f32.mrb[0].mxu0
  %1294 = vmatprep.mubr.f32.mxu0 0.0
  %1295 = vmatmul.mubr.f32.gmra.mrb[0].mxu0 %v1127
  %v1296 = vpop.f32.mrb[0].mxu0
  %v1297 = vadd.f32 0.0, %v1296
  %v1298 = vpop.f32.mrb[0].mxu0
  %1299 = vmatprep.mubr.f32.mxu0 0.0
  %1300 = vmatmul.mubr.f32.gmra.mrb[0].mxu0 %v1130
  %v1301 = vpop.f32.mrb[0].mxu0
  %v1302 = vadd.f32 0.0, %v1301
  %v1303 = vpop.f32.mrb[0].mxu0
  %1304 = vmatprep.mubr.f32.mxu0 0.0
  %1305 = vmatmul.mubr.f32.gmra.mrb[0].mxu0 %v1133
  %v1306 = vpop.f32.mrb[0].mxu0
  %v1307 = vadd.f32 0.0, %v1306
  %v1308 = vpop.f32.mrb[0].mxu0
  %1309 = vmatprep.mubr.f32.mxu0 0.0
  %1310 = vmatmul.mubr.f32.gmra.mrb[0].mxu0 %v1136
  %v1311 = vpop.f32.mrb[0].mxu0
  %v1312 = vadd.f32 0.0, %v1311
  %v1313 = vpop.f32.mrb[0].mxu0
  %1314 = vmatprep.mubr.f32.mxu0 0.0
  %1315 = vmatmul.mubr.f32.gmra.mrb[0].mxu0 %v1139
  %v1316 = vpop.f32.mrb[0].mxu0
  %v1317 = vadd.f32 0.0, %v1316
  %v1318 = vpop.f32.mrb[0].mxu0
  %1319 = vmatprep.mubr.f32.mxu0 0.0
  %1320 = vmatmul.mubr.f32.gmra.mrb[0].mxu0 %v1142
  %v1321 = vpop.f32.mrb[0].mxu0
  %v1322 = vadd.f32 0.0, %v1321
  %v1323 = vpop.f32.mrb[0].mxu0
  %1324 = vmatprep.mubr.f32.mxu0 0.0
  %1325 = vmatmul.mubr.f32.gmra.mrb[0].mxu0 %v1145
  %v1326 = vpop.f32.mrb[0].mxu0
  %v1327 = vadd.f32 0.0, %v1326
  %v1328 = vpop.f32.mrb[0].mxu0
  %1329 = vmatprep.mubr.f32.mxu0 0.0
  %1330 = vmatmul.mubr.f32.gmra.mrb[0].mxu0 %v1148
  %v1331 = vpop.f32.mrb[0].mxu0
  %v1332 = vadd.f32 0.0, %v1331
  %v1333 = vpop.f32.mrb[0].mxu0
  %1334 = vmatprep.mubr.f32.mxu0 0.0
  %1335 = vmatmul.mubr.f32.gmra.mrb[0].mxu0 %v1151
  %v1336 = vpop.f32.mrb[0].mxu0
  %v1337 = vadd.f32 0.0, %v1336
  %v1338 = vpop.f32.mrb[0].mxu0
  %1339 = vmatprep.mubr.f32.mxu0 0.0
  %1340 = vmatmul.mubr.f32.gmra.mrb[0].mxu0 %v1154
  %v1341 = vpop.f32.mrb[0].mxu0
  %v1342 = vadd.f32 0.0, %v1341
  %v1343 = vpop.f32.mrb[0].mxu0
  %1344 = vmatprep.mubr.f32.mxu0 0.0
  %1345 = vmatmul.mubr.f32.gmra.mrb[0].mxu0 %v1157
  %v1346 = vpop.f32.mrb[0].mxu0
  %v1347 = vadd.f32 0.0, %v1346
  %v1348 = vpop.f32.mrb[0].mxu0
  %1349 = vmatprep.mubr.f32.mxu0 0.0
  %1350 = vmatmul.mubr.f32.gmra.mrb[0].mxu0 %v1160
  %v1351 = vpop.f32.mrb[0].mxu0
  %v1352 = vadd.f32 0.0, %v1351
  %v1353 = vpop.f32.mrb[0].mxu0
  %1354 = vmatprep.mubr.f32.mxu0 0.0
  %1355 = vmatmul.mubr.f32.gmra.mrb[0].mxu0 %v1163
  %v1356 = vpop.f32.mrb[0].mxu0
  %v1357 = vadd.f32 0.0, %v1356
  %v1358 = vpop.f32.mrb[0].mxu0
  %1359 = vmatprep.mubr.f32.mxu0 0.0
  %1360 = vmatmul.mubr.f32.gmra.mrb[0].mxu0 %v1166
  %v1361 = vpop.f32.mrb[0].mxu0
  %v1362 = vadd.f32 0.0, %v1361
  %v1363 = vpop.f32.mrb[0].mxu0
  %1364 = vmatprep.mubr.f32.mxu0 0.0
  %1365 = vmatmul.mubr.f32.gmra.mrb[0].mxu0 %v1169
  %v1366 = vpop.f32.mrb[0].mxu0
  %v1367 = vadd.f32 0.0, %v1366
  %v1368 = vpop.f32.mrb[0].mxu0
  %1369 = vmatprep.mubr.f32.mxu0 0.0
  %1370 = vmatmul.mubr.f32.gmra.mrb[0].mxu0 %v1172
  %v1371 = vpop.f32.mrb[0].mxu0
  %v1372 = vadd.f32 0.0, %v1371
  %v1373 = vpop.f32.mrb[0].mxu0
  %1374 = vmatprep.mubr.f32.mxu0 0.0
  %1375 = vmatmul.mubr.f32.gmra.mrb[0].mxu0 %v1175
  %v1376 = vpop.f32.mrb[0].mxu0
  %v1377 = vadd.f32 0.0, %v1376
  %v1378 = vpop.f32.mrb[0].mxu0
  %1379 = vmatprep.mubr.f32.mxu0 0.0
  %1380 = vmatmul.mubr.f32.gmra.mrb[0].mxu0 %v1178
  %v1381 = vpop.f32.mrb[0].mxu0
  %v1382 = vadd.f32 0.0, %v1381
  %v1383 = vpop.f32.mrb[0].mxu0
  %1384 = vmatprep.mubr.f32.mxu0 0.0
  %1385 = vmatmul.mubr.f32.gmra.mrb[0].mxu0 %v1181
  %v1386 = vpop.f32.mrb[0].mxu0
  %v1387 = vadd.f32 0.0, %v1386
  %v1388 = vpop.f32.mrb[0].mxu0
  %1389 = vmatprep.mubr.f32.mxu0 0.0
  %1390 = vmatmul.mubr.f32.gmra.mrb[0].mxu0 %v1184
  %v1391 = vpop.f32.mrb[0].mxu0
  %v1392 = vadd.f32 0.0, %v1391
  %v1393 = vpop.f32.mrb[0].mxu0
  %1394 = vmatprep.mubr.f32.mxu0 0.0
  %1395 = vmatmul.mubr.f32.gmra.mrb[0].mxu0 %v1187
  %v1396 = vpop.f32.mrb[0].mxu0
  %v1397 = vadd.f32 0.0, %v1396
  %v1398 = vpop.f32.mrb[0].mxu0
  %1399 = vmatprep.mubr.f32.mxu0 0.0
  %1400 = vmatmul.mubr.f32.gmra.mrb[0].mxu0 %v1190
  %v1401 = vpop.f32.mrb[0].mxu0
  %v1402 = vadd.f32 0.0, %v1401
  %v1403 = vpop.f32.mrb[0].mxu0
  %1404 = vmatprep.mubr.f32.mxu0 0.0
  %1405 = vmatmul.mubr.f32.gmra.mrb[0].mxu0 %v1193
  %v1406 = vpop.f32.mrb[0].mxu0
  %v1407 = vadd.f32 0.0, %v1406
  %v1408 = vpop.f32.mrb[0].mxu0
  %1409 = vmatprep.mubr.f32.mxu0 0.0
  %1410 = vmatmul.mubr.f32.gmra.mrb[0].mxu0 %v1196
  %v1411 = vpop.f32.mrb[0].mxu0
  %v1412 = vadd.f32 0.0, %v1411
  %v1413 = vpop.f32.mrb[0].mxu0
  %1414 = vmatprep.mubr.f32.mxu0 0.0
  %1415 = vmatmul.mubr.f32.gmra.mrb[0].mxu0 %v1199
  %v1416 = vpop.f32.mrb[0].mxu0
  %v1417 = vadd.f32 0.0, %v1416
  %v1418 = vpop.f32.mrb[0].mxu0
  %1419 = vmatprep.mubr.f32.mxu0 0.0
  %1420 = vmatmul.mubr.f32.gmra.mrb[0].mxu0 %v1202
  %v1421 = vpop.f32.mrb[0].mxu0
  %v1422 = vadd.f32 0.0, %v1421
  %v1423 = vpop.f32.mrb[0].mxu0
  %1424 = vmatprep.mubr.f32.mxu0 0.0
  %1425 = vmatmul.mubr.f32.gmra.mrb[0].mxu0 %v1205
  %v1426 = vpop.f32.mrb[0].mxu0
  %v1427 = vadd.f32 0.0, %v1426
  %v1428 = vpop.f32.mrb[0].mxu0
  %1429 = vmatprep.mubr.f32.mxu0 0.0
  %1430 = vmatmul.mubr.f32.gmra.mrb[0].mxu0 %v1208
  %v1431 = vpop.f32.mrb[0].mxu0
  %v1432 = vadd.f32 0.0, %v1431
  %v1433 = vpop.f32.mrb[0].mxu0
  %1434 = vdwg.mxu0
  %v1435 = vmax.f32 %v604, %v1277
  %v1436 = vmax.f32 %v609, %v1282
  %v1437 = vmax.f32 %v614, %v1287
  %v1438 = vmax.f32 %v619, %v1292
  %v1439 = vmax.f32 %v624, %v1297
  %v1440 = vmax.f32 %v629, %v1302
  %v1441 = vmax.f32 %v634, %v1307
  %v1442 = vmax.f32 %v639, %v1312
  %v1443 = vmax.f32 %v644, %v1317
  %v1444 = vmax.f32 %v649, %v1322
  %v1445 = vmax.f32 %v654, %v1327
  %v1446 = vmax.f32 %v659, %v1332
  %v1447 = vmax.f32 %v664, %v1337
  %v1448 = vmax.f32 %v669, %v1342
  %v1449 = vmax.f32 %v674, %v1347
  %v1450 = vmax.f32 %v679, %v1352
  %v1451 = vmax.f32 %v684, %v1357
  %v1452 = vmax.f32 %v689, %v1362
  %v1453 = vmax.f32 %v694, %v1367
  %v1454 = vmax.f32 %v699, %v1372
  %v1455 = vmax.f32 %v704, %v1377
  %v1456 = vmax.f32 %v709, %v1382
  %v1457 = vmax.f32 %v714, %v1387
  %v1458 = vmax.f32 %v719, %v1392
  %v1459 = vmax.f32 %v724, %v1397
  %v1460 = vmax.f32 %v729, %v1402
  %v1461 = vmax.f32 %v734, %v1407
  %v1462 = vmax.f32 %v739, %v1412
  %v1463 = vmax.f32 %v744, %v1417
  %v1464 = vmax.f32 %v749, %v1422
  %v1465 = vmax.f32 %v754, %v1427
  %v1466 = vmax.f32 %v759, %v1432
  %1467 = vset.pattern.permute.xlu0 3
  %1468 = vperm.xlu0 %1467, %v17
  %v1469 = vpop.permute.xlu0 %1468
  %1470 = vset.pattern.permute.xlu0 3
  %1471 = vperm.xlu0 %1470, %v18
  %v1472 = vpop.permute.xlu0 %1471
  %1473 = vset.pattern.permute.xlu0 3
  %1474 = vperm.xlu0 %1473, %v19
  %v1475 = vpop.permute.xlu0 %1474
  %1476 = vset.pattern.permute.xlu0 3
  %1477 = vperm.xlu0 %1476, %v20
  %v1478 = vpop.permute.xlu0 %1477
  %1479 = vset.pattern.permute.xlu0 3
  %1480 = vperm.xlu0 %1479, %v21
  %v1481 = vpop.permute.xlu0 %1480
  %1482 = vset.pattern.permute.xlu0 3
  %1483 = vperm.xlu0 %1482, %v22
  %v1484 = vpop.permute.xlu0 %1483
  %1485 = vset.pattern.permute.xlu0 3
  %1486 = vperm.xlu0 %1485, %v23
  %v1487 = vpop.permute.xlu0 %1486
  %1488 = vset.pattern.permute.xlu0 3
  %1489 = vperm.xlu0 %1488, %v24
  %v1490 = vpop.permute.xlu0 %1489
  %1491 = vset.pattern.permute.xlu0 3
  %1492 = vperm.xlu0 %1491, %v25
  %v1493 = vpop.permute.xlu0 %1492
  %1494 = vset.pattern.permute.xlu0 3
  %1495 = vperm.xlu0 %1494, %v26
  %v1496 = vpop.permute.xlu0 %1495
  %1497 = vset.pattern.permute.xlu0 3
  %1498 = vperm.xlu0 %1497, %v27
  %v1499 = vpop.permute.xlu0 %1498
  %1500 = vset.pattern.permute.xlu0 3
  %1501 = vperm.xlu0 %1500, %v28
  %v1502 = vpop.permute.xlu0 %1501
  %1503 = vset.pattern.permute.xlu0 3
  %1504 = vperm.xlu0 %1503, %v29
  %v1505 = vpop.permute.xlu0 %1504
  %1506 = vset.pattern.permute.xlu0 3
  %1507 = vperm.xlu0 %1506, %v30
  %v1508 = vpop.permute.xlu0 %1507
  %1509 = vset.pattern.permute.xlu0 3
  %1510 = vperm.xlu0 %1509, %v31
  %v1511 = vpop.permute.xlu0 %1510
  %1512 = vset.pattern.permute.xlu0 3
  %1513 = vperm.xlu0 %1512, %v32
  %v1514 = vpop.permute.xlu0 %1513
  %1515 = vset.pattern.permute.xlu0 3
  %1516 = vperm.xlu0 %1515, %v33
  %v1517 = vpop.permute.xlu0 %1516
  %1518 = vset.pattern.permute.xlu0 3
  %1519 = vperm.xlu0 %1518, %v34
  %v1520 = vpop.permute.xlu0 %1519
  %1521 = vset.pattern.permute.xlu0 3
  %1522 = vperm.xlu0 %1521, %v35
  %v1523 = vpop.permute.xlu0 %1522
  %1524 = vset.pattern.permute.xlu0 3
  %1525 = vperm.xlu0 %1524, %v36
  %v1526 = vpop.permute.xlu0 %1525
  %1527 = vset.pattern.permute.xlu0 3
  %1528 = vperm.xlu0 %1527, %v37
  %v1529 = vpop.permute.xlu0 %1528
  %1530 = vset.pattern.permute.xlu0 3
  %1531 = vperm.xlu0 %1530, %v38
  %v1532 = vpop.permute.xlu0 %1531
  %1533 = vset.pattern.permute.xlu0 3
  %1534 = vperm.xlu0 %1533, %v39
  %v1535 = vpop.permute.xlu0 %1534
  %1536 = vset.pattern.permute.xlu0 3
  %1537 = vperm.xlu0 %1536, %v40
  %v1538 = vpop.permute.xlu0 %1537
  %1539 = vset.pattern.permute.xlu0 3
  %1540 = vperm.xlu0 %1539, %v41
  %v1541 = vpop.permute.xlu0 %1540
  %1542 = vset.pattern.permute.xlu0 3
  %1543 = vperm.xlu0 %1542, %v42
  %v1544 = vpop.permute.xlu0 %1543
  %1545 = vset.pattern.permute.xlu0 3
  %1546 = vperm.xlu0 %1545, %v43
  %v1547 = vpop.permute.xlu0 %1546
  %1548 = vset.pattern.permute.xlu0 3
  %1549 = vperm.xlu0 %1548, %v44
  %v1550 = vpop.permute.xlu0 %1549
  %1551 = vset.pattern.permute.xlu0 3
  %1552 = vperm.xlu0 %1551, %v45
  %v1553 = vpop.permute.xlu0 %1552
  %1554 = vset.pattern.permute.xlu0 3
  %1555 = vperm.xlu0 %1554, %v46
  %v1556 = vpop.permute.xlu0 %1555
  %1557 = vset.pattern.permute.xlu0 3
  %1558 = vperm.xlu0 %1557, %v47
  %v1559 = vpop.permute.xlu0 %1558
  %1560 = vset.pattern.permute.xlu0 3
  %1561 = vperm.xlu0 %1560, %v48
  %v1562 = vpop.permute.xlu0 %1561
  %vm1563 = vcmp.eq.s32.totalorder %v55, %v1469
  %vm1564 = vcmp.eq.s32.totalorder %v55, %v1472
  %vm1565 = vcmp.eq.s32.totalorder %v55, %v1475
  %vm1566 = vcmp.eq.s32.totalorder %v55, %v1478
  %vm1567 = vcmp.eq.s32.totalorder %v55, %v1481
  %vm1568 = vcmp.eq.s32.totalorder %v55, %v1484
  %vm1569 = vcmp.eq.s32.totalorder %v55, %v1487
  %vm1570 = vcmp.eq.s32.totalorder %v55, %v1490
  %vm1571 = vcmp.eq.s32.totalorder %v55, %v1493
  %vm1572 = vcmp.eq.s32.totalorder %v55, %v1496
  %vm1573 = vcmp.eq.s32.totalorder %v55, %v1499
  %vm1574 = vcmp.eq.s32.totalorder %v55, %v1502
  %vm1575 = vcmp.eq.s32.totalorder %v55, %v1505
  %vm1576 = vcmp.eq.s32.totalorder %v55, %v1508
  %vm1577 = vcmp.eq.s32.totalorder %v55, %v1511
  %vm1578 = vcmp.eq.s32.totalorder %v55, %v1514
  %vm1579 = vcmp.eq.s32.totalorder %v55, %v1517
  %vm1580 = vcmp.eq.s32.totalorder %v55, %v1520
  %vm1581 = vcmp.eq.s32.totalorder %v55, %v1523
  %vm1582 = vcmp.eq.s32.totalorder %v55, %v1526
  %vm1583 = vcmp.eq.s32.totalorder %v55, %v1529
  %vm1584 = vcmp.eq.s32.totalorder %v55, %v1532
  %vm1585 = vcmp.eq.s32.totalorder %v55, %v1535
  %vm1586 = vcmp.eq.s32.totalorder %v55, %v1538
  %vm1587 = vcmp.eq.s32.totalorder %v55, %v1541
  %vm1588 = vcmp.eq.s32.totalorder %v55, %v1544
  %vm1589 = vcmp.eq.s32.totalorder %v55, %v1547
  %vm1590 = vcmp.eq.s32.totalorder %v55, %v1550
  %vm1591 = vcmp.eq.s32.totalorder %v55, %v1553
  %vm1592 = vcmp.eq.s32.totalorder %v55, %v1556
  %vm1593 = vcmp.eq.s32.totalorder %v55, %v1559
  %vm1594 = vcmp.eq.s32.totalorder %v55, %v1562
  %1595 = vset.pattern.permute.xlu0 4
  %1596 = vperm.xlu0 %1595, %v184
  %v1597 = vpop.permute.xlu0 %1596
  %1598 = vset.pattern.permute.xlu0 4
  %1599 = vperm.xlu0 %1598, %v185
  %v1600 = vpop.permute.xlu0 %1599
  %1601 = vset.pattern.permute.xlu0 4
  %1602 = vperm.xlu0 %1601, %v186
  %v1603 = vpop.permute.xlu0 %1602
  %1604 = vset.pattern.permute.xlu0 4
  %1605 = vperm.xlu0 %1604, %v187
  %v1606 = vpop.permute.xlu0 %1605
  %1607 = vset.pattern.permute.xlu0 4
  %1608 = vperm.xlu0 %1607, %v188
  %v1609 = vpop.permute.xlu0 %1608
  %1610 = vset.pattern.permute.xlu0 4
  %1611 = vperm.xlu0 %1610, %v189
  %v1612 = vpop.permute.xlu0 %1611
  %1613 = vset.pattern.permute.xlu0 4
  %1614 = vperm.xlu0 %1613, %v190
  %v1615 = vpop.permute.xlu0 %1614
  %1616 = vset.pattern.permute.xlu0 4
  %1617 = vperm.xlu0 %1616, %v191
  %v1618 = vpop.permute.xlu0 %1617
  %1619 = vset.pattern.permute.xlu0 4
  %1620 = vperm.xlu0 %1619, %v192
  %v1621 = vpop.permute.xlu0 %1620
  %1622 = vset.pattern.permute.xlu0 4
  %1623 = vperm.xlu0 %1622, %v193
  %v1624 = vpop.permute.xlu0 %1623
  %1625 = vset.pattern.permute.xlu0 4
  %1626 = vperm.xlu0 %1625, %v194
  %v1627 = vpop.permute.xlu0 %1626
  %1628 = vset.pattern.permute.xlu0 4
  %1629 = vperm.xlu0 %1628, %v195
  %v1630 = vpop.permute.xlu0 %1629
  %1631 = vset.pattern.permute.xlu0 4
  %1632 = vperm.xlu0 %1631, %v196
  %v1633 = vpop.permute.xlu0 %1632
  %1634 = vset.pattern.permute.xlu0 4
  %1635 = vperm.xlu0 %1634, %v197
  %v1636 = vpop.permute.xlu0 %1635
  %1637 = vset.pattern.permute.xlu0 4
  %1638 = vperm.xlu0 %1637, %v198
  %v1639 = vpop.permute.xlu0 %1638
  %1640 = vset.pattern.permute.xlu0 4
  %1641 = vperm.xlu0 %1640, %v199
  %v1642 = vpop.permute.xlu0 %1641
  %1643 = vset.pattern.permute.xlu0 4
  %1644 = vperm.xlu0 %1643, %v200
  %v1645 = vpop.permute.xlu0 %1644
  %1646 = vset.pattern.permute.xlu0 4
  %1647 = vperm.xlu0 %1646, %v201
  %v1648 = vpop.permute.xlu0 %1647
  %1649 = vset.pattern.permute.xlu0 4
  %1650 = vperm.xlu0 %1649, %v202
  %v1651 = vpop.permute.xlu0 %1650
  %1652 = vset.pattern.permute.xlu0 4
  %1653 = vperm.xlu0 %1652, %v203
  %v1654 = vpop.permute.xlu0 %1653
  %1655 = vset.pattern.permute.xlu0 4
  %1656 = vperm.xlu0 %1655, %v204
  %v1657 = vpop.permute.xlu0 %1656
  %1658 = vset.pattern.permute.xlu0 4
  %1659 = vperm.xlu0 %1658, %v205
  %v1660 = vpop.permute.xlu0 %1659
  %1661 = vset.pattern.permute.xlu0 4
  %1662 = vperm.xlu0 %1661, %v206
  %v1663 = vpop.permute.xlu0 %1662
  %1664 = vset.pattern.permute.xlu0 4
  %1665 = vperm.xlu0 %1664, %v207
  %v1666 = vpop.permute.xlu0 %1665
  %1667 = vset.pattern.permute.xlu0 4
  %1668 = vperm.xlu0 %1667, %v208
  %v1669 = vpop.permute.xlu0 %1668
  %1670 = vset.pattern.permute.xlu0 4
  %1671 = vperm.xlu0 %1670, %v209
  %v1672 = vpop.permute.xlu0 %1671
  %1673 = vset.pattern.permute.xlu0 4
  %1674 = vperm.xlu0 %1673, %v210
  %v1675 = vpop.permute.xlu0 %1674
  %1676 = vset.pattern.permute.xlu0 4
  %1677 = vperm.xlu0 %1676, %v211
  %v1678 = vpop.permute.xlu0 %1677
  %1679 = vset.pattern.permute.xlu0 4
  %1680 = vperm.xlu0 %1679, %v212
  %v1681 = vpop.permute.xlu0 %1680
  %1682 = vset.pattern.permute.xlu0 4
  %1683 = vperm.xlu0 %1682, %v213
  %v1684 = vpop.permute.xlu0 %1683
  %1685 = vset.pattern.permute.xlu0 4
  %1686 = vperm.xlu0 %1685, %v214
  %v1687 = vpop.permute.xlu0 %1686
  %1688 = vset.pattern.permute.xlu0 4
  %1689 = vperm.xlu0 %1688, %v215
  %v1690 = vpop.permute.xlu0 %1689
  %vm1691 = vcmp.eq.s32.totalorder %v55, %v1597
  %vm1692 = vcmp.eq.s32.totalorder %v55, %v1600
  %vm1693 = vcmp.eq.s32.totalorder %v55, %v1603
  %vm1694 = vcmp.eq.s32.totalorder %v55, %v1606
  %vm1695 = vcmp.eq.s32.totalorder %v55, %v1609
  %vm1696 = vcmp.eq.s32.totalorder %v55, %v1612
  %vm1697 = vcmp.eq.s32.totalorder %v55, %v1615
  %vm1698 = vcmp.eq.s32.totalorder %v55, %v1618
  %vm1699 = vcmp.eq.s32.totalorder %v55, %v1621
  %vm1700 = vcmp.eq.s32.totalorder %v55, %v1624
  %vm1701 = vcmp.eq.s32.totalorder %v55, %v1627
  %vm1702 = vcmp.eq.s32.totalorder %v55, %v1630
  %vm1703 = vcmp.eq.s32.totalorder %v55, %v1633
  %vm1704 = vcmp.eq.s32.totalorder %v55, %v1636
  %vm1705 = vcmp.eq.s32.totalorder %v55, %v1639
  %vm1706 = vcmp.eq.s32.totalorder %v55, %v1642
  %vm1707 = vcmp.eq.s32.totalorder %v55, %v1645
  %vm1708 = vcmp.eq.s32.totalorder %v55, %v1648
  %vm1709 = vcmp.eq.s32.totalorder %v55, %v1651
  %vm1710 = vcmp.eq.s32.totalorder %v55, %v1654
  %vm1711 = vcmp.eq.s32.totalorder %v55, %v1657
  %vm1712 = vcmp.eq.s32.totalorder %v55, %v1660
  %vm1713 = vcmp.eq.s32.totalorder %v55, %v1663
  %vm1714 = vcmp.eq.s32.totalorder %v55, %v1666
  %vm1715 = vcmp.eq.s32.totalorder %v55, %v1669
  %vm1716 = vcmp.eq.s32.totalorder %v55, %v1672
  %vm1717 = vcmp.eq.s32.totalorder %v55, %v1675
  %vm1718 = vcmp.eq.s32.totalorder %v55, %v1678
  %vm1719 = vcmp.eq.s32.totalorder %v55, %v1681
  %vm1720 = vcmp.eq.s32.totalorder %v55, %v1684
  %vm1721 = vcmp.eq.s32.totalorder %v55, %v1687
  %vm1722 = vcmp.eq.s32.totalorder %v55, %v1690
  %vm1723 = vmor %vm1563, %vm1691
  %vm1724 = vmor %vm1564, %vm1692
  %vm1725 = vmor %vm1565, %vm1693
  %vm1726 = vmor %vm1566, %vm1694
  %vm1727 = vmor %vm1567, %vm1695
  %vm1728 = vmor %vm1568, %vm1696
  %vm1729 = vmor %vm1569, %vm1697
  %vm1730 = vmor %vm1570, %vm1698
  %vm1731 = vmor %vm1571, %vm1699
  %vm1732 = vmor %vm1572, %vm1700
  %vm1733 = vmor %vm1573, %vm1701
  %vm1734 = vmor %vm1574, %vm1702
  %vm1735 = vmor %vm1575, %vm1703
  %vm1736 = vmor %vm1576, %vm1704
  %vm1737 = vmor %vm1577, %vm1705
  %vm1738 = vmor %vm1578, %vm1706
  %vm1739 = vmor %vm1579, %vm1707
  %vm1740 = vmor %vm1580, %vm1708
  %vm1741 = vmor %vm1581, %vm1709
  %vm1742 = vmor %vm1582, %vm1710
  %vm1743 = vmor %vm1583, %vm1711
  %vm1744 = vmor %vm1584, %vm1712
  %vm1745 = vmor %vm1585, %vm1713
  %vm1746 = vmor %vm1586, %vm1714
  %vm1747 = vmor %vm1587, %vm1715
  %vm1748 = vmor %vm1588, %vm1716
  %vm1749 = vmor %vm1589, %vm1717
  %vm1750 = vmor %vm1590, %vm1718
  %vm1751 = vmor %vm1591, %vm1719
  %vm1752 = vmor %vm1592, %vm1720
  %vm1753 = vmor %vm1593, %vm1721
  %vm1754 = vmor %vm1594, %vm1722
  %v1755 = vsel %vm1723, 1, 0
  %v1756 = vsel %vm1724, 1, 0
  %v1757 = vsel %vm1725, 1, 0
  %v1758 = vsel %vm1726, 1, 0
  %v1759 = vsel %vm1727, 1, 0
  %v1760 = vsel %vm1728, 1, 0
  %v1761 = vsel %vm1729, 1, 0
  %v1762 = vsel %vm1730, 1, 0
  %v1763 = vsel %vm1731, 1, 0
  %v1764 = vsel %vm1732, 1, 0
  %v1765 = vsel %vm1733, 1, 0
  %v1766 = vsel %vm1734, 1, 0
  %v1767 = vsel %vm1735, 1, 0
  %v1768 = vsel %vm1736, 1, 0
  %v1769 = vsel %vm1737, 1, 0
  %v1770 = vsel %vm1738, 1, 0
  %v1771 = vsel %vm1739, 1, 0
  %v1772 = vsel %vm1740, 1, 0
  %v1773 = vsel %vm1741, 1, 0
  %v1774 = vsel %vm1742, 1, 0
  %v1775 = vsel %vm1743, 1, 0
  %v1776 = vsel %vm1744, 1, 0
  %v1777 = vsel %vm1745, 1, 0
  %v1778 = vsel %vm1746, 1, 0
  %v1779 = vsel %vm1747, 1, 0
  %v1780 = vsel %vm1748, 1, 0
  %v1781 = vsel %vm1749, 1, 0
  %v1782 = vsel %vm1750, 1, 0
  %v1783 = vsel %vm1751, 1, 0
  %v1784 = vsel %vm1752, 1, 0
  %v1785 = vsel %vm1753, 1, 0
  %v1786 = vsel %vm1754, 1, 0
  %v1787 = vcvt.s32.f32 %v1755
  %v1788 = vcvt.s32.f32 %v1756
  %v1789 = vcvt.s32.f32 %v1757
  %v1790 = vcvt.s32.f32 %v1758
  %v1791 = vcvt.s32.f32 %v1759
  %v1792 = vcvt.s32.f32 %v1760
  %v1793 = vcvt.s32.f32 %v1761
  %v1794 = vcvt.s32.f32 %v1762
  %v1795 = vcvt.s32.f32 %v1763
  %v1796 = vcvt.s32.f32 %v1764
  %v1797 = vcvt.s32.f32 %v1765
  %v1798 = vcvt.s32.f32 %v1766
  %v1799 = vcvt.s32.f32 %v1767
  %v1800 = vcvt.s32.f32 %v1768
  %v1801 = vcvt.s32.f32 %v1769
  %v1802 = vcvt.s32.f32 %v1770
  %v1803 = vcvt.s32.f32 %v1771
  %v1804 = vcvt.s32.f32 %v1772
  %v1805 = vcvt.s32.f32 %v1773
  %v1806 = vcvt.s32.f32 %v1774
  %v1807 = vcvt.s32.f32 %v1775
  %v1808 = vcvt.s32.f32 %v1776
  %v1809 = vcvt.s32.f32 %v1777
  %v1810 = vcvt.s32.f32 %v1778
  %v1811 = vcvt.s32.f32 %v1779
  %v1812 = vcvt.s32.f32 %v1780
  %v1813 = vcvt.s32.f32 %v1781
  %v1814 = vcvt.s32.f32 %v1782
  %v1815 = vcvt.s32.f32 %v1783
  %v1816 = vcvt.s32.f32 %v1784
  %v1817 = vcvt.s32.f32 %v1785
  %v1818 = vcvt.s32.f32 %v1786
  %v1820 = vsel %vm440, %v1787, 0
  %v1823 = vsel %vm440, %v1788, 0
  %v1826 = vsel %vm440, %v1789, 0
  %v1829 = vsel %vm440, %v1790, 0
  %v1832 = vsel %vm440, %v1791, 0
  %v1835 = vsel %vm440, %v1792, 0
  %v1838 = vsel %vm440, %v1793, 0
  %v1841 = vsel %vm440, %v1794, 0
  %v1844 = vsel %vm440, %v1795, 0
  %v1847 = vsel %vm440, %v1796, 0
  %v1850 = vsel %vm440, %v1797, 0
  %v1853 = vsel %vm440, %v1798, 0
  %v1856 = vsel %vm440, %v1799, 0
  %v1859 = vsel %vm440, %v1800, 0
  %v1862 = vsel %vm440, %v1801, 0
  %v1865 = vsel %vm440, %v1802, 0
  %v1868 = vsel %vm440, %v1803, 0
  %v1871 = vsel %vm440, %v1804, 0
  %v1874 = vsel %vm440, %v1805, 0
  %v1877 = vsel %vm440, %v1806, 0
  %v1880 = vsel %vm440, %v1807, 0
  %v1883 = vsel %vm440, %v1808, 0
  %v1886 = vsel %vm440, %v1809, 0
  %v1889 = vsel %vm440, %v1810, 0
  %v1892 = vsel %vm440, %v1811, 0
  %v1895 = vsel %vm440, %v1812, 0
  %v1898 = vsel %vm440, %v1813, 0
  %v1901 = vsel %vm440, %v1814, 0
  %v1904 = vsel %vm440, %v1815, 0
  %v1907 = vsel %vm440, %v1816, 0
  %v1910 = vsel %vm440, %v1817, 0
  %v1913 = vsel %vm440, %v1818, 0
  %1915 = vmatprep.subr.mxu0 0.0
  %1916 = vmatpush1.msra.mxu0 %v49
  %1917 = vmatprep.subr.mxu0 0.0
  %1918 = vmatpush1.msra.mxu0 %v50
  %1919 = vmatprep.subr.mxu0 0.0
  %1920 = vmatpush1.msra.mxu0 %v51
  %1921 = vmatprep.subr.mxu0 0.0
  %1922 = vmatpush1.msra.mxu0 %v52
  %1923 = vmatprep.subr.mxu0 0.0
  %1924 = vmatpush1.msra.mxu0 %v53
  %1925 = vmatprep.subr.mxu0 0.0
  %1926 = vmatpush1.msra.mxu0 0.0
  %1927 = vmatprep.subr.mxu0 0.0
  %1928 = vmatpush1.msra.mxu0 0.0
  %1929 = vmatprep.subr.mxu0 0.0
  %1930 = vmatpush1.msra.mxu0 0.0
  %1931 = vmatprep.subr.mxu0 0.0
  %1932 = vmatpush1.msra.mxu0 0.0
  %1933 = vmatprep.subr.mxu0 0.0
  %1934 = vmatpush1.msra.mxu0 0.0
  %1935 = vmatprep.subr.mxu0 0.0
  %1936 = vmatpush1.msra.mxu0 0.0
  %1937 = vmatprep.subr.mxu0 0.0
  %1938 = vmatpush1.msra.mxu0 0.0
  %1939 = vmatprep.subr.mxu0 0.0
  %1940 = vmatpush1.msra.mxu0 0.0
  %1941 = vmatprep.subr.mxu0 0.0
  %1942 = vmatpush1.msra.mxu0 0.0
  %1943 = vmatprep.subr.mxu0 0.0
  %1944 = vmatpush1.msra.mxu0 0.0
  %1945 = vmatprep.subr.mxu0 0.0
  %1946 = vmatpush1.msra.mxu0 0.0
  %1947 = vmatprep.subr.mxu0 0.0
  %1948 = vmatpush1.msra.mxu0 0.0
  %1949 = vmatprep.subr.mxu0 0.0
  %1950 = vmatpush1.msra.mxu0 0.0
  %1951 = vmatprep.subr.mxu0 0.0
  %1952 = vmatpush1.msra.mxu0 0.0
  %1953 = vmatprep.subr.mxu0 0.0
  %1954 = vmatpush1.msra.mxu0 0.0
  %1955 = vmatprep.subr.mxu0 0.0
  %1956 = vmatpush1.msra.mxu0 0.0
  %1957 = vmatprep.subr.mxu0 0.0
  %1958 = vmatpush1.msra.mxu0 0.0
  %1959 = vmatprep.subr.mxu0 0.0
  %1960 = vmatpush1.msra.mxu0 0.0
  %1961 = vmatprep.subr.mxu0 0.0
  %1962 = vmatpush1.msra.mxu0 0.0
  %1963 = vmatprep.subr.mxu0 0.0
  %1964 = vmatpush1.msra.mxu0 0.0
  %1965 = vmatprep.subr.mxu0 0.0
  %1966 = vmatpush1.msra.mxu0 0.0
  %1967 = vmatprep.subr.mxu0 0.0
  %1968 = vmatpush1.msra.mxu0 0.0
  %1969 = vmatprep.subr.mxu0 0.0
  %1970 = vmatpush1.msra.mxu0 0.0
  %1971 = vmatprep.subr.mxu0 0.0
  %1972 = vmatpush1.msra.mxu0 0.0
  %1973 = vmatprep.subr.mxu0 0.0
  %1974 = vmatpush1.msra.mxu0 0.0
  %1975 = vmatprep.subr.mxu0 0.0
  %1976 = vmatpush1.msra.mxu0 0.0
  %1977 = vmatprep.subr.mxu0 0.0
  %1978 = vmatpush1.msra.mxu0 0.0
  %1979 = vmatprep.mubr.f32.mxu0 0.0
  %1980 = vmatmul.mubr.f32.gmra.mrb[0].mxu0 %v1820
  %v1981 = vpop.f32.mrb[0].mxu0
  %v1982 = vadd.f32 0.0, %v1981
  %v1983 = vpop.f32.mrb[0].mxu0
  %1984 = vmatprep.mubr.f32.mxu0 0.0
  %1985 = vmatmul.mubr.f32.gmra.mrb[0].mxu0 %v1823
  %v1986 = vpop.f32.mrb[0].mxu0
  %v1987 = vadd.f32 0.0, %v1986
  %v1988 = vpop.f32.mrb[0].mxu0
  %1989 = vmatprep.mubr.f32.mxu0 0.0
  %1990 = vmatmul.mubr.f32.gmra.mrb[0].mxu0 %v1826
  %v1991 = vpop.f32.mrb[0].mxu0
  %v1992 = vadd.f32 0.0, %v1991
  %v1993 = vpop.f32.mrb[0].mxu0
  %1994 = vmatprep.mubr.f32.mxu0 0.0
  %1995 = vmatmul.mubr.f32.gmra.mrb[0].mxu0 %v1829
  %v1996 = vpop.f32.mrb[0].mxu0
  %v1997 = vadd.f32 0.0, %v1996
  %v1998 = vpop.f32.mrb[0].mxu0
  %1999 = vmatprep.mubr.f32.mxu0 0.0
  %2000 = vmatmul.mubr.f32.gmra.mrb[0].mxu0 %v1832
  %v2001 = vpop.f32.mrb[0].mxu0
  %v2002 = vadd.f32 0.0, %v2001
  %v2003 = vpop.f32.mrb[0].mxu0
  %2004 = vmatprep.mubr.f32.mxu0 0.0
  %2005 = vmatmul.mubr.f32.gmra.mrb[0].mxu0 %v1835
  %v2006 = vpop.f32.mrb[0].mxu0
  %v2007 = vadd.f32 0.0, %v2006
  %v2008 = vpop.f32.mrb[0].mxu0
  %2009 = vmatprep.mubr.f32.mxu0 0.0
  %2010 = vmatmul.mubr.f32.gmra.mrb[0].mxu0 %v1838
  %v2011 = vpop.f32.mrb[0].mxu0
  %v2012 = vadd.f32 0.0, %v2011
  %v2013 = vpop.f32.mrb[0].mxu0
  %2014 = vmatprep.mubr.f32.mxu0 0.0
  %2015 = vmatmul.mubr.f32.gmra.mrb[0].mxu0 %v1841
  %v2016 = vpop.f32.mrb[0].mxu0
  %v2017 = vadd.f32 0.0, %v2016
  %v2018 = vpop.f32.mrb[0].mxu0
  %2019 = vmatprep.mubr.f32.mxu0 0.0
  %2020 = vmatmul.mubr.f32.gmra.mrb[0].mxu0 %v1844
  %v2021 = vpop.f32.mrb[0].mxu0
  %v2022 = vadd.f32 0.0, %v2021
  %v2023 = vpop.f32.mrb[0].mxu0
  %2024 = vmatprep.mubr.f32.mxu0 0.0
  %2025 = vmatmul.mubr.f32.gmra.mrb[0].mxu0 %v1847
  %v2026 = vpop.f32.mrb[0].mxu0
  %v2027 = vadd.f32 0.0, %v2026
  %v2028 = vpop.f32.mrb[0].mxu0
  %2029 = vmatprep.mubr.f32.mxu0 0.0
  %2030 = vmatmul.mubr.f32.gmra.mrb[0].mxu0 %v1850
  %v2031 = vpop.f32.mrb[0].mxu0
  %v2032 = vadd.f32 0.0, %v2031
  %v2033 = vpop.f32.mrb[0].mxu0
  %2034 = vmatprep.mubr.f32.mxu0 0.0
  %2035 = vmatmul.mubr.f32.gmra.mrb[0].mxu0 %v1853
  %v2036 = vpop.f32.mrb[0].mxu0
  %v2037 = vadd.f32 0.0, %v2036
  %v2038 = vpop.f32.mrb[0].mxu0
  %2039 = vmatprep.mubr.f32.mxu0 0.0
  %2040 = vmatmul.mubr.f32.gmra.mrb[0].mxu0 %v1856
  %v2041 = vpop.f32.mrb[0].mxu0
  %v2042 = vadd.f32 0.0, %v2041
  %v2043 = vpop.f32.mrb[0].mxu0
  %2044 = vmatprep.mubr.f32.mxu0 0.0
  %2045 = vmatmul.mubr.f32.gmra.mrb[0].mxu0 %v1859
  %v2046 = vpop.f32.mrb[0].mxu0
  %v2047 = vadd.f32 0.0, %v2046
  %v2048 = vpop.f32.mrb[0].mxu0
  %2049 = vmatprep.mubr.f32.mxu0 0.0
  %2050 = vmatmul.mubr.f32.gmra.mrb[0].mxu0 %v1862
  %v2051 = vpop.f32.mrb[0].mxu0
  %v2052 = vadd.f32 0.0, %v2051
  %v2053 = vpop.f32.mrb[0].mxu0
  %2054 = vmatprep.mubr.f32.mxu0 0.0
  %2055 = vmatmul.mubr.f32.gmra.mrb[0].mxu0 %v1865
  %v2056 = vpop.f32.mrb[0].mxu0
  %v2057 = vadd.f32 0.0, %v2056
  %v2058 = vpop.f32.mrb[0].mxu0
  %2059 = vmatprep.mubr.f32.mxu0 0.0
  %2060 = vmatmul.mubr.f32.gmra.mrb[0].mxu0 %v1868
  %v2061 = vpop.f32.mrb[0].mxu0
  %v2062 = vadd.f32 0.0, %v2061
  %v2063 = vpop.f32.mrb[0].mxu0
  %2064 = vmatprep.mubr.f32.mxu0 0.0
  %2065 = vmatmul.mubr.f32.gmra.mrb[0].mxu0 %v1871
  %v2066 = vpop.f32.mrb[0].mxu0
  %v2067 = vadd.f32 0.0, %v2066
  %v2068 = vpop.f32.mrb[0].mxu0
  %2069 = vmatprep.mubr.f32.mxu0 0.0
  %2070 = vmatmul.mubr.f32.gmra.mrb[0].mxu0 %v1874
  %v2071 = vpop.f32.mrb[0].mxu0
  %v2072 = vadd.f32 0.0, %v2071
  %v2073 = vpop.f32.mrb[0].mxu0
  %2074 = vmatprep.mubr.f32.mxu0 0.0
  %2075 = vmatmul.mubr.f32.gmra.mrb[0].mxu0 %v1877
  %v2076 = vpop.f32.mrb[0].mxu0
  %v2077 = vadd.f32 0.0, %v2076
  %v2078 = vpop.f32.mrb[0].mxu0
  %2079 = vmatprep.mubr.f32.mxu0 0.0
  %2080 = vmatmul.mubr.f32.gmra.mrb[0].mxu0 %v1880
  %v2081 = vpop.f32.mrb[0].mxu0
  %v2082 = vadd.f32 0.0, %v2081
  %v2083 = vpop.f32.mrb[0].mxu0
  %2084 = vmatprep.mubr.f32.mxu0 0.0
  %2085 = vmatmul.mubr.f32.gmra.mrb[0].mxu0 %v1883
  %v2086 = vpop.f32.mrb[0].mxu0
  %v2087 = vadd.f32 0.0, %v2086
  %v2088 = vpop.f32.mrb[0].mxu0
  %2089 = vmatprep.mubr.f32.mxu0 0.0
  %2090 = vmatmul.mubr.f32.gmra.mrb[0].mxu0 %v1886
  %v2091 = vpop.f32.mrb[0].mxu0
  %v2092 = vadd.f32 0.0, %v2091
  %v2093 = vpop.f32.mrb[0].mxu0
  %2094 = vmatprep.mubr.f32.mxu0 0.0
  %2095 = vmatmul.mubr.f32.gmra.mrb[0].mxu0 %v1889
  %v2096 = vpop.f32.mrb[0].mxu0
  %v2097 = vadd.f32 0.0, %v2096
  %v2098 = vpop.f32.mrb[0].mxu0
  %2099 = vmatprep.mubr.f32.mxu0 0.0
  %2100 = vmatmul.mubr.f32.gmra.mrb[0].mxu0 %v1892
  %v2101 = vpop.f32.mrb[0].mxu0
  %v2102 = vadd.f32 0.0, %v2101
  %v2103 = vpop.f32.mrb[0].mxu0
  %2104 = vmatprep.mubr.f32.mxu0 0.0
  %2105 = vmatmul.mubr.f32.gmra.mrb[0].mxu0 %v1895
  %v2106 = vpop.f32.mrb[0].mxu0
  %v2107 = vadd.f32 0.0, %v2106
  %v2108 = vpop.f32.mrb[0].mxu0
  %2109 = vmatprep.mubr.f32.mxu0 0.0
  %2110 = vmatmul.mubr.f32.gmra.mrb[0].mxu0 %v1898
  %v2111 = vpop.f32.mrb[0].mxu0
  %v2112 = vadd.f32 0.0, %v2111
  %v2113 = vpop.f32.mrb[0].mxu0
  %2114 = vmatprep.mubr.f32.mxu0 0.0
  %2115 = vmatmul.mubr.f32.gmra.mrb[0].mxu0 %v1901
  %v2116 = vpop.f32.mrb[0].mxu0
  %v2117 = vadd.f32 0.0, %v2116
  %v2118 = vpop.f32.mrb[0].mxu0
  %2119 = vmatprep.mubr.f32.mxu0 0.0
  %2120 = vmatmul.mubr.f32.gmra.mrb[0].mxu0 %v1904
  %v2121 = vpop.f32.mrb[0].mxu0
  %v2122 = vadd.f32 0.0, %v2121
  %v2123 = vpop.f32.mrb[0].mxu0
  %2124 = vmatprep.mubr.f32.mxu0 0.0
  %2125 = vmatmul.mubr.f32.gmra.mrb[0].mxu0 %v1907
  %v2126 = vpop.f32.mrb[0].mxu0
  %v2127 = vadd.f32 0.0, %v2126
  %v2128 = vpop.f32.mrb[0].mxu0
  %2129 = vmatprep.mubr.f32.mxu0 0.0
  %2130 = vmatmul.mubr.f32.gmra.mrb[0].mxu0 %v1910
  %v2131 = vpop.f32.mrb[0].mxu0
  %v2132 = vadd.f32 0.0, %v2131
  %v2133 = vpop.f32.mrb[0].mxu0
  %2134 = vmatprep.mubr.f32.mxu0 0.0
  %2135 = vmatmul.mubr.f32.gmra.mrb[0].mxu0 %v1913
  %v2136 = vpop.f32.mrb[0].mxu0
  %v2137 = vadd.f32 0.0, %v2136
  %v2138 = vpop.f32.mrb[0].mxu0
  %2139 = vdwg.mxu0
  %v2140 = vmax.f32 %v1435, %v1982
  %v2141 = vmax.f32 %v1436, %v1987
  %v2142 = vmax.f32 %v1437, %v1992
  %v2143 = vmax.f32 %v1438, %v1997
  %v2144 = vmax.f32 %v1439, %v2002
  %v2145 = vmax.f32 %v1440, %v2007
  %v2146 = vmax.f32 %v1441, %v2012
  %v2147 = vmax.f32 %v1442, %v2017
  %v2148 = vmax.f32 %v1443, %v2022
  %v2149 = vmax.f32 %v1444, %v2027
  %v2150 = vmax.f32 %v1445, %v2032
  %v2151 = vmax.f32 %v1446, %v2037
  %v2152 = vmax.f32 %v1447, %v2042
  %v2153 = vmax.f32 %v1448, %v2047
  %v2154 = vmax.f32 %v1449, %v2052
  %v2155 = vmax.f32 %v1450, %v2057
  %v2156 = vmax.f32 %v1451, %v2062
  %v2157 = vmax.f32 %v1452, %v2067
  %v2158 = vmax.f32 %v1453, %v2072
  %v2159 = vmax.f32 %v1454, %v2077
  %v2160 = vmax.f32 %v1455, %v2082
  %v2161 = vmax.f32 %v1456, %v2087
  %v2162 = vmax.f32 %v1457, %v2092
  %v2163 = vmax.f32 %v1458, %v2097
  %v2164 = vmax.f32 %v1459, %v2102
  %v2165 = vmax.f32 %v1460, %v2107
  %v2166 = vmax.f32 %v1461, %v2112
  %v2167 = vmax.f32 %v1462, %v2117
  %v2168 = vmax.f32 %v1463, %v2122
  %v2169 = vmax.f32 %v1464, %v2127
  %v2170 = vmax.f32 %v1465, %v2132
  %v2171 = vmax.f32 %v1466, %v2137
  %2172 = vset.pattern.permute.xlu0 4
  %2173 = vperm.xlu0 %2172, %v17
  %v2174 = vpop.permute.xlu0 %2173
  %2175 = vset.pattern.permute.xlu0 4
  %2176 = vperm.xlu0 %2175, %v18
  %v2177 = vpop.permute.xlu0 %2176
  %2178 = vset.pattern.permute.xlu0 4
  %2179 = vperm.xlu0 %2178, %v19
  %v2180 = vpop.permute.xlu0 %2179
  %2181 = vset.pattern.permute.xlu0 4
  %2182 = vperm.xlu0 %2181, %v20
  %v2183 = vpop.permute.xlu0 %2182
  %2184 = vset.pattern.permute.xlu0 4
  %2185 = vperm.xlu0 %2184, %v21
  %v2186 = vpop.permute.xlu0 %2185
  %2187 = vset.pattern.permute.xlu0 4
  %2188 = vperm.xlu0 %2187, %v22
  %v2189 = vpop.permute.xlu0 %2188
  %2190 = vset.pattern.permute.xlu0 4
  %2191 = vperm.xlu0 %2190, %v23
  %v2192 = vpop.permute.xlu0 %2191
  %2193 = vset.pattern.permute.xlu0 4
  %2194 = vperm.xlu0 %2193, %v24
  %v2195 = vpop.permute.xlu0 %2194
  %2196 = vset.pattern.permute.xlu0 4
  %2197 = vperm.xlu0 %2196, %v25
  %v2198 = vpop.permute.xlu0 %2197
  %2199 = vset.pattern.permute.xlu0 4
  %2200 = vperm.xlu0 %2199, %v26
  %v2201 = vpop.permute.xlu0 %2200
  %2202 = vset.pattern.permute.xlu0 4
  %2203 = vperm.xlu0 %2202, %v27
  %v2204 = vpop.permute.xlu0 %2203
  %2205 = vset.pattern.permute.xlu0 4
  %2206 = vperm.xlu0 %2205, %v28
  %v2207 = vpop.permute.xlu0 %2206
  %2208 = vset.pattern.permute.xlu0 4
  %2209 = vperm.xlu0 %2208, %v29
  %v2210 = vpop.permute.xlu0 %2209
  %2211 = vset.pattern.permute.xlu0 4
  %2212 = vperm.xlu0 %2211, %v30
  %v2213 = vpop.permute.xlu0 %2212
  %2214 = vset.pattern.permute.xlu0 4
  %2215 = vperm.xlu0 %2214, %v31
  %v2216 = vpop.permute.xlu0 %2215
  %2217 = vset.pattern.permute.xlu0 4
  %2218 = vperm.xlu0 %2217, %v32
  %v2219 = vpop.permute.xlu0 %2218
  %2220 = vset.pattern.permute.xlu0 4
  %2221 = vperm.xlu0 %2220, %v33
  %v2222 = vpop.permute.xlu0 %2221
  %2223 = vset.pattern.permute.xlu0 4
  %2224 = vperm.xlu0 %2223, %v34
  %v2225 = vpop.permute.xlu0 %2224
  %2226 = vset.pattern.permute.xlu0 4
  %2227 = vperm.xlu0 %2226, %v35
  %v2228 = vpop.permute.xlu0 %2227
  %2229 = vset.pattern.permute.xlu0 4
  %2230 = vperm.xlu0 %2229, %v36
  %v2231 = vpop.permute.xlu0 %2230
  %2232 = vset.pattern.permute.xlu0 4
  %2233 = vperm.xlu0 %2232, %v37
  %v2234 = vpop.permute.xlu0 %2233
  %2235 = vset.pattern.permute.xlu0 4
  %2236 = vperm.xlu0 %2235, %v38
  %v2237 = vpop.permute.xlu0 %2236
  %2238 = vset.pattern.permute.xlu0 4
  %2239 = vperm.xlu0 %2238, %v39
  %v2240 = vpop.permute.xlu0 %2239
  %2241 = vset.pattern.permute.xlu0 4
  %2242 = vperm.xlu0 %2241, %v40
  %v2243 = vpop.permute.xlu0 %2242
  %2244 = vset.pattern.permute.xlu0 4
  %2245 = vperm.xlu0 %2244, %v41
  %v2246 = vpop.permute.xlu0 %2245
  %2247 = vset.pattern.permute.xlu0 4
  %2248 = vperm.xlu0 %2247, %v42
  %v2249 = vpop.permute.xlu0 %2248
  %2250 = vset.pattern.permute.xlu0 4
  %2251 = vperm.xlu0 %2250, %v43
  %v2252 = vpop.permute.xlu0 %2251
  %2253 = vset.pattern.permute.xlu0 4
  %2254 = vperm.xlu0 %2253, %v44
  %v2255 = vpop.permute.xlu0 %2254
  %2256 = vset.pattern.permute.xlu0 4
  %2257 = vperm.xlu0 %2256, %v45
  %v2258 = vpop.permute.xlu0 %2257
  %2259 = vset.pattern.permute.xlu0 4
  %2260 = vperm.xlu0 %2259, %v46
  %v2261 = vpop.permute.xlu0 %2260
  %2262 = vset.pattern.permute.xlu0 4
  %2263 = vperm.xlu0 %2262, %v47
  %v2264 = vpop.permute.xlu0 %2263
  %2265 = vset.pattern.permute.xlu0 4
  %2266 = vperm.xlu0 %2265, %v48
  %v2267 = vpop.permute.xlu0 %2266
  %vm2268 = vcmp.eq.s32.totalorder %v55, %v2174
  %vm2269 = vcmp.eq.s32.totalorder %v55, %v2177
  %vm2270 = vcmp.eq.s32.totalorder %v55, %v2180
  %vm2271 = vcmp.eq.s32.totalorder %v55, %v2183
  %vm2272 = vcmp.eq.s32.totalorder %v55, %v2186
  %vm2273 = vcmp.eq.s32.totalorder %v55, %v2189
  %vm2274 = vcmp.eq.s32.totalorder %v55, %v2192
  %vm2275 = vcmp.eq.s32.totalorder %v55, %v2195
  %vm2276 = vcmp.eq.s32.totalorder %v55, %v2198
  %vm2277 = vcmp.eq.s32.totalorder %v55, %v2201
  %vm2278 = vcmp.eq.s32.totalorder %v55, %v2204
  %vm2279 = vcmp.eq.s32.totalorder %v55, %v2207
  %vm2280 = vcmp.eq.s32.totalorder %v55, %v2210
  %vm2281 = vcmp.eq.s32.totalorder %v55, %v2213
  %vm2282 = vcmp.eq.s32.totalorder %v55, %v2216
  %vm2283 = vcmp.eq.s32.totalorder %v55, %v2219
  %vm2284 = vcmp.eq.s32.totalorder %v55, %v2222
  %vm2285 = vcmp.eq.s32.totalorder %v55, %v2225
  %vm2286 = vcmp.eq.s32.totalorder %v55, %v2228
  %vm2287 = vcmp.eq.s32.totalorder %v55, %v2231
  %vm2288 = vcmp.eq.s32.totalorder %v55, %v2234
  %vm2289 = vcmp.eq.s32.totalorder %v55, %v2237
  %vm2290 = vcmp.eq.s32.totalorder %v55, %v2240
  %vm2291 = vcmp.eq.s32.totalorder %v55, %v2243
  %vm2292 = vcmp.eq.s32.totalorder %v55, %v2246
  %vm2293 = vcmp.eq.s32.totalorder %v55, %v2249
  %vm2294 = vcmp.eq.s32.totalorder %v55, %v2252
  %vm2295 = vcmp.eq.s32.totalorder %v55, %v2255
  %vm2296 = vcmp.eq.s32.totalorder %v55, %v2258
  %vm2297 = vcmp.eq.s32.totalorder %v55, %v2261
  %vm2298 = vcmp.eq.s32.totalorder %v55, %v2264
  %vm2299 = vcmp.eq.s32.totalorder %v55, %v2267
  %2300 = vset.pattern.permute.xlu0 5
  %2301 = vperm.xlu0 %2300, %v184
  %v2302 = vpop.permute.xlu0 %2301
  %2303 = vset.pattern.permute.xlu0 5
  %2304 = vperm.xlu0 %2303, %v185
  %v2305 = vpop.permute.xlu0 %2304
  %2306 = vset.pattern.permute.xlu0 5
  %2307 = vperm.xlu0 %2306, %v186
  %v2308 = vpop.permute.xlu0 %2307
  %2309 = vset.pattern.permute.xlu0 5
  %2310 = vperm.xlu0 %2309, %v187
  %v2311 = vpop.permute.xlu0 %2310
  %2312 = vset.pattern.permute.xlu0 5
  %2313 = vperm.xlu0 %2312, %v188
  %v2314 = vpop.permute.xlu0 %2313
  %2315 = vset.pattern.permute.xlu0 5
  %2316 = vperm.xlu0 %2315, %v189
  %v2317 = vpop.permute.xlu0 %2316
  %2318 = vset.pattern.permute.xlu0 5
  %2319 = vperm.xlu0 %2318, %v190
  %v2320 = vpop.permute.xlu0 %2319
  %2321 = vset.pattern.permute.xlu0 5
  %2322 = vperm.xlu0 %2321, %v191
  %v2323 = vpop.permute.xlu0 %2322
  %2324 = vset.pattern.permute.xlu0 5
  %2325 = vperm.xlu0 %2324, %v192
  %v2326 = vpop.permute.xlu0 %2325
  %2327 = vset.pattern.permute.xlu0 5
  %2328 = vperm.xlu0 %2327, %v193
  %v2329 = vpop.permute.xlu0 %2328
  %2330 = vset.pattern.permute.xlu0 5
  %2331 = vperm.xlu0 %2330, %v194
  %v2332 = vpop.permute.xlu0 %2331
  %2333 = vset.pattern.permute.xlu0 5
  %2334 = vperm.xlu0 %2333, %v195
  %v2335 = vpop.permute.xlu0 %2334
  %2336 = vset.pattern.permute.xlu0 5
  %2337 = vperm.xlu0 %2336, %v196
  %v2338 = vpop.permute.xlu0 %2337
  %2339 = vset.pattern.permute.xlu0 5
  %2340 = vperm.xlu0 %2339, %v197
  %v2341 = vpop.permute.xlu0 %2340
  %2342 = vset.pattern.permute.xlu0 5
  %2343 = vperm.xlu0 %2342, %v198
  %v2344 = vpop.permute.xlu0 %2343
  %2345 = vset.pattern.permute.xlu0 5
  %2346 = vperm.xlu0 %2345, %v199
  %v2347 = vpop.permute.xlu0 %2346
  %2348 = vset.pattern.permute.xlu0 5
  %2349 = vperm.xlu0 %2348, %v200
  %v2350 = vpop.permute.xlu0 %2349
  %2351 = vset.pattern.permute.xlu0 5
  %2352 = vperm.xlu0 %2351, %v201
  %v2353 = vpop.permute.xlu0 %2352
  %2354 = vset.pattern.permute.xlu0 5
  %2355 = vperm.xlu0 %2354, %v202
  %v2356 = vpop.permute.xlu0 %2355
  %2357 = vset.pattern.permute.xlu0 5
  %2358 = vperm.xlu0 %2357, %v203
  %v2359 = vpop.permute.xlu0 %2358
  %2360 = vset.pattern.permute.xlu0 5
  %2361 = vperm.xlu0 %2360, %v204
  %v2362 = vpop.permute.xlu0 %2361
  %2363 = vset.pattern.permute.xlu0 5
  %2364 = vperm.xlu0 %2363, %v205
  %v2365 = vpop.permute.xlu0 %2364
  %2366 = vset.pattern.permute.xlu0 5
  %2367 = vperm.xlu0 %2366, %v206
  %v2368 = vpop.permute.xlu0 %2367
  %2369 = vset.pattern.permute.xlu0 5
  %2370 = vperm.xlu0 %2369, %v207
  %v2371 = vpop.permute.xlu0 %2370
  %2372 = vset.pattern.permute.xlu0 5
  %2373 = vperm.xlu0 %2372, %v208
  %v2374 = vpop.permute.xlu0 %2373
  %2375 = vset.pattern.permute.xlu0 5
  %2376 = vperm.xlu0 %2375, %v209
  %v2377 = vpop.permute.xlu0 %2376
  %2378 = vset.pattern.permute.xlu0 5
  %2379 = vperm.xlu0 %2378, %v210
  %v2380 = vpop.permute.xlu0 %2379
  %2381 = vset.pattern.permute.xlu0 5
  %2382 = vperm.xlu0 %2381, %v211
  %v2383 = vpop.permute.xlu0 %2382
  %2384 = vset.pattern.permute.xlu0 5
  %2385 = vperm.xlu0 %2384, %v212
  %v2386 = vpop.permute.xlu0 %2385
  %2387 = vset.pattern.permute.xlu0 5
  %2388 = vperm.xlu0 %2387, %v213
  %v2389 = vpop.permute.xlu0 %2388
  %2390 = vset.pattern.permute.xlu0 5
  %2391 = vperm.xlu0 %2390, %v214
  %v2392 = vpop.permute.xlu0 %2391
  %2393 = vset.pattern.permute.xlu0 5
  %2394 = vperm.xlu0 %2393, %v215
  %v2395 = vpop.permute.xlu0 %2394
  %vm2396 = vcmp.eq.s32.totalorder %v55, %v2302
  %vm2397 = vcmp.eq.s32.totalorder %v55, %v2305
  %vm2398 = vcmp.eq.s32.totalorder %v55, %v2308
  %vm2399 = vcmp.eq.s32.totalorder %v55, %v2311
  %vm2400 = vcmp.eq.s32.totalorder %v55, %v2314
  %vm2401 = vcmp.eq.s32.totalorder %v55, %v2317
  %vm2402 = vcmp.eq.s32.totalorder %v55, %v2320
  %vm2403 = vcmp.eq.s32.totalorder %v55, %v2323
  %vm2404 = vcmp.eq.s32.totalorder %v55, %v2326
  %vm2405 = vcmp.eq.s32.totalorder %v55, %v2329
  %vm2406 = vcmp.eq.s32.totalorder %v55, %v2332
  %vm2407 = vcmp.eq.s32.totalorder %v55, %v2335
  %vm2408 = vcmp.eq.s32.totalorder %v55, %v2338
  %vm2409 = vcmp.eq.s32.totalorder %v55, %v2341
  %vm2410 = vcmp.eq.s32.totalorder %v55, %v2344
  %vm2411 = vcmp.eq.s32.totalorder %v55, %v2347
  %vm2412 = vcmp.eq.s32.totalorder %v55, %v2350
  %vm2413 = vcmp.eq.s32.totalorder %v55, %v2353
  %vm2414 = vcmp.eq.s32.totalorder %v55, %v2356
  %vm2415 = vcmp.eq.s32.totalorder %v55, %v2359
  %vm2416 = vcmp.eq.s32.totalorder %v55, %v2362
  %vm2417 = vcmp.eq.s32.totalorder %v55, %v2365
  %vm2418 = vcmp.eq.s32.totalorder %v55, %v2368
  %vm2419 = vcmp.eq.s32.totalorder %v55, %v2371
  %vm2420 = vcmp.eq.s32.totalorder %v55, %v2374
  %vm2421 = vcmp.eq.s32.totalorder %v55, %v2377
  %vm2422 = vcmp.eq.s32.totalorder %v55, %v2380
  %vm2423 = vcmp.eq.s32.totalorder %v55, %v2383
  %vm2424 = vcmp.eq.s32.totalorder %v55, %v2386
  %vm2425 = vcmp.eq.s32.totalorder %v55, %v2389
  %vm2426 = vcmp.eq.s32.totalorder %v55, %v2392
  %vm2427 = vcmp.eq.s32.totalorder %v55, %v2395
  %vm2428 = vmor %vm2268, %vm2396
  %vm2429 = vmor %vm2269, %vm2397
  %vm2430 = vmor %vm2270, %vm2398
  %vm2431 = vmor %vm2271, %vm2399
  %vm2432 = vmor %vm2272, %vm2400
  %vm2433 = vmor %vm2273, %vm2401
  %vm2434 = vmor %vm2274, %vm2402
  %vm2435 = vmor %vm2275, %vm2403
  %vm2436 = vmor %vm2276, %vm2404
  %vm2437 = vmor %vm2277, %vm2405
  %vm2438 = vmor %vm2278, %vm2406
  %vm2439 = vmor %vm2279, %vm2407
  %vm2440 = vmor %vm2280, %vm2408
  %vm2441 = vmor %vm2281, %vm2409
  %vm2442 = vmor %vm2282, %vm2410
  %vm2443 = vmor %vm2283, %vm2411
  %vm2444 = vmor %vm2284, %vm2412
  %vm2445 = vmor %vm2285, %vm2413
  %vm2446 = vmor %vm2286, %vm2414
  %vm2447 = vmor %vm2287, %vm2415
  %vm2448 = vmor %vm2288, %vm2416
  %vm2449 = vmor %vm2289, %vm2417
  %vm2450 = vmor %vm2290, %vm2418
  %vm2451 = vmor %vm2291, %vm2419
  %vm2452 = vmor %vm2292, %vm2420
  %vm2453 = vmor %vm2293, %vm2421
  %vm2454 = vmor %vm2294, %vm2422
  %vm2455 = vmor %vm2295, %vm2423
  %vm2456 = vmor %vm2296, %vm2424
  %vm2457 = vmor %vm2297, %vm2425
  %vm2458 = vmor %vm2298, %vm2426
  %vm2459 = vmor %vm2299, %vm2427
  %v2460 = vsel %vm2428, 1, 0
  %v2461 = vsel %vm2429, 1, 0
  %v2462 = vsel %vm2430, 1, 0
  %v2463 = vsel %vm2431, 1, 0
  %v2464 = vsel %vm2432, 1, 0
  %v2465 = vsel %vm2433, 1, 0
  %v2466 = vsel %vm2434, 1, 0
  %v2467 = vsel %vm2435, 1, 0
  %v2468 = vsel %vm2436, 1, 0
  %v2469 = vsel %vm2437, 1, 0
  %v2470 = vsel %vm2438, 1, 0
  %v2471 = vsel %vm2439, 1, 0
  %v2472 = vsel %vm2440, 1, 0
  %v2473 = vsel %vm2441, 1, 0
  %v2474 = vsel %vm2442, 1, 0
  %v2475 = vsel %vm2443, 1, 0
  %v2476 = vsel %vm2444, 1, 0
  %v2477 = vsel %vm2445, 1, 0
  %v2478 = vsel %vm2446, 1, 0
  %v2479 = vsel %vm2447, 1, 0
  %v2480 = vsel %vm2448, 1, 0
  %v2481 = vsel %vm2449, 1, 0
  %v2482 = vsel %vm2450, 1, 0
  %v2483 = vsel %vm2451, 1, 0
  %v2484 = vsel %vm2452, 1, 0
  %v2485 = vsel %vm2453, 1, 0
  %v2486 = vsel %vm2454, 1, 0
  %v2487 = vsel %vm2455, 1, 0
  %v2488 = vsel %vm2456, 1, 0
  %v2489 = vsel %vm2457, 1, 0
  %v2490 = vsel %vm2458, 1, 0
  %v2491 = vsel %vm2459, 1, 0
  %v2492 = vcvt.s32.f32 %v2460
  %v2493 = vcvt.s32.f32 %v2461
  %v2494 = vcvt.s32.f32 %v2462
  %v2495 = vcvt.s32.f32 %v2463
  %v2496 = vcvt.s32.f32 %v2464
  %v2497 = vcvt.s32.f32 %v2465
  %v2498 = vcvt.s32.f32 %v2466
  %v2499 = vcvt.s32.f32 %v2467
  %v2500 = vcvt.s32.f32 %v2468
  %v2501 = vcvt.s32.f32 %v2469
  %v2502 = vcvt.s32.f32 %v2470
  %v2503 = vcvt.s32.f32 %v2471
  %v2504 = vcvt.s32.f32 %v2472
  %v2505 = vcvt.s32.f32 %v2473
  %v2506 = vcvt.s32.f32 %v2474
  %v2507 = vcvt.s32.f32 %v2475
  %v2508 = vcvt.s32.f32 %v2476
  %v2509 = vcvt.s32.f32 %v2477
  %v2510 = vcvt.s32.f32 %v2478
  %v2511 = vcvt.s32.f32 %v2479
  %v2512 = vcvt.s32.f32 %v2480
  %v2513 = vcvt.s32.f32 %v2481
  %v2514 = vcvt.s32.f32 %v2482
  %v2515 = vcvt.s32.f32 %v2483
  %v2516 = vcvt.s32.f32 %v2484
  %v2517 = vcvt.s32.f32 %v2485
  %v2518 = vcvt.s32.f32 %v2486
  %v2519 = vcvt.s32.f32 %v2487
  %v2520 = vcvt.s32.f32 %v2488
  %v2521 = vcvt.s32.f32 %v2489
  %v2522 = vcvt.s32.f32 %v2490
  %v2523 = vcvt.s32.f32 %v2491
  %v2525 = vsel %vm440, %v2492, 0
  %v2528 = vsel %vm440, %v2493, 0
  %v2531 = vsel %vm440, %v2494, 0
  %v2534 = vsel %vm440, %v2495, 0
  %v2537 = vsel %vm440, %v2496, 0
  %v2540 = vsel %vm440, %v2497, 0
  %v2543 = vsel %vm440, %v2498, 0
  %v2546 = vsel %vm440, %v2499, 0
  %v2549 = vsel %vm440, %v2500, 0
  %v2552 = vsel %vm440, %v2501, 0
  %v2555 = vsel %vm440, %v2502, 0
  %v2558 = vsel %vm440, %v2503, 0
  %v2561 = vsel %vm440, %v2504, 0
  %v2564 = vsel %vm440, %v2505, 0
  %v2567 = vsel %vm440, %v2506, 0
  %v2570 = vsel %vm440, %v2507, 0
  %v2573 = vsel %vm440, %v2508, 0
  %v2576 = vsel %vm440, %v2509, 0
  %v2579 = vsel %vm440, %v2510, 0
  %v2582 = vsel %vm440, %v2511, 0
  %v2585 = vsel %vm440, %v2512, 0
  %v2588 = vsel %vm440, %v2513, 0
  %v2591 = vsel %vm440, %v2514, 0
  %v2594 = vsel %vm440, %v2515, 0
  %v2597 = vsel %vm440, %v2516, 0
  %v2600 = vsel %vm440, %v2517, 0
  %v2603 = vsel %vm440, %v2518, 0
  %v2606 = vsel %vm440, %v2519, 0
  %v2609 = vsel %vm440, %v2520, 0
  %v2612 = vsel %vm440, %v2521, 0
  %v2615 = vsel %vm440, %v2522, 0
  %v2618 = vsel %vm440, %v2523, 0
  %2620 = vmatprep.subr.mxu0 0.0
  %2621 = vmatpush1.msra.mxu0 %v49
  %2622 = vmatprep.subr.mxu0 0.0
  %2623 = vmatpush1.msra.mxu0 %v50
  %2624 = vmatprep.subr.mxu0 0.0
  %2625 = vmatpush1.msra.mxu0 %v51
  %2626 = vmatprep.subr.mxu0 0.0
  %2627 = vmatpush1.msra.mxu0 %v52
  %2628 = vmatprep.subr.mxu0 0.0
  %2629 = vmatpush1.msra.mxu0 %v53
  %2630 = vmatprep.subr.mxu0 0.0
  %2631 = vmatpush1.msra.mxu0 0.0
  %2632 = vmatprep.subr.mxu0 0.0
  %2633 = vmatpush1.msra.mxu0 0.0
  %2634 = vmatprep.subr.mxu0 0.0
  %2635 = vmatpush1.msra.mxu0 0.0
  %2636 = vmatprep.subr.mxu0 0.0
  %2637 = vmatpush1.msra.mxu0 0.0
  %2638 = vmatprep.subr.mxu0 0.0
  %2639 = vmatpush1.msra.mxu0 0.0
  %2640 = vmatprep.subr.mxu0 0.0
  %2641 = vmatpush1.msra.mxu0 0.0
  %2642 = vmatprep.subr.mxu0 0.0
  %2643 = vmatpush1.msra.mxu0 0.0
  %2644 = vmatprep.subr.mxu0 0.0
  %2645 = vmatpush1.msra.mxu0 0.0
  %2646 = vmatprep.subr.mxu0 0.0
  %2647 = vmatpush1.msra.mxu0 0.0
  %2648 = vmatprep.subr.mxu0 0.0
  %2649 = vmatpush1.msra.mxu0 0.0
  %2650 = vmatprep.subr.mxu0 0.0
  %2651 = vmatpush1.msra.mxu0 0.0
  %2652 = vmatprep.subr.mxu0 0.0
  %2653 = vmatpush1.msra.mxu0 0.0
  %2654 = vmatprep.subr.mxu0 0.0
  %2655 = vmatpush1.msra.mxu0 0.0
  %2656 = vmatprep.subr.mxu0 0.0
  %2657 = vmatpush1.msra.mxu0 0.0
  %2658 = vmatprep.subr.mxu0 0.0
  %2659 = vmatpush1.msra.mxu0 0.0
  %2660 = vmatprep.subr.mxu0 0.0
  %2661 = vmatpush1.msra.mxu0 0.0
  %2662 = vmatprep.subr.mxu0 0.0
  %2663 = vmatpush1.msra.mxu0 0.0
  %2664 = vmatprep.subr.mxu0 0.0
  %2665 = vmatpush1.msra.mxu0 0.0
  %2666 = vmatprep.subr.mxu0 0.0
  %2667 = vmatpush1.msra.mxu0 0.0
  %2668 = vmatprep.subr.mxu0 0.0
  %2669 = vmatpush1.msra.mxu0 0.0
  %2670 = vmatprep.subr.mxu0 0.0
  %2671 = vmatpush1.msra.mxu0 0.0
  %2672 = vmatprep.subr.mxu0 0.0
  %2673 = vmatpush1.msra.mxu0 0.0
  %2674 = vmatprep.subr.mxu0 0.0
  %2675 = vmatpush1.msra.mxu0 0.0
  %2676 = vmatprep.subr.mxu0 0.0
  %2677 = vmatpush1.msra.mxu0 0.0
  %2678 = vmatprep.subr.mxu0 0.0
  %2679 = vmatpush1.msra.mxu0 0.0
  %2680 = vmatprep.subr.mxu0 0.0
  %2681 = vmatpush1.msra.mxu0 0.0
  %2682 = vmatprep.subr.mxu0 0.0
  %2683 = vmatpush1.msra.mxu0 0.0
  %2684 = vmatprep.mubr.f32.mxu0 0.0
  %2685 = vmatmul.mubr.f32.gmra.mrb[0].mxu0 %v2525
  %v2686 = vpop.f32.mrb[0].mxu0
  %v2687 = vadd.f32 0.0, %v2686
  %v2688 = vpop.f32.mrb[0].mxu0
  %2689 = vmatprep.mubr.f32.mxu0 0.0
  %2690 = vmatmul.mubr.f32.gmra.mrb[0].mxu0 %v2528
  %v2691 = vpop.f32.mrb[0].mxu0
  %v2692 = vadd.f32 0.0, %v2691
  %v2693 = vpop.f32.mrb[0].mxu0
  %2694 = vmatprep.mubr.f32.mxu0 0.0
  %2695 = vmatmul.mubr.f32.gmra.mrb[0].mxu0 %v2531
  %v2696 = vpop.f32.mrb[0].mxu0
  %v2697 = vadd.f32 0.0, %v2696
  %v2698 = vpop.f32.mrb[0].mxu0
  %2699 = vmatprep.mubr.f32.mxu0 0.0
  %2700 = vmatmul.mubr.f32.gmra.mrb[0].mxu0 %v2534
  %v2701 = vpop.f32.mrb[0].mxu0
  %v2702 = vadd.f32 0.0, %v2701
  %v2703 = vpop.f32.mrb[0].mxu0
  %2704 = vmatprep.mubr.f32.mxu0 0.0
  %2705 = vmatmul.mubr.f32.gmra.mrb[0].mxu0 %v2537
  %v2706 = vpop.f32.mrb[0].mxu0
  %v2707 = vadd.f32 0.0, %v2706
  %v2708 = vpop.f32.mrb[0].mxu0
  %2709 = vmatprep.mubr.f32.mxu0 0.0
  %2710 = vmatmul.mubr.f32.gmra.mrb[0].mxu0 %v2540
  %v2711 = vpop.f32.mrb[0].mxu0
  %v2712 = vadd.f32 0.0, %v2711
  %v2713 = vpop.f32.mrb[0].mxu0
  %2714 = vmatprep.mubr.f32.mxu0 0.0
  %2715 = vmatmul.mubr.f32.gmra.mrb[0].mxu0 %v2543
  %v2716 = vpop.f32.mrb[0].mxu0
  %v2717 = vadd.f32 0.0, %v2716
  %v2718 = vpop.f32.mrb[0].mxu0
  %2719 = vmatprep.mubr.f32.mxu0 0.0
  %2720 = vmatmul.mubr.f32.gmra.mrb[0].mxu0 %v2546
  %v2721 = vpop.f32.mrb[0].mxu0
  %v2722 = vadd.f32 0.0, %v2721
  %v2723 = vpop.f32.mrb[0].mxu0
  %2724 = vmatprep.mubr.f32.mxu0 0.0
  %2725 = vmatmul.mubr.f32.gmra.mrb[0].mxu0 %v2549
  %v2726 = vpop.f32.mrb[0].mxu0
  %v2727 = vadd.f32 0.0, %v2726
  %v2728 = vpop.f32.mrb[0].mxu0
  %2729 = vmatprep.mubr.f32.mxu0 0.0
  %2730 = vmatmul.mubr.f32.gmra.mrb[0].mxu0 %v2552
  %v2731 = vpop.f32.mrb[0].mxu0
  %v2732 = vadd.f32 0.0, %v2731
  %v2733 = vpop.f32.mrb[0].mxu0
  %2734 = vmatprep.mubr.f32.mxu0 0.0
  %2735 = vmatmul.mubr.f32.gmra.mrb[0].mxu0 %v2555
  %v2736 = vpop.f32.mrb[0].mxu0
  %v2737 = vadd.f32 0.0, %v2736
  %v2738 = vpop.f32.mrb[0].mxu0
  %2739 = vmatprep.mubr.f32.mxu0 0.0
  %2740 = vmatmul.mubr.f32.gmra.mrb[0].mxu0 %v2558
  %v2741 = vpop.f32.mrb[0].mxu0
  %v2742 = vadd.f32 0.0, %v2741
  %v2743 = vpop.f32.mrb[0].mxu0
  %2744 = vmatprep.mubr.f32.mxu0 0.0
  %2745 = vmatmul.mubr.f32.gmra.mrb[0].mxu0 %v2561
  %v2746 = vpop.f32.mrb[0].mxu0
  %v2747 = vadd.f32 0.0, %v2746
  %v2748 = vpop.f32.mrb[0].mxu0
  %2749 = vmatprep.mubr.f32.mxu0 0.0
  %2750 = vmatmul.mubr.f32.gmra.mrb[0].mxu0 %v2564
  %v2751 = vpop.f32.mrb[0].mxu0
  %v2752 = vadd.f32 0.0, %v2751
  %v2753 = vpop.f32.mrb[0].mxu0
  %2754 = vmatprep.mubr.f32.mxu0 0.0
  %2755 = vmatmul.mubr.f32.gmra.mrb[0].mxu0 %v2567
  %v2756 = vpop.f32.mrb[0].mxu0
  %v2757 = vadd.f32 0.0, %v2756
  %v2758 = vpop.f32.mrb[0].mxu0
  %2759 = vmatprep.mubr.f32.mxu0 0.0
  %2760 = vmatmul.mubr.f32.gmra.mrb[0].mxu0 %v2570
  %v2761 = vpop.f32.mrb[0].mxu0
  %v2762 = vadd.f32 0.0, %v2761
  %v2763 = vpop.f32.mrb[0].mxu0
  %2764 = vmatprep.mubr.f32.mxu0 0.0
  %2765 = vmatmul.mubr.f32.gmra.mrb[0].mxu0 %v2573
  %v2766 = vpop.f32.mrb[0].mxu0
  %v2767 = vadd.f32 0.0, %v2766
  %v2768 = vpop.f32.mrb[0].mxu0
  %2769 = vmatprep.mubr.f32.mxu0 0.0
  %2770 = vmatmul.mubr.f32.gmra.mrb[0].mxu0 %v2576
  %v2771 = vpop.f32.mrb[0].mxu0
  %v2772 = vadd.f32 0.0, %v2771
  %v2773 = vpop.f32.mrb[0].mxu0
  %2774 = vmatprep.mubr.f32.mxu0 0.0
  %2775 = vmatmul.mubr.f32.gmra.mrb[0].mxu0 %v2579
  %v2776 = vpop.f32.mrb[0].mxu0
  %v2777 = vadd.f32 0.0, %v2776
  %v2778 = vpop.f32.mrb[0].mxu0
  %2779 = vmatprep.mubr.f32.mxu0 0.0
  %2780 = vmatmul.mubr.f32.gmra.mrb[0].mxu0 %v2582
  %v2781 = vpop.f32.mrb[0].mxu0
  %v2782 = vadd.f32 0.0, %v2781
  %v2783 = vpop.f32.mrb[0].mxu0
  %2784 = vmatprep.mubr.f32.mxu0 0.0
  %2785 = vmatmul.mubr.f32.gmra.mrb[0].mxu0 %v2585
  %v2786 = vpop.f32.mrb[0].mxu0
  %v2787 = vadd.f32 0.0, %v2786
  %v2788 = vpop.f32.mrb[0].mxu0
  %2789 = vmatprep.mubr.f32.mxu0 0.0
  %2790 = vmatmul.mubr.f32.gmra.mrb[0].mxu0 %v2588
  %v2791 = vpop.f32.mrb[0].mxu0
  %v2792 = vadd.f32 0.0, %v2791
  %v2793 = vpop.f32.mrb[0].mxu0
  %2794 = vmatprep.mubr.f32.mxu0 0.0
  %2795 = vmatmul.mubr.f32.gmra.mrb[0].mxu0 %v2591
  %v2796 = vpop.f32.mrb[0].mxu0
  %v2797 = vadd.f32 0.0, %v2796
  %v2798 = vpop.f32.mrb[0].mxu0
  %2799 = vmatprep.mubr.f32.mxu0 0.0
  %2800 = vmatmul.mubr.f32.gmra.mrb[0].mxu0 %v2594
  %v2801 = vpop.f32.mrb[0].mxu0
  %v2802 = vadd.f32 0.0, %v2801
  %v2803 = vpop.f32.mrb[0].mxu0
  %2804 = vmatprep.mubr.f32.mxu0 0.0
  %2805 = vmatmul.mubr.f32.gmra.mrb[0].mxu0 %v2597
  %v2806 = vpop.f32.mrb[0].mxu0
  %v2807 = vadd.f32 0.0, %v2806
  %v2808 = vpop.f32.mrb[0].mxu0
  %2809 = vmatprep.mubr.f32.mxu0 0.0
  %2810 = vmatmul.mubr.f32.gmra.mrb[0].mxu0 %v2600
  %v2811 = vpop.f32.mrb[0].mxu0
  %v2812 = vadd.f32 0.0, %v2811
  %v2813 = vpop.f32.mrb[0].mxu0
  %2814 = vmatprep.mubr.f32.mxu0 0.0
  %2815 = vmatmul.mubr.f32.gmra.mrb[0].mxu0 %v2603
  %v2816 = vpop.f32.mrb[0].mxu0
  %v2817 = vadd.f32 0.0, %v2816
  %v2818 = vpop.f32.mrb[0].mxu0
  %2819 = vmatprep.mubr.f32.mxu0 0.0
  %2820 = vmatmul.mubr.f32.gmra.mrb[0].mxu0 %v2606
  %v2821 = vpop.f32.mrb[0].mxu0
  %v2822 = vadd.f32 0.0, %v2821
  %v2823 = vpop.f32.mrb[0].mxu0
  %2824 = vmatprep.mubr.f32.mxu0 0.0
  %2825 = vmatmul.mubr.f32.gmra.mrb[0].mxu0 %v2609
  %v2826 = vpop.f32.mrb[0].mxu0
  %v2827 = vadd.f32 0.0, %v2826
  %v2828 = vpop.f32.mrb[0].mxu0
  %2829 = vmatprep.mubr.f32.mxu0 0.0
  %2830 = vmatmul.mubr.f32.gmra.mrb[0].mxu0 %v2612
  %v2831 = vpop.f32.mrb[0].mxu0
  %v2832 = vadd.f32 0.0, %v2831
  %v2833 = vpop.f32.mrb[0].mxu0
  %2834 = vmatprep.mubr.f32.mxu0 0.0
  %2835 = vmatmul.mubr.f32.gmra.mrb[0].mxu0 %v2615
  %v2836 = vpop.f32.mrb[0].mxu0
  %v2837 = vadd.f32 0.0, %v2836
  %v2838 = vpop.f32.mrb[0].mxu0
  %2839 = vmatprep.mubr.f32.mxu0 0.0
  %2840 = vmatmul.mubr.f32.gmra.mrb[0].mxu0 %v2618
  %v2841 = vpop.f32.mrb[0].mxu0
  %v2842 = vadd.f32 0.0, %v2841
  %v2843 = vpop.f32.mrb[0].mxu0
  %2844 = vdwg.mxu0
  %v2845 = vmax.f32 %v2140, %v2687
  %v2846 = vmax.f32 %v2141, %v2692
  %v2847 = vmax.f32 %v2142, %v2697
  %v2848 = vmax.f32 %v2143, %v2702
  %v2849 = vmax.f32 %v2144, %v2707
  %v2850 = vmax.f32 %v2145, %v2712
  %v2851 = vmax.f32 %v2146, %v2717
  %v2852 = vmax.f32 %v2147, %v2722
  %v2853 = vmax.f32 %v2148, %v2727
  %v2854 = vmax.f32 %v2149, %v2732
  %v2855 = vmax.f32 %v2150, %v2737
  %v2856 = vmax.f32 %v2151, %v2742
  %v2857 = vmax.f32 %v2152, %v2747
  %v2858 = vmax.f32 %v2153, %v2752
  %v2859 = vmax.f32 %v2154, %v2757
  %v2860 = vmax.f32 %v2155, %v2762
  %v2861 = vmax.f32 %v2156, %v2767
  %v2862 = vmax.f32 %v2157, %v2772
  %v2863 = vmax.f32 %v2158, %v2777
  %v2864 = vmax.f32 %v2159, %v2782
  %v2865 = vmax.f32 %v2160, %v2787
  %v2866 = vmax.f32 %v2161, %v2792
  %v2867 = vmax.f32 %v2162, %v2797
  %v2868 = vmax.f32 %v2163, %v2802
  %v2869 = vmax.f32 %v2164, %v2807
  %v2870 = vmax.f32 %v2165, %v2812
  %v2871 = vmax.f32 %v2166, %v2817
  %v2872 = vmax.f32 %v2167, %v2822
  %v2873 = vmax.f32 %v2168, %v2827
  %v2874 = vmax.f32 %v2169, %v2832
  %v2875 = vmax.f32 %v2170, %v2837
  %v2876 = vmax.f32 %v2171, %v2842
  %2877 = vset.pattern.permute.xlu0 5
  %2878 = vperm.xlu0 %2877, %v17
  %v2879 = vpop.permute.xlu0 %2878
  %2880 = vset.pattern.permute.xlu0 5
  %2881 = vperm.xlu0 %2880, %v18
  %v2882 = vpop.permute.xlu0 %2881
  %2883 = vset.pattern.permute.xlu0 5
  %2884 = vperm.xlu0 %2883, %v19
  %v2885 = vpop.permute.xlu0 %2884
  %2886 = vset.pattern.permute.xlu0 5
  %2887 = vperm.xlu0 %2886, %v20
  %v2888 = vpop.permute.xlu0 %2887
  %2889 = vset.pattern.permute.xlu0 5
  %2890 = vperm.xlu0 %2889, %v21
  %v2891 = vpop.permute.xlu0 %2890
  %2892 = vset.pattern.permute.xlu0 5
  %2893 = vperm.xlu0 %2892, %v22
  %v2894 = vpop.permute.xlu0 %2893
  %2895 = vset.pattern.permute.xlu0 5
  %2896 = vperm.xlu0 %2895, %v23
  %v2897 = vpop.permute.xlu0 %2896
  %2898 = vset.pattern.permute.xlu0 5
  %2899 = vperm.xlu0 %2898, %v24
  %v2900 = vpop.permute.xlu0 %2899
  %2901 = vset.pattern.permute.xlu0 5
  %2902 = vperm.xlu0 %2901, %v25
  %v2903 = vpop.permute.xlu0 %2902
  %2904 = vset.pattern.permute.xlu0 5
  %2905 = vperm.xlu0 %2904, %v26
  %v2906 = vpop.permute.xlu0 %2905
  %2907 = vset.pattern.permute.xlu0 5
  %2908 = vperm.xlu0 %2907, %v27
  %v2909 = vpop.permute.xlu0 %2908
  %2910 = vset.pattern.permute.xlu0 5
  %2911 = vperm.xlu0 %2910, %v28
  %v2912 = vpop.permute.xlu0 %2911
  %2913 = vset.pattern.permute.xlu0 5
  %2914 = vperm.xlu0 %2913, %v29
  %v2915 = vpop.permute.xlu0 %2914
  %2916 = vset.pattern.permute.xlu0 5
  %2917 = vperm.xlu0 %2916, %v30
  %v2918 = vpop.permute.xlu0 %2917
  %2919 = vset.pattern.permute.xlu0 5
  %2920 = vperm.xlu0 %2919, %v31
  %v2921 = vpop.permute.xlu0 %2920
  %2922 = vset.pattern.permute.xlu0 5
  %2923 = vperm.xlu0 %2922, %v32
  %v2924 = vpop.permute.xlu0 %2923
  %2925 = vset.pattern.permute.xlu0 5
  %2926 = vperm.xlu0 %2925, %v33
  %v2927 = vpop.permute.xlu0 %2926
  %2928 = vset.pattern.permute.xlu0 5
  %2929 = vperm.xlu0 %2928, %v34
  %v2930 = vpop.permute.xlu0 %2929
  %2931 = vset.pattern.permute.xlu0 5
  %2932 = vperm.xlu0 %2931, %v35
  %v2933 = vpop.permute.xlu0 %2932
  %2934 = vset.pattern.permute.xlu0 5
  %2935 = vperm.xlu0 %2934, %v36
  %v2936 = vpop.permute.xlu0 %2935
  %2937 = vset.pattern.permute.xlu0 5
  %2938 = vperm.xlu0 %2937, %v37
  %v2939 = vpop.permute.xlu0 %2938
  %2940 = vset.pattern.permute.xlu0 5
  %2941 = vperm.xlu0 %2940, %v38
  %v2942 = vpop.permute.xlu0 %2941
  %2943 = vset.pattern.permute.xlu0 5
  %2944 = vperm.xlu0 %2943, %v39
  %v2945 = vpop.permute.xlu0 %2944
  %2946 = vset.pattern.permute.xlu0 5
  %2947 = vperm.xlu0 %2946, %v40
  %v2948 = vpop.permute.xlu0 %2947
  %2949 = vset.pattern.permute.xlu0 5
  %2950 = vperm.xlu0 %2949, %v41
  %v2951 = vpop.permute.xlu0 %2950
  %2952 = vset.pattern.permute.xlu0 5
  %2953 = vperm.xlu0 %2952, %v42
  %v2954 = vpop.permute.xlu0 %2953
  %2955 = vset.pattern.permute.xlu0 5
  %2956 = vperm.xlu0 %2955, %v43
  %v2957 = vpop.permute.xlu0 %2956
  %2958 = vset.pattern.permute.xlu0 5
  %2959 = vperm.xlu0 %2958, %v44
  %v2960 = vpop.permute.xlu0 %2959
  %2961 = vset.pattern.permute.xlu0 5
  %2962 = vperm.xlu0 %2961, %v45
  %v2963 = vpop.permute.xlu0 %2962
  %2964 = vset.pattern.permute.xlu0 5
  %2965 = vperm.xlu0 %2964, %v46
  %v2966 = vpop.permute.xlu0 %2965
  %2967 = vset.pattern.permute.xlu0 5
  %2968 = vperm.xlu0 %2967, %v47
  %v2969 = vpop.permute.xlu0 %2968
  %2970 = vset.pattern.permute.xlu0 5
  %2971 = vperm.xlu0 %2970, %v48
  %v2972 = vpop.permute.xlu0 %2971
  %vm2973 = vcmp.eq.s32.totalorder %v55, %v2879
  %vm2974 = vcmp.eq.s32.totalorder %v55, %v2882
  %vm2975 = vcmp.eq.s32.totalorder %v55, %v2885
  %vm2976 = vcmp.eq.s32.totalorder %v55, %v2888
  %vm2977 = vcmp.eq.s32.totalorder %v55, %v2891
  %vm2978 = vcmp.eq.s32.totalorder %v55, %v2894
  %vm2979 = vcmp.eq.s32.totalorder %v55, %v2897
  %vm2980 = vcmp.eq.s32.totalorder %v55, %v2900
  %vm2981 = vcmp.eq.s32.totalorder %v55, %v2903
  %vm2982 = vcmp.eq.s32.totalorder %v55, %v2906
  %vm2983 = vcmp.eq.s32.totalorder %v55, %v2909
  %vm2984 = vcmp.eq.s32.totalorder %v55, %v2912
  %vm2985 = vcmp.eq.s32.totalorder %v55, %v2915
  %vm2986 = vcmp.eq.s32.totalorder %v55, %v2918
  %vm2987 = vcmp.eq.s32.totalorder %v55, %v2921
  %vm2988 = vcmp.eq.s32.totalorder %v55, %v2924
  %vm2989 = vcmp.eq.s32.totalorder %v55, %v2927
  %vm2990 = vcmp.eq.s32.totalorder %v55, %v2930
  %vm2991 = vcmp.eq.s32.totalorder %v55, %v2933
  %vm2992 = vcmp.eq.s32.totalorder %v55, %v2936
  %vm2993 = vcmp.eq.s32.totalorder %v55, %v2939
  %vm2994 = vcmp.eq.s32.totalorder %v55, %v2942
  %vm2995 = vcmp.eq.s32.totalorder %v55, %v2945
  %vm2996 = vcmp.eq.s32.totalorder %v55, %v2948
  %vm2997 = vcmp.eq.s32.totalorder %v55, %v2951
  %vm2998 = vcmp.eq.s32.totalorder %v55, %v2954
  %vm2999 = vcmp.eq.s32.totalorder %v55, %v2957
  %vm3000 = vcmp.eq.s32.totalorder %v55, %v2960
  %vm3001 = vcmp.eq.s32.totalorder %v55, %v2963
  %vm3002 = vcmp.eq.s32.totalorder %v55, %v2966
  %vm3003 = vcmp.eq.s32.totalorder %v55, %v2969
  %vm3004 = vcmp.eq.s32.totalorder %v55, %v2972
  %3005 = vset.pattern.permute.xlu0 6
  %3006 = vperm.xlu0 %3005, %v184
  %v3007 = vpop.permute.xlu0 %3006
  %3008 = vset.pattern.permute.xlu0 6
  %3009 = vperm.xlu0 %3008, %v185
  %v3010 = vpop.permute.xlu0 %3009
  %3011 = vset.pattern.permute.xlu0 6
  %3012 = vperm.xlu0 %3011, %v186
  %v3013 = vpop.permute.xlu0 %3012
  %3014 = vset.pattern.permute.xlu0 6
  %3015 = vperm.xlu0 %3014, %v187
  %v3016 = vpop.permute.xlu0 %3015
  %3017 = vset.pattern.permute.xlu0 6
  %3018 = vperm.xlu0 %3017, %v188
  %v3019 = vpop.permute.xlu0 %3018
  %3020 = vset.pattern.permute.xlu0 6
  %3021 = vperm.xlu0 %3020, %v189
  %v3022 = vpop.permute.xlu0 %3021
  %3023 = vset.pattern.permute.xlu0 6
  %3024 = vperm.xlu0 %3023, %v190
  %v3025 = vpop.permute.xlu0 %3024
  %3026 = vset.pattern.permute.xlu0 6
  %3027 = vperm.xlu0 %3026, %v191
  %v3028 = vpop.permute.xlu0 %3027
  %3029 = vset.pattern.permute.xlu0 6
  %3030 = vperm.xlu0 %3029, %v192
  %v3031 = vpop.permute.xlu0 %3030
  %3032 = vset.pattern.permute.xlu0 6
  %3033 = vperm.xlu0 %3032, %v193
  %v3034 = vpop.permute.xlu0 %3033
  %3035 = vset.pattern.permute.xlu0 6
  %3036 = vperm.xlu0 %3035, %v194
  %v3037 = vpop.permute.xlu0 %3036
  %3038 = vset.pattern.permute.xlu0 6
  %3039 = vperm.xlu0 %3038, %v195
  %v3040 = vpop.permute.xlu0 %3039
  %3041 = vset.pattern.permute.xlu0 6
  %3042 = vperm.xlu0 %3041, %v196
  %v3043 = vpop.permute.xlu0 %3042
  %3044 = vset.pattern.permute.xlu0 6
  %3045 = vperm.xlu0 %3044, %v197
  %v3046 = vpop.permute.xlu0 %3045
  %3047 = vset.pattern.permute.xlu0 6
  %3048 = vperm.xlu0 %3047, %v198
  %v3049 = vpop.permute.xlu0 %3048
  %3050 = vset.pattern.permute.xlu0 6
  %3051 = vperm.xlu0 %3050, %v199
  %v3052 = vpop.permute.xlu0 %3051
  %3053 = vset.pattern.permute.xlu0 6
  %3054 = vperm.xlu0 %3053, %v200
  %v3055 = vpop.permute.xlu0 %3054
  %3056 = vset.pattern.permute.xlu0 6
  %3057 = vperm.xlu0 %3056, %v201
  %v3058 = vpop.permute.xlu0 %3057
  %3059 = vset.pattern.permute.xlu0 6
  %3060 = vperm.xlu0 %3059, %v202
  %v3061 = vpop.permute.xlu0 %3060
  %3062 = vset.pattern.permute.xlu0 6
  %3063 = vperm.xlu0 %3062, %v203
  %v3064 = vpop.permute.xlu0 %3063
  %3065 = vset.pattern.permute.xlu0 6
  %3066 = vperm.xlu0 %3065, %v204
  %v3067 = vpop.permute.xlu0 %3066
  %3068 = vset.pattern.permute.xlu0 6
  %3069 = vperm.xlu0 %3068, %v205
  %v3070 = vpop.permute.xlu0 %3069
  %3071 = vset.pattern.permute.xlu0 6
  %3072 = vperm.xlu0 %3071, %v206
  %v3073 = vpop.permute.xlu0 %3072
  %3074 = vset.pattern.permute.xlu0 6
  %3075 = vperm.xlu0 %3074, %v207
  %v3076 = vpop.permute.xlu0 %3075
  %3077 = vset.pattern.permute.xlu0 6
  %3078 = vperm.xlu0 %3077, %v208
  %v3079 = vpop.permute.xlu0 %3078
  %3080 = vset.pattern.permute.xlu0 6
  %3081 = vperm.xlu0 %3080, %v209
  %v3082 = vpop.permute.xlu0 %3081
  %3083 = vset.pattern.permute.xlu0 6
  %3084 = vperm.xlu0 %3083, %v210
  %v3085 = vpop.permute.xlu0 %3084
  %3086 = vset.pattern.permute.xlu0 6
  %3087 = vperm.xlu0 %3086, %v211
  %v3088 = vpop.permute.xlu0 %3087
  %3089 = vset.pattern.permute.xlu0 6
  %3090 = vperm.xlu0 %3089, %v212
  %v3091 = vpop.permute.xlu0 %3090
  %3092 = vset.pattern.permute.xlu0 6
  %3093 = vperm.xlu0 %3092, %v213
  %v3094 = vpop.permute.xlu0 %3093
  %3095 = vset.pattern.permute.xlu0 6
  %3096 = vperm.xlu0 %3095, %v214
  %v3097 = vpop.permute.xlu0 %3096
  %3098 = vset.pattern.permute.xlu0 6
  %3099 = vperm.xlu0 %3098, %v215
  %v3100 = vpop.permute.xlu0 %3099
  %vm3101 = vcmp.eq.s32.totalorder %v55, %v3007
  %vm3102 = vcmp.eq.s32.totalorder %v55, %v3010
  %vm3103 = vcmp.eq.s32.totalorder %v55, %v3013
  %vm3104 = vcmp.eq.s32.totalorder %v55, %v3016
  %vm3105 = vcmp.eq.s32.totalorder %v55, %v3019
  %vm3106 = vcmp.eq.s32.totalorder %v55, %v3022
  %vm3107 = vcmp.eq.s32.totalorder %v55, %v3025
  %vm3108 = vcmp.eq.s32.totalorder %v55, %v3028
  %vm3109 = vcmp.eq.s32.totalorder %v55, %v3031
  %vm3110 = vcmp.eq.s32.totalorder %v55, %v3034
  %vm3111 = vcmp.eq.s32.totalorder %v55, %v3037
  %vm3112 = vcmp.eq.s32.totalorder %v55, %v3040
  %vm3113 = vcmp.eq.s32.totalorder %v55, %v3043
  %vm3114 = vcmp.eq.s32.totalorder %v55, %v3046
  %vm3115 = vcmp.eq.s32.totalorder %v55, %v3049
  %vm3116 = vcmp.eq.s32.totalorder %v55, %v3052
  %vm3117 = vcmp.eq.s32.totalorder %v55, %v3055
  %vm3118 = vcmp.eq.s32.totalorder %v55, %v3058
  %vm3119 = vcmp.eq.s32.totalorder %v55, %v3061
  %vm3120 = vcmp.eq.s32.totalorder %v55, %v3064
  %vm3121 = vcmp.eq.s32.totalorder %v55, %v3067
  %vm3122 = vcmp.eq.s32.totalorder %v55, %v3070
  %vm3123 = vcmp.eq.s32.totalorder %v55, %v3073
  %vm3124 = vcmp.eq.s32.totalorder %v55, %v3076
  %vm3125 = vcmp.eq.s32.totalorder %v55, %v3079
  %vm3126 = vcmp.eq.s32.totalorder %v55, %v3082
  %vm3127 = vcmp.eq.s32.totalorder %v55, %v3085
  %vm3128 = vcmp.eq.s32.totalorder %v55, %v3088
  %vm3129 = vcmp.eq.s32.totalorder %v55, %v3091
  %vm3130 = vcmp.eq.s32.totalorder %v55, %v3094
  %vm3131 = vcmp.eq.s32.totalorder %v55, %v3097
  %vm3132 = vcmp.eq.s32.totalorder %v55, %v3100
  %vm3133 = vmor %vm2973, %vm3101
  %vm3134 = vmor %vm2974, %vm3102
  %vm3135 = vmor %vm2975, %vm3103
  %vm3136 = vmor %vm2976, %vm3104
  %vm3137 = vmor %vm2977, %vm3105
  %vm3138 = vmor %vm2978, %vm3106
  %vm3139 = vmor %vm2979, %vm3107
  %vm3140 = vmor %vm2980, %vm3108
  %vm3141 = vmor %vm2981, %vm3109
  %vm3142 = vmor %vm2982, %vm3110
  %vm3143 = vmor %vm2983, %vm3111
  %vm3144 = vmor %vm2984, %vm3112
  %vm3145 = vmor %vm2985, %vm3113
  %vm3146 = vmor %vm2986, %vm3114
  %vm3147 = vmor %vm2987, %vm3115
  %vm3148 = vmor %vm2988, %vm3116
  %vm3149 = vmor %vm2989, %vm3117
  %vm3150 = vmor %vm2990, %vm3118
  %vm3151 = vmor %vm2991, %vm3119
  %vm3152 = vmor %vm2992, %vm3120
  %vm3153 = vmor %vm2993, %vm3121
  %vm3154 = vmor %vm2994, %vm3122
  %vm3155 = vmor %vm2995, %vm3123
  %vm3156 = vmor %vm2996, %vm3124
  %vm3157 = vmor %vm2997, %vm3125
  %vm3158 = vmor %vm2998, %vm3126
  %vm3159 = vmor %vm2999, %vm3127
  %vm3160 = vmor %vm3000, %vm3128
  %vm3161 = vmor %vm3001, %vm3129
  %vm3162 = vmor %vm3002, %vm3130
  %vm3163 = vmor %vm3003, %vm3131
  %vm3164 = vmor %vm3004, %vm3132
  %v3165 = vsel %vm3133, 1, 0
  %v3166 = vsel %vm3134, 1, 0
  %v3167 = vsel %vm3135, 1, 0
  %v3168 = vsel %vm3136, 1, 0
  %v3169 = vsel %vm3137, 1, 0
  %v3170 = vsel %vm3138, 1, 0
  %v3171 = vsel %vm3139, 1, 0
  %v3172 = vsel %vm3140, 1, 0
  %v3173 = vsel %vm3141, 1, 0
  %v3174 = vsel %vm3142, 1, 0
  %v3175 = vsel %vm3143, 1, 0
  %v3176 = vsel %vm3144, 1, 0
  %v3177 = vsel %vm3145, 1, 0
  %v3178 = vsel %vm3146, 1, 0
  %v3179 = vsel %vm3147, 1, 0
  %v3180 = vsel %vm3148, 1, 0
  %v3181 = vsel %vm3149, 1, 0
  %v3182 = vsel %vm3150, 1, 0
  %v3183 = vsel %vm3151, 1, 0
  %v3184 = vsel %vm3152, 1, 0
  %v3185 = vsel %vm3153, 1, 0
  %v3186 = vsel %vm3154, 1, 0
  %v3187 = vsel %vm3155, 1, 0
  %v3188 = vsel %vm3156, 1, 0
  %v3189 = vsel %vm3157, 1, 0
  %v3190 = vsel %vm3158, 1, 0
  %v3191 = vsel %vm3159, 1, 0
  %v3192 = vsel %vm3160, 1, 0
  %v3193 = vsel %vm3161, 1, 0
  %v3194 = vsel %vm3162, 1, 0
  %v3195 = vsel %vm3163, 1, 0
  %v3196 = vsel %vm3164, 1, 0
  %v3197 = vcvt.s32.f32 %v3165
  %v3198 = vcvt.s32.f32 %v3166
  %v3199 = vcvt.s32.f32 %v3167
  %v3200 = vcvt.s32.f32 %v3168
  %v3201 = vcvt.s32.f32 %v3169
  %v3202 = vcvt.s32.f32 %v3170
  %v3203 = vcvt.s32.f32 %v3171
  %v3204 = vcvt.s32.f32 %v3172
  %v3205 = vcvt.s32.f32 %v3173
  %v3206 = vcvt.s32.f32 %v3174
  %v3207 = vcvt.s32.f32 %v3175
  %v3208 = vcvt.s32.f32 %v3176
  %v3209 = vcvt.s32.f32 %v3177
  %v3210 = vcvt.s32.f32 %v3178
  %v3211 = vcvt.s32.f32 %v3179
  %v3212 = vcvt.s32.f32 %v3180
  %v3213 = vcvt.s32.f32 %v3181
  %v3214 = vcvt.s32.f32 %v3182
  %v3215 = vcvt.s32.f32 %v3183
  %v3216 = vcvt.s32.f32 %v3184
  %v3217 = vcvt.s32.f32 %v3185
  %v3218 = vcvt.s32.f32 %v3186
  %v3219 = vcvt.s32.f32 %v3187
  %v3220 = vcvt.s32.f32 %v3188
  %v3221 = vcvt.s32.f32 %v3189
  %v3222 = vcvt.s32.f32 %v3190
  %v3223 = vcvt.s32.f32 %v3191
  %v3224 = vcvt.s32.f32 %v3192
  %v3225 = vcvt.s32.f32 %v3193
  %v3226 = vcvt.s32.f32 %v3194
  %v3227 = vcvt.s32.f32 %v3195
  %v3228 = vcvt.s32.f32 %v3196
  %v3230 = vsel %vm440, %v3197, 0
  %v3233 = vsel %vm440, %v3198, 0
  %v3236 = vsel %vm440, %v3199, 0
  %v3239 = vsel %vm440, %v3200, 0
  %v3242 = vsel %vm440, %v3201, 0
  %v3245 = vsel %vm440, %v3202, 0
  %v3248 = vsel %vm440, %v3203, 0
  %v3251 = vsel %vm440, %v3204, 0
  %v3254 = vsel %vm440, %v3205, 0
  %v3257 = vsel %vm440, %v3206, 0
  %v3260 = vsel %vm440, %v3207, 0
  %v3263 = vsel %vm440, %v3208, 0
  %v3266 = vsel %vm440, %v3209, 0
  %v3269 = vsel %vm440, %v3210, 0
  %v3272 = vsel %vm440, %v3211, 0
  %v3275 = vsel %vm440, %v3212, 0
  %v3278 = vsel %vm440, %v3213, 0
  %v3281 = vsel %vm440, %v3214, 0
  %v3284 = vsel %vm440, %v3215, 0
  %v3287 = vsel %vm440, %v3216, 0
  %v3290 = vsel %vm440, %v3217, 0
  %v3293 = vsel %vm440, %v3218, 0
  %v3296 = vsel %vm440, %v3219, 0
  %v3299 = vsel %vm440, %v3220, 0
  %v3302 = vsel %vm440, %v3221, 0
  %v3305 = vsel %vm440, %v3222, 0
  %v3308 = vsel %vm440, %v3223, 0
  %v3311 = vsel %vm440, %v3224, 0
  %v3314 = vsel %vm440, %v3225, 0
  %v3317 = vsel %vm440, %v3226, 0
  %v3320 = vsel %vm440, %v3227, 0
  %v3323 = vsel %vm440, %v3228, 0
  %3325 = vmatprep.subr.mxu0 0.0
  %3326 = vmatpush1.msra.mxu0 %v49
  %3327 = vmatprep.subr.mxu0 0.0
  %3328 = vmatpush1.msra.mxu0 %v50
  %3329 = vmatprep.subr.mxu0 0.0
  %3330 = vmatpush1.msra.mxu0 %v51
  %3331 = vmatprep.subr.mxu0 0.0
  %3332 = vmatpush1.msra.mxu0 %v52
  %3333 = vmatprep.subr.mxu0 0.0
  %3334 = vmatpush1.msra.mxu0 %v53
  %3335 = vmatprep.subr.mxu0 0.0
  %3336 = vmatpush1.msra.mxu0 0.0
  %3337 = vmatprep.subr.mxu0 0.0
  %3338 = vmatpush1.msra.mxu0 0.0
  %3339 = vmatprep.subr.mxu0 0.0
  %3340 = vmatpush1.msra.mxu0 0.0
  %3341 = vmatprep.subr.mxu0 0.0
  %3342 = vmatpush1.msra.mxu0 0.0
  %3343 = vmatprep.subr.mxu0 0.0
  %3344 = vmatpush1.msra.mxu0 0.0
  %3345 = vmatprep.subr.mxu0 0.0
  %3346 = vmatpush1.msra.mxu0 0.0
  %3347 = vmatprep.subr.mxu0 0.0
  %3348 = vmatpush1.msra.mxu0 0.0
  %3349 = vmatprep.subr.mxu0 0.0
  %3350 = vmatpush1.msra.mxu0 0.0
  %3351 = vmatprep.subr.mxu0 0.0
  %3352 = vmatpush1.msra.mxu0 0.0
  %3353 = vmatprep.subr.mxu0 0.0
  %3354 = vmatpush1.msra.mxu0 0.0
  %3355 = vmatprep.subr.mxu0 0.0
  %3356 = vmatpush1.msra.mxu0 0.0
  %3357 = vmatprep.subr.mxu0 0.0
  %3358 = vmatpush1.msra.mxu0 0.0
  %3359 = vmatprep.subr.mxu0 0.0
  %3360 = vmatpush1.msra.mxu0 0.0
  %3361 = vmatprep.subr.mxu0 0.0
  %3362 = vmatpush1.msra.mxu0 0.0
  %3363 = vmatprep.subr.mxu0 0.0
  %3364 = vmatpush1.msra.mxu0 0.0
  %3365 = vmatprep.subr.mxu0 0.0
  %3366 = vmatpush1.msra.mxu0 0.0
  %3367 = vmatprep.subr.mxu0 0.0
  %3368 = vmatpush1.msra.mxu0 0.0
  %3369 = vmatprep.subr.mxu0 0.0
  %3370 = vmatpush1.msra.mxu0 0.0
  %3371 = vmatprep.subr.mxu0 0.0
  %3372 = vmatpush1.msra.mxu0 0.0
  %3373 = vmatprep.subr.mxu0 0.0
  %3374 = vmatpush1.msra.mxu0 0.0
  %3375 = vmatprep.subr.mxu0 0.0
  %3376 = vmatpush1.msra.mxu0 0.0
  %3377 = vmatprep.subr.mxu0 0.0
  %3378 = vmatpush1.msra.mxu0 0.0
  %3379 = vmatprep.subr.mxu0 0.0
  %3380 = vmatpush1.msra.mxu0 0.0
  %3381 = vmatprep.subr.mxu0 0.0
  %3382 = vmatpush1.msra.mxu0 0.0
  %3383 = vmatprep.subr.mxu0 0.0
  %3384 = vmatpush1.msra.mxu0 0.0
  %3385 = vmatprep.subr.mxu0 0.0
  %3386 = vmatpush1.msra.mxu0 0.0
  %3387 = vmatprep.subr.mxu0 0.0
  %3388 = vmatpush1.msra.mxu0 0.0
  %3389 = vmatprep.mubr.f32.mxu0 0.0
  %3390 = vmatmul.mubr.f32.gmra.mrb[0].mxu0 %v3230
  %v3391 = vpop.f32.mrb[0].mxu0
  %v3392 = vadd.f32 0.0, %v3391
  %v3393 = vpop.f32.mrb[0].mxu0
  %3394 = vmatprep.mubr.f32.mxu0 0.0
  %3395 = vmatmul.mubr.f32.gmra.mrb[0].mxu0 %v3233
  %v3396 = vpop.f32.mrb[0].mxu0
  %v3397 = vadd.f32 0.0, %v3396
  %v3398 = vpop.f32.mrb[0].mxu0
  %3399 = vmatprep.mubr.f32.mxu0 0.0
  %3400 = vmatmul.mubr.f32.gmra.mrb[0].mxu0 %v3236
  %v3401 = vpop.f32.mrb[0].mxu0
  %v3402 = vadd.f32 0.0, %v3401
  %v3403 = vpop.f32.mrb[0].mxu0
  %3404 = vmatprep.mubr.f32.mxu0 0.0
  %3405 = vmatmul.mubr.f32.gmra.mrb[0].mxu0 %v3239
  %v3406 = vpop.f32.mrb[0].mxu0
  %v3407 = vadd.f32 0.0, %v3406
  %v3408 = vpop.f32.mrb[0].mxu0
  %3409 = vmatprep.mubr.f32.mxu0 0.0
  %3410 = vmatmul.mubr.f32.gmra.mrb[0].mxu0 %v3242
  %v3411 = vpop.f32.mrb[0].mxu0
  %v3412 = vadd.f32 0.0, %v3411
  %v3413 = vpop.f32.mrb[0].mxu0
  %3414 = vmatprep.mubr.f32.mxu0 0.0
  %3415 = vmatmul.mubr.f32.gmra.mrb[0].mxu0 %v3245
  %v3416 = vpop.f32.mrb[0].mxu0
  %v3417 = vadd.f32 0.0, %v3416
  %v3418 = vpop.f32.mrb[0].mxu0
  %3419 = vmatprep.mubr.f32.mxu0 0.0
  %3420 = vmatmul.mubr.f32.gmra.mrb[0].mxu0 %v3248
  %v3421 = vpop.f32.mrb[0].mxu0
  %v3422 = vadd.f32 0.0, %v3421
  %v3423 = vpop.f32.mrb[0].mxu0
  %3424 = vmatprep.mubr.f32.mxu0 0.0
  %3425 = vmatmul.mubr.f32.gmra.mrb[0].mxu0 %v3251
  %v3426 = vpop.f32.mrb[0].mxu0
  %v3427 = vadd.f32 0.0, %v3426
  %v3428 = vpop.f32.mrb[0].mxu0
  %3429 = vmatprep.mubr.f32.mxu0 0.0
  %3430 = vmatmul.mubr.f32.gmra.mrb[0].mxu0 %v3254
  %v3431 = vpop.f32.mrb[0].mxu0
  %v3432 = vadd.f32 0.0, %v3431
  %v3433 = vpop.f32.mrb[0].mxu0
  %3434 = vmatprep.mubr.f32.mxu0 0.0
  %3435 = vmatmul.mubr.f32.gmra.mrb[0].mxu0 %v3257
  %v3436 = vpop.f32.mrb[0].mxu0
  %v3437 = vadd.f32 0.0, %v3436
  %v3438 = vpop.f32.mrb[0].mxu0
  %3439 = vmatprep.mubr.f32.mxu0 0.0
  %3440 = vmatmul.mubr.f32.gmra.mrb[0].mxu0 %v3260
  %v3441 = vpop.f32.mrb[0].mxu0
  %v3442 = vadd.f32 0.0, %v3441
  %v3443 = vpop.f32.mrb[0].mxu0
  %3444 = vmatprep.mubr.f32.mxu0 0.0
  %3445 = vmatmul.mubr.f32.gmra.mrb[0].mxu0 %v3263
  %v3446 = vpop.f32.mrb[0].mxu0
  %v3447 = vadd.f32 0.0, %v3446
  %v3448 = vpop.f32.mrb[0].mxu0
  %3449 = vmatprep.mubr.f32.mxu0 0.0
  %3450 = vmatmul.mubr.f32.gmra.mrb[0].mxu0 %v3266
  %v3451 = vpop.f32.mrb[0].mxu0
  %v3452 = vadd.f32 0.0, %v3451
  %v3453 = vpop.f32.mrb[0].mxu0
  %3454 = vmatprep.mubr.f32.mxu0 0.0
  %3455 = vmatmul.mubr.f32.gmra.mrb[0].mxu0 %v3269
  %v3456 = vpop.f32.mrb[0].mxu0
  %v3457 = vadd.f32 0.0, %v3456
  %v3458 = vpop.f32.mrb[0].mxu0
  %3459 = vmatprep.mubr.f32.mxu0 0.0
  %3460 = vmatmul.mubr.f32.gmra.mrb[0].mxu0 %v3272
  %v3461 = vpop.f32.mrb[0].mxu0
  %v3462 = vadd.f32 0.0, %v3461
  %v3463 = vpop.f32.mrb[0].mxu0
  %3464 = vmatprep.mubr.f32.mxu0 0.0
  %3465 = vmatmul.mubr.f32.gmra.mrb[0].mxu0 %v3275
  %v3466 = vpop.f32.mrb[0].mxu0
  %v3467 = vadd.f32 0.0, %v3466
  %v3468 = vpop.f32.mrb[0].mxu0
  %3469 = vmatprep.mubr.f32.mxu0 0.0
  %3470 = vmatmul.mubr.f32.gmra.mrb[0].mxu0 %v3278
  %v3471 = vpop.f32.mrb[0].mxu0
  %v3472 = vadd.f32 0.0, %v3471
  %v3473 = vpop.f32.mrb[0].mxu0
  %3474 = vmatprep.mubr.f32.mxu0 0.0
  %3475 = vmatmul.mubr.f32.gmra.mrb[0].mxu0 %v3281
  %v3476 = vpop.f32.mrb[0].mxu0
  %v3477 = vadd.f32 0.0, %v3476
  %v3478 = vpop.f32.mrb[0].mxu0
  %3479 = vmatprep.mubr.f32.mxu0 0.0
  %3480 = vmatmul.mubr.f32.gmra.mrb[0].mxu0 %v3284
  %v3481 = vpop.f32.mrb[0].mxu0
  %v3482 = vadd.f32 0.0, %v3481
  %v3483 = vpop.f32.mrb[0].mxu0
  %3484 = vmatprep.mubr.f32.mxu0 0.0
  %3485 = vmatmul.mubr.f32.gmra.mrb[0].mxu0 %v3287
  %v3486 = vpop.f32.mrb[0].mxu0
  %v3487 = vadd.f32 0.0, %v3486
  %v3488 = vpop.f32.mrb[0].mxu0
  %3489 = vmatprep.mubr.f32.mxu0 0.0
  %3490 = vmatmul.mubr.f32.gmra.mrb[0].mxu0 %v3290
  %v3491 = vpop.f32.mrb[0].mxu0
  %v3492 = vadd.f32 0.0, %v3491
  %v3493 = vpop.f32.mrb[0].mxu0
  %3494 = vmatprep.mubr.f32.mxu0 0.0
  %3495 = vmatmul.mubr.f32.gmra.mrb[0].mxu0 %v3293
  %v3496 = vpop.f32.mrb[0].mxu0
  %v3497 = vadd.f32 0.0, %v3496
  %v3498 = vpop.f32.mrb[0].mxu0
  %3499 = vmatprep.mubr.f32.mxu0 0.0
  %3500 = vmatmul.mubr.f32.gmra.mrb[0].mxu0 %v3296
  %v3501 = vpop.f32.mrb[0].mxu0
  %v3502 = vadd.f32 0.0, %v3501
  %v3503 = vpop.f32.mrb[0].mxu0
  %3504 = vmatprep.mubr.f32.mxu0 0.0
  %3505 = vmatmul.mubr.f32.gmra.mrb[0].mxu0 %v3299
  %v3506 = vpop.f32.mrb[0].mxu0
  %v3507 = vadd.f32 0.0, %v3506
  %v3508 = vpop.f32.mrb[0].mxu0
  %3509 = vmatprep.mubr.f32.mxu0 0.0
  %3510 = vmatmul.mubr.f32.gmra.mrb[0].mxu0 %v3302
  %v3511 = vpop.f32.mrb[0].mxu0
  %v3512 = vadd.f32 0.0, %v3511
  %v3513 = vpop.f32.mrb[0].mxu0
  %3514 = vmatprep.mubr.f32.mxu0 0.0
  %3515 = vmatmul.mubr.f32.gmra.mrb[0].mxu0 %v3305
  %v3516 = vpop.f32.mrb[0].mxu0
  %v3517 = vadd.f32 0.0, %v3516
  %v3518 = vpop.f32.mrb[0].mxu0
  %3519 = vmatprep.mubr.f32.mxu0 0.0
  %3520 = vmatmul.mubr.f32.gmra.mrb[0].mxu0 %v3308
  %v3521 = vpop.f32.mrb[0].mxu0
  %v3522 = vadd.f32 0.0, %v3521
  %v3523 = vpop.f32.mrb[0].mxu0
  %3524 = vmatprep.mubr.f32.mxu0 0.0
  %3525 = vmatmul.mubr.f32.gmra.mrb[0].mxu0 %v3311
  %v3526 = vpop.f32.mrb[0].mxu0
  %v3527 = vadd.f32 0.0, %v3526
  %v3528 = vpop.f32.mrb[0].mxu0
  %3529 = vmatprep.mubr.f32.mxu0 0.0
  %3530 = vmatmul.mubr.f32.gmra.mrb[0].mxu0 %v3314
  %v3531 = vpop.f32.mrb[0].mxu0
  %v3532 = vadd.f32 0.0, %v3531
  %v3533 = vpop.f32.mrb[0].mxu0
  %3534 = vmatprep.mubr.f32.mxu0 0.0
  %3535 = vmatmul.mubr.f32.gmra.mrb[0].mxu0 %v3317
  %v3536 = vpop.f32.mrb[0].mxu0
  %v3537 = vadd.f32 0.0, %v3536
  %v3538 = vpop.f32.mrb[0].mxu0
  %3539 = vmatprep.mubr.f32.mxu0 0.0
  %3540 = vmatmul.mubr.f32.gmra.mrb[0].mxu0 %v3320
  %v3541 = vpop.f32.mrb[0].mxu0
  %v3542 = vadd.f32 0.0, %v3541
  %v3543 = vpop.f32.mrb[0].mxu0
  %3544 = vmatprep.mubr.f32.mxu0 0.0
  %3545 = vmatmul.mubr.f32.gmra.mrb[0].mxu0 %v3323
  %v3546 = vpop.f32.mrb[0].mxu0
  %v3547 = vadd.f32 0.0, %v3546
  %v3548 = vpop.f32.mrb[0].mxu0
  %3549 = vdwg.mxu0
  %v3550 = vmax.f32 %v2845, %v3392
  %v3551 = vmax.f32 %v2846, %v3397
  %v3552 = vmax.f32 %v2847, %v3402
  %v3553 = vmax.f32 %v2848, %v3407
  %v3554 = vmax.f32 %v2849, %v3412
  %v3555 = vmax.f32 %v2850, %v3417
  %v3556 = vmax.f32 %v2851, %v3422
  %v3557 = vmax.f32 %v2852, %v3427
  %v3558 = vmax.f32 %v2853, %v3432
  %v3559 = vmax.f32 %v2854, %v3437
  %v3560 = vmax.f32 %v2855, %v3442
  %v3561 = vmax.f32 %v2856, %v3447
  %v3562 = vmax.f32 %v2857, %v3452
  %v3563 = vmax.f32 %v2858, %v3457
  %v3564 = vmax.f32 %v2859, %v3462
  %v3565 = vmax.f32 %v2860, %v3467
  %v3566 = vmax.f32 %v2861, %v3472
  %v3567 = vmax.f32 %v2862, %v3477
  %v3568 = vmax.f32 %v2863, %v3482
  %v3569 = vmax.f32 %v2864, %v3487
  %v3570 = vmax.f32 %v2865, %v3492
  %v3571 = vmax.f32 %v2866, %v3497
  %v3572 = vmax.f32 %v2867, %v3502
  %v3573 = vmax.f32 %v2868, %v3507
  %v3574 = vmax.f32 %v2869, %v3512
  %v3575 = vmax.f32 %v2870, %v3517
  %v3576 = vmax.f32 %v2871, %v3522
  %v3577 = vmax.f32 %v2872, %v3527
  %v3578 = vmax.f32 %v2873, %v3532
  %v3579 = vmax.f32 %v2874, %v3537
  %v3580 = vmax.f32 %v2875, %v3542
  %v3581 = vmax.f32 %v2876, %v3547
  %3582 = vset.pattern.permute.xlu0 6
  %3583 = vperm.xlu0 %3582, %v17
  %v3584 = vpop.permute.xlu0 %3583
  %3585 = vset.pattern.permute.xlu0 6
  %3586 = vperm.xlu0 %3585, %v18
  %v3587 = vpop.permute.xlu0 %3586
  %3588 = vset.pattern.permute.xlu0 6
  %3589 = vperm.xlu0 %3588, %v19
  %v3590 = vpop.permute.xlu0 %3589
  %3591 = vset.pattern.permute.xlu0 6
  %3592 = vperm.xlu0 %3591, %v20
  %v3593 = vpop.permute.xlu0 %3592
  %3594 = vset.pattern.permute.xlu0 6
  %3595 = vperm.xlu0 %3594, %v21
  %v3596 = vpop.permute.xlu0 %3595
  %3597 = vset.pattern.permute.xlu0 6
  %3598 = vperm.xlu0 %3597, %v22
  %v3599 = vpop.permute.xlu0 %3598
  %3600 = vset.pattern.permute.xlu0 6
  %3601 = vperm.xlu0 %3600, %v23
  %v3602 = vpop.permute.xlu0 %3601
  %3603 = vset.pattern.permute.xlu0 6
  %3604 = vperm.xlu0 %3603, %v24
  %v3605 = vpop.permute.xlu0 %3604
  %3606 = vset.pattern.permute.xlu0 6
  %3607 = vperm.xlu0 %3606, %v25
  %v3608 = vpop.permute.xlu0 %3607
  %3609 = vset.pattern.permute.xlu0 6
  %3610 = vperm.xlu0 %3609, %v26
  %v3611 = vpop.permute.xlu0 %3610
  %3612 = vset.pattern.permute.xlu0 6
  %3613 = vperm.xlu0 %3612, %v27
  %v3614 = vpop.permute.xlu0 %3613
  %3615 = vset.pattern.permute.xlu0 6
  %3616 = vperm.xlu0 %3615, %v28
  %v3617 = vpop.permute.xlu0 %3616
  %3618 = vset.pattern.permute.xlu0 6
  %3619 = vperm.xlu0 %3618, %v29
  %v3620 = vpop.permute.xlu0 %3619
  %3621 = vset.pattern.permute.xlu0 6
  %3622 = vperm.xlu0 %3621, %v30
  %v3623 = vpop.permute.xlu0 %3622
  %3624 = vset.pattern.permute.xlu0 6
  %3625 = vperm.xlu0 %3624, %v31
  %v3626 = vpop.permute.xlu0 %3625
  %3627 = vset.pattern.permute.xlu0 6
  %3628 = vperm.xlu0 %3627, %v32
  %v3629 = vpop.permute.xlu0 %3628
  %3630 = vset.pattern.permute.xlu0 6
  %3631 = vperm.xlu0 %3630, %v33
  %v3632 = vpop.permute.xlu0 %3631
  %3633 = vset.pattern.permute.xlu0 6
  %3634 = vperm.xlu0 %3633, %v34
  %v3635 = vpop.permute.xlu0 %3634
  %3636 = vset.pattern.permute.xlu0 6
  %3637 = vperm.xlu0 %3636, %v35
  %v3638 = vpop.permute.xlu0 %3637
  %3639 = vset.pattern.permute.xlu0 6
  %3640 = vperm.xlu0 %3639, %v36
  %v3641 = vpop.permute.xlu0 %3640
  %3642 = vset.pattern.permute.xlu0 6
  %3643 = vperm.xlu0 %3642, %v37
  %v3644 = vpop.permute.xlu0 %3643
  %3645 = vset.pattern.permute.xlu0 6
  %3646 = vperm.xlu0 %3645, %v38
  %v3647 = vpop.permute.xlu0 %3646
  %3648 = vset.pattern.permute.xlu0 6
  %3649 = vperm.xlu0 %3648, %v39
  %v3650 = vpop.permute.xlu0 %3649
  %3651 = vset.pattern.permute.xlu0 6
  %3652 = vperm.xlu0 %3651, %v40
  %v3653 = vpop.permute.xlu0 %3652
  %3654 = vset.pattern.permute.xlu0 6
  %3655 = vperm.xlu0 %3654, %v41
  %v3656 = vpop.permute.xlu0 %3655
  %3657 = vset.pattern.permute.xlu0 6
  %3658 = vperm.xlu0 %3657, %v42
  %v3659 = vpop.permute.xlu0 %3658
  %3660 = vset.pattern.permute.xlu0 6
  %3661 = vperm.xlu0 %3660, %v43
  %v3662 = vpop.permute.xlu0 %3661
  %3663 = vset.pattern.permute.xlu0 6
  %3664 = vperm.xlu0 %3663, %v44
  %v3665 = vpop.permute.xlu0 %3664
  %3666 = vset.pattern.permute.xlu0 6
  %3667 = vperm.xlu0 %3666, %v45
  %v3668 = vpop.permute.xlu0 %3667
  %3669 = vset.pattern.permute.xlu0 6
  %3670 = vperm.xlu0 %3669, %v46
  %v3671 = vpop.permute.xlu0 %3670
  %3672 = vset.pattern.permute.xlu0 6
  %3673 = vperm.xlu0 %3672, %v47
  %v3674 = vpop.permute.xlu0 %3673
  %3675 = vset.pattern.permute.xlu0 6
  %3676 = vperm.xlu0 %3675, %v48
  %v3677 = vpop.permute.xlu0 %3676
  %vm3678 = vcmp.eq.s32.totalorder %v55, %v3584
  %vm3679 = vcmp.eq.s32.totalorder %v55, %v3587
  %vm3680 = vcmp.eq.s32.totalorder %v55, %v3590
  %vm3681 = vcmp.eq.s32.totalorder %v55, %v3593
  %vm3682 = vcmp.eq.s32.totalorder %v55, %v3596
  %vm3683 = vcmp.eq.s32.totalorder %v55, %v3599
  %vm3684 = vcmp.eq.s32.totalorder %v55, %v3602
  %vm3685 = vcmp.eq.s32.totalorder %v55, %v3605
  %vm3686 = vcmp.eq.s32.totalorder %v55, %v3608
  %vm3687 = vcmp.eq.s32.totalorder %v55, %v3611
  %vm3688 = vcmp.eq.s32.totalorder %v55, %v3614
  %vm3689 = vcmp.eq.s32.totalorder %v55, %v3617
  %vm3690 = vcmp.eq.s32.totalorder %v55, %v3620
  %vm3691 = vcmp.eq.s32.totalorder %v55, %v3623
  %vm3692 = vcmp.eq.s32.totalorder %v55, %v3626
  %vm3693 = vcmp.eq.s32.totalorder %v55, %v3629
  %vm3694 = vcmp.eq.s32.totalorder %v55, %v3632
  %vm3695 = vcmp.eq.s32.totalorder %v55, %v3635
  %vm3696 = vcmp.eq.s32.totalorder %v55, %v3638
  %vm3697 = vcmp.eq.s32.totalorder %v55, %v3641
  %vm3698 = vcmp.eq.s32.totalorder %v55, %v3644
  %vm3699 = vcmp.eq.s32.totalorder %v55, %v3647
  %vm3700 = vcmp.eq.s32.totalorder %v55, %v3650
  %vm3701 = vcmp.eq.s32.totalorder %v55, %v3653
  %vm3702 = vcmp.eq.s32.totalorder %v55, %v3656
  %vm3703 = vcmp.eq.s32.totalorder %v55, %v3659
  %vm3704 = vcmp.eq.s32.totalorder %v55, %v3662
  %vm3705 = vcmp.eq.s32.totalorder %v55, %v3665
  %vm3706 = vcmp.eq.s32.totalorder %v55, %v3668
  %vm3707 = vcmp.eq.s32.totalorder %v55, %v3671
  %vm3708 = vcmp.eq.s32.totalorder %v55, %v3674
  %vm3709 = vcmp.eq.s32.totalorder %v55, %v3677
  %3710 = vset.pattern.permute.xlu0 7
  %3711 = vperm.xlu0 %3710, %v184
  %v3712 = vpop.permute.xlu0 %3711
  %3713 = vset.pattern.permute.xlu0 7
  %3714 = vperm.xlu0 %3713, %v185
  %v3715 = vpop.permute.xlu0 %3714
  %3716 = vset.pattern.permute.xlu0 7
  %3717 = vperm.xlu0 %3716, %v186
  %v3718 = vpop.permute.xlu0 %3717
  %3719 = vset.pattern.permute.xlu0 7
  %3720 = vperm.xlu0 %3719, %v187
  %v3721 = vpop.permute.xlu0 %3720
  %3722 = vset.pattern.permute.xlu0 7
  %3723 = vperm.xlu0 %3722, %v188
  %v3724 = vpop.permute.xlu0 %3723
  %3725 = vset.pattern.permute.xlu0 7
  %3726 = vperm.xlu0 %3725, %v189
  %v3727 = vpop.permute.xlu0 %3726
  %3728 = vset.pattern.permute.xlu0 7
  %3729 = vperm.xlu0 %3728, %v190
  %v3730 = vpop.permute.xlu0 %3729
  %3731 = vset.pattern.permute.xlu0 7
  %3732 = vperm.xlu0 %3731, %v191
  %v3733 = vpop.permute.xlu0 %3732
  %3734 = vset.pattern.permute.xlu0 7
  %3735 = vperm.xlu0 %3734, %v192
  %v3736 = vpop.permute.xlu0 %3735
  %3737 = vset.pattern.permute.xlu0 7
  %3738 = vperm.xlu0 %3737, %v193
  %v3739 = vpop.permute.xlu0 %3738
  %3740 = vset.pattern.permute.xlu0 7
  %3741 = vperm.xlu0 %3740, %v194
  %v3742 = vpop.permute.xlu0 %3741
  %3743 = vset.pattern.permute.xlu0 7
  %3744 = vperm.xlu0 %3743, %v195
  %v3745 = vpop.permute.xlu0 %3744
  %3746 = vset.pattern.permute.xlu0 7
  %3747 = vperm.xlu0 %3746, %v196
  %v3748 = vpop.permute.xlu0 %3747
  %3749 = vset.pattern.permute.xlu0 7
  %3750 = vperm.xlu0 %3749, %v197
  %v3751 = vpop.permute.xlu0 %3750
  %3752 = vset.pattern.permute.xlu0 7
  %3753 = vperm.xlu0 %3752, %v198
  %v3754 = vpop.permute.xlu0 %3753
  %3755 = vset.pattern.permute.xlu0 7
  %3756 = vperm.xlu0 %3755, %v199
  %v3757 = vpop.permute.xlu0 %3756
  %3758 = vset.pattern.permute.xlu0 7
  %3759 = vperm.xlu0 %3758, %v200
  %v3760 = vpop.permute.xlu0 %3759
  %3761 = vset.pattern.permute.xlu0 7
  %3762 = vperm.xlu0 %3761, %v201
  %v3763 = vpop.permute.xlu0 %3762
  %3764 = vset.pattern.permute.xlu0 7
  %3765 = vperm.xlu0 %3764, %v202
  %v3766 = vpop.permute.xlu0 %3765
  %3767 = vset.pattern.permute.xlu0 7
  %3768 = vperm.xlu0 %3767, %v203
  %v3769 = vpop.permute.xlu0 %3768
  %3770 = vset.pattern.permute.xlu0 7
  %3771 = vperm.xlu0 %3770, %v204
  %v3772 = vpop.permute.xlu0 %3771
  %3773 = vset.pattern.permute.xlu0 7
  %3774 = vperm.xlu0 %3773, %v205
  %v3775 = vpop.permute.xlu0 %3774
  %3776 = vset.pattern.permute.xlu0 7
  %3777 = vperm.xlu0 %3776, %v206
  %v3778 = vpop.permute.xlu0 %3777
  %3779 = vset.pattern.permute.xlu0 7
  %3780 = vperm.xlu0 %3779, %v207
  %v3781 = vpop.permute.xlu0 %3780
  %3782 = vset.pattern.permute.xlu0 7
  %3783 = vperm.xlu0 %3782, %v208
  %v3784 = vpop.permute.xlu0 %3783
  %3785 = vset.pattern.permute.xlu0 7
  %3786 = vperm.xlu0 %3785, %v209
  %v3787 = vpop.permute.xlu0 %3786
  %3788 = vset.pattern.permute.xlu0 7
  %3789 = vperm.xlu0 %3788, %v210
  %v3790 = vpop.permute.xlu0 %3789
  %3791 = vset.pattern.permute.xlu0 7
  %3792 = vperm.xlu0 %3791, %v211
  %v3793 = vpop.permute.xlu0 %3792
  %3794 = vset.pattern.permute.xlu0 7
  %3795 = vperm.xlu0 %3794, %v212
  %v3796 = vpop.permute.xlu0 %3795
  %3797 = vset.pattern.permute.xlu0 7
  %3798 = vperm.xlu0 %3797, %v213
  %v3799 = vpop.permute.xlu0 %3798
  %3800 = vset.pattern.permute.xlu0 7
  %3801 = vperm.xlu0 %3800, %v214
  %v3802 = vpop.permute.xlu0 %3801
  %3803 = vset.pattern.permute.xlu0 7
  %3804 = vperm.xlu0 %3803, %v215
  %v3805 = vpop.permute.xlu0 %3804
  %vm3806 = vcmp.eq.s32.totalorder %v55, %v3712
  %vm3807 = vcmp.eq.s32.totalorder %v55, %v3715
  %vm3808 = vcmp.eq.s32.totalorder %v55, %v3718
  %vm3809 = vcmp.eq.s32.totalorder %v55, %v3721
  %vm3810 = vcmp.eq.s32.totalorder %v55, %v3724
  %vm3811 = vcmp.eq.s32.totalorder %v55, %v3727
  %vm3812 = vcmp.eq.s32.totalorder %v55, %v3730
  %vm3813 = vcmp.eq.s32.totalorder %v55, %v3733
  %vm3814 = vcmp.eq.s32.totalorder %v55, %v3736
  %vm3815 = vcmp.eq.s32.totalorder %v55, %v3739
  %vm3816 = vcmp.eq.s32.totalorder %v55, %v3742
  %vm3817 = vcmp.eq.s32.totalorder %v55, %v3745
  %vm3818 = vcmp.eq.s32.totalorder %v55, %v3748
  %vm3819 = vcmp.eq.s32.totalorder %v55, %v3751
  %vm3820 = vcmp.eq.s32.totalorder %v55, %v3754
  %vm3821 = vcmp.eq.s32.totalorder %v55, %v3757
  %vm3822 = vcmp.eq.s32.totalorder %v55, %v3760
  %vm3823 = vcmp.eq.s32.totalorder %v55, %v3763
  %vm3824 = vcmp.eq.s32.totalorder %v55, %v3766
  %vm3825 = vcmp.eq.s32.totalorder %v55, %v3769
  %vm3826 = vcmp.eq.s32.totalorder %v55, %v3772
  %vm3827 = vcmp.eq.s32.totalorder %v55, %v3775
  %vm3828 = vcmp.eq.s32.totalorder %v55, %v3778
  %vm3829 = vcmp.eq.s32.totalorder %v55, %v3781
  %vm3830 = vcmp.eq.s32.totalorder %v55, %v3784
  %vm3831 = vcmp.eq.s32.totalorder %v55, %v3787
  %vm3832 = vcmp.eq.s32.totalorder %v55, %v3790
  %vm3833 = vcmp.eq.s32.totalorder %v55, %v3793
  %vm3834 = vcmp.eq.s32.totalorder %v55, %v3796
  %vm3835 = vcmp.eq.s32.totalorder %v55, %v3799
  %vm3836 = vcmp.eq.s32.totalorder %v55, %v3802
  %vm3837 = vcmp.eq.s32.totalorder %v55, %v3805
  %vm3838 = vmor %vm3678, %vm3806
  %vm3839 = vmor %vm3679, %vm3807
  %vm3840 = vmor %vm3680, %vm3808
  %vm3841 = vmor %vm3681, %vm3809
  %vm3842 = vmor %vm3682, %vm3810
  %vm3843 = vmor %vm3683, %vm3811
  %vm3844 = vmor %vm3684, %vm3812
  %vm3845 = vmor %vm3685, %vm3813
  %vm3846 = vmor %vm3686, %vm3814
  %vm3847 = vmor %vm3687, %vm3815
  %vm3848 = vmor %vm3688, %vm3816
  %vm3849 = vmor %vm3689, %vm3817
  %vm3850 = vmor %vm3690, %vm3818
  %vm3851 = vmor %vm3691, %vm3819
  %vm3852 = vmor %vm3692, %vm3820
  %vm3853 = vmor %vm3693, %vm3821
  %vm3854 = vmor %vm3694, %vm3822
  %vm3855 = vmor %vm3695, %vm3823
  %vm3856 = vmor %vm3696, %vm3824
  %vm3857 = vmor %vm3697, %vm3825
  %vm3858 = vmor %vm3698, %vm3826
  %vm3859 = vmor %vm3699, %vm3827
  %vm3860 = vmor %vm3700, %vm3828
  %vm3861 = vmor %vm3701, %vm3829
  %vm3862 = vmor %vm3702, %vm3830
  %vm3863 = vmor %vm3703, %vm3831
  %vm3864 = vmor %vm3704, %vm3832
  %vm3865 = vmor %vm3705, %vm3833
  %vm3866 = vmor %vm3706, %vm3834
  %vm3867 = vmor %vm3707, %vm3835
  %vm3868 = vmor %vm3708, %vm3836
  %vm3869 = vmor %vm3709, %vm3837
  %v3870 = vsel %vm3838, 1, 0
  %v3871 = vsel %vm3839, 1, 0
  %v3872 = vsel %vm3840, 1, 0
  %v3873 = vsel %vm3841, 1, 0
  %v3874 = vsel %vm3842, 1, 0
  %v3875 = vsel %vm3843, 1, 0
  %v3876 = vsel %vm3844, 1, 0
  %v3877 = vsel %vm3845, 1, 0
  %v3878 = vsel %vm3846, 1, 0
  %v3879 = vsel %vm3847, 1, 0
  %v3880 = vsel %vm3848, 1, 0
  %v3881 = vsel %vm3849, 1, 0
  %v3882 = vsel %vm3850, 1, 0
  %v3883 = vsel %vm3851, 1, 0
  %v3884 = vsel %vm3852, 1, 0
  %v3885 = vsel %vm3853, 1, 0
  %v3886 = vsel %vm3854, 1, 0
  %v3887 = vsel %vm3855, 1, 0
  %v3888 = vsel %vm3856, 1, 0
  %v3889 = vsel %vm3857, 1, 0
  %v3890 = vsel %vm3858, 1, 0
  %v3891 = vsel %vm3859, 1, 0
  %v3892 = vsel %vm3860, 1, 0
  %v3893 = vsel %vm3861, 1, 0
  %v3894 = vsel %vm3862, 1, 0
  %v3895 = vsel %vm3863, 1, 0
  %v3896 = vsel %vm3864, 1, 0
  %v3897 = vsel %vm3865, 1, 0
  %v3898 = vsel %vm3866, 1, 0
  %v3899 = vsel %vm3867, 1, 0
  %v3900 = vsel %vm3868, 1, 0
  %v3901 = vsel %vm3869, 1, 0
  %v3902 = vcvt.s32.f32 %v3870
  %v3903 = vcvt.s32.f32 %v3871
  %v3904 = vcvt.s32.f32 %v3872
  %v3905 = vcvt.s32.f32 %v3873
  %v3906 = vcvt.s32.f32 %v3874
  %v3907 = vcvt.s32.f32 %v3875
  %v3908 = vcvt.s32.f32 %v3876
  %v3909 = vcvt.s32.f32 %v3877
  %v3910 = vcvt.s32.f32 %v3878
  %v3911 = vcvt.s32.f32 %v3879
  %v3912 = vcvt.s32.f32 %v3880
  %v3913 = vcvt.s32.f32 %v3881
  %v3914 = vcvt.s32.f32 %v3882
  %v3915 = vcvt.s32.f32 %v3883
  %v3916 = vcvt.s32.f32 %v3884
  %v3917 = vcvt.s32.f32 %v3885
  %v3918 = vcvt.s32.f32 %v3886
  %v3919 = vcvt.s32.f32 %v3887
  %v3920 = vcvt.s32.f32 %v3888
  %v3921 = vcvt.s32.f32 %v3889
  %v3922 = vcvt.s32.f32 %v3890
  %v3923 = vcvt.s32.f32 %v3891
  %v3924 = vcvt.s32.f32 %v3892
  %v3925 = vcvt.s32.f32 %v3893
  %v3926 = vcvt.s32.f32 %v3894
  %v3927 = vcvt.s32.f32 %v3895
  %v3928 = vcvt.s32.f32 %v3896
  %v3929 = vcvt.s32.f32 %v3897
  %v3930 = vcvt.s32.f32 %v3898
  %v3931 = vcvt.s32.f32 %v3899
  %v3932 = vcvt.s32.f32 %v3900
  %v3933 = vcvt.s32.f32 %v3901
  %v3935 = vsel %vm440, %v3902, 0
  %v3938 = vsel %vm440, %v3903, 0
  %v3941 = vsel %vm440, %v3904, 0
  %v3944 = vsel %vm440, %v3905, 0
  %v3947 = vsel %vm440, %v3906, 0
  %v3950 = vsel %vm440, %v3907, 0
  %v3953 = vsel %vm440, %v3908, 0
  %v3956 = vsel %vm440, %v3909, 0
  %v3959 = vsel %vm440, %v3910, 0
  %v3962 = vsel %vm440, %v3911, 0
  %v3965 = vsel %vm440, %v3912, 0
  %v3968 = vsel %vm440, %v3913, 0
  %v3971 = vsel %vm440, %v3914, 0
  %v3974 = vsel %vm440, %v3915, 0
  %v3977 = vsel %vm440, %v3916, 0
  %v3980 = vsel %vm440, %v3917, 0
  %v3983 = vsel %vm440, %v3918, 0
  %v3986 = vsel %vm440, %v3919, 0
  %v3989 = vsel %vm440, %v3920, 0
  %v3992 = vsel %vm440, %v3921, 0
  %v3995 = vsel %vm440, %v3922, 0
  %v3998 = vsel %vm440, %v3923, 0
  %v4001 = vsel %vm440, %v3924, 0
  %v4004 = vsel %vm440, %v3925, 0
  %v4007 = vsel %vm440, %v3926, 0
  %v4010 = vsel %vm440, %v3927, 0
  %v4013 = vsel %vm440, %v3928, 0
  %v4016 = vsel %vm440, %v3929, 0
  %v4019 = vsel %vm440, %v3930, 0
  %v4022 = vsel %vm440, %v3931, 0
  %v4025 = vsel %vm440, %v3932, 0
  %v4028 = vsel %vm440, %v3933, 0
  %4030 = vmatprep.subr.mxu0 0.0
  %4031 = vmatpush1.msra.mxu0 %v49
  %4032 = vmatprep.subr.mxu0 0.0
  %4033 = vmatpush1.msra.mxu0 %v50
  %4034 = vmatprep.subr.mxu0 0.0
  %4035 = vmatpush1.msra.mxu0 %v51
  %4036 = vmatprep.subr.mxu0 0.0
  %4037 = vmatpush1.msra.mxu0 %v52
  %4038 = vmatprep.subr.mxu0 0.0
  %4039 = vmatpush1.msra.mxu0 %v53
  %4040 = vmatprep.subr.mxu0 0.0
  %4041 = vmatpush1.msra.mxu0 0.0
  %4042 = vmatprep.subr.mxu0 0.0
  %4043 = vmatpush1.msra.mxu0 0.0
  %4044 = vmatprep.subr.mxu0 0.0
  %4045 = vmatpush1.msra.mxu0 0.0
  %4046 = vmatprep.subr.mxu0 0.0
  %4047 = vmatpush1.msra.mxu0 0.0
  %4048 = vmatprep.subr.mxu0 0.0
  %4049 = vmatpush1.msra.mxu0 0.0
  %4050 = vmatprep.subr.mxu0 0.0
  %4051 = vmatpush1.msra.mxu0 0.0
  %4052 = vmatprep.subr.mxu0 0.0
  %4053 = vmatpush1.msra.mxu0 0.0
  %4054 = vmatprep.subr.mxu0 0.0
  %4055 = vmatpush1.msra.mxu0 0.0
  %4056 = vmatprep.subr.mxu0 0.0
  %4057 = vmatpush1.msra.mxu0 0.0
  %4058 = vmatprep.subr.mxu0 0.0
  %4059 = vmatpush1.msra.mxu0 0.0
  %4060 = vmatprep.subr.mxu0 0.0
  %4061 = vmatpush1.msra.mxu0 0.0
  %4062 = vmatprep.subr.mxu0 0.0
  %4063 = vmatpush1.msra.mxu0 0.0
  %4064 = vmatprep.subr.mxu0 0.0
  %4065 = vmatpush1.msra.mxu0 0.0
  %4066 = vmatprep.subr.mxu0 0.0
  %4067 = vmatpush1.msra.mxu0 0.0
  %4068 = vmatprep.subr.mxu0 0.0
  %4069 = vmatpush1.msra.mxu0 0.0
  %4070 = vmatprep.subr.mxu0 0.0
  %4071 = vmatpush1.msra.mxu0 0.0
  %4072 = vmatprep.subr.mxu0 0.0
  %4073 = vmatpush1.msra.mxu0 0.0
  %4074 = vmatprep.subr.mxu0 0.0
  %4075 = vmatpush1.msra.mxu0 0.0
  %4076 = vmatprep.subr.mxu0 0.0
  %4077 = vmatpush1.msra.mxu0 0.0
  %4078 = vmatprep.subr.mxu0 0.0
  %4079 = vmatpush1.msra.mxu0 0.0
  %4080 = vmatprep.subr.mxu0 0.0
  %4081 = vmatpush1.msra.mxu0 0.0
  %4082 = vmatprep.subr.mxu0 0.0
  %4083 = vmatpush1.msra.mxu0 0.0
  %4084 = vmatprep.subr.mxu0 0.0
  %4085 = vmatpush1.msra.mxu0 0.0
  %4086 = vmatprep.subr.mxu0 0.0
  %4087 = vmatpush1.msra.mxu0 0.0
  %4088 = vmatprep.subr.mxu0 0.0
  %4089 = vmatpush1.msra.mxu0 0.0
  %4090 = vmatprep.subr.mxu0 0.0
  %4091 = vmatpush1.msra.mxu0 0.0
  %4092 = vmatprep.subr.mxu0 0.0
  %4093 = vmatpush1.msra.mxu0 0.0
  %4094 = vmatprep.mubr.f32.mxu0 0.0
  %4095 = vmatmul.mubr.f32.gmra.mrb[0].mxu0 %v3935
  %v4096 = vpop.f32.mrb[0].mxu0
  %v4097 = vadd.f32 0.0, %v4096
  %v4098 = vpop.f32.mrb[0].mxu0
  %4099 = vmatprep.mubr.f32.mxu0 0.0
  %4100 = vmatmul.mubr.f32.gmra.mrb[0].mxu0 %v3938
  %v4101 = vpop.f32.mrb[0].mxu0
  %v4102 = vadd.f32 0.0, %v4101
  %v4103 = vpop.f32.mrb[0].mxu0
  %4104 = vmatprep.mubr.f32.mxu0 0.0
  %4105 = vmatmul.mubr.f32.gmra.mrb[0].mxu0 %v3941
  %v4106 = vpop.f32.mrb[0].mxu0
  %v4107 = vadd.f32 0.0, %v4106
  %v4108 = vpop.f32.mrb[0].mxu0
  %4109 = vmatprep.mubr.f32.mxu0 0.0
  %4110 = vmatmul.mubr.f32.gmra.mrb[0].mxu0 %v3944
  %v4111 = vpop.f32.mrb[0].mxu0
  %v4112 = vadd.f32 0.0, %v4111
  %v4113 = vpop.f32.mrb[0].mxu0
  %4114 = vmatprep.mubr.f32.mxu0 0.0
  %4115 = vmatmul.mubr.f32.gmra.mrb[0].mxu0 %v3947
  %v4116 = vpop.f32.mrb[0].mxu0
  %v4117 = vadd.f32 0.0, %v4116
  %v4118 = vpop.f32.mrb[0].mxu0
  %4119 = vmatprep.mubr.f32.mxu0 0.0
  %4120 = vmatmul.mubr.f32.gmra.mrb[0].mxu0 %v3950
  %v4121 = vpop.f32.mrb[0].mxu0
  %v4122 = vadd.f32 0.0, %v4121
  %v4123 = vpop.f32.mrb[0].mxu0
  %4124 = vmatprep.mubr.f32.mxu0 0.0
  %4125 = vmatmul.mubr.f32.gmra.mrb[0].mxu0 %v3953
  %v4126 = vpop.f32.mrb[0].mxu0
  %v4127 = vadd.f32 0.0, %v4126
  %v4128 = vpop.f32.mrb[0].mxu0
  %4129 = vmatprep.mubr.f32.mxu0 0.0
  %4130 = vmatmul.mubr.f32.gmra.mrb[0].mxu0 %v3956
  %v4131 = vpop.f32.mrb[0].mxu0
  %v4132 = vadd.f32 0.0, %v4131
  %v4133 = vpop.f32.mrb[0].mxu0
  %4134 = vmatprep.mubr.f32.mxu0 0.0
  %4135 = vmatmul.mubr.f32.gmra.mrb[0].mxu0 %v3959
  %v4136 = vpop.f32.mrb[0].mxu0
  %v4137 = vadd.f32 0.0, %v4136
  %v4138 = vpop.f32.mrb[0].mxu0
  %4139 = vmatprep.mubr.f32.mxu0 0.0
  %4140 = vmatmul.mubr.f32.gmra.mrb[0].mxu0 %v3962
  %v4141 = vpop.f32.mrb[0].mxu0
  %v4142 = vadd.f32 0.0, %v4141
  %v4143 = vpop.f32.mrb[0].mxu0
  %4144 = vmatprep.mubr.f32.mxu0 0.0
  %4145 = vmatmul.mubr.f32.gmra.mrb[0].mxu0 %v3965
  %v4146 = vpop.f32.mrb[0].mxu0
  %v4147 = vadd.f32 0.0, %v4146
  %v4148 = vpop.f32.mrb[0].mxu0
  %4149 = vmatprep.mubr.f32.mxu0 0.0
  %4150 = vmatmul.mubr.f32.gmra.mrb[0].mxu0 %v3968
  %v4151 = vpop.f32.mrb[0].mxu0
  %v4152 = vadd.f32 0.0, %v4151
  %v4153 = vpop.f32.mrb[0].mxu0
  %4154 = vmatprep.mubr.f32.mxu0 0.0
  %4155 = vmatmul.mubr.f32.gmra.mrb[0].mxu0 %v3971
  %v4156 = vpop.f32.mrb[0].mxu0
  %v4157 = vadd.f32 0.0, %v4156
  %v4158 = vpop.f32.mrb[0].mxu0
  %4159 = vmatprep.mubr.f32.mxu0 0.0
  %4160 = vmatmul.mubr.f32.gmra.mrb[0].mxu0 %v3974
  %v4161 = vpop.f32.mrb[0].mxu0
  %v4162 = vadd.f32 0.0, %v4161
  %v4163 = vpop.f32.mrb[0].mxu0
  %4164 = vmatprep.mubr.f32.mxu0 0.0
  %4165 = vmatmul.mubr.f32.gmra.mrb[0].mxu0 %v3977
  %v4166 = vpop.f32.mrb[0].mxu0
  %v4167 = vadd.f32 0.0, %v4166
  %v4168 = vpop.f32.mrb[0].mxu0
  %4169 = vmatprep.mubr.f32.mxu0 0.0
  %4170 = vmatmul.mubr.f32.gmra.mrb[0].mxu0 %v3980
  %v4171 = vpop.f32.mrb[0].mxu0
  %v4172 = vadd.f32 0.0, %v4171
  %v4173 = vpop.f32.mrb[0].mxu0
  %4174 = vmatprep.mubr.f32.mxu0 0.0
  %4175 = vmatmul.mubr.f32.gmra.mrb[0].mxu0 %v3983
  %v4176 = vpop.f32.mrb[0].mxu0
  %v4177 = vadd.f32 0.0, %v4176
  %v4178 = vpop.f32.mrb[0].mxu0
  %4179 = vmatprep.mubr.f32.mxu0 0.0
  %4180 = vmatmul.mubr.f32.gmra.mrb[0].mxu0 %v3986
  %v4181 = vpop.f32.mrb[0].mxu0
  %v4182 = vadd.f32 0.0, %v4181
  %v4183 = vpop.f32.mrb[0].mxu0
  %4184 = vmatprep.mubr.f32.mxu0 0.0
  %4185 = vmatmul.mubr.f32.gmra.mrb[0].mxu0 %v3989
  %v4186 = vpop.f32.mrb[0].mxu0
  %v4187 = vadd.f32 0.0, %v4186
  %v4188 = vpop.f32.mrb[0].mxu0
  %4189 = vmatprep.mubr.f32.mxu0 0.0
  %4190 = vmatmul.mubr.f32.gmra.mrb[0].mxu0 %v3992
  %v4191 = vpop.f32.mrb[0].mxu0
  %v4192 = vadd.f32 0.0, %v4191
  %v4193 = vpop.f32.mrb[0].mxu0
  %4194 = vmatprep.mubr.f32.mxu0 0.0
  %4195 = vmatmul.mubr.f32.gmra.mrb[0].mxu0 %v3995
  %v4196 = vpop.f32.mrb[0].mxu0
  %v4197 = vadd.f32 0.0, %v4196
  %v4198 = vpop.f32.mrb[0].mxu0
  %4199 = vmatprep.mubr.f32.mxu0 0.0
  %4200 = vmatmul.mubr.f32.gmra.mrb[0].mxu0 %v3998
  %v4201 = vpop.f32.mrb[0].mxu0
  %v4202 = vadd.f32 0.0, %v4201
  %v4203 = vpop.f32.mrb[0].mxu0
  %4204 = vmatprep.mubr.f32.mxu0 0.0
  %4205 = vmatmul.mubr.f32.gmra.mrb[0].mxu0 %v4001
  %v4206 = vpop.f32.mrb[0].mxu0
  %v4207 = vadd.f32 0.0, %v4206
  %v4208 = vpop.f32.mrb[0].mxu0
  %4209 = vmatprep.mubr.f32.mxu0 0.0
  %4210 = vmatmul.mubr.f32.gmra.mrb[0].mxu0 %v4004
  %v4211 = vpop.f32.mrb[0].mxu0
  %v4212 = vadd.f32 0.0, %v4211
  %v4213 = vpop.f32.mrb[0].mxu0
  %4214 = vmatprep.mubr.f32.mxu0 0.0
  %4215 = vmatmul.mubr.f32.gmra.mrb[0].mxu0 %v4007
  %v4216 = vpop.f32.mrb[0].mxu0
  %v4217 = vadd.f32 0.0, %v4216
  %v4218 = vpop.f32.mrb[0].mxu0
  %4219 = vmatprep.mubr.f32.mxu0 0.0
  %4220 = vmatmul.mubr.f32.gmra.mrb[0].mxu0 %v4010
  %v4221 = vpop.f32.mrb[0].mxu0
  %v4222 = vadd.f32 0.0, %v4221
  %v4223 = vpop.f32.mrb[0].mxu0
  %4224 = vmatprep.mubr.f32.mxu0 0.0
  %4225 = vmatmul.mubr.f32.gmra.mrb[0].mxu0 %v4013
  %v4226 = vpop.f32.mrb[0].mxu0
  %v4227 = vadd.f32 0.0, %v4226
  %v4228 = vpop.f32.mrb[0].mxu0
  %4229 = vmatprep.mubr.f32.mxu0 0.0
  %4230 = vmatmul.mubr.f32.gmra.mrb[0].mxu0 %v4016
  %v4231 = vpop.f32.mrb[0].mxu0
  %v4232 = vadd.f32 0.0, %v4231
  %v4233 = vpop.f32.mrb[0].mxu0
  %4234 = vmatprep.mubr.f32.mxu0 0.0
  %4235 = vmatmul.mubr.f32.gmra.mrb[0].mxu0 %v4019
  %v4236 = vpop.f32.mrb[0].mxu0
  %v4237 = vadd.f32 0.0, %v4236
  %v4238 = vpop.f32.mrb[0].mxu0
  %4239 = vmatprep.mubr.f32.mxu0 0.0
  %4240 = vmatmul.mubr.f32.gmra.mrb[0].mxu0 %v4022
  %v4241 = vpop.f32.mrb[0].mxu0
  %v4242 = vadd.f32 0.0, %v4241
  %v4243 = vpop.f32.mrb[0].mxu0
  %4244 = vmatprep.mubr.f32.mxu0 0.0
  %4245 = vmatmul.mubr.f32.gmra.mrb[0].mxu0 %v4025
  %v4246 = vpop.f32.mrb[0].mxu0
  %v4247 = vadd.f32 0.0, %v4246
  %v4248 = vpop.f32.mrb[0].mxu0
  %4249 = vmatprep.mubr.f32.mxu0 0.0
  %4250 = vmatmul.mubr.f32.gmra.mrb[0].mxu0 %v4028
  %v4251 = vpop.f32.mrb[0].mxu0
  %v4252 = vadd.f32 0.0, %v4251
  %v4253 = vpop.f32.mrb[0].mxu0
  %4254 = vdwg.mxu0
  %v4255 = vmax.f32 %v3550, %v4097
  %v4256 = vmax.f32 %v3551, %v4102
  %v4257 = vmax.f32 %v3552, %v4107
  %v4258 = vmax.f32 %v3553, %v4112
  %v4259 = vmax.f32 %v3554, %v4117
  %v4260 = vmax.f32 %v3555, %v4122
  %v4261 = vmax.f32 %v3556, %v4127
  %v4262 = vmax.f32 %v3557, %v4132
  %v4263 = vmax.f32 %v3558, %v4137
  %v4264 = vmax.f32 %v3559, %v4142
  %v4265 = vmax.f32 %v3560, %v4147
  %v4266 = vmax.f32 %v3561, %v4152
  %v4267 = vmax.f32 %v3562, %v4157
  %v4268 = vmax.f32 %v3563, %v4162
  %v4269 = vmax.f32 %v3564, %v4167
  %v4270 = vmax.f32 %v3565, %v4172
  %v4271 = vmax.f32 %v3566, %v4177
  %v4272 = vmax.f32 %v3567, %v4182
  %v4273 = vmax.f32 %v3568, %v4187
  %v4274 = vmax.f32 %v3569, %v4192
  %v4275 = vmax.f32 %v3570, %v4197
  %v4276 = vmax.f32 %v3571, %v4202
  %v4277 = vmax.f32 %v3572, %v4207
  %v4278 = vmax.f32 %v3573, %v4212
  %v4279 = vmax.f32 %v3574, %v4217
  %v4280 = vmax.f32 %v3575, %v4222
  %v4281 = vmax.f32 %v3576, %v4227
  %v4282 = vmax.f32 %v3577, %v4232
  %v4283 = vmax.f32 %v3578, %v4237
  %v4284 = vmax.f32 %v3579, %v4242
  %v4285 = vmax.f32 %v3580, %v4247
  %v4286 = vmax.f32 %v3581, %v4252
  %4287 = vset.pattern.permute.xlu0 7
  %4288 = vperm.xlu0 %4287, %v17
  %v4289 = vpop.permute.xlu0 %4288
  %4290 = vset.pattern.permute.xlu0 7
  %4291 = vperm.xlu0 %4290, %v18
  %v4292 = vpop.permute.xlu0 %4291
  %4293 = vset.pattern.permute.xlu0 7
  %4294 = vperm.xlu0 %4293, %v19
  %v4295 = vpop.permute.xlu0 %4294
  %4296 = vset.pattern.permute.xlu0 7
  %4297 = vperm.xlu0 %4296, %v20
  %v4298 = vpop.permute.xlu0 %4297
  %4299 = vset.pattern.permute.xlu0 7
  %4300 = vperm.xlu0 %4299, %v21
  %v4301 = vpop.permute.xlu0 %4300
  %4302 = vset.pattern.permute.xlu0 7
  %4303 = vperm.xlu0 %4302, %v22
  %v4304 = vpop.permute.xlu0 %4303
  %4305 = vset.pattern.permute.xlu0 7
  %4306 = vperm.xlu0 %4305, %v23
  %v4307 = vpop.permute.xlu0 %4306
  %4308 = vset.pattern.permute.xlu0 7
  %4309 = vperm.xlu0 %4308, %v24
  %v4310 = vpop.permute.xlu0 %4309
  %4311 = vset.pattern.permute.xlu0 7
  %4312 = vperm.xlu0 %4311, %v25
  %v4313 = vpop.permute.xlu0 %4312
  %4314 = vset.pattern.permute.xlu0 7
  %4315 = vperm.xlu0 %4314, %v26
  %v4316 = vpop.permute.xlu0 %4315
  %4317 = vset.pattern.permute.xlu0 7
  %4318 = vperm.xlu0 %4317, %v27
  %v4319 = vpop.permute.xlu0 %4318
  %4320 = vset.pattern.permute.xlu0 7
  %4321 = vperm.xlu0 %4320, %v28
  %v4322 = vpop.permute.xlu0 %4321
  %4323 = vset.pattern.permute.xlu0 7
  %4324 = vperm.xlu0 %4323, %v29
  %v4325 = vpop.permute.xlu0 %4324
  %4326 = vset.pattern.permute.xlu0 7
  %4327 = vperm.xlu0 %4326, %v30
  %v4328 = vpop.permute.xlu0 %4327
  %4329 = vset.pattern.permute.xlu0 7
  %4330 = vperm.xlu0 %4329, %v31
  %v4331 = vpop.permute.xlu0 %4330
  %4332 = vset.pattern.permute.xlu0 7
  %4333 = vperm.xlu0 %4332, %v32
  %v4334 = vpop.permute.xlu0 %4333
  %4335 = vset.pattern.permute.xlu0 7
  %4336 = vperm.xlu0 %4335, %v33
  %v4337 = vpop.permute.xlu0 %4336
  %4338 = vset.pattern.permute.xlu0 7
  %4339 = vperm.xlu0 %4338, %v34
  %v4340 = vpop.permute.xlu0 %4339
  %4341 = vset.pattern.permute.xlu0 7
  %4342 = vperm.xlu0 %4341, %v35
  %v4343 = vpop.permute.xlu0 %4342
  %4344 = vset.pattern.permute.xlu0 7
  %4345 = vperm.xlu0 %4344, %v36
  %v4346 = vpop.permute.xlu0 %4345
  %4347 = vset.pattern.permute.xlu0 7
  %4348 = vperm.xlu0 %4347, %v37
  %v4349 = vpop.permute.xlu0 %4348
  %4350 = vset.pattern.permute.xlu0 7
  %4351 = vperm.xlu0 %4350, %v38
  %v4352 = vpop.permute.xlu0 %4351
  %4353 = vset.pattern.permute.xlu0 7
  %4354 = vperm.xlu0 %4353, %v39
  %v4355 = vpop.permute.xlu0 %4354
  %4356 = vset.pattern.permute.xlu0 7
  %4357 = vperm.xlu0 %4356, %v40
  %v4358 = vpop.permute.xlu0 %4357
  %4359 = vset.pattern.permute.xlu0 7
  %4360 = vperm.xlu0 %4359, %v41
  %v4361 = vpop.permute.xlu0 %4360
  %4362 = vset.pattern.permute.xlu0 7
  %4363 = vperm.xlu0 %4362, %v42
  %v4364 = vpop.permute.xlu0 %4363
  %4365 = vset.pattern.permute.xlu0 7
  %4366 = vperm.xlu0 %4365, %v43
  %v4367 = vpop.permute.xlu0 %4366
  %4368 = vset.pattern.permute.xlu0 7
  %4369 = vperm.xlu0 %4368, %v44
  %v4370 = vpop.permute.xlu0 %4369
  %4371 = vset.pattern.permute.xlu0 7
  %4372 = vperm.xlu0 %4371, %v45
  %v4373 = vpop.permute.xlu0 %4372
  %4374 = vset.pattern.permute.xlu0 7
  %4375 = vperm.xlu0 %4374, %v46
  %v4376 = vpop.permute.xlu0 %4375
  %4377 = vset.pattern.permute.xlu0 7
  %4378 = vperm.xlu0 %4377, %v47
  %v4379 = vpop.permute.xlu0 %4378
  %4380 = vset.pattern.permute.xlu0 7
  %4381 = vperm.xlu0 %4380, %v48
  %v4382 = vpop.permute.xlu0 %4381
  %vm4383 = vcmp.eq.s32.totalorder %v55, %v4289
  %vm4384 = vcmp.eq.s32.totalorder %v55, %v4292
  %vm4385 = vcmp.eq.s32.totalorder %v55, %v4295
  %vm4386 = vcmp.eq.s32.totalorder %v55, %v4298
  %vm4387 = vcmp.eq.s32.totalorder %v55, %v4301
  %vm4388 = vcmp.eq.s32.totalorder %v55, %v4304
  %vm4389 = vcmp.eq.s32.totalorder %v55, %v4307
  %vm4390 = vcmp.eq.s32.totalorder %v55, %v4310
  %vm4391 = vcmp.eq.s32.totalorder %v55, %v4313
  %vm4392 = vcmp.eq.s32.totalorder %v55, %v4316
  %vm4393 = vcmp.eq.s32.totalorder %v55, %v4319
  %vm4394 = vcmp.eq.s32.totalorder %v55, %v4322
  %vm4395 = vcmp.eq.s32.totalorder %v55, %v4325
  %vm4396 = vcmp.eq.s32.totalorder %v55, %v4328
  %vm4397 = vcmp.eq.s32.totalorder %v55, %v4331
  %vm4398 = vcmp.eq.s32.totalorder %v55, %v4334
  %vm4399 = vcmp.eq.s32.totalorder %v55, %v4337
  %vm4400 = vcmp.eq.s32.totalorder %v55, %v4340
  %vm4401 = vcmp.eq.s32.totalorder %v55, %v4343
  %vm4402 = vcmp.eq.s32.totalorder %v55, %v4346
  %vm4403 = vcmp.eq.s32.totalorder %v55, %v4349
  %vm4404 = vcmp.eq.s32.totalorder %v55, %v4352
  %vm4405 = vcmp.eq.s32.totalorder %v55, %v4355
  %vm4406 = vcmp.eq.s32.totalorder %v55, %v4358
  %vm4407 = vcmp.eq.s32.totalorder %v55, %v4361
  %vm4408 = vcmp.eq.s32.totalorder %v55, %v4364
  %vm4409 = vcmp.eq.s32.totalorder %v55, %v4367
  %vm4410 = vcmp.eq.s32.totalorder %v55, %v4370
  %vm4411 = vcmp.eq.s32.totalorder %v55, %v4373
  %vm4412 = vcmp.eq.s32.totalorder %v55, %v4376
  %vm4413 = vcmp.eq.s32.totalorder %v55, %v4379
  %vm4414 = vcmp.eq.s32.totalorder %v55, %v4382
  %4415 = vset.pattern.permute.xlu0 8
  %4416 = vperm.xlu0 %4415, %v184
  %v4417 = vpop.permute.xlu0 %4416
  %4418 = vset.pattern.permute.xlu0 8
  %4419 = vperm.xlu0 %4418, %v185
  %v4420 = vpop.permute.xlu0 %4419
  %4421 = vset.pattern.permute.xlu0 8
  %4422 = vperm.xlu0 %4421, %v186
  %v4423 = vpop.permute.xlu0 %4422
  %4424 = vset.pattern.permute.xlu0 8
  %4425 = vperm.xlu0 %4424, %v187
  %v4426 = vpop.permute.xlu0 %4425
  %4427 = vset.pattern.permute.xlu0 8
  %4428 = vperm.xlu0 %4427, %v188
  %v4429 = vpop.permute.xlu0 %4428
  %4430 = vset.pattern.permute.xlu0 8
  %4431 = vperm.xlu0 %4430, %v189
  %v4432 = vpop.permute.xlu0 %4431
  %4433 = vset.pattern.permute.xlu0 8
  %4434 = vperm.xlu0 %4433, %v190
  %v4435 = vpop.permute.xlu0 %4434
  %4436 = vset.pattern.permute.xlu0 8
  %4437 = vperm.xlu0 %4436, %v191
  %v4438 = vpop.permute.xlu0 %4437
  %4439 = vset.pattern.permute.xlu0 8
  %4440 = vperm.xlu0 %4439, %v192
  %v4441 = vpop.permute.xlu0 %4440
  %4442 = vset.pattern.permute.xlu0 8
  %4443 = vperm.xlu0 %4442, %v193
  %v4444 = vpop.permute.xlu0 %4443
  %4445 = vset.pattern.permute.xlu0 8
  %4446 = vperm.xlu0 %4445, %v194
  %v4447 = vpop.permute.xlu0 %4446
  %4448 = vset.pattern.permute.xlu0 8
  %4449 = vperm.xlu0 %4448, %v195
  %v4450 = vpop.permute.xlu0 %4449
  %4451 = vset.pattern.permute.xlu0 8
  %4452 = vperm.xlu0 %4451, %v196
  %v4453 = vpop.permute.xlu0 %4452
  %4454 = vset.pattern.permute.xlu0 8
  %4455 = vperm.xlu0 %4454, %v197
  %v4456 = vpop.permute.xlu0 %4455
  %4457 = vset.pattern.permute.xlu0 8
  %4458 = vperm.xlu0 %4457, %v198
  %v4459 = vpop.permute.xlu0 %4458
  %4460 = vset.pattern.permute.xlu0 8
  %4461 = vperm.xlu0 %4460, %v199
  %v4462 = vpop.permute.xlu0 %4461
  %4463 = vset.pattern.permute.xlu0 8
  %4464 = vperm.xlu0 %4463, %v200
  %v4465 = vpop.permute.xlu0 %4464
  %4466 = vset.pattern.permute.xlu0 8
  %4467 = vperm.xlu0 %4466, %v201
  %v4468 = vpop.permute.xlu0 %4467
  %4469 = vset.pattern.permute.xlu0 8
  %4470 = vperm.xlu0 %4469, %v202
  %v4471 = vpop.permute.xlu0 %4470
  %4472 = vset.pattern.permute.xlu0 8
  %4473 = vperm.xlu0 %4472, %v203
  %v4474 = vpop.permute.xlu0 %4473
  %4475 = vset.pattern.permute.xlu0 8
  %4476 = vperm.xlu0 %4475, %v204
  %v4477 = vpop.permute.xlu0 %4476
  %4478 = vset.pattern.permute.xlu0 8
  %4479 = vperm.xlu0 %4478, %v205
  %v4480 = vpop.permute.xlu0 %4479
  %4481 = vset.pattern.permute.xlu0 8
  %4482 = vperm.xlu0 %4481, %v206
  %v4483 = vpop.permute.xlu0 %4482
  %4484 = vset.pattern.permute.xlu0 8
  %4485 = vperm.xlu0 %4484, %v207
  %v4486 = vpop.permute.xlu0 %4485
  %4487 = vset.pattern.permute.xlu0 8
  %4488 = vperm.xlu0 %4487, %v208
  %v4489 = vpop.permute.xlu0 %4488
  %4490 = vset.pattern.permute.xlu0 8
  %4491 = vperm.xlu0 %4490, %v209
  %v4492 = vpop.permute.xlu0 %4491
  %4493 = vset.pattern.permute.xlu0 8
  %4494 = vperm.xlu0 %4493, %v210
  %v4495 = vpop.permute.xlu0 %4494
  %4496 = vset.pattern.permute.xlu0 8
  %4497 = vperm.xlu0 %4496, %v211
  %v4498 = vpop.permute.xlu0 %4497
  %4499 = vset.pattern.permute.xlu0 8
  %4500 = vperm.xlu0 %4499, %v212
  %v4501 = vpop.permute.xlu0 %4500
  %4502 = vset.pattern.permute.xlu0 8
  %4503 = vperm.xlu0 %4502, %v213
  %v4504 = vpop.permute.xlu0 %4503
  %4505 = vset.pattern.permute.xlu0 8
  %4506 = vperm.xlu0 %4505, %v214
  %v4507 = vpop.permute.xlu0 %4506
  %4508 = vset.pattern.permute.xlu0 8
  %4509 = vperm.xlu0 %4508, %v215
  %v4510 = vpop.permute.xlu0 %4509
  %vm4511 = vcmp.eq.s32.totalorder %v55, %v4417
  %vm4512 = vcmp.eq.s32.totalorder %v55, %v4420
  %vm4513 = vcmp.eq.s32.totalorder %v55, %v4423
  %vm4514 = vcmp.eq.s32.totalorder %v55, %v4426
  %vm4515 = vcmp.eq.s32.totalorder %v55, %v4429
  %vm4516 = vcmp.eq.s32.totalorder %v55, %v4432
  %vm4517 = vcmp.eq.s32.totalorder %v55, %v4435
  %vm4518 = vcmp.eq.s32.totalorder %v55, %v4438
  %vm4519 = vcmp.eq.s32.totalorder %v55, %v4441
  %vm4520 = vcmp.eq.s32.totalorder %v55, %v4444
  %vm4521 = vcmp.eq.s32.totalorder %v55, %v4447
  %vm4522 = vcmp.eq.s32.totalorder %v55, %v4450
  %vm4523 = vcmp.eq.s32.totalorder %v55, %v4453
  %vm4524 = vcmp.eq.s32.totalorder %v55, %v4456
  %vm4525 = vcmp.eq.s32.totalorder %v55, %v4459
  %vm4526 = vcmp.eq.s32.totalorder %v55, %v4462
  %vm4527 = vcmp.eq.s32.totalorder %v55, %v4465
  %vm4528 = vcmp.eq.s32.totalorder %v55, %v4468
  %vm4529 = vcmp.eq.s32.totalorder %v55, %v4471
  %vm4530 = vcmp.eq.s32.totalorder %v55, %v4474
  %vm4531 = vcmp.eq.s32.totalorder %v55, %v4477
  %vm4532 = vcmp.eq.s32.totalorder %v55, %v4480
  %vm4533 = vcmp.eq.s32.totalorder %v55, %v4483
  %vm4534 = vcmp.eq.s32.totalorder %v55, %v4486
  %vm4535 = vcmp.eq.s32.totalorder %v55, %v4489
  %vm4536 = vcmp.eq.s32.totalorder %v55, %v4492
  %vm4537 = vcmp.eq.s32.totalorder %v55, %v4495
  %vm4538 = vcmp.eq.s32.totalorder %v55, %v4498
  %vm4539 = vcmp.eq.s32.totalorder %v55, %v4501
  %vm4540 = vcmp.eq.s32.totalorder %v55, %v4504
  %vm4541 = vcmp.eq.s32.totalorder %v55, %v4507
  %vm4542 = vcmp.eq.s32.totalorder %v55, %v4510
  %vm4543 = vmor %vm4383, %vm4511
  %vm4544 = vmor %vm4384, %vm4512
  %vm4545 = vmor %vm4385, %vm4513
  %vm4546 = vmor %vm4386, %vm4514
  %vm4547 = vmor %vm4387, %vm4515
  %vm4548 = vmor %vm4388, %vm4516
  %vm4549 = vmor %vm4389, %vm4517
  %vm4550 = vmor %vm4390, %vm4518
  %vm4551 = vmor %vm4391, %vm4519
  %vm4552 = vmor %vm4392, %vm4520
  %vm4553 = vmor %vm4393, %vm4521
  %vm4554 = vmor %vm4394, %vm4522
  %vm4555 = vmor %vm4395, %vm4523
  %vm4556 = vmor %vm4396, %vm4524
  %vm4557 = vmor %vm4397, %vm4525
  %vm4558 = vmor %vm4398, %vm4526
  %vm4559 = vmor %vm4399, %vm4527
  %vm4560 = vmor %vm4400, %vm4528
  %vm4561 = vmor %vm4401, %vm4529
  %vm4562 = vmor %vm4402, %vm4530
  %vm4563 = vmor %vm4403, %vm4531
  %vm4564 = vmor %vm4404, %vm4532
  %vm4565 = vmor %vm4405, %vm4533
  %vm4566 = vmor %vm4406, %vm4534
  %vm4567 = vmor %vm4407, %vm4535
  %vm4568 = vmor %vm4408, %vm4536
  %vm4569 = vmor %vm4409, %vm4537
  %vm4570 = vmor %vm4410, %vm4538
  %vm4571 = vmor %vm4411, %vm4539
  %vm4572 = vmor %vm4412, %vm4540
  %vm4573 = vmor %vm4413, %vm4541
  %vm4574 = vmor %vm4414, %vm4542
  %v4575 = vsel %vm4543, 1, 0
  %v4576 = vsel %vm4544, 1, 0
  %v4577 = vsel %vm4545, 1, 0
  %v4578 = vsel %vm4546, 1, 0
  %v4579 = vsel %vm4547, 1, 0
  %v4580 = vsel %vm4548, 1, 0
  %v4581 = vsel %vm4549, 1, 0
  %v4582 = vsel %vm4550, 1, 0
  %v4583 = vsel %vm4551, 1, 0
  %v4584 = vsel %vm4552, 1, 0
  %v4585 = vsel %vm4553, 1, 0
  %v4586 = vsel %vm4554, 1, 0
  %v4587 = vsel %vm4555, 1, 0
  %v4588 = vsel %vm4556, 1, 0
  %v4589 = vsel %vm4557, 1, 0
  %v4590 = vsel %vm4558, 1, 0
  %v4591 = vsel %vm4559, 1, 0
  %v4592 = vsel %vm4560, 1, 0
  %v4593 = vsel %vm4561, 1, 0
  %v4594 = vsel %vm4562, 1, 0
  %v4595 = vsel %vm4563, 1, 0
  %v4596 = vsel %vm4564, 1, 0
  %v4597 = vsel %vm4565, 1, 0
  %v4598 = vsel %vm4566, 1, 0
  %v4599 = vsel %vm4567, 1, 0
  %v4600 = vsel %vm4568, 1, 0
  %v4601 = vsel %vm4569, 1, 0
  %v4602 = vsel %vm4570, 1, 0
  %v4603 = vsel %vm4571, 1, 0
  %v4604 = vsel %vm4572, 1, 0
  %v4605 = vsel %vm4573, 1, 0
  %v4606 = vsel %vm4574, 1, 0
  %v4607 = vcvt.s32.f32 %v4575
  %v4608 = vcvt.s32.f32 %v4576
  %v4609 = vcvt.s32.f32 %v4577
  %v4610 = vcvt.s32.f32 %v4578
  %v4611 = vcvt.s32.f32 %v4579
  %v4612 = vcvt.s32.f32 %v4580
  %v4613 = vcvt.s32.f32 %v4581
  %v4614 = vcvt.s32.f32 %v4582
  %v4615 = vcvt.s32.f32 %v4583
  %v4616 = vcvt.s32.f32 %v4584
  %v4617 = vcvt.s32.f32 %v4585
  %v4618 = vcvt.s32.f32 %v4586
  %v4619 = vcvt.s32.f32 %v4587
  %v4620 = vcvt.s32.f32 %v4588
  %v4621 = vcvt.s32.f32 %v4589
  %v4622 = vcvt.s32.f32 %v4590
  %v4623 = vcvt.s32.f32 %v4591
  %v4624 = vcvt.s32.f32 %v4592
  %v4625 = vcvt.s32.f32 %v4593
  %v4626 = vcvt.s32.f32 %v4594
  %v4627 = vcvt.s32.f32 %v4595
  %v4628 = vcvt.s32.f32 %v4596
  %v4629 = vcvt.s32.f32 %v4597
  %v4630 = vcvt.s32.f32 %v4598
  %v4631 = vcvt.s32.f32 %v4599
  %v4632 = vcvt.s32.f32 %v4600
  %v4633 = vcvt.s32.f32 %v4601
  %v4634 = vcvt.s32.f32 %v4602
  %v4635 = vcvt.s32.f32 %v4603
  %v4636 = vcvt.s32.f32 %v4604
  %v4637 = vcvt.s32.f32 %v4605
  %v4638 = vcvt.s32.f32 %v4606
  %v4640 = vsel %vm440, %v4607, 0
  %v4643 = vsel %vm440, %v4608, 0
  %v4646 = vsel %vm440, %v4609, 0
  %v4649 = vsel %vm440, %v4610, 0
  %v4652 = vsel %vm440, %v4611, 0
  %v4655 = vsel %vm440, %v4612, 0
  %v4658 = vsel %vm440, %v4613, 0
  %v4661 = vsel %vm440, %v4614, 0
  %v4664 = vsel %vm440, %v4615, 0
  %v4667 = vsel %vm440, %v4616, 0
  %v4670 = vsel %vm440, %v4617, 0
  %v4673 = vsel %vm440, %v4618, 0
  %v4676 = vsel %vm440, %v4619, 0
  %v4679 = vsel %vm440, %v4620, 0
  %v4682 = vsel %vm440, %v4621, 0
  %v4685 = vsel %vm440, %v4622, 0
  %v4688 = vsel %vm440, %v4623, 0
  %v4691 = vsel %vm440, %v4624, 0
  %v4694 = vsel %vm440, %v4625, 0
  %v4697 = vsel %vm440, %v4626, 0
  %v4700 = vsel %vm440, %v4627, 0
  %v4703 = vsel %vm440, %v4628, 0
  %v4706 = vsel %vm440, %v4629, 0
  %v4709 = vsel %vm440, %v4630, 0
  %v4712 = vsel %vm440, %v4631, 0
  %v4715 = vsel %vm440, %v4632, 0
  %v4718 = vsel %vm440, %v4633, 0
  %v4721 = vsel %vm440, %v4634, 0
  %v4724 = vsel %vm440, %v4635, 0
  %v4727 = vsel %vm440, %v4636, 0
  %v4730 = vsel %vm440, %v4637, 0
  %v4733 = vsel %vm440, %v4638, 0
  %4735 = vmatprep.subr.mxu0 0.0
  %4736 = vmatpush1.msra.mxu0 %v49
  %4737 = vmatprep.subr.mxu0 0.0
  %4738 = vmatpush1.msra.mxu0 %v50
  %4739 = vmatprep.subr.mxu0 0.0
  %4740 = vmatpush1.msra.mxu0 %v51
  %4741 = vmatprep.subr.mxu0 0.0
  %4742 = vmatpush1.msra.mxu0 %v52
  %4743 = vmatprep.subr.mxu0 0.0
  %4744 = vmatpush1.msra.mxu0 %v53
  %4745 = vmatprep.subr.mxu0 0.0
  %4746 = vmatpush1.msra.mxu0 0.0
  %4747 = vmatprep.subr.mxu0 0.0
  %4748 = vmatpush1.msra.mxu0 0.0
  %4749 = vmatprep.subr.mxu0 0.0
  %4750 = vmatpush1.msra.mxu0 0.0
  %4751 = vmatprep.subr.mxu0 0.0
  %4752 = vmatpush1.msra.mxu0 0.0
  %4753 = vmatprep.subr.mxu0 0.0
  %4754 = vmatpush1.msra.mxu0 0.0
  %4755 = vmatprep.subr.mxu0 0.0
  %4756 = vmatpush1.msra.mxu0 0.0
  %4757 = vmatprep.subr.mxu0 0.0
  %4758 = vmatpush1.msra.mxu0 0.0
  %4759 = vmatprep.subr.mxu0 0.0
  %4760 = vmatpush1.msra.mxu0 0.0
  %4761 = vmatprep.subr.mxu0 0.0
  %4762 = vmatpush1.msra.mxu0 0.0
  %4763 = vmatprep.subr.mxu0 0.0
  %4764 = vmatpush1.msra.mxu0 0.0
  %4765 = vmatprep.subr.mxu0 0.0
  %4766 = vmatpush1.msra.mxu0 0.0
  %4767 = vmatprep.subr.mxu0 0.0
  %4768 = vmatpush1.msra.mxu0 0.0
  %4769 = vmatprep.subr.mxu0 0.0
  %4770 = vmatpush1.msra.mxu0 0.0
  %4771 = vmatprep.subr.mxu0 0.0
  %4772 = vmatpush1.msra.mxu0 0.0
  %4773 = vmatprep.subr.mxu0 0.0
  %4774 = vmatpush1.msra.mxu0 0.0
  %4775 = vmatprep.subr.mxu0 0.0
  %4776 = vmatpush1.msra.mxu0 0.0
  %4777 = vmatprep.subr.mxu0 0.0
  %4778 = vmatpush1.msra.mxu0 0.0
  %4779 = vmatprep.subr.mxu0 0.0
  %4780 = vmatpush1.msra.mxu0 0.0
  %4781 = vmatprep.subr.mxu0 0.0
  %4782 = vmatpush1.msra.mxu0 0.0
  %4783 = vmatprep.subr.mxu0 0.0
  %4784 = vmatpush1.msra.mxu0 0.0
  %4785 = vmatprep.subr.mxu0 0.0
  %4786 = vmatpush1.msra.mxu0 0.0
  %4787 = vmatprep.subr.mxu0 0.0
  %4788 = vmatpush1.msra.mxu0 0.0
  %4789 = vmatprep.subr.mxu0 0.0
  %4790 = vmatpush1.msra.mxu0 0.0
  %4791 = vmatprep.subr.mxu0 0.0
  %4792 = vmatpush1.msra.mxu0 0.0
  %4793 = vmatprep.subr.mxu0 0.0
  %4794 = vmatpush1.msra.mxu0 0.0
  %4795 = vmatprep.subr.mxu0 0.0
  %4796 = vmatpush1.msra.mxu0 0.0
  %4797 = vmatprep.subr.mxu0 0.0
  %4798 = vmatpush1.msra.mxu0 0.0
  %4799 = vmatprep.mubr.f32.mxu0 0.0
  %4800 = vmatmul.mubr.f32.gmra.mrb[0].mxu0 %v4640
  %v4801 = vpop.f32.mrb[0].mxu0
  %v4802 = vadd.f32 0.0, %v4801
  %v4803 = vpop.f32.mrb[0].mxu0
  %4804 = vmatprep.mubr.f32.mxu0 0.0
  %4805 = vmatmul.mubr.f32.gmra.mrb[0].mxu0 %v4643
  %v4806 = vpop.f32.mrb[0].mxu0
  %v4807 = vadd.f32 0.0, %v4806
  %v4808 = vpop.f32.mrb[0].mxu0
  %4809 = vmatprep.mubr.f32.mxu0 0.0
  %4810 = vmatmul.mubr.f32.gmra.mrb[0].mxu0 %v4646
  %v4811 = vpop.f32.mrb[0].mxu0
  %v4812 = vadd.f32 0.0, %v4811
  %v4813 = vpop.f32.mrb[0].mxu0
  %4814 = vmatprep.mubr.f32.mxu0 0.0
  %4815 = vmatmul.mubr.f32.gmra.mrb[0].mxu0 %v4649
  %v4816 = vpop.f32.mrb[0].mxu0
  %v4817 = vadd.f32 0.0, %v4816
  %v4818 = vpop.f32.mrb[0].mxu0
  %4819 = vmatprep.mubr.f32.mxu0 0.0
  %4820 = vmatmul.mubr.f32.gmra.mrb[0].mxu0 %v4652
  %v4821 = vpop.f32.mrb[0].mxu0
  %v4822 = vadd.f32 0.0, %v4821
  %v4823 = vpop.f32.mrb[0].mxu0
  %4824 = vmatprep.mubr.f32.mxu0 0.0
  %4825 = vmatmul.mubr.f32.gmra.mrb[0].mxu0 %v4655
  %v4826 = vpop.f32.mrb[0].mxu0
  %v4827 = vadd.f32 0.0, %v4826
  %v4828 = vpop.f32.mrb[0].mxu0
  %4829 = vmatprep.mubr.f32.mxu0 0.0
  %4830 = vmatmul.mubr.f32.gmra.mrb[0].mxu0 %v4658
  %v4831 = vpop.f32.mrb[0].mxu0
  %v4832 = vadd.f32 0.0, %v4831
  %v4833 = vpop.f32.mrb[0].mxu0
  %4834 = vmatprep.mubr.f32.mxu0 0.0
  %4835 = vmatmul.mubr.f32.gmra.mrb[0].mxu0 %v4661
  %v4836 = vpop.f32.mrb[0].mxu0
  %v4837 = vadd.f32 0.0, %v4836
  %v4838 = vpop.f32.mrb[0].mxu0
  %4839 = vmatprep.mubr.f32.mxu0 0.0
  %4840 = vmatmul.mubr.f32.gmra.mrb[0].mxu0 %v4664
  %v4841 = vpop.f32.mrb[0].mxu0
  %v4842 = vadd.f32 0.0, %v4841
  %v4843 = vpop.f32.mrb[0].mxu0
  %4844 = vmatprep.mubr.f32.mxu0 0.0
  %4845 = vmatmul.mubr.f32.gmra.mrb[0].mxu0 %v4667
  %v4846 = vpop.f32.mrb[0].mxu0
  %v4847 = vadd.f32 0.0, %v4846
  %v4848 = vpop.f32.mrb[0].mxu0
  %4849 = vmatprep.mubr.f32.mxu0 0.0
  %4850 = vmatmul.mubr.f32.gmra.mrb[0].mxu0 %v4670
  %v4851 = vpop.f32.mrb[0].mxu0
  %v4852 = vadd.f32 0.0, %v4851
  %v4853 = vpop.f32.mrb[0].mxu0
  %4854 = vmatprep.mubr.f32.mxu0 0.0
  %4855 = vmatmul.mubr.f32.gmra.mrb[0].mxu0 %v4673
  %v4856 = vpop.f32.mrb[0].mxu0
  %v4857 = vadd.f32 0.0, %v4856
  %v4858 = vpop.f32.mrb[0].mxu0
  %4859 = vmatprep.mubr.f32.mxu0 0.0
  %4860 = vmatmul.mubr.f32.gmra.mrb[0].mxu0 %v4676
  %v4861 = vpop.f32.mrb[0].mxu0
  %v4862 = vadd.f32 0.0, %v4861
  %v4863 = vpop.f32.mrb[0].mxu0
  %4864 = vmatprep.mubr.f32.mxu0 0.0
  %4865 = vmatmul.mubr.f32.gmra.mrb[0].mxu0 %v4679
  %v4866 = vpop.f32.mrb[0].mxu0
  %v4867 = vadd.f32 0.0, %v4866
  %v4868 = vpop.f32.mrb[0].mxu0
  %4869 = vmatprep.mubr.f32.mxu0 0.0
  %4870 = vmatmul.mubr.f32.gmra.mrb[0].mxu0 %v4682
  %v4871 = vpop.f32.mrb[0].mxu0
  %v4872 = vadd.f32 0.0, %v4871
  %v4873 = vpop.f32.mrb[0].mxu0
  %4874 = vmatprep.mubr.f32.mxu0 0.0
  %4875 = vmatmul.mubr.f32.gmra.mrb[0].mxu0 %v4685
  %v4876 = vpop.f32.mrb[0].mxu0
  %v4877 = vadd.f32 0.0, %v4876
  %v4878 = vpop.f32.mrb[0].mxu0
  %4879 = vmatprep.mubr.f32.mxu0 0.0
  %4880 = vmatmul.mubr.f32.gmra.mrb[0].mxu0 %v4688
  %v4881 = vpop.f32.mrb[0].mxu0
  %v4882 = vadd.f32 0.0, %v4881
  %v4883 = vpop.f32.mrb[0].mxu0
  %4884 = vmatprep.mubr.f32.mxu0 0.0
  %4885 = vmatmul.mubr.f32.gmra.mrb[0].mxu0 %v4691
  %v4886 = vpop.f32.mrb[0].mxu0
  %v4887 = vadd.f32 0.0, %v4886
  %v4888 = vpop.f32.mrb[0].mxu0
  %4889 = vmatprep.mubr.f32.mxu0 0.0
  %4890 = vmatmul.mubr.f32.gmra.mrb[0].mxu0 %v4694
  %v4891 = vpop.f32.mrb[0].mxu0
  %v4892 = vadd.f32 0.0, %v4891
  %v4893 = vpop.f32.mrb[0].mxu0
  %4894 = vmatprep.mubr.f32.mxu0 0.0
  %4895 = vmatmul.mubr.f32.gmra.mrb[0].mxu0 %v4697
  %v4896 = vpop.f32.mrb[0].mxu0
  %v4897 = vadd.f32 0.0, %v4896
  %v4898 = vpop.f32.mrb[0].mxu0
  %4899 = vmatprep.mubr.f32.mxu0 0.0
  %4900 = vmatmul.mubr.f32.gmra.mrb[0].mxu0 %v4700
  %v4901 = vpop.f32.mrb[0].mxu0
  %v4902 = vadd.f32 0.0, %v4901
  %v4903 = vpop.f32.mrb[0].mxu0
  %4904 = vmatprep.mubr.f32.mxu0 0.0
  %4905 = vmatmul.mubr.f32.gmra.mrb[0].mxu0 %v4703
  %v4906 = vpop.f32.mrb[0].mxu0
  %v4907 = vadd.f32 0.0, %v4906
  %v4908 = vpop.f32.mrb[0].mxu0
  %4909 = vmatprep.mubr.f32.mxu0 0.0
  %4910 = vmatmul.mubr.f32.gmra.mrb[0].mxu0 %v4706
  %v4911 = vpop.f32.mrb[0].mxu0
  %v4912 = vadd.f32 0.0, %v4911
  %v4913 = vpop.f32.mrb[0].mxu0
  %4914 = vmatprep.mubr.f32.mxu0 0.0
  %4915 = vmatmul.mubr.f32.gmra.mrb[0].mxu0 %v4709
  %v4916 = vpop.f32.mrb[0].mxu0
  %v4917 = vadd.f32 0.0, %v4916
  %v4918 = vpop.f32.mrb[0].mxu0
  %4919 = vmatprep.mubr.f32.mxu0 0.0
  %4920 = vmatmul.mubr.f32.gmra.mrb[0].mxu0 %v4712
  %v4921 = vpop.f32.mrb[0].mxu0
  %v4922 = vadd.f32 0.0, %v4921
  %v4923 = vpop.f32.mrb[0].mxu0
  %4924 = vmatprep.mubr.f32.mxu0 0.0
  %4925 = vmatmul.mubr.f32.gmra.mrb[0].mxu0 %v4715
  %v4926 = vpop.f32.mrb[0].mxu0
  %v4927 = vadd.f32 0.0, %v4926
  %v4928 = vpop.f32.mrb[0].mxu0
  %4929 = vmatprep.mubr.f32.mxu0 0.0
  %4930 = vmatmul.mubr.f32.gmra.mrb[0].mxu0 %v4718
  %v4931 = vpop.f32.mrb[0].mxu0
  %v4932 = vadd.f32 0.0, %v4931
  %v4933 = vpop.f32.mrb[0].mxu0
  %4934 = vmatprep.mubr.f32.mxu0 0.0
  %4935 = vmatmul.mubr.f32.gmra.mrb[0].mxu0 %v4721
  %v4936 = vpop.f32.mrb[0].mxu0
  %v4937 = vadd.f32 0.0, %v4936
  %v4938 = vpop.f32.mrb[0].mxu0
  %4939 = vmatprep.mubr.f32.mxu0 0.0
  %4940 = vmatmul.mubr.f32.gmra.mrb[0].mxu0 %v4724
  %v4941 = vpop.f32.mrb[0].mxu0
  %v4942 = vadd.f32 0.0, %v4941
  %v4943 = vpop.f32.mrb[0].mxu0
  %4944 = vmatprep.mubr.f32.mxu0 0.0
  %4945 = vmatmul.mubr.f32.gmra.mrb[0].mxu0 %v4727
  %v4946 = vpop.f32.mrb[0].mxu0
  %v4947 = vadd.f32 0.0, %v4946
  %v4948 = vpop.f32.mrb[0].mxu0
  %4949 = vmatprep.mubr.f32.mxu0 0.0
  %4950 = vmatmul.mubr.f32.gmra.mrb[0].mxu0 %v4730
  %v4951 = vpop.f32.mrb[0].mxu0
  %v4952 = vadd.f32 0.0, %v4951
  %v4953 = vpop.f32.mrb[0].mxu0
  %4954 = vmatprep.mubr.f32.mxu0 0.0
  %4955 = vmatmul.mubr.f32.gmra.mrb[0].mxu0 %v4733
  %v4956 = vpop.f32.mrb[0].mxu0
  %v4957 = vadd.f32 0.0, %v4956
  %v4958 = vpop.f32.mrb[0].mxu0
  %4959 = vdwg.mxu0
  %v4960 = vmax.f32 %v4255, %v4802
  %v4961 = vmax.f32 %v4256, %v4807
  %v4962 = vmax.f32 %v4257, %v4812
  %v4963 = vmax.f32 %v4258, %v4817
  %v4964 = vmax.f32 %v4259, %v4822
  %v4965 = vmax.f32 %v4260, %v4827
  %v4966 = vmax.f32 %v4261, %v4832
  %v4967 = vmax.f32 %v4262, %v4837
  %v4968 = vmax.f32 %v4263, %v4842
  %v4969 = vmax.f32 %v4264, %v4847
  %v4970 = vmax.f32 %v4265, %v4852
  %v4971 = vmax.f32 %v4266, %v4857
  %v4972 = vmax.f32 %v4267, %v4862
  %v4973 = vmax.f32 %v4268, %v4867
  %v4974 = vmax.f32 %v4269, %v4872
  %v4975 = vmax.f32 %v4270, %v4877
  %v4976 = vmax.f32 %v4271, %v4882
  %v4977 = vmax.f32 %v4272, %v4887
  %v4978 = vmax.f32 %v4273, %v4892
  %v4979 = vmax.f32 %v4274, %v4897
  %v4980 = vmax.f32 %v4275, %v4902
  %v4981 = vmax.f32 %v4276, %v4907
  %v4982 = vmax.f32 %v4277, %v4912
  %v4983 = vmax.f32 %v4278, %v4917
  %v4984 = vmax.f32 %v4279, %v4922
  %v4985 = vmax.f32 %v4280, %v4927
  %v4986 = vmax.f32 %v4281, %v4932
  %v4987 = vmax.f32 %v4282, %v4937
  %v4988 = vmax.f32 %v4283, %v4942
  %v4989 = vmax.f32 %v4284, %v4947
  %v4990 = vmax.f32 %v4285, %v4952
  %v4991 = vmax.f32 %v4286, %v4957
  %4992 = vset.pattern.permute.xlu0 8
  %4993 = vperm.xlu0 %4992, %v17
  %v4994 = vpop.permute.xlu0 %4993
  %4995 = vset.pattern.permute.xlu0 8
  %4996 = vperm.xlu0 %4995, %v18
  %v4997 = vpop.permute.xlu0 %4996
  %4998 = vset.pattern.permute.xlu0 8
  %4999 = vperm.xlu0 %4998, %v19
  %v5000 = vpop.permute.xlu0 %4999
  %5001 = vset.pattern.permute.xlu0 8
  %5002 = vperm.xlu0 %5001, %v20
  %v5003 = vpop.permute.xlu0 %5002
  %5004 = vset.pattern.permute.xlu0 8
  %5005 = vperm.xlu0 %5004, %v21
  %v5006 = vpop.permute.xlu0 %5005
  %5007 = vset.pattern.permute.xlu0 8
  %5008 = vperm.xlu0 %5007, %v22
  %v5009 = vpop.permute.xlu0 %5008
  %5010 = vset.pattern.permute.xlu0 8
  %5011 = vperm.xlu0 %5010, %v23
  %v5012 = vpop.permute.xlu0 %5011
  %5013 = vset.pattern.permute.xlu0 8
  %5014 = vperm.xlu0 %5013, %v24
  %v5015 = vpop.permute.xlu0 %5014
  %5016 = vset.pattern.permute.xlu0 8
  %5017 = vperm.xlu0 %5016, %v25
  %v5018 = vpop.permute.xlu0 %5017
  %5019 = vset.pattern.permute.xlu0 8
  %5020 = vperm.xlu0 %5019, %v26
  %v5021 = vpop.permute.xlu0 %5020
  %5022 = vset.pattern.permute.xlu0 8
  %5023 = vperm.xlu0 %5022, %v27
  %v5024 = vpop.permute.xlu0 %5023
  %5025 = vset.pattern.permute.xlu0 8
  %5026 = vperm.xlu0 %5025, %v28
  %v5027 = vpop.permute.xlu0 %5026
  %5028 = vset.pattern.permute.xlu0 8
  %5029 = vperm.xlu0 %5028, %v29
  %v5030 = vpop.permute.xlu0 %5029
  %5031 = vset.pattern.permute.xlu0 8
  %5032 = vperm.xlu0 %5031, %v30
  %v5033 = vpop.permute.xlu0 %5032
  %5034 = vset.pattern.permute.xlu0 8
  %5035 = vperm.xlu0 %5034, %v31
  %v5036 = vpop.permute.xlu0 %5035
  %5037 = vset.pattern.permute.xlu0 8
  %5038 = vperm.xlu0 %5037, %v32
  %v5039 = vpop.permute.xlu0 %5038
  %5040 = vset.pattern.permute.xlu0 8
  %5041 = vperm.xlu0 %5040, %v33
  %v5042 = vpop.permute.xlu0 %5041
  %5043 = vset.pattern.permute.xlu0 8
  %5044 = vperm.xlu0 %5043, %v34
  %v5045 = vpop.permute.xlu0 %5044
  %5046 = vset.pattern.permute.xlu0 8
  %5047 = vperm.xlu0 %5046, %v35
  %v5048 = vpop.permute.xlu0 %5047
  %5049 = vset.pattern.permute.xlu0 8
  %5050 = vperm.xlu0 %5049, %v36
  %v5051 = vpop.permute.xlu0 %5050
  %5052 = vset.pattern.permute.xlu0 8
  %5053 = vperm.xlu0 %5052, %v37
  %v5054 = vpop.permute.xlu0 %5053
  %5055 = vset.pattern.permute.xlu0 8
  %5056 = vperm.xlu0 %5055, %v38
  %v5057 = vpop.permute.xlu0 %5056
  %5058 = vset.pattern.permute.xlu0 8
  %5059 = vperm.xlu0 %5058, %v39
  %v5060 = vpop.permute.xlu0 %5059
  %5061 = vset.pattern.permute.xlu0 8
  %5062 = vperm.xlu0 %5061, %v40
  %v5063 = vpop.permute.xlu0 %5062
  %5064 = vset.pattern.permute.xlu0 8
  %5065 = vperm.xlu0 %5064, %v41
  %v5066 = vpop.permute.xlu0 %5065
  %5067 = vset.pattern.permute.xlu0 8
  %5068 = vperm.xlu0 %5067, %v42
  %v5069 = vpop.permute.xlu0 %5068
  %5070 = vset.pattern.permute.xlu0 8
  %5071 = vperm.xlu0 %5070, %v43
  %v5072 = vpop.permute.xlu0 %5071
  %5073 = vset.pattern.permute.xlu0 8
  %5074 = vperm.xlu0 %5073, %v44
  %v5075 = vpop.permute.xlu0 %5074
  %5076 = vset.pattern.permute.xlu0 8
  %5077 = vperm.xlu0 %5076, %v45
  %v5078 = vpop.permute.xlu0 %5077
  %5079 = vset.pattern.permute.xlu0 8
  %5080 = vperm.xlu0 %5079, %v46
  %v5081 = vpop.permute.xlu0 %5080
  %5082 = vset.pattern.permute.xlu0 8
  %5083 = vperm.xlu0 %5082, %v47
  %v5084 = vpop.permute.xlu0 %5083
  %5085 = vset.pattern.permute.xlu0 8
  %5086 = vperm.xlu0 %5085, %v48
  %v5087 = vpop.permute.xlu0 %5086
  %vm5088 = vcmp.eq.s32.totalorder %v55, %v4994
  %vm5089 = vcmp.eq.s32.totalorder %v55, %v4997
  %vm5090 = vcmp.eq.s32.totalorder %v55, %v5000
  %vm5091 = vcmp.eq.s32.totalorder %v55, %v5003
  %vm5092 = vcmp.eq.s32.totalorder %v55, %v5006
  %vm5093 = vcmp.eq.s32.totalorder %v55, %v5009
  %vm5094 = vcmp.eq.s32.totalorder %v55, %v5012
  %vm5095 = vcmp.eq.s32.totalorder %v55, %v5015
  %vm5096 = vcmp.eq.s32.totalorder %v55, %v5018
  %vm5097 = vcmp.eq.s32.totalorder %v55, %v5021
  %vm5098 = vcmp.eq.s32.totalorder %v55, %v5024
  %vm5099 = vcmp.eq.s32.totalorder %v55, %v5027
  %vm5100 = vcmp.eq.s32.totalorder %v55, %v5030
  %vm5101 = vcmp.eq.s32.totalorder %v55, %v5033
  %vm5102 = vcmp.eq.s32.totalorder %v55, %v5036
  %vm5103 = vcmp.eq.s32.totalorder %v55, %v5039
  %vm5104 = vcmp.eq.s32.totalorder %v55, %v5042
  %vm5105 = vcmp.eq.s32.totalorder %v55, %v5045
  %vm5106 = vcmp.eq.s32.totalorder %v55, %v5048
  %vm5107 = vcmp.eq.s32.totalorder %v55, %v5051
  %vm5108 = vcmp.eq.s32.totalorder %v55, %v5054
  %vm5109 = vcmp.eq.s32.totalorder %v55, %v5057
  %vm5110 = vcmp.eq.s32.totalorder %v55, %v5060
  %vm5111 = vcmp.eq.s32.totalorder %v55, %v5063
  %vm5112 = vcmp.eq.s32.totalorder %v55, %v5066
  %vm5113 = vcmp.eq.s32.totalorder %v55, %v5069
  %vm5114 = vcmp.eq.s32.totalorder %v55, %v5072
  %vm5115 = vcmp.eq.s32.totalorder %v55, %v5075
  %vm5116 = vcmp.eq.s32.totalorder %v55, %v5078
  %vm5117 = vcmp.eq.s32.totalorder %v55, %v5081
  %vm5118 = vcmp.eq.s32.totalorder %v55, %v5084
  %vm5119 = vcmp.eq.s32.totalorder %v55, %v5087
  %5120 = vset.pattern.permute.xlu0 9
  %5121 = vperm.xlu0 %5120, %v184
  %v5122 = vpop.permute.xlu0 %5121
  %5123 = vset.pattern.permute.xlu0 9
  %5124 = vperm.xlu0 %5123, %v185
  %v5125 = vpop.permute.xlu0 %5124
  %5126 = vset.pattern.permute.xlu0 9
  %5127 = vperm.xlu0 %5126, %v186
  %v5128 = vpop.permute.xlu0 %5127
  %5129 = vset.pattern.permute.xlu0 9
  %5130 = vperm.xlu0 %5129, %v187
  %v5131 = vpop.permute.xlu0 %5130
  %5132 = vset.pattern.permute.xlu0 9
  %5133 = vperm.xlu0 %5132, %v188
  %v5134 = vpop.permute.xlu0 %5133
  %5135 = vset.pattern.permute.xlu0 9
  %5136 = vperm.xlu0 %5135, %v189
  %v5137 = vpop.permute.xlu0 %5136
  %5138 = vset.pattern.permute.xlu0 9
  %5139 = vperm.xlu0 %5138, %v190
  %v5140 = vpop.permute.xlu0 %5139
  %5141 = vset.pattern.permute.xlu0 9
  %5142 = vperm.xlu0 %5141, %v191
  %v5143 = vpop.permute.xlu0 %5142
  %5144 = vset.pattern.permute.xlu0 9
  %5145 = vperm.xlu0 %5144, %v192
  %v5146 = vpop.permute.xlu0 %5145
  %5147 = vset.pattern.permute.xlu0 9
  %5148 = vperm.xlu0 %5147, %v193
  %v5149 = vpop.permute.xlu0 %5148
  %5150 = vset.pattern.permute.xlu0 9
  %5151 = vperm.xlu0 %5150, %v194
  %v5152 = vpop.permute.xlu0 %5151
  %5153 = vset.pattern.permute.xlu0 9
  %5154 = vperm.xlu0 %5153, %v195
  %v5155 = vpop.permute.xlu0 %5154
  %5156 = vset.pattern.permute.xlu0 9
  %5157 = vperm.xlu0 %5156, %v196
  %v5158 = vpop.permute.xlu0 %5157
  %5159 = vset.pattern.permute.xlu0 9
  %5160 = vperm.xlu0 %5159, %v197
  %v5161 = vpop.permute.xlu0 %5160
  %5162 = vset.pattern.permute.xlu0 9
  %5163 = vperm.xlu0 %5162, %v198
  %v5164 = vpop.permute.xlu0 %5163
  %5165 = vset.pattern.permute.xlu0 9
  %5166 = vperm.xlu0 %5165, %v199
  %v5167 = vpop.permute.xlu0 %5166
  %5168 = vset.pattern.permute.xlu0 9
  %5169 = vperm.xlu0 %5168, %v200
  %v5170 = vpop.permute.xlu0 %5169
  %5171 = vset.pattern.permute.xlu0 9
  %5172 = vperm.xlu0 %5171, %v201
  %v5173 = vpop.permute.xlu0 %5172
  %5174 = vset.pattern.permute.xlu0 9
  %5175 = vperm.xlu0 %5174, %v202
  %v5176 = vpop.permute.xlu0 %5175
  %5177 = vset.pattern.permute.xlu0 9
  %5178 = vperm.xlu0 %5177, %v203
  %v5179 = vpop.permute.xlu0 %5178
  %5180 = vset.pattern.permute.xlu0 9
  %5181 = vperm.xlu0 %5180, %v204
  %v5182 = vpop.permute.xlu0 %5181
  %5183 = vset.pattern.permute.xlu0 9
  %5184 = vperm.xlu0 %5183, %v205
  %v5185 = vpop.permute.xlu0 %5184
  %5186 = vset.pattern.permute.xlu0 9
  %5187 = vperm.xlu0 %5186, %v206
  %v5188 = vpop.permute.xlu0 %5187
  %5189 = vset.pattern.permute.xlu0 9
  %5190 = vperm.xlu0 %5189, %v207
  %v5191 = vpop.permute.xlu0 %5190
  %5192 = vset.pattern.permute.xlu0 9
  %5193 = vperm.xlu0 %5192, %v208
  %v5194 = vpop.permute.xlu0 %5193
  %5195 = vset.pattern.permute.xlu0 9
  %5196 = vperm.xlu0 %5195, %v209
  %v5197 = vpop.permute.xlu0 %5196
  %5198 = vset.pattern.permute.xlu0 9
  %5199 = vperm.xlu0 %5198, %v210
  %v5200 = vpop.permute.xlu0 %5199
  %5201 = vset.pattern.permute.xlu0 9
  %5202 = vperm.xlu0 %5201, %v211
  %v5203 = vpop.permute.xlu0 %5202
  %5204 = vset.pattern.permute.xlu0 9
  %5205 = vperm.xlu0 %5204, %v212
  %v5206 = vpop.permute.xlu0 %5205
  %5207 = vset.pattern.permute.xlu0 9
  %5208 = vperm.xlu0 %5207, %v213
  %v5209 = vpop.permute.xlu0 %5208
  %5210 = vset.pattern.permute.xlu0 9
  %5211 = vperm.xlu0 %5210, %v214
  %v5212 = vpop.permute.xlu0 %5211
  %5213 = vset.pattern.permute.xlu0 9
  %5214 = vperm.xlu0 %5213, %v215
  %v5215 = vpop.permute.xlu0 %5214
  %vm5216 = vcmp.eq.s32.totalorder %v55, %v5122
  %vm5217 = vcmp.eq.s32.totalorder %v55, %v5125
  %vm5218 = vcmp.eq.s32.totalorder %v55, %v5128
  %vm5219 = vcmp.eq.s32.totalorder %v55, %v5131
  %vm5220 = vcmp.eq.s32.totalorder %v55, %v5134
  %vm5221 = vcmp.eq.s32.totalorder %v55, %v5137
  %vm5222 = vcmp.eq.s32.totalorder %v55, %v5140
  %vm5223 = vcmp.eq.s32.totalorder %v55, %v5143
  %vm5224 = vcmp.eq.s32.totalorder %v55, %v5146
  %vm5225 = vcmp.eq.s32.totalorder %v55, %v5149
  %vm5226 = vcmp.eq.s32.totalorder %v55, %v5152
  %vm5227 = vcmp.eq.s32.totalorder %v55, %v5155
  %vm5228 = vcmp.eq.s32.totalorder %v55, %v5158
  %vm5229 = vcmp.eq.s32.totalorder %v55, %v5161
  %vm5230 = vcmp.eq.s32.totalorder %v55, %v5164
  %vm5231 = vcmp.eq.s32.totalorder %v55, %v5167
  %vm5232 = vcmp.eq.s32.totalorder %v55, %v5170
  %vm5233 = vcmp.eq.s32.totalorder %v55, %v5173
  %vm5234 = vcmp.eq.s32.totalorder %v55, %v5176
  %vm5235 = vcmp.eq.s32.totalorder %v55, %v5179
  %vm5236 = vcmp.eq.s32.totalorder %v55, %v5182
  %vm5237 = vcmp.eq.s32.totalorder %v55, %v5185
  %vm5238 = vcmp.eq.s32.totalorder %v55, %v5188
  %vm5239 = vcmp.eq.s32.totalorder %v55, %v5191
  %vm5240 = vcmp.eq.s32.totalorder %v55, %v5194
  %vm5241 = vcmp.eq.s32.totalorder %v55, %v5197
  %vm5242 = vcmp.eq.s32.totalorder %v55, %v5200
  %vm5243 = vcmp.eq.s32.totalorder %v55, %v5203
  %vm5244 = vcmp.eq.s32.totalorder %v55, %v5206
  %vm5245 = vcmp.eq.s32.totalorder %v55, %v5209
  %vm5246 = vcmp.eq.s32.totalorder %v55, %v5212
  %vm5247 = vcmp.eq.s32.totalorder %v55, %v5215
  %vm5248 = vmor %vm5088, %vm5216
  %vm5249 = vmor %vm5089, %vm5217
  %vm5250 = vmor %vm5090, %vm5218
  %vm5251 = vmor %vm5091, %vm5219
  %vm5252 = vmor %vm5092, %vm5220
  %vm5253 = vmor %vm5093, %vm5221
  %vm5254 = vmor %vm5094, %vm5222
  %vm5255 = vmor %vm5095, %vm5223
  %vm5256 = vmor %vm5096, %vm5224
  %vm5257 = vmor %vm5097, %vm5225
  %vm5258 = vmor %vm5098, %vm5226
  %vm5259 = vmor %vm5099, %vm5227
  %vm5260 = vmor %vm5100, %vm5228
  %vm5261 = vmor %vm5101, %vm5229
  %vm5262 = vmor %vm5102, %vm5230
  %vm5263 = vmor %vm5103, %vm5231
  %vm5264 = vmor %vm5104, %vm5232
  %vm5265 = vmor %vm5105, %vm5233
  %vm5266 = vmor %vm5106, %vm5234
  %vm5267 = vmor %vm5107, %vm5235
  %vm5268 = vmor %vm5108, %vm5236
  %vm5269 = vmor %vm5109, %vm5237
  %vm5270 = vmor %vm5110, %vm5238
  %vm5271 = vmor %vm5111, %vm5239
  %vm5272 = vmor %vm5112, %vm5240
  %vm5273 = vmor %vm5113, %vm5241
  %vm5274 = vmor %vm5114, %vm5242
  %vm5275 = vmor %vm5115, %vm5243
  %vm5276 = vmor %vm5116, %vm5244
  %vm5277 = vmor %vm5117, %vm5245
  %vm5278 = vmor %vm5118, %vm5246
  %vm5279 = vmor %vm5119, %vm5247
  %v5280 = vsel %vm5248, 1, 0
  %v5281 = vsel %vm5249, 1, 0
  %v5282 = vsel %vm5250, 1, 0
  %v5283 = vsel %vm5251, 1, 0
  %v5284 = vsel %vm5252, 1, 0
  %v5285 = vsel %vm5253, 1, 0
  %v5286 = vsel %vm5254, 1, 0
  %v5287 = vsel %vm5255, 1, 0
  %v5288 = vsel %vm5256, 1, 0
  %v5289 = vsel %vm5257, 1, 0
  %v5290 = vsel %vm5258, 1, 0
  %v5291 = vsel %vm5259, 1, 0
  %v5292 = vsel %vm5260, 1, 0
  %v5293 = vsel %vm5261, 1, 0
  %v5294 = vsel %vm5262, 1, 0
  %v5295 = vsel %vm5263, 1, 0
  %v5296 = vsel %vm5264, 1, 0
  %v5297 = vsel %vm5265, 1, 0
  %v5298 = vsel %vm5266, 1, 0
  %v5299 = vsel %vm5267, 1, 0
  %v5300 = vsel %vm5268, 1, 0
  %v5301 = vsel %vm5269, 1, 0
  %v5302 = vsel %vm5270, 1, 0
  %v5303 = vsel %vm5271, 1, 0
  %v5304 = vsel %vm5272, 1, 0
  %v5305 = vsel %vm5273, 1, 0
  %v5306 = vsel %vm5274, 1, 0
  %v5307 = vsel %vm5275, 1, 0
  %v5308 = vsel %vm5276, 1, 0
  %v5309 = vsel %vm5277, 1, 0
  %v5310 = vsel %vm5278, 1, 0
  %v5311 = vsel %vm5279, 1, 0
  %v5312 = vcvt.s32.f32 %v5280
  %v5313 = vcvt.s32.f32 %v5281
  %v5314 = vcvt.s32.f32 %v5282
  %v5315 = vcvt.s32.f32 %v5283
  %v5316 = vcvt.s32.f32 %v5284
  %v5317 = vcvt.s32.f32 %v5285
  %v5318 = vcvt.s32.f32 %v5286
  %v5319 = vcvt.s32.f32 %v5287
  %v5320 = vcvt.s32.f32 %v5288
  %v5321 = vcvt.s32.f32 %v5289
  %v5322 = vcvt.s32.f32 %v5290
  %v5323 = vcvt.s32.f32 %v5291
  %v5324 = vcvt.s32.f32 %v5292
  %v5325 = vcvt.s32.f32 %v5293
  %v5326 = vcvt.s32.f32 %v5294
  %v5327 = vcvt.s32.f32 %v5295
  %v5328 = vcvt.s32.f32 %v5296
  %v5329 = vcvt.s32.f32 %v5297
  %v5330 = vcvt.s32.f32 %v5298
  %v5331 = vcvt.s32.f32 %v5299
  %v5332 = vcvt.s32.f32 %v5300
  %v5333 = vcvt.s32.f32 %v5301
  %v5334 = vcvt.s32.f32 %v5302
  %v5335 = vcvt.s32.f32 %v5303
  %v5336 = vcvt.s32.f32 %v5304
  %v5337 = vcvt.s32.f32 %v5305
  %v5338 = vcvt.s32.f32 %v5306
  %v5339 = vcvt.s32.f32 %v5307
  %v5340 = vcvt.s32.f32 %v5308
  %v5341 = vcvt.s32.f32 %v5309
  %v5342 = vcvt.s32.f32 %v5310
  %v5343 = vcvt.s32.f32 %v5311
  %v5345 = vsel %vm440, %v5312, 0
  %v5348 = vsel %vm440, %v5313, 0
  %v5351 = vsel %vm440, %v5314, 0
  %v5354 = vsel %vm440, %v5315, 0
  %v5357 = vsel %vm440, %v5316, 0
  %v5360 = vsel %vm440, %v5317, 0
  %v5363 = vsel %vm440, %v5318, 0
  %v5366 = vsel %vm440, %v5319, 0
  %v5369 = vsel %vm440, %v5320, 0
  %v5372 = vsel %vm440, %v5321, 0
  %v5375 = vsel %vm440, %v5322, 0
  %v5378 = vsel %vm440, %v5323, 0
  %v5381 = vsel %vm440, %v5324, 0
  %v5384 = vsel %vm440, %v5325, 0
  %v5387 = vsel %vm440, %v5326, 0
  %v5390 = vsel %vm440, %v5327, 0
  %v5393 = vsel %vm440, %v5328, 0
  %v5396 = vsel %vm440, %v5329, 0
  %v5399 = vsel %vm440, %v5330, 0
  %v5402 = vsel %vm440, %v5331, 0
  %v5405 = vsel %vm440, %v5332, 0
  %v5408 = vsel %vm440, %v5333, 0
  %v5411 = vsel %vm440, %v5334, 0
  %v5414 = vsel %vm440, %v5335, 0
  %v5417 = vsel %vm440, %v5336, 0
  %v5420 = vsel %vm440, %v5337, 0
  %v5423 = vsel %vm440, %v5338, 0
  %v5426 = vsel %vm440, %v5339, 0
  %v5429 = vsel %vm440, %v5340, 0
  %v5432 = vsel %vm440, %v5341, 0
  %v5435 = vsel %vm440, %v5342, 0
  %v5438 = vsel %vm440, %v5343, 0
  %5440 = vmatprep.subr.mxu0 0.0
  %5441 = vmatpush1.msra.mxu0 %v49
  %5442 = vmatprep.subr.mxu0 0.0
  %5443 = vmatpush1.msra.mxu0 %v50
  %5444 = vmatprep.subr.mxu0 0.0
  %5445 = vmatpush1.msra.mxu0 %v51
  %5446 = vmatprep.subr.mxu0 0.0
  %5447 = vmatpush1.msra.mxu0 %v52
  %5448 = vmatprep.subr.mxu0 0.0
  %5449 = vmatpush1.msra.mxu0 %v53
  %5450 = vmatprep.subr.mxu0 0.0
  %5451 = vmatpush1.msra.mxu0 0.0
  %5452 = vmatprep.subr.mxu0 0.0
  %5453 = vmatpush1.msra.mxu0 0.0
  %5454 = vmatprep.subr.mxu0 0.0
  %5455 = vmatpush1.msra.mxu0 0.0
  %5456 = vmatprep.subr.mxu0 0.0
  %5457 = vmatpush1.msra.mxu0 0.0
  %5458 = vmatprep.subr.mxu0 0.0
  %5459 = vmatpush1.msra.mxu0 0.0
  %5460 = vmatprep.subr.mxu0 0.0
  %5461 = vmatpush1.msra.mxu0 0.0
  %5462 = vmatprep.subr.mxu0 0.0
  %5463 = vmatpush1.msra.mxu0 0.0
  %5464 = vmatprep.subr.mxu0 0.0
  %5465 = vmatpush1.msra.mxu0 0.0
  %5466 = vmatprep.subr.mxu0 0.0
  %5467 = vmatpush1.msra.mxu0 0.0
  %5468 = vmatprep.subr.mxu0 0.0
  %5469 = vmatpush1.msra.mxu0 0.0
  %5470 = vmatprep.subr.mxu0 0.0
  %5471 = vmatpush1.msra.mxu0 0.0
  %5472 = vmatprep.subr.mxu0 0.0
  %5473 = vmatpush1.msra.mxu0 0.0
  %5474 = vmatprep.subr.mxu0 0.0
  %5475 = vmatpush1.msra.mxu0 0.0
  %5476 = vmatprep.subr.mxu0 0.0
  %5477 = vmatpush1.msra.mxu0 0.0
  %5478 = vmatprep.subr.mxu0 0.0
  %5479 = vmatpush1.msra.mxu0 0.0
  %5480 = vmatprep.subr.mxu0 0.0
  %5481 = vmatpush1.msra.mxu0 0.0
  %5482 = vmatprep.subr.mxu0 0.0
  %5483 = vmatpush1.msra.mxu0 0.0
  %5484 = vmatprep.subr.mxu0 0.0
  %5485 = vmatpush1.msra.mxu0 0.0
  %5486 = vmatprep.subr.mxu0 0.0
  %5487 = vmatpush1.msra.mxu0 0.0
  %5488 = vmatprep.subr.mxu0 0.0
  %5489 = vmatpush1.msra.mxu0 0.0
  %5490 = vmatprep.subr.mxu0 0.0
  %5491 = vmatpush1.msra.mxu0 0.0
  %5492 = vmatprep.subr.mxu0 0.0
  %5493 = vmatpush1.msra.mxu0 0.0
  %5494 = vmatprep.subr.mxu0 0.0
  %5495 = vmatpush1.msra.mxu0 0.0
  %5496 = vmatprep.subr.mxu0 0.0
  %5497 = vmatpush1.msra.mxu0 0.0
  %5498 = vmatprep.subr.mxu0 0.0
  %5499 = vmatpush1.msra.mxu0 0.0
  %5500 = vmatprep.subr.mxu0 0.0
  %5501 = vmatpush1.msra.mxu0 0.0
  %5502 = vmatprep.subr.mxu0 0.0
  %5503 = vmatpush1.msra.mxu0 0.0
  %5504 = vmatprep.mubr.f32.mxu0 0.0
  %5505 = vmatmul.mubr.f32.gmra.mrb[0].mxu0 %v5345
  %v5506 = vpop.f32.mrb[0].mxu0
  %v5507 = vadd.f32 0.0, %v5506
  %v5508 = vpop.f32.mrb[0].mxu0
  %5509 = vmatprep.mubr.f32.mxu0 0.0
  %5510 = vmatmul.mubr.f32.gmra.mrb[0].mxu0 %v5348
  %v5511 = vpop.f32.mrb[0].mxu0
  %v5512 = vadd.f32 0.0, %v5511
  %v5513 = vpop.f32.mrb[0].mxu0
  %5514 = vmatprep.mubr.f32.mxu0 0.0
  %5515 = vmatmul.mubr.f32.gmra.mrb[0].mxu0 %v5351
  %v5516 = vpop.f32.mrb[0].mxu0
  %v5517 = vadd.f32 0.0, %v5516
  %v5518 = vpop.f32.mrb[0].mxu0
  %5519 = vmatprep.mubr.f32.mxu0 0.0
  %5520 = vmatmul.mubr.f32.gmra.mrb[0].mxu0 %v5354
  %v5521 = vpop.f32.mrb[0].mxu0
  %v5522 = vadd.f32 0.0, %v5521
  %v5523 = vpop.f32.mrb[0].mxu0
  %5524 = vmatprep.mubr.f32.mxu0 0.0
  %5525 = vmatmul.mubr.f32.gmra.mrb[0].mxu0 %v5357
  %v5526 = vpop.f32.mrb[0].mxu0
  %v5527 = vadd.f32 0.0, %v5526
  %v5528 = vpop.f32.mrb[0].mxu0
  %5529 = vmatprep.mubr.f32.mxu0 0.0
  %5530 = vmatmul.mubr.f32.gmra.mrb[0].mxu0 %v5360
  %v5531 = vpop.f32.mrb[0].mxu0
  %v5532 = vadd.f32 0.0, %v5531
  %v5533 = vpop.f32.mrb[0].mxu0
  %5534 = vmatprep.mubr.f32.mxu0 0.0
  %5535 = vmatmul.mubr.f32.gmra.mrb[0].mxu0 %v5363
  %v5536 = vpop.f32.mrb[0].mxu0
  %v5537 = vadd.f32 0.0, %v5536
  %v5538 = vpop.f32.mrb[0].mxu0
  %5539 = vmatprep.mubr.f32.mxu0 0.0
  %5540 = vmatmul.mubr.f32.gmra.mrb[0].mxu0 %v5366
  %v5541 = vpop.f32.mrb[0].mxu0
  %v5542 = vadd.f32 0.0, %v5541
  %v5543 = vpop.f32.mrb[0].mxu0
  %5544 = vmatprep.mubr.f32.mxu0 0.0
  %5545 = vmatmul.mubr.f32.gmra.mrb[0].mxu0 %v5369
  %v5546 = vpop.f32.mrb[0].mxu0
  %v5547 = vadd.f32 0.0, %v5546
  %v5548 = vpop.f32.mrb[0].mxu0
  %5549 = vmatprep.mubr.f32.mxu0 0.0
  %5550 = vmatmul.mubr.f32.gmra.mrb[0].mxu0 %v5372
  %v5551 = vpop.f32.mrb[0].mxu0
  %v5552 = vadd.f32 0.0, %v5551
  %v5553 = vpop.f32.mrb[0].mxu0
  %5554 = vmatprep.mubr.f32.mxu0 0.0
  %5555 = vmatmul.mubr.f32.gmra.mrb[0].mxu0 %v5375
  %v5556 = vpop.f32.mrb[0].mxu0
  %v5557 = vadd.f32 0.0, %v5556
  %v5558 = vpop.f32.mrb[0].mxu0
  %5559 = vmatprep.mubr.f32.mxu0 0.0
  %5560 = vmatmul.mubr.f32.gmra.mrb[0].mxu0 %v5378
  %v5561 = vpop.f32.mrb[0].mxu0
  %v5562 = vadd.f32 0.0, %v5561
  %v5563 = vpop.f32.mrb[0].mxu0
  %5564 = vmatprep.mubr.f32.mxu0 0.0
  %5565 = vmatmul.mubr.f32.gmra.mrb[0].mxu0 %v5381
  %v5566 = vpop.f32.mrb[0].mxu0
  %v5567 = vadd.f32 0.0, %v5566
  %v5568 = vpop.f32.mrb[0].mxu0
  %5569 = vmatprep.mubr.f32.mxu0 0.0
  %5570 = vmatmul.mubr.f32.gmra.mrb[0].mxu0 %v5384
  %v5571 = vpop.f32.mrb[0].mxu0
  %v5572 = vadd.f32 0.0, %v5571
  %v5573 = vpop.f32.mrb[0].mxu0
  %5574 = vmatprep.mubr.f32.mxu0 0.0
  %5575 = vmatmul.mubr.f32.gmra.mrb[0].mxu0 %v5387
  %v5576 = vpop.f32.mrb[0].mxu0
  %v5577 = vadd.f32 0.0, %v5576
  %v5578 = vpop.f32.mrb[0].mxu0
  %5579 = vmatprep.mubr.f32.mxu0 0.0
  %5580 = vmatmul.mubr.f32.gmra.mrb[0].mxu0 %v5390
  %v5581 = vpop.f32.mrb[0].mxu0
  %v5582 = vadd.f32 0.0, %v5581
  %v5583 = vpop.f32.mrb[0].mxu0
  %5584 = vmatprep.mubr.f32.mxu0 0.0
  %5585 = vmatmul.mubr.f32.gmra.mrb[0].mxu0 %v5393
  %v5586 = vpop.f32.mrb[0].mxu0
  %v5587 = vadd.f32 0.0, %v5586
  %v5588 = vpop.f32.mrb[0].mxu0
  %5589 = vmatprep.mubr.f32.mxu0 0.0
  %5590 = vmatmul.mubr.f32.gmra.mrb[0].mxu0 %v5396
  %v5591 = vpop.f32.mrb[0].mxu0
  %v5592 = vadd.f32 0.0, %v5591
  %v5593 = vpop.f32.mrb[0].mxu0
  %5594 = vmatprep.mubr.f32.mxu0 0.0
  %5595 = vmatmul.mubr.f32.gmra.mrb[0].mxu0 %v5399
  %v5596 = vpop.f32.mrb[0].mxu0
  %v5597 = vadd.f32 0.0, %v5596
  %v5598 = vpop.f32.mrb[0].mxu0
  %5599 = vmatprep.mubr.f32.mxu0 0.0
  %5600 = vmatmul.mubr.f32.gmra.mrb[0].mxu0 %v5402
  %v5601 = vpop.f32.mrb[0].mxu0
  %v5602 = vadd.f32 0.0, %v5601
  %v5603 = vpop.f32.mrb[0].mxu0
  %5604 = vmatprep.mubr.f32.mxu0 0.0
  %5605 = vmatmul.mubr.f32.gmra.mrb[0].mxu0 %v5405
  %v5606 = vpop.f32.mrb[0].mxu0
  %v5607 = vadd.f32 0.0, %v5606
  %v5608 = vpop.f32.mrb[0].mxu0
  %5609 = vmatprep.mubr.f32.mxu0 0.0
  %5610 = vmatmul.mubr.f32.gmra.mrb[0].mxu0 %v5408
  %v5611 = vpop.f32.mrb[0].mxu0
  %v5612 = vadd.f32 0.0, %v5611
  %v5613 = vpop.f32.mrb[0].mxu0
  %5614 = vmatprep.mubr.f32.mxu0 0.0
  %5615 = vmatmul.mubr.f32.gmra.mrb[0].mxu0 %v5411
  %v5616 = vpop.f32.mrb[0].mxu0
  %v5617 = vadd.f32 0.0, %v5616
  %v5618 = vpop.f32.mrb[0].mxu0
  %5619 = vmatprep.mubr.f32.mxu0 0.0
  %5620 = vmatmul.mubr.f32.gmra.mrb[0].mxu0 %v5414
  %v5621 = vpop.f32.mrb[0].mxu0
  %v5622 = vadd.f32 0.0, %v5621
  %v5623 = vpop.f32.mrb[0].mxu0
  %5624 = vmatprep.mubr.f32.mxu0 0.0
  %5625 = vmatmul.mubr.f32.gmra.mrb[0].mxu0 %v5417
  %v5626 = vpop.f32.mrb[0].mxu0
  %v5627 = vadd.f32 0.0, %v5626
  %v5628 = vpop.f32.mrb[0].mxu0
  %5629 = vmatprep.mubr.f32.mxu0 0.0
  %5630 = vmatmul.mubr.f32.gmra.mrb[0].mxu0 %v5420
  %v5631 = vpop.f32.mrb[0].mxu0
  %v5632 = vadd.f32 0.0, %v5631
  %v5633 = vpop.f32.mrb[0].mxu0
  %5634 = vmatprep.mubr.f32.mxu0 0.0
  %5635 = vmatmul.mubr.f32.gmra.mrb[0].mxu0 %v5423
  %v5636 = vpop.f32.mrb[0].mxu0
  %v5637 = vadd.f32 0.0, %v5636
  %v5638 = vpop.f32.mrb[0].mxu0
  %5639 = vmatprep.mubr.f32.mxu0 0.0
  %5640 = vmatmul.mubr.f32.gmra.mrb[0].mxu0 %v5426
  %v5641 = vpop.f32.mrb[0].mxu0
  %v5642 = vadd.f32 0.0, %v5641
  %v5643 = vpop.f32.mrb[0].mxu0
  %5644 = vmatprep.mubr.f32.mxu0 0.0
  %5645 = vmatmul.mubr.f32.gmra.mrb[0].mxu0 %v5429
  %v5646 = vpop.f32.mrb[0].mxu0
  %v5647 = vadd.f32 0.0, %v5646
  %v5648 = vpop.f32.mrb[0].mxu0
  %5649 = vmatprep.mubr.f32.mxu0 0.0
  %5650 = vmatmul.mubr.f32.gmra.mrb[0].mxu0 %v5432
  %v5651 = vpop.f32.mrb[0].mxu0
  %v5652 = vadd.f32 0.0, %v5651
  %v5653 = vpop.f32.mrb[0].mxu0
  %5654 = vmatprep.mubr.f32.mxu0 0.0
  %5655 = vmatmul.mubr.f32.gmra.mrb[0].mxu0 %v5435
  %v5656 = vpop.f32.mrb[0].mxu0
  %v5657 = vadd.f32 0.0, %v5656
  %v5658 = vpop.f32.mrb[0].mxu0
  %5659 = vmatprep.mubr.f32.mxu0 0.0
  %5660 = vmatmul.mubr.f32.gmra.mrb[0].mxu0 %v5438
  %v5661 = vpop.f32.mrb[0].mxu0
  %v5662 = vadd.f32 0.0, %v5661
  %v5663 = vpop.f32.mrb[0].mxu0
  %5664 = vdwg.mxu0
  %v5665 = vmax.f32 %v4960, %v5507
  %v5666 = vmax.f32 %v4961, %v5512
  %v5667 = vmax.f32 %v4962, %v5517
  %v5668 = vmax.f32 %v4963, %v5522
  %v5669 = vmax.f32 %v4964, %v5527
  %v5670 = vmax.f32 %v4965, %v5532
  %v5671 = vmax.f32 %v4966, %v5537
  %v5672 = vmax.f32 %v4967, %v5542
  %v5673 = vmax.f32 %v4968, %v5547
  %v5674 = vmax.f32 %v4969, %v5552
  %v5675 = vmax.f32 %v4970, %v5557
  %v5676 = vmax.f32 %v4971, %v5562
  %v5677 = vmax.f32 %v4972, %v5567
  %v5678 = vmax.f32 %v4973, %v5572
  %v5679 = vmax.f32 %v4974, %v5577
  %v5680 = vmax.f32 %v4975, %v5582
  %v5681 = vmax.f32 %v4976, %v5587
  %v5682 = vmax.f32 %v4977, %v5592
  %v5683 = vmax.f32 %v4978, %v5597
  %v5684 = vmax.f32 %v4979, %v5602
  %v5685 = vmax.f32 %v4980, %v5607
  %v5686 = vmax.f32 %v4981, %v5612
  %v5687 = vmax.f32 %v4982, %v5617
  %v5688 = vmax.f32 %v4983, %v5622
  %v5689 = vmax.f32 %v4984, %v5627
  %v5690 = vmax.f32 %v4985, %v5632
  %v5691 = vmax.f32 %v4986, %v5637
  %v5692 = vmax.f32 %v4987, %v5642
  %v5693 = vmax.f32 %v4988, %v5647
  %v5694 = vmax.f32 %v4989, %v5652
  %v5695 = vmax.f32 %v4990, %v5657
  %v5696 = vmax.f32 %v4991, %v5662
  %5697 = vset.pattern.permute.xlu0 9
  %5698 = vperm.xlu0 %5697, %v17
  %v5699 = vpop.permute.xlu0 %5698
  %5700 = vset.pattern.permute.xlu0 9
  %5701 = vperm.xlu0 %5700, %v18
  %v5702 = vpop.permute.xlu0 %5701
  %5703 = vset.pattern.permute.xlu0 9
  %5704 = vperm.xlu0 %5703, %v19
  %v5705 = vpop.permute.xlu0 %5704
  %5706 = vset.pattern.permute.xlu0 9
  %5707 = vperm.xlu0 %5706, %v20
  %v5708 = vpop.permute.xlu0 %5707
  %5709 = vset.pattern.permute.xlu0 9
  %5710 = vperm.xlu0 %5709, %v21
  %v5711 = vpop.permute.xlu0 %5710
  %5712 = vset.pattern.permute.xlu0 9
  %5713 = vperm.xlu0 %5712, %v22
  %v5714 = vpop.permute.xlu0 %5713
  %5715 = vset.pattern.permute.xlu0 9
  %5716 = vperm.xlu0 %5715, %v23
  %v5717 = vpop.permute.xlu0 %5716
  %5718 = vset.pattern.permute.xlu0 9
  %5719 = vperm.xlu0 %5718, %v24
  %v5720 = vpop.permute.xlu0 %5719
  %5721 = vset.pattern.permute.xlu0 9
  %5722 = vperm.xlu0 %5721, %v25
  %v5723 = vpop.permute.xlu0 %5722
  %5724 = vset.pattern.permute.xlu0 9
  %5725 = vperm.xlu0 %5724, %v26
  %v5726 = vpop.permute.xlu0 %5725
  %5727 = vset.pattern.permute.xlu0 9
  %5728 = vperm.xlu0 %5727, %v27
  %v5729 = vpop.permute.xlu0 %5728
  %5730 = vset.pattern.permute.xlu0 9
  %5731 = vperm.xlu0 %5730, %v28
  %v5732 = vpop.permute.xlu0 %5731
  %5733 = vset.pattern.permute.xlu0 9
  %5734 = vperm.xlu0 %5733, %v29
  %v5735 = vpop.permute.xlu0 %5734
  %5736 = vset.pattern.permute.xlu0 9
  %5737 = vperm.xlu0 %5736, %v30
  %v5738 = vpop.permute.xlu0 %5737
  %5739 = vset.pattern.permute.xlu0 9
  %5740 = vperm.xlu0 %5739, %v31
  %v5741 = vpop.permute.xlu0 %5740
  %5742 = vset.pattern.permute.xlu0 9
  %5743 = vperm.xlu0 %5742, %v32
  %v5744 = vpop.permute.xlu0 %5743
  %5745 = vset.pattern.permute.xlu0 9
  %5746 = vperm.xlu0 %5745, %v33
  %v5747 = vpop.permute.xlu0 %5746
  %5748 = vset.pattern.permute.xlu0 9
  %5749 = vperm.xlu0 %5748, %v34
  %v5750 = vpop.permute.xlu0 %5749
  %5751 = vset.pattern.permute.xlu0 9
  %5752 = vperm.xlu0 %5751, %v35
  %v5753 = vpop.permute.xlu0 %5752
  %5754 = vset.pattern.permute.xlu0 9
  %5755 = vperm.xlu0 %5754, %v36
  %v5756 = vpop.permute.xlu0 %5755
  %5757 = vset.pattern.permute.xlu0 9
  %5758 = vperm.xlu0 %5757, %v37
  %v5759 = vpop.permute.xlu0 %5758
  %5760 = vset.pattern.permute.xlu0 9
  %5761 = vperm.xlu0 %5760, %v38
  %v5762 = vpop.permute.xlu0 %5761
  %5763 = vset.pattern.permute.xlu0 9
  %5764 = vperm.xlu0 %5763, %v39
  %v5765 = vpop.permute.xlu0 %5764
  %5766 = vset.pattern.permute.xlu0 9
  %5767 = vperm.xlu0 %5766, %v40
  %v5768 = vpop.permute.xlu0 %5767
  %5769 = vset.pattern.permute.xlu0 9
  %5770 = vperm.xlu0 %5769, %v41
  %v5771 = vpop.permute.xlu0 %5770
  %5772 = vset.pattern.permute.xlu0 9
  %5773 = vperm.xlu0 %5772, %v42
  %v5774 = vpop.permute.xlu0 %5773
  %5775 = vset.pattern.permute.xlu0 9
  %5776 = vperm.xlu0 %5775, %v43
  %v5777 = vpop.permute.xlu0 %5776
  %5778 = vset.pattern.permute.xlu0 9
  %5779 = vperm.xlu0 %5778, %v44
  %v5780 = vpop.permute.xlu0 %5779
  %5781 = vset.pattern.permute.xlu0 9
  %5782 = vperm.xlu0 %5781, %v45
  %v5783 = vpop.permute.xlu0 %5782
  %5784 = vset.pattern.permute.xlu0 9
  %5785 = vperm.xlu0 %5784, %v46
  %v5786 = vpop.permute.xlu0 %5785
  %5787 = vset.pattern.permute.xlu0 9
  %5788 = vperm.xlu0 %5787, %v47
  %v5789 = vpop.permute.xlu0 %5788
  %5790 = vset.pattern.permute.xlu0 9
  %5791 = vperm.xlu0 %5790, %v48
  %v5792 = vpop.permute.xlu0 %5791
  %vm5793 = vcmp.eq.s32.totalorder %v55, %v5699
  %vm5794 = vcmp.eq.s32.totalorder %v55, %v5702
  %vm5795 = vcmp.eq.s32.totalorder %v55, %v5705
  %vm5796 = vcmp.eq.s32.totalorder %v55, %v5708
  %vm5797 = vcmp.eq.s32.totalorder %v55, %v5711
  %vm5798 = vcmp.eq.s32.totalorder %v55, %v5714
  %vm5799 = vcmp.eq.s32.totalorder %v55, %v5717
  %vm5800 = vcmp.eq.s32.totalorder %v55, %v5720
  %vm5801 = vcmp.eq.s32.totalorder %v55, %v5723
  %vm5802 = vcmp.eq.s32.totalorder %v55, %v5726
  %vm5803 = vcmp.eq.s32.totalorder %v55, %v5729
  %vm5804 = vcmp.eq.s32.totalorder %v55, %v5732
  %vm5805 = vcmp.eq.s32.totalorder %v55, %v5735
  %vm5806 = vcmp.eq.s32.totalorder %v55, %v5738
  %vm5807 = vcmp.eq.s32.totalorder %v55, %v5741
  %vm5808 = vcmp.eq.s32.totalorder %v55, %v5744
  %vm5809 = vcmp.eq.s32.totalorder %v55, %v5747
  %vm5810 = vcmp.eq.s32.totalorder %v55, %v5750
  %vm5811 = vcmp.eq.s32.totalorder %v55, %v5753
  %vm5812 = vcmp.eq.s32.totalorder %v55, %v5756
  %vm5813 = vcmp.eq.s32.totalorder %v55, %v5759
  %vm5814 = vcmp.eq.s32.totalorder %v55, %v5762
  %vm5815 = vcmp.eq.s32.totalorder %v55, %v5765
  %vm5816 = vcmp.eq.s32.totalorder %v55, %v5768
  %vm5817 = vcmp.eq.s32.totalorder %v55, %v5771
  %vm5818 = vcmp.eq.s32.totalorder %v55, %v5774
  %vm5819 = vcmp.eq.s32.totalorder %v55, %v5777
  %vm5820 = vcmp.eq.s32.totalorder %v55, %v5780
  %vm5821 = vcmp.eq.s32.totalorder %v55, %v5783
  %vm5822 = vcmp.eq.s32.totalorder %v55, %v5786
  %vm5823 = vcmp.eq.s32.totalorder %v55, %v5789
  %vm5824 = vcmp.eq.s32.totalorder %v55, %v5792
  %5825 = vset.pattern.permute.xlu0 10
  %5826 = vperm.xlu0 %5825, %v184
  %v5827 = vpop.permute.xlu0 %5826
  %5828 = vset.pattern.permute.xlu0 10
  %5829 = vperm.xlu0 %5828, %v185
  %v5830 = vpop.permute.xlu0 %5829
  %5831 = vset.pattern.permute.xlu0 10
  %5832 = vperm.xlu0 %5831, %v186
  %v5833 = vpop.permute.xlu0 %5832
  %5834 = vset.pattern.permute.xlu0 10
  %5835 = vperm.xlu0 %5834, %v187
  %v5836 = vpop.permute.xlu0 %5835
  %5837 = vset.pattern.permute.xlu0 10
  %5838 = vperm.xlu0 %5837, %v188
  %v5839 = vpop.permute.xlu0 %5838
  %5840 = vset.pattern.permute.xlu0 10
  %5841 = vperm.xlu0 %5840, %v189
  %v5842 = vpop.permute.xlu0 %5841
  %5843 = vset.pattern.permute.xlu0 10
  %5844 = vperm.xlu0 %5843, %v190
  %v5845 = vpop.permute.xlu0 %5844
  %5846 = vset.pattern.permute.xlu0 10
  %5847 = vperm.xlu0 %5846, %v191
  %v5848 = vpop.permute.xlu0 %5847
  %5849 = vset.pattern.permute.xlu0 10
  %5850 = vperm.xlu0 %5849, %v192
  %v5851 = vpop.permute.xlu0 %5850
  %5852 = vset.pattern.permute.xlu0 10
  %5853 = vperm.xlu0 %5852, %v193
  %v5854 = vpop.permute.xlu0 %5853
  %5855 = vset.pattern.permute.xlu0 10
  %5856 = vperm.xlu0 %5855, %v194
  %v5857 = vpop.permute.xlu0 %5856
  %5858 = vset.pattern.permute.xlu0 10
  %5859 = vperm.xlu0 %5858, %v195
  %v5860 = vpop.permute.xlu0 %5859
  %5861 = vset.pattern.permute.xlu0 10
  %5862 = vperm.xlu0 %5861, %v196
  %v5863 = vpop.permute.xlu0 %5862
  %5864 = vset.pattern.permute.xlu0 10
  %5865 = vperm.xlu0 %5864, %v197
  %v5866 = vpop.permute.xlu0 %5865
  %5867 = vset.pattern.permute.xlu0 10
  %5868 = vperm.xlu0 %5867, %v198
  %v5869 = vpop.permute.xlu0 %5868
  %5870 = vset.pattern.permute.xlu0 10
  %5871 = vperm.xlu0 %5870, %v199
  %v5872 = vpop.permute.xlu0 %5871
  %5873 = vset.pattern.permute.xlu0 10
  %5874 = vperm.xlu0 %5873, %v200
  %v5875 = vpop.permute.xlu0 %5874
  %5876 = vset.pattern.permute.xlu0 10
  %5877 = vperm.xlu0 %5876, %v201
  %v5878 = vpop.permute.xlu0 %5877
  %5879 = vset.pattern.permute.xlu0 10
  %5880 = vperm.xlu0 %5879, %v202
  %v5881 = vpop.permute.xlu0 %5880
  %5882 = vset.pattern.permute.xlu0 10
  %5883 = vperm.xlu0 %5882, %v203
  %v5884 = vpop.permute.xlu0 %5883
  %5885 = vset.pattern.permute.xlu0 10
  %5886 = vperm.xlu0 %5885, %v204
  %v5887 = vpop.permute.xlu0 %5886
  %5888 = vset.pattern.permute.xlu0 10
  %5889 = vperm.xlu0 %5888, %v205
  %v5890 = vpop.permute.xlu0 %5889
  %5891 = vset.pattern.permute.xlu0 10
  %5892 = vperm.xlu0 %5891, %v206
  %v5893 = vpop.permute.xlu0 %5892
  %5894 = vset.pattern.permute.xlu0 10
  %5895 = vperm.xlu0 %5894, %v207
  %v5896 = vpop.permute.xlu0 %5895
  %5897 = vset.pattern.permute.xlu0 10
  %5898 = vperm.xlu0 %5897, %v208
  %v5899 = vpop.permute.xlu0 %5898
  %5900 = vset.pattern.permute.xlu0 10
  %5901 = vperm.xlu0 %5900, %v209
  %v5902 = vpop.permute.xlu0 %5901
  %5903 = vset.pattern.permute.xlu0 10
  %5904 = vperm.xlu0 %5903, %v210
  %v5905 = vpop.permute.xlu0 %5904
  %5906 = vset.pattern.permute.xlu0 10
  %5907 = vperm.xlu0 %5906, %v211
  %v5908 = vpop.permute.xlu0 %5907
  %5909 = vset.pattern.permute.xlu0 10
  %5910 = vperm.xlu0 %5909, %v212
  %v5911 = vpop.permute.xlu0 %5910
  %5912 = vset.pattern.permute.xlu0 10
  %5913 = vperm.xlu0 %5912, %v213
  %v5914 = vpop.permute.xlu0 %5913
  %5915 = vset.pattern.permute.xlu0 10
  %5916 = vperm.xlu0 %5915, %v214
  %v5917 = vpop.permute.xlu0 %5916
  %5918 = vset.pattern.permute.xlu0 10
  %5919 = vperm.xlu0 %5918, %v215
  %v5920 = vpop.permute.xlu0 %5919
  %vm5921 = vcmp.eq.s32.totalorder %v55, %v5827
  %vm5922 = vcmp.eq.s32.totalorder %v55, %v5830
  %vm5923 = vcmp.eq.s32.totalorder %v55, %v5833
  %vm5924 = vcmp.eq.s32.totalorder %v55, %v5836
  %vm5925 = vcmp.eq.s32.totalorder %v55, %v5839
  %vm5926 = vcmp.eq.s32.totalorder %v55, %v5842
  %vm5927 = vcmp.eq.s32.totalorder %v55, %v5845
  %vm5928 = vcmp.eq.s32.totalorder %v55, %v5848
  %vm5929 = vcmp.eq.s32.totalorder %v55, %v5851
  %vm5930 = vcmp.eq.s32.totalorder %v55, %v5854
  %vm5931 = vcmp.eq.s32.totalorder %v55, %v5857
  %vm5932 = vcmp.eq.s32.totalorder %v55, %v5860
  %vm5933 = vcmp.eq.s32.totalorder %v55, %v5863
  %vm5934 = vcmp.eq.s32.totalorder %v55, %v5866
  %vm5935 = vcmp.eq.s32.totalorder %v55, %v5869
  %vm5936 = vcmp.eq.s32.totalorder %v55, %v5872
  %vm5937 = vcmp.eq.s32.totalorder %v55, %v5875
  %vm5938 = vcmp.eq.s32.totalorder %v55, %v5878
  %vm5939 = vcmp.eq.s32.totalorder %v55, %v5881
  %vm5940 = vcmp.eq.s32.totalorder %v55, %v5884
  %vm5941 = vcmp.eq.s32.totalorder %v55, %v5887
  %vm5942 = vcmp.eq.s32.totalorder %v55, %v5890
  %vm5943 = vcmp.eq.s32.totalorder %v55, %v5893
  %vm5944 = vcmp.eq.s32.totalorder %v55, %v5896
  %vm5945 = vcmp.eq.s32.totalorder %v55, %v5899
  %vm5946 = vcmp.eq.s32.totalorder %v55, %v5902
  %vm5947 = vcmp.eq.s32.totalorder %v55, %v5905
  %vm5948 = vcmp.eq.s32.totalorder %v55, %v5908
  %vm5949 = vcmp.eq.s32.totalorder %v55, %v5911
  %vm5950 = vcmp.eq.s32.totalorder %v55, %v5914
  %vm5951 = vcmp.eq.s32.totalorder %v55, %v5917
  %vm5952 = vcmp.eq.s32.totalorder %v55, %v5920
  %vm5953 = vmor %vm5793, %vm5921
  %vm5954 = vmor %vm5794, %vm5922
  %vm5955 = vmor %vm5795, %vm5923
  %vm5956 = vmor %vm5796, %vm5924
  %vm5957 = vmor %vm5797, %vm5925
  %vm5958 = vmor %vm5798, %vm5926
  %vm5959 = vmor %vm5799, %vm5927
  %vm5960 = vmor %vm5800, %vm5928
  %vm5961 = vmor %vm5801, %vm5929
  %vm5962 = vmor %vm5802, %vm5930
  %vm5963 = vmor %vm5803, %vm5931
  %vm5964 = vmor %vm5804, %vm5932
  %vm5965 = vmor %vm5805, %vm5933
  %vm5966 = vmor %vm5806, %vm5934
  %vm5967 = vmor %vm5807, %vm5935
  %vm5968 = vmor %vm5808, %vm5936
  %vm5969 = vmor %vm5809, %vm5937
  %vm5970 = vmor %vm5810, %vm5938
  %vm5971 = vmor %vm5811, %vm5939
  %vm5972 = vmor %vm5812, %vm5940
  %vm5973 = vmor %vm5813, %vm5941
  %vm5974 = vmor %vm5814, %vm5942
  %vm5975 = vmor %vm5815, %vm5943
  %vm5976 = vmor %vm5816, %vm5944
  %vm5977 = vmor %vm5817, %vm5945
  %vm5978 = vmor %vm5818, %vm5946
  %vm5979 = vmor %vm5819, %vm5947
  %vm5980 = vmor %vm5820, %vm5948
  %vm5981 = vmor %vm5821, %vm5949
  %vm5982 = vmor %vm5822, %vm5950
  %vm5983 = vmor %vm5823, %vm5951
  %vm5984 = vmor %vm5824, %vm5952
  %v5985 = vsel %vm5953, 1, 0
  %v5986 = vsel %vm5954, 1, 0
  %v5987 = vsel %vm5955, 1, 0
  %v5988 = vsel %vm5956, 1, 0
  %v5989 = vsel %vm5957, 1, 0
  %v5990 = vsel %vm5958, 1, 0
  %v5991 = vsel %vm5959, 1, 0
  %v5992 = vsel %vm5960, 1, 0
  %v5993 = vsel %vm5961, 1, 0
  %v5994 = vsel %vm5962, 1, 0
  %v5995 = vsel %vm5963, 1, 0
  %v5996 = vsel %vm5964, 1, 0
  %v5997 = vsel %vm5965, 1, 0
  %v5998 = vsel %vm5966, 1, 0
  %v5999 = vsel %vm5967, 1, 0
  %v6000 = vsel %vm5968, 1, 0
  %v6001 = vsel %vm5969, 1, 0
  %v6002 = vsel %vm5970, 1, 0
  %v6003 = vsel %vm5971, 1, 0
  %v6004 = vsel %vm5972, 1, 0
  %v6005 = vsel %vm5973, 1, 0
  %v6006 = vsel %vm5974, 1, 0
  %v6007 = vsel %vm5975, 1, 0
  %v6008 = vsel %vm5976, 1, 0
  %v6009 = vsel %vm5977, 1, 0
  %v6010 = vsel %vm5978, 1, 0
  %v6011 = vsel %vm5979, 1, 0
  %v6012 = vsel %vm5980, 1, 0
  %v6013 = vsel %vm5981, 1, 0
  %v6014 = vsel %vm5982, 1, 0
  %v6015 = vsel %vm5983, 1, 0
  %v6016 = vsel %vm5984, 1, 0
  %v6017 = vcvt.s32.f32 %v5985
  %v6018 = vcvt.s32.f32 %v5986
  %v6019 = vcvt.s32.f32 %v5987
  %v6020 = vcvt.s32.f32 %v5988
  %v6021 = vcvt.s32.f32 %v5989
  %v6022 = vcvt.s32.f32 %v5990
  %v6023 = vcvt.s32.f32 %v5991
  %v6024 = vcvt.s32.f32 %v5992
  %v6025 = vcvt.s32.f32 %v5993
  %v6026 = vcvt.s32.f32 %v5994
  %v6027 = vcvt.s32.f32 %v5995
  %v6028 = vcvt.s32.f32 %v5996
  %v6029 = vcvt.s32.f32 %v5997
  %v6030 = vcvt.s32.f32 %v5998
  %v6031 = vcvt.s32.f32 %v5999
  %v6032 = vcvt.s32.f32 %v6000
  %v6033 = vcvt.s32.f32 %v6001
  %v6034 = vcvt.s32.f32 %v6002
  %v6035 = vcvt.s32.f32 %v6003
  %v6036 = vcvt.s32.f32 %v6004
  %v6037 = vcvt.s32.f32 %v6005
  %v6038 = vcvt.s32.f32 %v6006
  %v6039 = vcvt.s32.f32 %v6007
  %v6040 = vcvt.s32.f32 %v6008
  %v6041 = vcvt.s32.f32 %v6009
  %v6042 = vcvt.s32.f32 %v6010
  %v6043 = vcvt.s32.f32 %v6011
  %v6044 = vcvt.s32.f32 %v6012
  %v6045 = vcvt.s32.f32 %v6013
  %v6046 = vcvt.s32.f32 %v6014
  %v6047 = vcvt.s32.f32 %v6015
  %v6048 = vcvt.s32.f32 %v6016
  %v6050 = vsel %vm440, %v6017, 0
  %v6053 = vsel %vm440, %v6018, 0
  %v6056 = vsel %vm440, %v6019, 0
  %v6059 = vsel %vm440, %v6020, 0
  %v6062 = vsel %vm440, %v6021, 0
  %v6065 = vsel %vm440, %v6022, 0
  %v6068 = vsel %vm440, %v6023, 0
  %v6071 = vsel %vm440, %v6024, 0
  %v6074 = vsel %vm440, %v6025, 0
  %v6077 = vsel %vm440, %v6026, 0
  %v6080 = vsel %vm440, %v6027, 0
  %v6083 = vsel %vm440, %v6028, 0
  %v6086 = vsel %vm440, %v6029, 0
  %v6089 = vsel %vm440, %v6030, 0
  %v6092 = vsel %vm440, %v6031, 0
  %v6095 = vsel %vm440, %v6032, 0
  %v6098 = vsel %vm440, %v6033, 0
  %v6101 = vsel %vm440, %v6034, 0
  %v6104 = vsel %vm440, %v6035, 0
  %v6107 = vsel %vm440, %v6036, 0
  %v6110 = vsel %vm440, %v6037, 0
  %v6113 = vsel %vm440, %v6038, 0
  %v6116 = vsel %vm440, %v6039, 0
  %v6119 = vsel %vm440, %v6040, 0
  %v6122 = vsel %vm440, %v6041, 0
  %v6125 = vsel %vm440, %v6042, 0
  %v6128 = vsel %vm440, %v6043, 0
  %v6131 = vsel %vm440, %v6044, 0
  %v6134 = vsel %vm440, %v6045, 0
  %v6137 = vsel %vm440, %v6046, 0
  %v6140 = vsel %vm440, %v6047, 0
  %v6143 = vsel %vm440, %v6048, 0
  %6145 = vmatprep.subr.mxu0 0.0
  %6146 = vmatpush1.msra.mxu0 %v49
  %6147 = vmatprep.subr.mxu0 0.0
  %6148 = vmatpush1.msra.mxu0 %v50
  %6149 = vmatprep.subr.mxu0 0.0
  %6150 = vmatpush1.msra.mxu0 %v51
  %6151 = vmatprep.subr.mxu0 0.0
  %6152 = vmatpush1.msra.mxu0 %v52
  %6153 = vmatprep.subr.mxu0 0.0
  %6154 = vmatpush1.msra.mxu0 %v53
  %6155 = vmatprep.subr.mxu0 0.0
  %6156 = vmatpush1.msra.mxu0 0.0
  %6157 = vmatprep.subr.mxu0 0.0
  %6158 = vmatpush1.msra.mxu0 0.0
  %6159 = vmatprep.subr.mxu0 0.0
  %6160 = vmatpush1.msra.mxu0 0.0
  %6161 = vmatprep.subr.mxu0 0.0
  %6162 = vmatpush1.msra.mxu0 0.0
  %6163 = vmatprep.subr.mxu0 0.0
  %6164 = vmatpush1.msra.mxu0 0.0
  %6165 = vmatprep.subr.mxu0 0.0
  %6166 = vmatpush1.msra.mxu0 0.0
  %6167 = vmatprep.subr.mxu0 0.0
  %6168 = vmatpush1.msra.mxu0 0.0
  %6169 = vmatprep.subr.mxu0 0.0
  %6170 = vmatpush1.msra.mxu0 0.0
  %6171 = vmatprep.subr.mxu0 0.0
  %6172 = vmatpush1.msra.mxu0 0.0
  %6173 = vmatprep.subr.mxu0 0.0
  %6174 = vmatpush1.msra.mxu0 0.0
  %6175 = vmatprep.subr.mxu0 0.0
  %6176 = vmatpush1.msra.mxu0 0.0
  %6177 = vmatprep.subr.mxu0 0.0
  %6178 = vmatpush1.msra.mxu0 0.0
  %6179 = vmatprep.subr.mxu0 0.0
  %6180 = vmatpush1.msra.mxu0 0.0
  %6181 = vmatprep.subr.mxu0 0.0
  %6182 = vmatpush1.msra.mxu0 0.0
  %6183 = vmatprep.subr.mxu0 0.0
  %6184 = vmatpush1.msra.mxu0 0.0
  %6185 = vmatprep.subr.mxu0 0.0
  %6186 = vmatpush1.msra.mxu0 0.0
  %6187 = vmatprep.subr.mxu0 0.0
  %6188 = vmatpush1.msra.mxu0 0.0
  %6189 = vmatprep.subr.mxu0 0.0
  %6190 = vmatpush1.msra.mxu0 0.0
  %6191 = vmatprep.subr.mxu0 0.0
  %6192 = vmatpush1.msra.mxu0 0.0
  %6193 = vmatprep.subr.mxu0 0.0
  %6194 = vmatpush1.msra.mxu0 0.0
  %6195 = vmatprep.subr.mxu0 0.0
  %6196 = vmatpush1.msra.mxu0 0.0
  %6197 = vmatprep.subr.mxu0 0.0
  %6198 = vmatpush1.msra.mxu0 0.0
  %6199 = vmatprep.subr.mxu0 0.0
  %6200 = vmatpush1.msra.mxu0 0.0
  %6201 = vmatprep.subr.mxu0 0.0
  %6202 = vmatpush1.msra.mxu0 0.0
  %6203 = vmatprep.subr.mxu0 0.0
  %6204 = vmatpush1.msra.mxu0 0.0
  %6205 = vmatprep.subr.mxu0 0.0
  %6206 = vmatpush1.msra.mxu0 0.0
  %6207 = vmatprep.subr.mxu0 0.0
  %6208 = vmatpush1.msra.mxu0 0.0
  %6209 = vmatprep.mubr.f32.mxu0 0.0
  %6210 = vmatmul.mubr.f32.gmra.mrb[0].mxu0 %v6050
  %v6211 = vpop.f32.mrb[0].mxu0
  %v6212 = vadd.f32 0.0, %v6211
  %v6213 = vpop.f32.mrb[0].mxu0
  %6214 = vmatprep.mubr.f32.mxu0 0.0
  %6215 = vmatmul.mubr.f32.gmra.mrb[0].mxu0 %v6053
  %v6216 = vpop.f32.mrb[0].mxu0
  %v6217 = vadd.f32 0.0, %v6216
  %v6218 = vpop.f32.mrb[0].mxu0
  %6219 = vmatprep.mubr.f32.mxu0 0.0
  %6220 = vmatmul.mubr.f32.gmra.mrb[0].mxu0 %v6056
  %v6221 = vpop.f32.mrb[0].mxu0
  %v6222 = vadd.f32 0.0, %v6221
  %v6223 = vpop.f32.mrb[0].mxu0
  %6224 = vmatprep.mubr.f32.mxu0 0.0
  %6225 = vmatmul.mubr.f32.gmra.mrb[0].mxu0 %v6059
  %v6226 = vpop.f32.mrb[0].mxu0
  %v6227 = vadd.f32 0.0, %v6226
  %v6228 = vpop.f32.mrb[0].mxu0
  %6229 = vmatprep.mubr.f32.mxu0 0.0
  %6230 = vmatmul.mubr.f32.gmra.mrb[0].mxu0 %v6062
  %v6231 = vpop.f32.mrb[0].mxu0
  %v6232 = vadd.f32 0.0, %v6231
  %v6233 = vpop.f32.mrb[0].mxu0
  %6234 = vmatprep.mubr.f32.mxu0 0.0
  %6235 = vmatmul.mubr.f32.gmra.mrb[0].mxu0 %v6065
  %v6236 = vpop.f32.mrb[0].mxu0
  %v6237 = vadd.f32 0.0, %v6236
  %v6238 = vpop.f32.mrb[0].mxu0
  %6239 = vmatprep.mubr.f32.mxu0 0.0
  %6240 = vmatmul.mubr.f32.gmra.mrb[0].mxu0 %v6068
  %v6241 = vpop.f32.mrb[0].mxu0
  %v6242 = vadd.f32 0.0, %v6241
  %v6243 = vpop.f32.mrb[0].mxu0
  %6244 = vmatprep.mubr.f32.mxu0 0.0
  %6245 = vmatmul.mubr.f32.gmra.mrb[0].mxu0 %v6071
  %v6246 = vpop.f32.mrb[0].mxu0
  %v6247 = vadd.f32 0.0, %v6246
  %v6248 = vpop.f32.mrb[0].mxu0
  %6249 = vmatprep.mubr.f32.mxu0 0.0
  %6250 = vmatmul.mubr.f32.gmra.mrb[0].mxu0 %v6074
  %v6251 = vpop.f32.mrb[0].mxu0
  %v6252 = vadd.f32 0.0, %v6251
  %v6253 = vpop.f32.mrb[0].mxu0
  %6254 = vmatprep.mubr.f32.mxu0 0.0
  %6255 = vmatmul.mubr.f32.gmra.mrb[0].mxu0 %v6077
  %v6256 = vpop.f32.mrb[0].mxu0
  %v6257 = vadd.f32 0.0, %v6256
  %v6258 = vpop.f32.mrb[0].mxu0
  %6259 = vmatprep.mubr.f32.mxu0 0.0
  %6260 = vmatmul.mubr.f32.gmra.mrb[0].mxu0 %v6080
  %v6261 = vpop.f32.mrb[0].mxu0
  %v6262 = vadd.f32 0.0, %v6261
  %v6263 = vpop.f32.mrb[0].mxu0
  %6264 = vmatprep.mubr.f32.mxu0 0.0
  %6265 = vmatmul.mubr.f32.gmra.mrb[0].mxu0 %v6083
  %v6266 = vpop.f32.mrb[0].mxu0
  %v6267 = vadd.f32 0.0, %v6266
  %v6268 = vpop.f32.mrb[0].mxu0
  %6269 = vmatprep.mubr.f32.mxu0 0.0
  %6270 = vmatmul.mubr.f32.gmra.mrb[0].mxu0 %v6086
  %v6271 = vpop.f32.mrb[0].mxu0
  %v6272 = vadd.f32 0.0, %v6271
  %v6273 = vpop.f32.mrb[0].mxu0
  %6274 = vmatprep.mubr.f32.mxu0 0.0
  %6275 = vmatmul.mubr.f32.gmra.mrb[0].mxu0 %v6089
  %v6276 = vpop.f32.mrb[0].mxu0
  %v6277 = vadd.f32 0.0, %v6276
  %v6278 = vpop.f32.mrb[0].mxu0
  %6279 = vmatprep.mubr.f32.mxu0 0.0
  %6280 = vmatmul.mubr.f32.gmra.mrb[0].mxu0 %v6092
  %v6281 = vpop.f32.mrb[0].mxu0
  %v6282 = vadd.f32 0.0, %v6281
  %v6283 = vpop.f32.mrb[0].mxu0
  %6284 = vmatprep.mubr.f32.mxu0 0.0
  %6285 = vmatmul.mubr.f32.gmra.mrb[0].mxu0 %v6095
  %v6286 = vpop.f32.mrb[0].mxu0
  %v6287 = vadd.f32 0.0, %v6286
  %v6288 = vpop.f32.mrb[0].mxu0
  %6289 = vmatprep.mubr.f32.mxu0 0.0
  %6290 = vmatmul.mubr.f32.gmra.mrb[0].mxu0 %v6098
  %v6291 = vpop.f32.mrb[0].mxu0
  %v6292 = vadd.f32 0.0, %v6291
  %v6293 = vpop.f32.mrb[0].mxu0
  %6294 = vmatprep.mubr.f32.mxu0 0.0
  %6295 = vmatmul.mubr.f32.gmra.mrb[0].mxu0 %v6101
  %v6296 = vpop.f32.mrb[0].mxu0
  %v6297 = vadd.f32 0.0, %v6296
  %v6298 = vpop.f32.mrb[0].mxu0
  %6299 = vmatprep.mubr.f32.mxu0 0.0
  %6300 = vmatmul.mubr.f32.gmra.mrb[0].mxu0 %v6104
  %v6301 = vpop.f32.mrb[0].mxu0
  %v6302 = vadd.f32 0.0, %v6301
  %v6303 = vpop.f32.mrb[0].mxu0
  %6304 = vmatprep.mubr.f32.mxu0 0.0
  %6305 = vmatmul.mubr.f32.gmra.mrb[0].mxu0 %v6107
  %v6306 = vpop.f32.mrb[0].mxu0
  %v6307 = vadd.f32 0.0, %v6306
  %v6308 = vpop.f32.mrb[0].mxu0
  %6309 = vmatprep.mubr.f32.mxu0 0.0
  %6310 = vmatmul.mubr.f32.gmra.mrb[0].mxu0 %v6110
  %v6311 = vpop.f32.mrb[0].mxu0
  %v6312 = vadd.f32 0.0, %v6311
  %v6313 = vpop.f32.mrb[0].mxu0
  %6314 = vmatprep.mubr.f32.mxu0 0.0
  %6315 = vmatmul.mubr.f32.gmra.mrb[0].mxu0 %v6113
  %v6316 = vpop.f32.mrb[0].mxu0
  %v6317 = vadd.f32 0.0, %v6316
  %v6318 = vpop.f32.mrb[0].mxu0
  %6319 = vmatprep.mubr.f32.mxu0 0.0
  %6320 = vmatmul.mubr.f32.gmra.mrb[0].mxu0 %v6116
  %v6321 = vpop.f32.mrb[0].mxu0
  %v6322 = vadd.f32 0.0, %v6321
  %v6323 = vpop.f32.mrb[0].mxu0
  %6324 = vmatprep.mubr.f32.mxu0 0.0
  %6325 = vmatmul.mubr.f32.gmra.mrb[0].mxu0 %v6119
  %v6326 = vpop.f32.mrb[0].mxu0
  %v6327 = vadd.f32 0.0, %v6326
  %v6328 = vpop.f32.mrb[0].mxu0
  %6329 = vmatprep.mubr.f32.mxu0 0.0
  %6330 = vmatmul.mubr.f32.gmra.mrb[0].mxu0 %v6122
  %v6331 = vpop.f32.mrb[0].mxu0
  %v6332 = vadd.f32 0.0, %v6331
  %v6333 = vpop.f32.mrb[0].mxu0
  %6334 = vmatprep.mubr.f32.mxu0 0.0
  %6335 = vmatmul.mubr.f32.gmra.mrb[0].mxu0 %v6125
  %v6336 = vpop.f32.mrb[0].mxu0
  %v6337 = vadd.f32 0.0, %v6336
  %v6338 = vpop.f32.mrb[0].mxu0
  %6339 = vmatprep.mubr.f32.mxu0 0.0
  %6340 = vmatmul.mubr.f32.gmra.mrb[0].mxu0 %v6128
  %v6341 = vpop.f32.mrb[0].mxu0
  %v6342 = vadd.f32 0.0, %v6341
  %v6343 = vpop.f32.mrb[0].mxu0
  %6344 = vmatprep.mubr.f32.mxu0 0.0
  %6345 = vmatmul.mubr.f32.gmra.mrb[0].mxu0 %v6131
  %v6346 = vpop.f32.mrb[0].mxu0
  %v6347 = vadd.f32 0.0, %v6346
  %v6348 = vpop.f32.mrb[0].mxu0
  %6349 = vmatprep.mubr.f32.mxu0 0.0
  %6350 = vmatmul.mubr.f32.gmra.mrb[0].mxu0 %v6134
  %v6351 = vpop.f32.mrb[0].mxu0
  %v6352 = vadd.f32 0.0, %v6351
  %v6353 = vpop.f32.mrb[0].mxu0
  %6354 = vmatprep.mubr.f32.mxu0 0.0
  %6355 = vmatmul.mubr.f32.gmra.mrb[0].mxu0 %v6137
  %v6356 = vpop.f32.mrb[0].mxu0
  %v6357 = vadd.f32 0.0, %v6356
  %v6358 = vpop.f32.mrb[0].mxu0
  %6359 = vmatprep.mubr.f32.mxu0 0.0
  %6360 = vmatmul.mubr.f32.gmra.mrb[0].mxu0 %v6140
  %v6361 = vpop.f32.mrb[0].mxu0
  %v6362 = vadd.f32 0.0, %v6361
  %v6363 = vpop.f32.mrb[0].mxu0
  %6364 = vmatprep.mubr.f32.mxu0 0.0
  %6365 = vmatmul.mubr.f32.gmra.mrb[0].mxu0 %v6143
  %v6366 = vpop.f32.mrb[0].mxu0
  %v6367 = vadd.f32 0.0, %v6366
  %v6368 = vpop.f32.mrb[0].mxu0
  %6369 = vdwg.mxu0
  %v6370 = vmax.f32 %v5665, %v6212
  %v6371 = vmax.f32 %v5666, %v6217
  %v6372 = vmax.f32 %v5667, %v6222
  %v6373 = vmax.f32 %v5668, %v6227
  %v6374 = vmax.f32 %v5669, %v6232
  %v6375 = vmax.f32 %v5670, %v6237
  %v6376 = vmax.f32 %v5671, %v6242
  %v6377 = vmax.f32 %v5672, %v6247
  %v6378 = vmax.f32 %v5673, %v6252
  %v6379 = vmax.f32 %v5674, %v6257
  %v6380 = vmax.f32 %v5675, %v6262
  %v6381 = vmax.f32 %v5676, %v6267
  %v6382 = vmax.f32 %v5677, %v6272
  %v6383 = vmax.f32 %v5678, %v6277
  %v6384 = vmax.f32 %v5679, %v6282
  %v6385 = vmax.f32 %v5680, %v6287
  %v6386 = vmax.f32 %v5681, %v6292
  %v6387 = vmax.f32 %v5682, %v6297
  %v6388 = vmax.f32 %v5683, %v6302
  %v6389 = vmax.f32 %v5684, %v6307
  %v6390 = vmax.f32 %v5685, %v6312
  %v6391 = vmax.f32 %v5686, %v6317
  %v6392 = vmax.f32 %v5687, %v6322
  %v6393 = vmax.f32 %v5688, %v6327
  %v6394 = vmax.f32 %v5689, %v6332
  %v6395 = vmax.f32 %v5690, %v6337
  %v6396 = vmax.f32 %v5691, %v6342
  %v6397 = vmax.f32 %v5692, %v6347
  %v6398 = vmax.f32 %v5693, %v6352
  %v6399 = vmax.f32 %v5694, %v6357
  %v6400 = vmax.f32 %v5695, %v6362
  %v6401 = vmax.f32 %v5696, %v6367
  %v6402 = vld [vmem:[%s2] sm:$0xff]
  %v6403 = vld [vmem:[%s2 + $0x8] sm:$0xff]
  %v6404 = vld [vmem:[%s2 + $0x10] sm:$0xff]
  %v6405 = vld [vmem:[%s2 + $0x18] sm:$0xff]
  %v6406 = vld [vmem:[%s2 + $0x20] sm:$0xff]
  %v6407 = vld [vmem:[%s2 + $0x28] sm:$0xff]
  %v6408 = vld [vmem:[%s2 + $0x30] sm:$0xff]
  %v6409 = vld [vmem:[%s2 + $0x38] sm:$0xff]
  %6410 = vset.pattern.permute.xlu0 0
  %6411 = vperm.xlu0 %6410, %v17
  %v6412 = vpop.permute.xlu0 %6411
  %6413 = vset.pattern.permute.xlu0 0
  %6414 = vperm.xlu0 %6413, %v18
  %v6415 = vpop.permute.xlu0 %6414
  %6416 = vset.pattern.permute.xlu0 0
  %6417 = vperm.xlu0 %6416, %v19
  %v6418 = vpop.permute.xlu0 %6417
  %6419 = vset.pattern.permute.xlu0 0
  %6420 = vperm.xlu0 %6419, %v20
  %v6421 = vpop.permute.xlu0 %6420
  %6422 = vset.pattern.permute.xlu0 0
  %6423 = vperm.xlu0 %6422, %v21
  %v6424 = vpop.permute.xlu0 %6423
  %6425 = vset.pattern.permute.xlu0 0
  %6426 = vperm.xlu0 %6425, %v22
  %v6427 = vpop.permute.xlu0 %6426
  %6428 = vset.pattern.permute.xlu0 0
  %6429 = vperm.xlu0 %6428, %v23
  %v6430 = vpop.permute.xlu0 %6429
  %6431 = vset.pattern.permute.xlu0 0
  %6432 = vperm.xlu0 %6431, %v24
  %v6433 = vpop.permute.xlu0 %6432
  %6434 = vset.pattern.permute.xlu0 0
  %6435 = vperm.xlu0 %6434, %v25
  %v6436 = vpop.permute.xlu0 %6435
  %6437 = vset.pattern.permute.xlu0 0
  %6438 = vperm.xlu0 %6437, %v26
  %v6439 = vpop.permute.xlu0 %6438
  %6440 = vset.pattern.permute.xlu0 0
  %6441 = vperm.xlu0 %6440, %v27
  %v6442 = vpop.permute.xlu0 %6441
  %6443 = vset.pattern.permute.xlu0 0
  %6444 = vperm.xlu0 %6443, %v28
  %v6445 = vpop.permute.xlu0 %6444
  %6446 = vset.pattern.permute.xlu0 0
  %6447 = vperm.xlu0 %6446, %v29
  %v6448 = vpop.permute.xlu0 %6447
  %6449 = vset.pattern.permute.xlu0 0
  %6450 = vperm.xlu0 %6449, %v30
  %v6451 = vpop.permute.xlu0 %6450
  %6452 = vset.pattern.permute.xlu0 0
  %6453 = vperm.xlu0 %6452, %v31
  %v6454 = vpop.permute.xlu0 %6453
  %6455 = vset.pattern.permute.xlu0 0
  %6456 = vperm.xlu0 %6455, %v32
  %v6457 = vpop.permute.xlu0 %6456
  %6458 = vset.pattern.permute.xlu0 0
  %6459 = vperm.xlu0 %6458, %v33
  %v6460 = vpop.permute.xlu0 %6459
  %6461 = vset.pattern.permute.xlu0 0
  %6462 = vperm.xlu0 %6461, %v34
  %v6463 = vpop.permute.xlu0 %6462
  %6464 = vset.pattern.permute.xlu0 0
  %6465 = vperm.xlu0 %6464, %v35
  %v6466 = vpop.permute.xlu0 %6465
  %6467 = vset.pattern.permute.xlu0 0
  %6468 = vperm.xlu0 %6467, %v36
  %v6469 = vpop.permute.xlu0 %6468
  %6470 = vset.pattern.permute.xlu0 0
  %6471 = vperm.xlu0 %6470, %v37
  %v6472 = vpop.permute.xlu0 %6471
  %6473 = vset.pattern.permute.xlu0 0
  %6474 = vperm.xlu0 %6473, %v38
  %v6475 = vpop.permute.xlu0 %6474
  %6476 = vset.pattern.permute.xlu0 0
  %6477 = vperm.xlu0 %6476, %v39
  %v6478 = vpop.permute.xlu0 %6477
  %6479 = vset.pattern.permute.xlu0 0
  %6480 = vperm.xlu0 %6479, %v40
  %v6481 = vpop.permute.xlu0 %6480
  %6482 = vset.pattern.permute.xlu0 0
  %6483 = vperm.xlu0 %6482, %v41
  %v6484 = vpop.permute.xlu0 %6483
  %6485 = vset.pattern.permute.xlu0 0
  %6486 = vperm.xlu0 %6485, %v42
  %v6487 = vpop.permute.xlu0 %6486
  %6488 = vset.pattern.permute.xlu0 0
  %6489 = vperm.xlu0 %6488, %v43
  %v6490 = vpop.permute.xlu0 %6489
  %6491 = vset.pattern.permute.xlu0 0
  %6492 = vperm.xlu0 %6491, %v44
  %v6493 = vpop.permute.xlu0 %6492
  %6494 = vset.pattern.permute.xlu0 0
  %6495 = vperm.xlu0 %6494, %v45
  %v6496 = vpop.permute.xlu0 %6495
  %6497 = vset.pattern.permute.xlu0 0
  %6498 = vperm.xlu0 %6497, %v46
  %v6499 = vpop.permute.xlu0 %6498
  %6500 = vset.pattern.permute.xlu0 0
  %6501 = vperm.xlu0 %6500, %v47
  %v6502 = vpop.permute.xlu0 %6501
  %6503 = vset.pattern.permute.xlu0 0
  %6504 = vperm.xlu0 %6503, %v48
  %v6505 = vpop.permute.xlu0 %6504
  %vm6506 = vcmp.eq.s32.totalorder %v55, %v6412
  %vm6507 = vcmp.eq.s32.totalorder %v55, %v6415
  %vm6508 = vcmp.eq.s32.totalorder %v55, %v6418
  %vm6509 = vcmp.eq.s32.totalorder %v55, %v6421
  %vm6510 = vcmp.eq.s32.totalorder %v55, %v6424
  %vm6511 = vcmp.eq.s32.totalorder %v55, %v6427
  %vm6512 = vcmp.eq.s32.totalorder %v55, %v6430
  %vm6513 = vcmp.eq.s32.totalorder %v55, %v6433
  %vm6514 = vcmp.eq.s32.totalorder %v55, %v6436
  %vm6515 = vcmp.eq.s32.totalorder %v55, %v6439
  %vm6516 = vcmp.eq.s32.totalorder %v55, %v6442
  %vm6517 = vcmp.eq.s32.totalorder %v55, %v6445
  %vm6518 = vcmp.eq.s32.totalorder %v55, %v6448
  %vm6519 = vcmp.eq.s32.totalorder %v55, %v6451
  %vm6520 = vcmp.eq.s32.totalorder %v55, %v6454
  %vm6521 = vcmp.eq.s32.totalorder %v55, %v6457
  %vm6522 = vcmp.eq.s32.totalorder %v55, %v6460
  %vm6523 = vcmp.eq.s32.totalorder %v55, %v6463
  %vm6524 = vcmp.eq.s32.totalorder %v55, %v6466
  %vm6525 = vcmp.eq.s32.totalorder %v55, %v6469
  %vm6526 = vcmp.eq.s32.totalorder %v55, %v6472
  %vm6527 = vcmp.eq.s32.totalorder %v55, %v6475
  %vm6528 = vcmp.eq.s32.totalorder %v55, %v6478
  %vm6529 = vcmp.eq.s32.totalorder %v55, %v6481
  %vm6530 = vcmp.eq.s32.totalorder %v55, %v6484
  %vm6531 = vcmp.eq.s32.totalorder %v55, %v6487
  %vm6532 = vcmp.eq.s32.totalorder %v55, %v6490
  %vm6533 = vcmp.eq.s32.totalorder %v55, %v6493
  %vm6534 = vcmp.eq.s32.totalorder %v55, %v6496
  %vm6535 = vcmp.eq.s32.totalorder %v55, %v6499
  %vm6536 = vcmp.eq.s32.totalorder %v55, %v6502
  %vm6537 = vcmp.eq.s32.totalorder %v55, %v6505
  %6538 = vset.pattern.permute.xlu0 1
  %6539 = vperm.xlu0 %6538, %v184
  %v6540 = vpop.permute.xlu0 %6539
  %6541 = vset.pattern.permute.xlu0 1
  %6542 = vperm.xlu0 %6541, %v185
  %v6543 = vpop.permute.xlu0 %6542
  %6544 = vset.pattern.permute.xlu0 1
  %6545 = vperm.xlu0 %6544, %v186
  %v6546 = vpop.permute.xlu0 %6545
  %6547 = vset.pattern.permute.xlu0 1
  %6548 = vperm.xlu0 %6547, %v187
  %v6549 = vpop.permute.xlu0 %6548
  %6550 = vset.pattern.permute.xlu0 1
  %6551 = vperm.xlu0 %6550, %v188
  %v6552 = vpop.permute.xlu0 %6551
  %6553 = vset.pattern.permute.xlu0 1
  %6554 = vperm.xlu0 %6553, %v189
  %v6555 = vpop.permute.xlu0 %6554
  %6556 = vset.pattern.permute.xlu0 1
  %6557 = vperm.xlu0 %6556, %v190
  %v6558 = vpop.permute.xlu0 %6557
  %6559 = vset.pattern.permute.xlu0 1
  %6560 = vperm.xlu0 %6559, %v191
  %v6561 = vpop.permute.xlu0 %6560
  %6562 = vset.pattern.permute.xlu0 1
  %6563 = vperm.xlu0 %6562, %v192
  %v6564 = vpop.permute.xlu0 %6563
  %6565 = vset.pattern.permute.xlu0 1
  %6566 = vperm.xlu0 %6565, %v193
  %v6567 = vpop.permute.xlu0 %6566
  %6568 = vset.pattern.permute.xlu0 1
  %6569 = vperm.xlu0 %6568, %v194
  %v6570 = vpop.permute.xlu0 %6569
  %6571 = vset.pattern.permute.xlu0 1
  %6572 = vperm.xlu0 %6571, %v195
  %v6573 = vpop.permute.xlu0 %6572
  %6574 = vset.pattern.permute.xlu0 1
  %6575 = vperm.xlu0 %6574, %v196
  %v6576 = vpop.permute.xlu0 %6575
  %6577 = vset.pattern.permute.xlu0 1
  %6578 = vperm.xlu0 %6577, %v197
  %v6579 = vpop.permute.xlu0 %6578
  %6580 = vset.pattern.permute.xlu0 1
  %6581 = vperm.xlu0 %6580, %v198
  %v6582 = vpop.permute.xlu0 %6581
  %6583 = vset.pattern.permute.xlu0 1
  %6584 = vperm.xlu0 %6583, %v199
  %v6585 = vpop.permute.xlu0 %6584
  %6586 = vset.pattern.permute.xlu0 1
  %6587 = vperm.xlu0 %6586, %v200
  %v6588 = vpop.permute.xlu0 %6587
  %6589 = vset.pattern.permute.xlu0 1
  %6590 = vperm.xlu0 %6589, %v201
  %v6591 = vpop.permute.xlu0 %6590
  %6592 = vset.pattern.permute.xlu0 1
  %6593 = vperm.xlu0 %6592, %v202
  %v6594 = vpop.permute.xlu0 %6593
  %6595 = vset.pattern.permute.xlu0 1
  %6596 = vperm.xlu0 %6595, %v203
  %v6597 = vpop.permute.xlu0 %6596
  %6598 = vset.pattern.permute.xlu0 1
  %6599 = vperm.xlu0 %6598, %v204
  %v6600 = vpop.permute.xlu0 %6599
  %6601 = vset.pattern.permute.xlu0 1
  %6602 = vperm.xlu0 %6601, %v205
  %v6603 = vpop.permute.xlu0 %6602
  %6604 = vset.pattern.permute.xlu0 1
  %6605 = vperm.xlu0 %6604, %v206
  %v6606 = vpop.permute.xlu0 %6605
  %6607 = vset.pattern.permute.xlu0 1
  %6608 = vperm.xlu0 %6607, %v207
  %v6609 = vpop.permute.xlu0 %6608
  %6610 = vset.pattern.permute.xlu0 1
  %6611 = vperm.xlu0 %6610, %v208
  %v6612 = vpop.permute.xlu0 %6611
  %6613 = vset.pattern.permute.xlu0 1
  %6614 = vperm.xlu0 %6613, %v209
  %v6615 = vpop.permute.xlu0 %6614
  %6616 = vset.pattern.permute.xlu0 1
  %6617 = vperm.xlu0 %6616, %v210
  %v6618 = vpop.permute.xlu0 %6617
  %6619 = vset.pattern.permute.xlu0 1
  %6620 = vperm.xlu0 %6619, %v211
  %v6621 = vpop.permute.xlu0 %6620
  %6622 = vset.pattern.permute.xlu0 1
  %6623 = vperm.xlu0 %6622, %v212
  %v6624 = vpop.permute.xlu0 %6623
  %6625 = vset.pattern.permute.xlu0 1
  %6626 = vperm.xlu0 %6625, %v213
  %v6627 = vpop.permute.xlu0 %6626
  %6628 = vset.pattern.permute.xlu0 1
  %6629 = vperm.xlu0 %6628, %v214
  %v6630 = vpop.permute.xlu0 %6629
  %6631 = vset.pattern.permute.xlu0 1
  %6632 = vperm.xlu0 %6631, %v215
  %v6633 = vpop.permute.xlu0 %6632
  %vm6634 = vcmp.eq.s32.totalorder %v55, %v6540
  %vm6635 = vcmp.eq.s32.totalorder %v55, %v6543
  %vm6636 = vcmp.eq.s32.totalorder %v55, %v6546
  %vm6637 = vcmp.eq.s32.totalorder %v55, %v6549
  %vm6638 = vcmp.eq.s32.totalorder %v55, %v6552
  %vm6639 = vcmp.eq.s32.totalorder %v55, %v6555
  %vm6640 = vcmp.eq.s32.totalorder %v55, %v6558
  %vm6641 = vcmp.eq.s32.totalorder %v55, %v6561
  %vm6642 = vcmp.eq.s32.totalorder %v55, %v6564
  %vm6643 = vcmp.eq.s32.totalorder %v55, %v6567
  %vm6644 = vcmp.eq.s32.totalorder %v55, %v6570
  %vm6645 = vcmp.eq.s32.totalorder %v55, %v6573
  %vm6646 = vcmp.eq.s32.totalorder %v55, %v6576
  %vm6647 = vcmp.eq.s32.totalorder %v55, %v6579
  %vm6648 = vcmp.eq.s32.totalorder %v55, %v6582
  %vm6649 = vcmp.eq.s32.totalorder %v55, %v6585
  %vm6650 = vcmp.eq.s32.totalorder %v55, %v6588
  %vm6651 = vcmp.eq.s32.totalorder %v55, %v6591
  %vm6652 = vcmp.eq.s32.totalorder %v55, %v6594
  %vm6653 = vcmp.eq.s32.totalorder %v55, %v6597
  %vm6654 = vcmp.eq.s32.totalorder %v55, %v6600
  %vm6655 = vcmp.eq.s32.totalorder %v55, %v6603
  %vm6656 = vcmp.eq.s32.totalorder %v55, %v6606
  %vm6657 = vcmp.eq.s32.totalorder %v55, %v6609
  %vm6658 = vcmp.eq.s32.totalorder %v55, %v6612
  %vm6659 = vcmp.eq.s32.totalorder %v55, %v6615
  %vm6660 = vcmp.eq.s32.totalorder %v55, %v6618
  %vm6661 = vcmp.eq.s32.totalorder %v55, %v6621
  %vm6662 = vcmp.eq.s32.totalorder %v55, %v6624
  %vm6663 = vcmp.eq.s32.totalorder %v55, %v6627
  %vm6664 = vcmp.eq.s32.totalorder %v55, %v6630
  %vm6665 = vcmp.eq.s32.totalorder %v55, %v6633
  %vm6666 = vmor %vm6506, %vm6634
  %vm6667 = vmor %vm6507, %vm6635
  %vm6668 = vmor %vm6508, %vm6636
  %vm6669 = vmor %vm6509, %vm6637
  %vm6670 = vmor %vm6510, %vm6638
  %vm6671 = vmor %vm6511, %vm6639
  %vm6672 = vmor %vm6512, %vm6640
  %vm6673 = vmor %vm6513, %vm6641
  %vm6674 = vmor %vm6514, %vm6642
  %vm6675 = vmor %vm6515, %vm6643
  %vm6676 = vmor %vm6516, %vm6644
  %vm6677 = vmor %vm6517, %vm6645
  %vm6678 = vmor %vm6518, %vm6646
  %vm6679 = vmor %vm6519, %vm6647
  %vm6680 = vmor %vm6520, %vm6648
  %vm6681 = vmor %vm6521, %vm6649
  %vm6682 = vmor %vm6522, %vm6650
  %vm6683 = vmor %vm6523, %vm6651
  %vm6684 = vmor %vm6524, %vm6652
  %vm6685 = vmor %vm6525, %vm6653
  %vm6686 = vmor %vm6526, %vm6654
  %vm6687 = vmor %vm6527, %vm6655
  %vm6688 = vmor %vm6528, %vm6656
  %vm6689 = vmor %vm6529, %vm6657
  %vm6690 = vmor %vm6530, %vm6658
  %vm6691 = vmor %vm6531, %vm6659
  %vm6692 = vmor %vm6532, %vm6660
  %vm6693 = vmor %vm6533, %vm6661
  %vm6694 = vmor %vm6534, %vm6662
  %vm6695 = vmor %vm6535, %vm6663
  %vm6696 = vmor %vm6536, %vm6664
  %vm6697 = vmor %vm6537, %vm6665
  %v6698 = vadd.s32 %v17, 40
  %v6699 = vadd.s32 %v18, 40
  %v6700 = vadd.s32 %v19, 40
  %v6701 = vadd.s32 %v20, 40
  %v6702 = vadd.s32 %v21, 40
  %v6703 = vadd.s32 %v22, 40
  %v6704 = vadd.s32 %v23, 40
  %v6705 = vadd.s32 %v24, 40
  %v6706 = vadd.s32 %v25, 40
  %v6707 = vadd.s32 %v26, 40
  %v6708 = vadd.s32 %v27, 40
  %v6709 = vadd.s32 %v28, 40
  %v6710 = vadd.s32 %v29, 40
  %v6711 = vadd.s32 %v30, 40
  %v6712 = vadd.s32 %v31, 40
  %v6713 = vadd.s32 %v32, 40
  %v6714 = vadd.s32 %v33, 40
  %v6715 = vadd.s32 %v34, 40
  %v6716 = vadd.s32 %v35, 40
  %v6717 = vadd.s32 %v36, 40
  %v6718 = vadd.s32 %v37, 40
  %v6719 = vadd.s32 %v38, 40
  %v6720 = vadd.s32 %v39, 40
  %v6721 = vadd.s32 %v40, 40
  %v6722 = vadd.s32 %v41, 40
  %v6723 = vadd.s32 %v42, 40
  %v6724 = vadd.s32 %v43, 40
  %v6725 = vadd.s32 %v44, 40
  %v6726 = vadd.s32 %v45, 40
  %v6727 = vadd.s32 %v46, 40
  %v6728 = vadd.s32 %v47, 40
  %v6729 = vadd.s32 %v48, 40
  %6730 = vset.pattern.permute.xlu0 2
  %6731 = vperm.xlu0 %6730, %v6698
  %v6732 = vpop.permute.xlu0 %6731
  %6733 = vset.pattern.permute.xlu0 2
  %6734 = vperm.xlu0 %6733, %v6699
  %v6735 = vpop.permute.xlu0 %6734
  %6736 = vset.pattern.permute.xlu0 2
  %6737 = vperm.xlu0 %6736, %v6700
  %v6738 = vpop.permute.xlu0 %6737
  %6739 = vset.pattern.permute.xlu0 2
  %6740 = vperm.xlu0 %6739, %v6701
  %v6741 = vpop.permute.xlu0 %6740
  %6742 = vset.pattern.permute.xlu0 2
  %6743 = vperm.xlu0 %6742, %v6702
  %v6744 = vpop.permute.xlu0 %6743
  %6745 = vset.pattern.permute.xlu0 2
  %6746 = vperm.xlu0 %6745, %v6703
  %v6747 = vpop.permute.xlu0 %6746
  %6748 = vset.pattern.permute.xlu0 2
  %6749 = vperm.xlu0 %6748, %v6704
  %v6750 = vpop.permute.xlu0 %6749
  %6751 = vset.pattern.permute.xlu0 2
  %6752 = vperm.xlu0 %6751, %v6705
  %v6753 = vpop.permute.xlu0 %6752
  %6754 = vset.pattern.permute.xlu0 2
  %6755 = vperm.xlu0 %6754, %v6706
  %v6756 = vpop.permute.xlu0 %6755
  %6757 = vset.pattern.permute.xlu0 2
  %6758 = vperm.xlu0 %6757, %v6707
  %v6759 = vpop.permute.xlu0 %6758
  %6760 = vset.pattern.permute.xlu0 2
  %6761 = vperm.xlu0 %6760, %v6708
  %v6762 = vpop.permute.xlu0 %6761
  %6763 = vset.pattern.permute.xlu0 2
  %6764 = vperm.xlu0 %6763, %v6709
  %v6765 = vpop.permute.xlu0 %6764
  %6766 = vset.pattern.permute.xlu0 2
  %6767 = vperm.xlu0 %6766, %v6710
  %v6768 = vpop.permute.xlu0 %6767
  %6769 = vset.pattern.permute.xlu0 2
  %6770 = vperm.xlu0 %6769, %v6711
  %v6771 = vpop.permute.xlu0 %6770
  %6772 = vset.pattern.permute.xlu0 2
  %6773 = vperm.xlu0 %6772, %v6712
  %v6774 = vpop.permute.xlu0 %6773
  %6775 = vset.pattern.permute.xlu0 2
  %6776 = vperm.xlu0 %6775, %v6713
  %v6777 = vpop.permute.xlu0 %6776
  %6778 = vset.pattern.permute.xlu0 2
  %6779 = vperm.xlu0 %6778, %v6714
  %v6780 = vpop.permute.xlu0 %6779
  %6781 = vset.pattern.permute.xlu0 2
  %6782 = vperm.xlu0 %6781, %v6715
  %v6783 = vpop.permute.xlu0 %6782
  %6784 = vset.pattern.permute.xlu0 2
  %6785 = vperm.xlu0 %6784, %v6716
  %v6786 = vpop.permute.xlu0 %6785
  %6787 = vset.pattern.permute.xlu0 2
  %6788 = vperm.xlu0 %6787, %v6717
  %v6789 = vpop.permute.xlu0 %6788
  %6790 = vset.pattern.permute.xlu0 2
  %6791 = vperm.xlu0 %6790, %v6718
  %v6792 = vpop.permute.xlu0 %6791
  %6793 = vset.pattern.permute.xlu0 2
  %6794 = vperm.xlu0 %6793, %v6719
  %v6795 = vpop.permute.xlu0 %6794
  %6796 = vset.pattern.permute.xlu0 2
  %6797 = vperm.xlu0 %6796, %v6720
  %v6798 = vpop.permute.xlu0 %6797
  %6799 = vset.pattern.permute.xlu0 2
  %6800 = vperm.xlu0 %6799, %v6721
  %v6801 = vpop.permute.xlu0 %6800
  %6802 = vset.pattern.permute.xlu0 2
  %6803 = vperm.xlu0 %6802, %v6722
  %v6804 = vpop.permute.xlu0 %6803
  %6805 = vset.pattern.permute.xlu0 2
  %6806 = vperm.xlu0 %6805, %v6723
  %v6807 = vpop.permute.xlu0 %6806
  %6808 = vset.pattern.permute.xlu0 2
  %6809 = vperm.xlu0 %6808, %v6724
  %v6810 = vpop.permute.xlu0 %6809
  %6811 = vset.pattern.permute.xlu0 2
  %6812 = vperm.xlu0 %6811, %v6725
  %v6813 = vpop.permute.xlu0 %6812
  %6814 = vset.pattern.permute.xlu0 2
  %6815 = vperm.xlu0 %6814, %v6726
  %v6816 = vpop.permute.xlu0 %6815
  %6817 = vset.pattern.permute.xlu0 2
  %6818 = vperm.xlu0 %6817, %v6727
  %v6819 = vpop.permute.xlu0 %6818
  %6820 = vset.pattern.permute.xlu0 2
  %6821 = vperm.xlu0 %6820, %v6728
  %v6822 = vpop.permute.xlu0 %6821
  %6823 = vset.pattern.permute.xlu0 2
  %6824 = vperm.xlu0 %6823, %v6729
  %v6825 = vpop.permute.xlu0 %6824
  %vm6826 = vcmp.eq.s32.totalorder %v55, %v6732
  %vm6827 = vcmp.eq.s32.totalorder %v55, %v6735
  %vm6828 = vcmp.eq.s32.totalorder %v55, %v6738
  %vm6829 = vcmp.eq.s32.totalorder %v55, %v6741
  %vm6830 = vcmp.eq.s32.totalorder %v55, %v6744
  %vm6831 = vcmp.eq.s32.totalorder %v55, %v6747
  %vm6832 = vcmp.eq.s32.totalorder %v55, %v6750
  %vm6833 = vcmp.eq.s32.totalorder %v55, %v6753
  %vm6834 = vcmp.eq.s32.totalorder %v55, %v6756
  %vm6835 = vcmp.eq.s32.totalorder %v55, %v6759
  %vm6836 = vcmp.eq.s32.totalorder %v55, %v6762
  %vm6837 = vcmp.eq.s32.totalorder %v55, %v6765
  %vm6838 = vcmp.eq.s32.totalorder %v55, %v6768
  %vm6839 = vcmp.eq.s32.totalorder %v55, %v6771
  %vm6840 = vcmp.eq.s32.totalorder %v55, %v6774
  %vm6841 = vcmp.eq.s32.totalorder %v55, %v6777
  %vm6842 = vcmp.eq.s32.totalorder %v55, %v6780
  %vm6843 = vcmp.eq.s32.totalorder %v55, %v6783
  %vm6844 = vcmp.eq.s32.totalorder %v55, %v6786
  %vm6845 = vcmp.eq.s32.totalorder %v55, %v6789
  %vm6846 = vcmp.eq.s32.totalorder %v55, %v6792
  %vm6847 = vcmp.eq.s32.totalorder %v55, %v6795
  %vm6848 = vcmp.eq.s32.totalorder %v55, %v6798
  %vm6849 = vcmp.eq.s32.totalorder %v55, %v6801
  %vm6850 = vcmp.eq.s32.totalorder %v55, %v6804
  %vm6851 = vcmp.eq.s32.totalorder %v55, %v6807
  %vm6852 = vcmp.eq.s32.totalorder %v55, %v6810
  %vm6853 = vcmp.eq.s32.totalorder %v55, %v6813
  %vm6854 = vcmp.eq.s32.totalorder %v55, %v6816
  %vm6855 = vcmp.eq.s32.totalorder %v55, %v6819
  %vm6856 = vcmp.eq.s32.totalorder %v55, %v6822
  %vm6857 = vcmp.eq.s32.totalorder %v55, %v6825
  %vm6858 = vmor %vm6666, %vm6826
  %vm6859 = vmor %vm6667, %vm6827
  %vm6860 = vmor %vm6668, %vm6828
  %vm6861 = vmor %vm6669, %vm6829
  %vm6862 = vmor %vm6670, %vm6830
  %vm6863 = vmor %vm6671, %vm6831
  %vm6864 = vmor %vm6672, %vm6832
  %vm6865 = vmor %vm6673, %vm6833
  %vm6866 = vmor %vm6674, %vm6834
  %vm6867 = vmor %vm6675, %vm6835
  %vm6868 = vmor %vm6676, %vm6836
  %vm6869 = vmor %vm6677, %vm6837
  %vm6870 = vmor %vm6678, %vm6838
  %vm6871 = vmor %vm6679, %vm6839
  %vm6872 = vmor %vm6680, %vm6840
  %vm6873 = vmor %vm6681, %vm6841
  %vm6874 = vmor %vm6682, %vm6842
  %vm6875 = vmor %vm6683, %vm6843
  %vm6876 = vmor %vm6684, %vm6844
  %vm6877 = vmor %vm6685, %vm6845
  %vm6878 = vmor %vm6686, %vm6846
  %vm6879 = vmor %vm6687, %vm6847
  %vm6880 = vmor %vm6688, %vm6848
  %vm6881 = vmor %vm6689, %vm6849
  %vm6882 = vmor %vm6690, %vm6850
  %vm6883 = vmor %vm6691, %vm6851
  %vm6884 = vmor %vm6692, %vm6852
  %vm6885 = vmor %vm6693, %vm6853
  %vm6886 = vmor %vm6694, %vm6854
  %vm6887 = vmor %vm6695, %vm6855
  %vm6888 = vmor %vm6696, %vm6856
  %vm6889 = vmor %vm6697, %vm6857
  %v6890 = vsel %vm6858, 1, 0
  %v6891 = vsel %vm6859, 1, 0
  %v6892 = vsel %vm6860, 1, 0
  %v6893 = vsel %vm6861, 1, 0
  %v6894 = vsel %vm6862, 1, 0
  %v6895 = vsel %vm6863, 1, 0
  %v6896 = vsel %vm6864, 1, 0
  %v6897 = vsel %vm6865, 1, 0
  %v6898 = vsel %vm6866, 1, 0
  %v6899 = vsel %vm6867, 1, 0
  %v6900 = vsel %vm6868, 1, 0
  %v6901 = vsel %vm6869, 1, 0
  %v6902 = vsel %vm6870, 1, 0
  %v6903 = vsel %vm6871, 1, 0
  %v6904 = vsel %vm6872, 1, 0
  %v6905 = vsel %vm6873, 1, 0
  %v6906 = vsel %vm6874, 1, 0
  %v6907 = vsel %vm6875, 1, 0
  %v6908 = vsel %vm6876, 1, 0
  %v6909 = vsel %vm6877, 1, 0
  %v6910 = vsel %vm6878, 1, 0
  %v6911 = vsel %vm6879, 1, 0
  %v6912 = vsel %vm6880, 1, 0
  %v6913 = vsel %vm6881, 1, 0
  %v6914 = vsel %vm6882, 1, 0
  %v6915 = vsel %vm6883, 1, 0
  %v6916 = vsel %vm6884, 1, 0
  %v6917 = vsel %vm6885, 1, 0
  %v6918 = vsel %vm6886, 1, 0
  %v6919 = vsel %vm6887, 1, 0
  %v6920 = vsel %vm6888, 1, 0
  %v6921 = vsel %vm6889, 1, 0
  %v6922 = vcvt.s32.f32 %v6890
  %v6923 = vcvt.s32.f32 %v6891
  %v6924 = vcvt.s32.f32 %v6892
  %v6925 = vcvt.s32.f32 %v6893
  %v6926 = vcvt.s32.f32 %v6894
  %v6927 = vcvt.s32.f32 %v6895
  %v6928 = vcvt.s32.f32 %v6896
  %v6929 = vcvt.s32.f32 %v6897
  %v6930 = vcvt.s32.f32 %v6898
  %v6931 = vcvt.s32.f32 %v6899
  %v6932 = vcvt.s32.f32 %v6900
  %v6933 = vcvt.s32.f32 %v6901
  %v6934 = vcvt.s32.f32 %v6902
  %v6935 = vcvt.s32.f32 %v6903
  %v6936 = vcvt.s32.f32 %v6904
  %v6937 = vcvt.s32.f32 %v6905
  %v6938 = vcvt.s32.f32 %v6906
  %v6939 = vcvt.s32.f32 %v6907
  %v6940 = vcvt.s32.f32 %v6908
  %v6941 = vcvt.s32.f32 %v6909
  %v6942 = vcvt.s32.f32 %v6910
  %v6943 = vcvt.s32.f32 %v6911
  %v6944 = vcvt.s32.f32 %v6912
  %v6945 = vcvt.s32.f32 %v6913
  %v6946 = vcvt.s32.f32 %v6914
  %v6947 = vcvt.s32.f32 %v6915
  %v6948 = vcvt.s32.f32 %v6916
  %v6949 = vcvt.s32.f32 %v6917
  %v6950 = vcvt.s32.f32 %v6918
  %v6951 = vcvt.s32.f32 %v6919
  %v6952 = vcvt.s32.f32 %v6920
  %v6953 = vcvt.s32.f32 %v6921
  %vm6954 = vcmask 523264
  %v6956 = vsel %vm6954, %v6922, 0
  %v6959 = vsel %vm6954, %v6923, 0
  %v6962 = vsel %vm6954, %v6924, 0
  %v6965 = vsel %vm6954, %v6925, 0
  %v6968 = vsel %vm6954, %v6926, 0
  %v6971 = vsel %vm6954, %v6927, 0
  %v6974 = vsel %vm6954, %v6928, 0
  %v6977 = vsel %vm6954, %v6929, 0
  %v6980 = vsel %vm6954, %v6930, 0
  %v6983 = vsel %vm6954, %v6931, 0
  %v6986 = vsel %vm6954, %v6932, 0
  %v6989 = vsel %vm6954, %v6933, 0
  %v6992 = vsel %vm6954, %v6934, 0
  %v6995 = vsel %vm6954, %v6935, 0
  %v6998 = vsel %vm6954, %v6936, 0
  %v7001 = vsel %vm6954, %v6937, 0
  %v7004 = vsel %vm6954, %v6938, 0
  %v7007 = vsel %vm6954, %v6939, 0
  %v7010 = vsel %vm6954, %v6940, 0
  %v7013 = vsel %vm6954, %v6941, 0
  %v7016 = vsel %vm6954, %v6942, 0
  %v7019 = vsel %vm6954, %v6943, 0
  %v7022 = vsel %vm6954, %v6944, 0
  %v7025 = vsel %vm6954, %v6945, 0
  %v7028 = vsel %vm6954, %v6946, 0
  %v7031 = vsel %vm6954, %v6947, 0
  %v7034 = vsel %vm6954, %v6948, 0
  %v7037 = vsel %vm6954, %v6949, 0
  %v7040 = vsel %vm6954, %v6950, 0
  %v7043 = vsel %vm6954, %v6951, 0
  %v7046 = vsel %vm6954, %v6952, 0
  %v7049 = vsel %vm6954, %v6953, 0
  %7051 = vmatprep.subr.mxu0 0.0
  %7052 = vmatpush1.msra.mxu0 %v6402
  %7053 = vmatprep.subr.mxu0 0.0
  %7054 = vmatpush1.msra.mxu0 %v6403
  %7055 = vmatprep.subr.mxu0 0.0
  %7056 = vmatpush1.msra.mxu0 %v6404
  %7057 = vmatprep.subr.mxu0 0.0
  %7058 = vmatpush1.msra.mxu0 %v6405
  %7059 = vmatprep.subr.mxu0 0.0
  %7060 = vmatpush1.msra.mxu0 %v6406
  %7061 = vmatprep.subr.mxu0 0.0
  %7062 = vmatpush1.msra.mxu0 %v6407
  %7063 = vmatprep.subr.mxu0 0.0
  %7064 = vmatpush1.msra.mxu0 %v6408
  %7065 = vmatprep.subr.mxu0 0.0
  %7066 = vmatpush1.msra.mxu0 %v6409
  %7067 = vmatprep.subr.mxu0 0.0
  %7068 = vmatpush1.msra.mxu0 0.0
  %7069 = vmatprep.subr.mxu0 0.0
  %7070 = vmatpush1.msra.mxu0 0.0
  %7071 = vmatprep.subr.mxu0 0.0
  %7072 = vmatpush1.msra.mxu0 0.0
  %7073 = vmatprep.subr.mxu0 0.0
  %7074 = vmatpush1.msra.mxu0 0.0
  %7075 = vmatprep.subr.mxu0 0.0
  %7076 = vmatpush1.msra.mxu0 0.0
  %7077 = vmatprep.subr.mxu0 0.0
  %7078 = vmatpush1.msra.mxu0 0.0
  %7079 = vmatprep.subr.mxu0 0.0
  %7080 = vmatpush1.msra.mxu0 0.0
  %7081 = vmatprep.subr.mxu0 0.0
  %7082 = vmatpush1.msra.mxu0 0.0
  %7083 = vmatprep.subr.mxu0 0.0
  %7084 = vmatpush1.msra.mxu0 0.0
  %7085 = vmatprep.subr.mxu0 0.0
  %7086 = vmatpush1.msra.mxu0 0.0
  %7087 = vmatprep.subr.mxu0 0.0
  %7088 = vmatpush1.msra.mxu0 0.0
  %7089 = vmatprep.subr.mxu0 0.0
  %7090 = vmatpush1.msra.mxu0 0.0
  %7091 = vmatprep.subr.mxu0 0.0
  %7092 = vmatpush1.msra.mxu0 0.0
  %7093 = vmatprep.subr.mxu0 0.0
  %7094 = vmatpush1.msra.mxu0 0.0
  %7095 = vmatprep.subr.mxu0 0.0
  %7096 = vmatpush1.msra.mxu0 0.0
  %7097 = vmatprep.subr.mxu0 0.0
  %7098 = vmatpush1.msra.mxu0 0.0
  %7099 = vmatprep.subr.mxu0 0.0
  %7100 = vmatpush1.msra.mxu0 0.0
  %7101 = vmatprep.subr.mxu0 0.0
  %7102 = vmatpush1.msra.mxu0 0.0
  %7103 = vmatprep.subr.mxu0 0.0
  %7104 = vmatpush1.msra.mxu0 0.0
  %7105 = vmatprep.subr.mxu0 0.0
  %7106 = vmatpush1.msra.mxu0 0.0
  %7107 = vmatprep.subr.mxu0 0.0
  %7108 = vmatpush1.msra.mxu0 0.0
  %7109 = vmatprep.subr.mxu0 0.0
  %7110 = vmatpush1.msra.mxu0 0.0
  %7111 = vmatprep.subr.mxu0 0.0
  %7112 = vmatpush1.msra.mxu0 0.0
  %7113 = vmatprep.subr.mxu0 0.0
  %7114 = vmatpush1.msra.mxu0 0.0
  %7115 = vmatprep.mubr.f32.mxu0 0.0
  %7116 = vmatmul.mubr.f32.gmra.mrb[0].mxu0 %v6956
  %v7117 = vpop.f32.mrb[0].mxu0
  %v7118 = vadd.f32 0.0, %v7117
  %v7119 = vpop.f32.mrb[0].mxu0
  %7120 = vmatprep.mubr.f32.mxu0 0.0
  %7121 = vmatmul.mubr.f32.gmra.mrb[0].mxu0 %v6959
  %v7122 = vpop.f32.mrb[0].mxu0
  %v7123 = vadd.f32 0.0, %v7122
  %v7124 = vpop.f32.mrb[0].mxu0
  %7125 = vmatprep.mubr.f32.mxu0 0.0
  %7126 = vmatmul.mubr.f32.gmra.mrb[0].mxu0 %v6962
  %v7127 = vpop.f32.mrb[0].mxu0
  %v7128 = vadd.f32 0.0, %v7127
  %v7129 = vpop.f32.mrb[0].mxu0
  %7130 = vmatprep.mubr.f32.mxu0 0.0
  %7131 = vmatmul.mubr.f32.gmra.mrb[0].mxu0 %v6965
  %v7132 = vpop.f32.mrb[0].mxu0
  %v7133 = vadd.f32 0.0, %v7132
  %v7134 = vpop.f32.mrb[0].mxu0
  %7135 = vmatprep.mubr.f32.mxu0 0.0
  %7136 = vmatmul.mubr.f32.gmra.mrb[0].mxu0 %v6968
  %v7137 = vpop.f32.mrb[0].mxu0
  %v7138 = vadd.f32 0.0, %v7137
  %v7139 = vpop.f32.mrb[0].mxu0
  %7140 = vmatprep.mubr.f32.mxu0 0.0
  %7141 = vmatmul.mubr.f32.gmra.mrb[0].mxu0 %v6971
  %v7142 = vpop.f32.mrb[0].mxu0
  %v7143 = vadd.f32 0.0, %v7142
  %v7144 = vpop.f32.mrb[0].mxu0
  %7145 = vmatprep.mubr.f32.mxu0 0.0
  %7146 = vmatmul.mubr.f32.gmra.mrb[0].mxu0 %v6974
  %v7147 = vpop.f32.mrb[0].mxu0
  %v7148 = vadd.f32 0.0, %v7147
  %v7149 = vpop.f32.mrb[0].mxu0
  %7150 = vmatprep.mubr.f32.mxu0 0.0
  %7151 = vmatmul.mubr.f32.gmra.mrb[0].mxu0 %v6977
  %v7152 = vpop.f32.mrb[0].mxu0
  %v7153 = vadd.f32 0.0, %v7152
  %v7154 = vpop.f32.mrb[0].mxu0
  %7155 = vmatprep.mubr.f32.mxu0 0.0
  %7156 = vmatmul.mubr.f32.gmra.mrb[0].mxu0 %v6980
  %v7157 = vpop.f32.mrb[0].mxu0
  %v7158 = vadd.f32 0.0, %v7157
  %v7159 = vpop.f32.mrb[0].mxu0
  %7160 = vmatprep.mubr.f32.mxu0 0.0
  %7161 = vmatmul.mubr.f32.gmra.mrb[0].mxu0 %v6983
  %v7162 = vpop.f32.mrb[0].mxu0
  %v7163 = vadd.f32 0.0, %v7162
  %v7164 = vpop.f32.mrb[0].mxu0
  %7165 = vmatprep.mubr.f32.mxu0 0.0
  %7166 = vmatmul.mubr.f32.gmra.mrb[0].mxu0 %v6986
  %v7167 = vpop.f32.mrb[0].mxu0
  %v7168 = vadd.f32 0.0, %v7167
  %v7169 = vpop.f32.mrb[0].mxu0
  %7170 = vmatprep.mubr.f32.mxu0 0.0
  %7171 = vmatmul.mubr.f32.gmra.mrb[0].mxu0 %v6989
  %v7172 = vpop.f32.mrb[0].mxu0
  %v7173 = vadd.f32 0.0, %v7172
  %v7174 = vpop.f32.mrb[0].mxu0
  %7175 = vmatprep.mubr.f32.mxu0 0.0
  %7176 = vmatmul.mubr.f32.gmra.mrb[0].mxu0 %v6992
  %v7177 = vpop.f32.mrb[0].mxu0
  %v7178 = vadd.f32 0.0, %v7177
  %v7179 = vpop.f32.mrb[0].mxu0
  %7180 = vmatprep.mubr.f32.mxu0 0.0
  %7181 = vmatmul.mubr.f32.gmra.mrb[0].mxu0 %v6995
  %v7182 = vpop.f32.mrb[0].mxu0
  %v7183 = vadd.f32 0.0, %v7182
  %v7184 = vpop.f32.mrb[0].mxu0
  %7185 = vmatprep.mubr.f32.mxu0 0.0
  %7186 = vmatmul.mubr.f32.gmra.mrb[0].mxu0 %v6998
  %v7187 = vpop.f32.mrb[0].mxu0
  %v7188 = vadd.f32 0.0, %v7187
  %v7189 = vpop.f32.mrb[0].mxu0
  %7190 = vmatprep.mubr.f32.mxu0 0.0
  %7191 = vmatmul.mubr.f32.gmra.mrb[0].mxu0 %v7001
  %v7192 = vpop.f32.mrb[0].mxu0
  %v7193 = vadd.f32 0.0, %v7192
  %v7194 = vpop.f32.mrb[0].mxu0
  %7195 = vmatprep.mubr.f32.mxu0 0.0
  %7196 = vmatmul.mubr.f32.gmra.mrb[0].mxu0 %v7004
  %v7197 = vpop.f32.mrb[0].mxu0
  %v7198 = vadd.f32 0.0, %v7197
  %v7199 = vpop.f32.mrb[0].mxu0
  %7200 = vmatprep.mubr.f32.mxu0 0.0
  %7201 = vmatmul.mubr.f32.gmra.mrb[0].mxu0 %v7007
  %v7202 = vpop.f32.mrb[0].mxu0
  %v7203 = vadd.f32 0.0, %v7202
  %v7204 = vpop.f32.mrb[0].mxu0
  %7205 = vmatprep.mubr.f32.mxu0 0.0
  %7206 = vmatmul.mubr.f32.gmra.mrb[0].mxu0 %v7010
  %v7207 = vpop.f32.mrb[0].mxu0
  %v7208 = vadd.f32 0.0, %v7207
  %v7209 = vpop.f32.mrb[0].mxu0
  %7210 = vmatprep.mubr.f32.mxu0 0.0
  %7211 = vmatmul.mubr.f32.gmra.mrb[0].mxu0 %v7013
  %v7212 = vpop.f32.mrb[0].mxu0
  %v7213 = vadd.f32 0.0, %v7212
  %v7214 = vpop.f32.mrb[0].mxu0
  %7215 = vmatprep.mubr.f32.mxu0 0.0
  %7216 = vmatmul.mubr.f32.gmra.mrb[0].mxu0 %v7016
  %v7217 = vpop.f32.mrb[0].mxu0
  %v7218 = vadd.f32 0.0, %v7217
  %v7219 = vpop.f32.mrb[0].mxu0
  %7220 = vmatprep.mubr.f32.mxu0 0.0
  %7221 = vmatmul.mubr.f32.gmra.mrb[0].mxu0 %v7019
  %v7222 = vpop.f32.mrb[0].mxu0
  %v7223 = vadd.f32 0.0, %v7222
  %v7224 = vpop.f32.mrb[0].mxu0
  %7225 = vmatprep.mubr.f32.mxu0 0.0
  %7226 = vmatmul.mubr.f32.gmra.mrb[0].mxu0 %v7022
  %v7227 = vpop.f32.mrb[0].mxu0
  %v7228 = vadd.f32 0.0, %v7227
  %v7229 = vpop.f32.mrb[0].mxu0
  %7230 = vmatprep.mubr.f32.mxu0 0.0
  %7231 = vmatmul.mubr.f32.gmra.mrb[0].mxu0 %v7025
  %v7232 = vpop.f32.mrb[0].mxu0
  %v7233 = vadd.f32 0.0, %v7232
  %v7234 = vpop.f32.mrb[0].mxu0
  %7235 = vmatprep.mubr.f32.mxu0 0.0
  %7236 = vmatmul.mubr.f32.gmra.mrb[0].mxu0 %v7028
  %v7237 = vpop.f32.mrb[0].mxu0
  %v7238 = vadd.f32 0.0, %v7237
  %v7239 = vpop.f32.mrb[0].mxu0
  %7240 = vmatprep.mubr.f32.mxu0 0.0
  %7241 = vmatmul.mubr.f32.gmra.mrb[0].mxu0 %v7031
  %v7242 = vpop.f32.mrb[0].mxu0
  %v7243 = vadd.f32 0.0, %v7242
  %v7244 = vpop.f32.mrb[0].mxu0
  %7245 = vmatprep.mubr.f32.mxu0 0.0
  %7246 = vmatmul.mubr.f32.gmra.mrb[0].mxu0 %v7034
  %v7247 = vpop.f32.mrb[0].mxu0
  %v7248 = vadd.f32 0.0, %v7247
  %v7249 = vpop.f32.mrb[0].mxu0
  %7250 = vmatprep.mubr.f32.mxu0 0.0
  %7251 = vmatmul.mubr.f32.gmra.mrb[0].mxu0 %v7037
  %v7252 = vpop.f32.mrb[0].mxu0
  %v7253 = vadd.f32 0.0, %v7252
  %v7254 = vpop.f32.mrb[0].mxu0
  %7255 = vmatprep.mubr.f32.mxu0 0.0
  %7256 = vmatmul.mubr.f32.gmra.mrb[0].mxu0 %v7040
  %v7257 = vpop.f32.mrb[0].mxu0
  %v7258 = vadd.f32 0.0, %v7257
  %v7259 = vpop.f32.mrb[0].mxu0
  %7260 = vmatprep.mubr.f32.mxu0 0.0
  %7261 = vmatmul.mubr.f32.gmra.mrb[0].mxu0 %v7043
  %v7262 = vpop.f32.mrb[0].mxu0
  %v7263 = vadd.f32 0.0, %v7262
  %v7264 = vpop.f32.mrb[0].mxu0
  %7265 = vmatprep.mubr.f32.mxu0 0.0
  %7266 = vmatmul.mubr.f32.gmra.mrb[0].mxu0 %v7046
  %v7267 = vpop.f32.mrb[0].mxu0
  %v7268 = vadd.f32 0.0, %v7267
  %v7269 = vpop.f32.mrb[0].mxu0
  %7270 = vmatprep.mubr.f32.mxu0 0.0
  %7271 = vmatmul.mubr.f32.gmra.mrb[0].mxu0 %v7049
  %v7272 = vpop.f32.mrb[0].mxu0
  %v7273 = vadd.f32 0.0, %v7272
  %v7274 = vpop.f32.mrb[0].mxu0
  %7275 = vdwg.mxu0
  %7276 = vset.pattern.permute.xlu0 3
  %7277 = vperm.xlu0 %7276, %v6698
  %v7278 = vpop.permute.xlu0 %7277
  %7279 = vset.pattern.permute.xlu0 3
  %7280 = vperm.xlu0 %7279, %v6699
  %v7281 = vpop.permute.xlu0 %7280
  %7282 = vset.pattern.permute.xlu0 3
  %7283 = vperm.xlu0 %7282, %v6700
  %v7284 = vpop.permute.xlu0 %7283
  %7285 = vset.pattern.permute.xlu0 3
  %7286 = vperm.xlu0 %7285, %v6701
  %v7287 = vpop.permute.xlu0 %7286
  %7288 = vset.pattern.permute.xlu0 3
  %7289 = vperm.xlu0 %7288, %v6702
  %v7290 = vpop.permute.xlu0 %7289
  %7291 = vset.pattern.permute.xlu0 3
  %7292 = vperm.xlu0 %7291, %v6703
  %v7293 = vpop.permute.xlu0 %7292
  %7294 = vset.pattern.permute.xlu0 3
  %7295 = vperm.xlu0 %7294, %v6704
  %v7296 = vpop.permute.xlu0 %7295
  %7297 = vset.pattern.permute.xlu0 3
  %7298 = vperm.xlu0 %7297, %v6705
  %v7299 = vpop.permute.xlu0 %7298
  %7300 = vset.pattern.permute.xlu0 3
  %7301 = vperm.xlu0 %7300, %v6706
  %v7302 = vpop.permute.xlu0 %7301
  %7303 = vset.pattern.permute.xlu0 3
  %7304 = vperm.xlu0 %7303, %v6707
  %v7305 = vpop.permute.xlu0 %7304
  %7306 = vset.pattern.permute.xlu0 3
  %7307 = vperm.xlu0 %7306, %v6708
  %v7308 = vpop.permute.xlu0 %7307
  %7309 = vset.pattern.permute.xlu0 3
  %7310 = vperm.xlu0 %7309, %v6709
  %v7311 = vpop.permute.xlu0 %7310
  %7312 = vset.pattern.permute.xlu0 3
  %7313 = vperm.xlu0 %7312, %v6710
  %v7314 = vpop.permute.xlu0 %7313
  %7315 = vset.pattern.permute.xlu0 3
  %7316 = vperm.xlu0 %7315, %v6711
  %v7317 = vpop.permute.xlu0 %7316
  %7318 = vset.pattern.permute.xlu0 3
  %7319 = vperm.xlu0 %7318, %v6712
  %v7320 = vpop.permute.xlu0 %7319
  %7321 = vset.pattern.permute.xlu0 3
  %7322 = vperm.xlu0 %7321, %v6713
  %v7323 = vpop.permute.xlu0 %7322
  %7324 = vset.pattern.permute.xlu0 3
  %7325 = vperm.xlu0 %7324, %v6714
  %v7326 = vpop.permute.xlu0 %7325
  %7327 = vset.pattern.permute.xlu0 3
  %7328 = vperm.xlu0 %7327, %v6715
  %v7329 = vpop.permute.xlu0 %7328
  %7330 = vset.pattern.permute.xlu0 3
  %7331 = vperm.xlu0 %7330, %v6716
  %v7332 = vpop.permute.xlu0 %7331
  %7333 = vset.pattern.permute.xlu0 3
  %7334 = vperm.xlu0 %7333, %v6717
  %v7335 = vpop.permute.xlu0 %7334
  %7336 = vset.pattern.permute.xlu0 3
  %7337 = vperm.xlu0 %7336, %v6718
  %v7338 = vpop.permute.xlu0 %7337
  %7339 = vset.pattern.permute.xlu0 3
  %7340 = vperm.xlu0 %7339, %v6719
  %v7341 = vpop.permute.xlu0 %7340
  %7342 = vset.pattern.permute.xlu0 3
  %7343 = vperm.xlu0 %7342, %v6720
  %v7344 = vpop.permute.xlu0 %7343
  %7345 = vset.pattern.permute.xlu0 3
  %7346 = vperm.xlu0 %7345, %v6721
  %v7347 = vpop.permute.xlu0 %7346
  %7348 = vset.pattern.permute.xlu0 3
  %7349 = vperm.xlu0 %7348, %v6722
  %v7350 = vpop.permute.xlu0 %7349
  %7351 = vset.pattern.permute.xlu0 3
  %7352 = vperm.xlu0 %7351, %v6723
  %v7353 = vpop.permute.xlu0 %7352
  %7354 = vset.pattern.permute.xlu0 3
  %7355 = vperm.xlu0 %7354, %v6724
  %v7356 = vpop.permute.xlu0 %7355
  %7357 = vset.pattern.permute.xlu0 3
  %7358 = vperm.xlu0 %7357, %v6725
  %v7359 = vpop.permute.xlu0 %7358
  %7360 = vset.pattern.permute.xlu0 3
  %7361 = vperm.xlu0 %7360, %v6726
  %v7362 = vpop.permute.xlu0 %7361
  %7363 = vset.pattern.permute.xlu0 3
  %7364 = vperm.xlu0 %7363, %v6727
  %v7365 = vpop.permute.xlu0 %7364
  %7366 = vset.pattern.permute.xlu0 3
  %7367 = vperm.xlu0 %7366, %v6728
  %v7368 = vpop.permute.xlu0 %7367
  %7369 = vset.pattern.permute.xlu0 3
  %7370 = vperm.xlu0 %7369, %v6729
  %v7371 = vpop.permute.xlu0 %7370
  %vm7372 = vcmp.eq.s32.totalorder %v55, %v7278
  %vm7373 = vcmp.eq.s32.totalorder %v55, %v7281
  %vm7374 = vcmp.eq.s32.totalorder %v55, %v7284
  %vm7375 = vcmp.eq.s32.totalorder %v55, %v7287
  %vm7376 = vcmp.eq.s32.totalorder %v55, %v7290
  %vm7377 = vcmp.eq.s32.totalorder %v55, %v7293
  %vm7378 = vcmp.eq.s32.totalorder %v55, %v7296
  %vm7379 = vcmp.eq.s32.totalorder %v55, %v7299
  %vm7380 = vcmp.eq.s32.totalorder %v55, %v7302
  %vm7381 = vcmp.eq.s32.totalorder %v55, %v7305
  %vm7382 = vcmp.eq.s32.totalorder %v55, %v7308
  %vm7383 = vcmp.eq.s32.totalorder %v55, %v7311
  %vm7384 = vcmp.eq.s32.totalorder %v55, %v7314
  %vm7385 = vcmp.eq.s32.totalorder %v55, %v7317
  %vm7386 = vcmp.eq.s32.totalorder %v55, %v7320
  %vm7387 = vcmp.eq.s32.totalorder %v55, %v7323
  %vm7388 = vcmp.eq.s32.totalorder %v55, %v7326
  %vm7389 = vcmp.eq.s32.totalorder %v55, %v7329
  %vm7390 = vcmp.eq.s32.totalorder %v55, %v7332
  %vm7391 = vcmp.eq.s32.totalorder %v55, %v7335
  %vm7392 = vcmp.eq.s32.totalorder %v55, %v7338
  %vm7393 = vcmp.eq.s32.totalorder %v55, %v7341
  %vm7394 = vcmp.eq.s32.totalorder %v55, %v7344
  %vm7395 = vcmp.eq.s32.totalorder %v55, %v7347
  %vm7396 = vcmp.eq.s32.totalorder %v55, %v7350
  %vm7397 = vcmp.eq.s32.totalorder %v55, %v7353
  %vm7398 = vcmp.eq.s32.totalorder %v55, %v7356
  %vm7399 = vcmp.eq.s32.totalorder %v55, %v7359
  %vm7400 = vcmp.eq.s32.totalorder %v55, %v7362
  %vm7401 = vcmp.eq.s32.totalorder %v55, %v7365
  %vm7402 = vcmp.eq.s32.totalorder %v55, %v7368
  %vm7403 = vcmp.eq.s32.totalorder %v55, %v7371
  %vm7404 = vmor %vm344, %vm7372
  %vm7405 = vmor %vm345, %vm7373
  %vm7406 = vmor %vm346, %vm7374
  %vm7407 = vmor %vm347, %vm7375
  %vm7408 = vmor %vm348, %vm7376
  %vm7409 = vmor %vm349, %vm7377
  %vm7410 = vmor %vm350, %vm7378
  %vm7411 = vmor %vm351, %vm7379
  %vm7412 = vmor %vm352, %vm7380
  %vm7413 = vmor %vm353, %vm7381
  %vm7414 = vmor %vm354, %vm7382
  %vm7415 = vmor %vm355, %vm7383
  %vm7416 = vmor %vm356, %vm7384
  %vm7417 = vmor %vm357, %vm7385
  %vm7418 = vmor %vm358, %vm7386
  %vm7419 = vmor %vm359, %vm7387
  %vm7420 = vmor %vm360, %vm7388
  %vm7421 = vmor %vm361, %vm7389
  %vm7422 = vmor %vm362, %vm7390
  %vm7423 = vmor %vm363, %vm7391
  %vm7424 = vmor %vm364, %vm7392
  %vm7425 = vmor %vm365, %vm7393
  %vm7426 = vmor %vm366, %vm7394
  %vm7427 = vmor %vm367, %vm7395
  %vm7428 = vmor %vm368, %vm7396
  %vm7429 = vmor %vm369, %vm7397
  %vm7430 = vmor %vm370, %vm7398
  %vm7431 = vmor %vm371, %vm7399
  %vm7432 = vmor %vm372, %vm7400
  %vm7433 = vmor %vm373, %vm7401
  %vm7434 = vmor %vm374, %vm7402
  %vm7435 = vmor %vm375, %vm7403
  %v7436 = vsel %vm7404, 1, 0
  %v7437 = vsel %vm7405, 1, 0
  %v7438 = vsel %vm7406, 1, 0
  %v7439 = vsel %vm7407, 1, 0
  %v7440 = vsel %vm7408, 1, 0
  %v7441 = vsel %vm7409, 1, 0
  %v7442 = vsel %vm7410, 1, 0
  %v7443 = vsel %vm7411, 1, 0
  %v7444 = vsel %vm7412, 1, 0
  %v7445 = vsel %vm7413, 1, 0
  %v7446 = vsel %vm7414, 1, 0
  %v7447 = vsel %vm7415, 1, 0
  %v7448 = vsel %vm7416, 1, 0
  %v7449 = vsel %vm7417, 1, 0
  %v7450 = vsel %vm7418, 1, 0
  %v7451 = vsel %vm7419, 1, 0
  %v7452 = vsel %vm7420, 1, 0
  %v7453 = vsel %vm7421, 1, 0
  %v7454 = vsel %vm7422, 1, 0
  %v7455 = vsel %vm7423, 1, 0
  %v7456 = vsel %vm7424, 1, 0
  %v7457 = vsel %vm7425, 1, 0
  %v7458 = vsel %vm7426, 1, 0
  %v7459 = vsel %vm7427, 1, 0
  %v7460 = vsel %vm7428, 1, 0
  %v7461 = vsel %vm7429, 1, 0
  %v7462 = vsel %vm7430, 1, 0
  %v7463 = vsel %vm7431, 1, 0
  %v7464 = vsel %vm7432, 1, 0
  %v7465 = vsel %vm7433, 1, 0
  %v7466 = vsel %vm7434, 1, 0
  %v7467 = vsel %vm7435, 1, 0
  %v7468 = vcvt.s32.f32 %v7436
  %v7469 = vcvt.s32.f32 %v7437
  %v7470 = vcvt.s32.f32 %v7438
  %v7471 = vcvt.s32.f32 %v7439
  %v7472 = vcvt.s32.f32 %v7440
  %v7473 = vcvt.s32.f32 %v7441
  %v7474 = vcvt.s32.f32 %v7442
  %v7475 = vcvt.s32.f32 %v7443
  %v7476 = vcvt.s32.f32 %v7444
  %v7477 = vcvt.s32.f32 %v7445
  %v7478 = vcvt.s32.f32 %v7446
  %v7479 = vcvt.s32.f32 %v7447
  %v7480 = vcvt.s32.f32 %v7448
  %v7481 = vcvt.s32.f32 %v7449
  %v7482 = vcvt.s32.f32 %v7450
  %v7483 = vcvt.s32.f32 %v7451
  %v7484 = vcvt.s32.f32 %v7452
  %v7485 = vcvt.s32.f32 %v7453
  %v7486 = vcvt.s32.f32 %v7454
  %v7487 = vcvt.s32.f32 %v7455
  %v7488 = vcvt.s32.f32 %v7456
  %v7489 = vcvt.s32.f32 %v7457
  %v7490 = vcvt.s32.f32 %v7458
  %v7491 = vcvt.s32.f32 %v7459
  %v7492 = vcvt.s32.f32 %v7460
  %v7493 = vcvt.s32.f32 %v7461
  %v7494 = vcvt.s32.f32 %v7462
  %v7495 = vcvt.s32.f32 %v7463
  %v7496 = vcvt.s32.f32 %v7464
  %v7497 = vcvt.s32.f32 %v7465
  %v7498 = vcvt.s32.f32 %v7466
  %v7499 = vcvt.s32.f32 %v7467
  %v7501 = vsel %vm6954, %v7468, 0
  %v7504 = vsel %vm6954, %v7469, 0
  %v7507 = vsel %vm6954, %v7470, 0
  %v7510 = vsel %vm6954, %v7471, 0
  %v7513 = vsel %vm6954, %v7472, 0
  %v7516 = vsel %vm6954, %v7473, 0
  %v7519 = vsel %vm6954, %v7474, 0
  %v7522 = vsel %vm6954, %v7475, 0
  %v7525 = vsel %vm6954, %v7476, 0
  %v7528 = vsel %vm6954, %v7477, 0
  %v7531 = vsel %vm6954, %v7478, 0
  %v7534 = vsel %vm6954, %v7479, 0
  %v7537 = vsel %vm6954, %v7480, 0
  %v7540 = vsel %vm6954, %v7481, 0
  %v7543 = vsel %vm6954, %v7482, 0
  %v7546 = vsel %vm6954, %v7483, 0
  %v7549 = vsel %vm6954, %v7484, 0
  %v7552 = vsel %vm6954, %v7485, 0
  %v7555 = vsel %vm6954, %v7486, 0
  %v7558 = vsel %vm6954, %v7487, 0
  %v7561 = vsel %vm6954, %v7488, 0
  %v7564 = vsel %vm6954, %v7489, 0
  %v7567 = vsel %vm6954, %v7490, 0
  %v7570 = vsel %vm6954, %v7491, 0
  %v7573 = vsel %vm6954, %v7492, 0
  %v7576 = vsel %vm6954, %v7493, 0
  %v7579 = vsel %vm6954, %v7494, 0
  %v7582 = vsel %vm6954, %v7495, 0
  %v7585 = vsel %vm6954, %v7496, 0
  %v7588 = vsel %vm6954, %v7497, 0
  %v7591 = vsel %vm6954, %v7498, 0
  %v7594 = vsel %vm6954, %v7499, 0
  %7596 = vmatprep.subr.mxu0 0.0
  %7597 = vmatpush1.msra.mxu0 %v6402
  %7598 = vmatprep.subr.mxu0 0.0
  %7599 = vmatpush1.msra.mxu0 %v6403
  %7600 = vmatprep.subr.mxu0 0.0
  %7601 = vmatpush1.msra.mxu0 %v6404
  %7602 = vmatprep.subr.mxu0 0.0
  %7603 = vmatpush1.msra.mxu0 %v6405
  %7604 = vmatprep.subr.mxu0 0.0
  %7605 = vmatpush1.msra.mxu0 %v6406
  %7606 = vmatprep.subr.mxu0 0.0
  %7607 = vmatpush1.msra.mxu0 %v6407
  %7608 = vmatprep.subr.mxu0 0.0
  %7609 = vmatpush1.msra.mxu0 %v6408
  %7610 = vmatprep.subr.mxu0 0.0
  %7611 = vmatpush1.msra.mxu0 %v6409
  %7612 = vmatprep.subr.mxu0 0.0
  %7613 = vmatpush1.msra.mxu0 0.0
  %7614 = vmatprep.subr.mxu0 0.0
  %7615 = vmatpush1.msra.mxu0 0.0
  %7616 = vmatprep.subr.mxu0 0.0
  %7617 = vmatpush1.msra.mxu0 0.0
  %7618 = vmatprep.subr.mxu0 0.0
  %7619 = vmatpush1.msra.mxu0 0.0
  %7620 = vmatprep.subr.mxu0 0.0
  %7621 = vmatpush1.msra.mxu0 0.0
  %7622 = vmatprep.subr.mxu0 0.0
  %7623 = vmatpush1.msra.mxu0 0.0
  %7624 = vmatprep.subr.mxu0 0.0
  %7625 = vmatpush1.msra.mxu0 0.0
  %7626 = vmatprep.subr.mxu0 0.0
  %7627 = vmatpush1.msra.mxu0 0.0
  %7628 = vmatprep.subr.mxu0 0.0
  %7629 = vmatpush1.msra.mxu0 0.0
  %7630 = vmatprep.subr.mxu0 0.0
  %7631 = vmatpush1.msra.mxu0 0.0
  %7632 = vmatprep.subr.mxu0 0.0
  %7633 = vmatpush1.msra.mxu0 0.0
  %7634 = vmatprep.subr.mxu0 0.0
  %7635 = vmatpush1.msra.mxu0 0.0
  %7636 = vmatprep.subr.mxu0 0.0
  %7637 = vmatpush1.msra.mxu0 0.0
  %7638 = vmatprep.subr.mxu0 0.0
  %7639 = vmatpush1.msra.mxu0 0.0
  %7640 = vmatprep.subr.mxu0 0.0
  %7641 = vmatpush1.msra.mxu0 0.0
  %7642 = vmatprep.subr.mxu0 0.0
  %7643 = vmatpush1.msra.mxu0 0.0
  %7644 = vmatprep.subr.mxu0 0.0
  %7645 = vmatpush1.msra.mxu0 0.0
  %7646 = vmatprep.subr.mxu0 0.0
  %7647 = vmatpush1.msra.mxu0 0.0
  %7648 = vmatprep.subr.mxu0 0.0
  %7649 = vmatpush1.msra.mxu0 0.0
  %7650 = vmatprep.subr.mxu0 0.0
  %7651 = vmatpush1.msra.mxu0 0.0
  %7652 = vmatprep.subr.mxu0 0.0
  %7653 = vmatpush1.msra.mxu0 0.0
  %7654 = vmatprep.subr.mxu0 0.0
  %7655 = vmatpush1.msra.mxu0 0.0
  %7656 = vmatprep.subr.mxu0 0.0
  %7657 = vmatpush1.msra.mxu0 0.0
  %7658 = vmatprep.subr.mxu0 0.0
  %7659 = vmatpush1.msra.mxu0 0.0
  %7660 = vmatprep.mubr.f32.mxu0 0.0
  %7661 = vmatmul.mubr.f32.gmra.mrb[0].mxu0 %v7501
  %v7662 = vpop.f32.mrb[0].mxu0
  %v7663 = vadd.f32 0.0, %v7662
  %v7664 = vpop.f32.mrb[0].mxu0
  %7665 = vmatprep.mubr.f32.mxu0 0.0
  %7666 = vmatmul.mubr.f32.gmra.mrb[0].mxu0 %v7504
  %v7667 = vpop.f32.mrb[0].mxu0
  %v7668 = vadd.f32 0.0, %v7667
  %v7669 = vpop.f32.mrb[0].mxu0
  %7670 = vmatprep.mubr.f32.mxu0 0.0
  %7671 = vmatmul.mubr.f32.gmra.mrb[0].mxu0 %v7507
  %v7672 = vpop.f32.mrb[0].mxu0
  %v7673 = vadd.f32 0.0, %v7672
  %v7674 = vpop.f32.mrb[0].mxu0
  %7675 = vmatprep.mubr.f32.mxu0 0.0
  %7676 = vmatmul.mubr.f32.gmra.mrb[0].mxu0 %v7510
  %v7677 = vpop.f32.mrb[0].mxu0
  %v7678 = vadd.f32 0.0, %v7677
  %v7679 = vpop.f32.mrb[0].mxu0
  %7680 = vmatprep.mubr.f32.mxu0 0.0
  %7681 = vmatmul.mubr.f32.gmra.mrb[0].mxu0 %v7513
  %v7682 = vpop.f32.mrb[0].mxu0
  %v7683 = vadd.f32 0.0, %v7682
  %v7684 = vpop.f32.mrb[0].mxu0
  %7685 = vmatprep.mubr.f32.mxu0 0.0
  %7686 = vmatmul.mubr.f32.gmra.mrb[0].mxu0 %v7516
  %v7687 = vpop.f32.mrb[0].mxu0
  %v7688 = vadd.f32 0.0, %v7687
  %v7689 = vpop.f32.mrb[0].mxu0
  %7690 = vmatprep.mubr.f32.mxu0 0.0
  %7691 = vmatmul.mubr.f32.gmra.mrb[0].mxu0 %v7519
  %v7692 = vpop.f32.mrb[0].mxu0
  %v7693 = vadd.f32 0.0, %v7692
  %v7694 = vpop.f32.mrb[0].mxu0
  %7695 = vmatprep.mubr.f32.mxu0 0.0
  %7696 = vmatmul.mubr.f32.gmra.mrb[0].mxu0 %v7522
  %v7697 = vpop.f32.mrb[0].mxu0
  %v7698 = vadd.f32 0.0, %v7697
  %v7699 = vpop.f32.mrb[0].mxu0
  %7700 = vmatprep.mubr.f32.mxu0 0.0
  %7701 = vmatmul.mubr.f32.gmra.mrb[0].mxu0 %v7525
  %v7702 = vpop.f32.mrb[0].mxu0
  %v7703 = vadd.f32 0.0, %v7702
  %v7704 = vpop.f32.mrb[0].mxu0
  %7705 = vmatprep.mubr.f32.mxu0 0.0
  %7706 = vmatmul.mubr.f32.gmra.mrb[0].mxu0 %v7528
  %v7707 = vpop.f32.mrb[0].mxu0
  %v7708 = vadd.f32 0.0, %v7707
  %v7709 = vpop.f32.mrb[0].mxu0
  %7710 = vmatprep.mubr.f32.mxu0 0.0
  %7711 = vmatmul.mubr.f32.gmra.mrb[0].mxu0 %v7531
  %v7712 = vpop.f32.mrb[0].mxu0
  %v7713 = vadd.f32 0.0, %v7712
  %v7714 = vpop.f32.mrb[0].mxu0
  %7715 = vmatprep.mubr.f32.mxu0 0.0
  %7716 = vmatmul.mubr.f32.gmra.mrb[0].mxu0 %v7534
  %v7717 = vpop.f32.mrb[0].mxu0
  %v7718 = vadd.f32 0.0, %v7717
  %v7719 = vpop.f32.mrb[0].mxu0
  %7720 = vmatprep.mubr.f32.mxu0 0.0
  %7721 = vmatmul.mubr.f32.gmra.mrb[0].mxu0 %v7537
  %v7722 = vpop.f32.mrb[0].mxu0
  %v7723 = vadd.f32 0.0, %v7722
  %v7724 = vpop.f32.mrb[0].mxu0
  %7725 = vmatprep.mubr.f32.mxu0 0.0
  %7726 = vmatmul.mubr.f32.gmra.mrb[0].mxu0 %v7540
  %v7727 = vpop.f32.mrb[0].mxu0
  %v7728 = vadd.f32 0.0, %v7727
  %v7729 = vpop.f32.mrb[0].mxu0
  %7730 = vmatprep.mubr.f32.mxu0 0.0
  %7731 = vmatmul.mubr.f32.gmra.mrb[0].mxu0 %v7543
  %v7732 = vpop.f32.mrb[0].mxu0
  %v7733 = vadd.f32 0.0, %v7732
  %v7734 = vpop.f32.mrb[0].mxu0
  %7735 = vmatprep.mubr.f32.mxu0 0.0
  %7736 = vmatmul.mubr.f32.gmra.mrb[0].mxu0 %v7546
  %v7737 = vpop.f32.mrb[0].mxu0
  %v7738 = vadd.f32 0.0, %v7737
  %v7739 = vpop.f32.mrb[0].mxu0
  %7740 = vmatprep.mubr.f32.mxu0 0.0
  %7741 = vmatmul.mubr.f32.gmra.mrb[0].mxu0 %v7549
  %v7742 = vpop.f32.mrb[0].mxu0
  %v7743 = vadd.f32 0.0, %v7742
  %v7744 = vpop.f32.mrb[0].mxu0
  %7745 = vmatprep.mubr.f32.mxu0 0.0
  %7746 = vmatmul.mubr.f32.gmra.mrb[0].mxu0 %v7552
  %v7747 = vpop.f32.mrb[0].mxu0
  %v7748 = vadd.f32 0.0, %v7747
  %v7749 = vpop.f32.mrb[0].mxu0
  %7750 = vmatprep.mubr.f32.mxu0 0.0
  %7751 = vmatmul.mubr.f32.gmra.mrb[0].mxu0 %v7555
  %v7752 = vpop.f32.mrb[0].mxu0
  %v7753 = vadd.f32 0.0, %v7752
  %v7754 = vpop.f32.mrb[0].mxu0
  %7755 = vmatprep.mubr.f32.mxu0 0.0
  %7756 = vmatmul.mubr.f32.gmra.mrb[0].mxu0 %v7558
  %v7757 = vpop.f32.mrb[0].mxu0
  %v7758 = vadd.f32 0.0, %v7757
  %v7759 = vpop.f32.mrb[0].mxu0
  %7760 = vmatprep.mubr.f32.mxu0 0.0
  %7761 = vmatmul.mubr.f32.gmra.mrb[0].mxu0 %v7561
  %v7762 = vpop.f32.mrb[0].mxu0
  %v7763 = vadd.f32 0.0, %v7762
  %v7764 = vpop.f32.mrb[0].mxu0
  %7765 = vmatprep.mubr.f32.mxu0 0.0
  %7766 = vmatmul.mubr.f32.gmra.mrb[0].mxu0 %v7564
  %v7767 = vpop.f32.mrb[0].mxu0
  %v7768 = vadd.f32 0.0, %v7767
  %v7769 = vpop.f32.mrb[0].mxu0
  %7770 = vmatprep.mubr.f32.mxu0 0.0
  %7771 = vmatmul.mubr.f32.gmra.mrb[0].mxu0 %v7567
  %v7772 = vpop.f32.mrb[0].mxu0
  %v7773 = vadd.f32 0.0, %v7772
  %v7774 = vpop.f32.mrb[0].mxu0
  %7775 = vmatprep.mubr.f32.mxu0 0.0
  %7776 = vmatmul.mubr.f32.gmra.mrb[0].mxu0 %v7570
  %v7777 = vpop.f32.mrb[0].mxu0
  %v7778 = vadd.f32 0.0, %v7777
  %v7779 = vpop.f32.mrb[0].mxu0
  %7780 = vmatprep.mubr.f32.mxu0 0.0
  %7781 = vmatmul.mubr.f32.gmra.mrb[0].mxu0 %v7573
  %v7782 = vpop.f32.mrb[0].mxu0
  %v7783 = vadd.f32 0.0, %v7782
  %v7784 = vpop.f32.mrb[0].mxu0
  %7785 = vmatprep.mubr.f32.mxu0 0.0
  %7786 = vmatmul.mubr.f32.gmra.mrb[0].mxu0 %v7576
  %v7787 = vpop.f32.mrb[0].mxu0
  %v7788 = vadd.f32 0.0, %v7787
  %v7789 = vpop.f32.mrb[0].mxu0
  %7790 = vmatprep.mubr.f32.mxu0 0.0
  %7791 = vmatmul.mubr.f32.gmra.mrb[0].mxu0 %v7579
  %v7792 = vpop.f32.mrb[0].mxu0
  %v7793 = vadd.f32 0.0, %v7792
  %v7794 = vpop.f32.mrb[0].mxu0
  %7795 = vmatprep.mubr.f32.mxu0 0.0
  %7796 = vmatmul.mubr.f32.gmra.mrb[0].mxu0 %v7582
  %v7797 = vpop.f32.mrb[0].mxu0
  %v7798 = vadd.f32 0.0, %v7797
  %v7799 = vpop.f32.mrb[0].mxu0
  %7800 = vmatprep.mubr.f32.mxu0 0.0
  %7801 = vmatmul.mubr.f32.gmra.mrb[0].mxu0 %v7585
  %v7802 = vpop.f32.mrb[0].mxu0
  %v7803 = vadd.f32 0.0, %v7802
  %v7804 = vpop.f32.mrb[0].mxu0
  %7805 = vmatprep.mubr.f32.mxu0 0.0
  %7806 = vmatmul.mubr.f32.gmra.mrb[0].mxu0 %v7588
  %v7807 = vpop.f32.mrb[0].mxu0
  %v7808 = vadd.f32 0.0, %v7807
  %v7809 = vpop.f32.mrb[0].mxu0
  %7810 = vmatprep.mubr.f32.mxu0 0.0
  %7811 = vmatmul.mubr.f32.gmra.mrb[0].mxu0 %v7591
  %v7812 = vpop.f32.mrb[0].mxu0
  %v7813 = vadd.f32 0.0, %v7812
  %v7814 = vpop.f32.mrb[0].mxu0
  %7815 = vmatprep.mubr.f32.mxu0 0.0
  %7816 = vmatmul.mubr.f32.gmra.mrb[0].mxu0 %v7594
  %v7817 = vpop.f32.mrb[0].mxu0
  %v7818 = vadd.f32 0.0, %v7817
  %v7819 = vpop.f32.mrb[0].mxu0
  %7820 = vdwg.mxu0
  %v7821 = vmax.f32 %v7118, %v7663
  %v7822 = vmax.f32 %v7123, %v7668
  %v7823 = vmax.f32 %v7128, %v7673
  %v7824 = vmax.f32 %v7133, %v7678
  %v7825 = vmax.f32 %v7138, %v7683
  %v7826 = vmax.f32 %v7143, %v7688
  %v7827 = vmax.f32 %v7148, %v7693
  %v7828 = vmax.f32 %v7153, %v7698
  %v7829 = vmax.f32 %v7158, %v7703
  %v7830 = vmax.f32 %v7163, %v7708
  %v7831 = vmax.f32 %v7168, %v7713
  %v7832 = vmax.f32 %v7173, %v7718
  %v7833 = vmax.f32 %v7178, %v7723
  %v7834 = vmax.f32 %v7183, %v7728
  %v7835 = vmax.f32 %v7188, %v7733
  %v7836 = vmax.f32 %v7193, %v7738
  %v7837 = vmax.f32 %v7198, %v7743
  %v7838 = vmax.f32 %v7203, %v7748
  %v7839 = vmax.f32 %v7208, %v7753
  %v7840 = vmax.f32 %v7213, %v7758
  %v7841 = vmax.f32 %v7218, %v7763
  %v7842 = vmax.f32 %v7223, %v7768
  %v7843 = vmax.f32 %v7228, %v7773
  %v7844 = vmax.f32 %v7233, %v7778
  %v7845 = vmax.f32 %v7238, %v7783
  %v7846 = vmax.f32 %v7243, %v7788
  %v7847 = vmax.f32 %v7248, %v7793
  %v7848 = vmax.f32 %v7253, %v7798
  %v7849 = vmax.f32 %v7258, %v7803
  %v7850 = vmax.f32 %v7263, %v7808
  %v7851 = vmax.f32 %v7268, %v7813
  %v7852 = vmax.f32 %v7273, %v7818
  %7853 = vset.pattern.permute.xlu0 4
  %7854 = vperm.xlu0 %7853, %v6698
  %v7855 = vpop.permute.xlu0 %7854
  %7856 = vset.pattern.permute.xlu0 4
  %7857 = vperm.xlu0 %7856, %v6699
  %v7858 = vpop.permute.xlu0 %7857
  %7859 = vset.pattern.permute.xlu0 4
  %7860 = vperm.xlu0 %7859, %v6700
  %v7861 = vpop.permute.xlu0 %7860
  %7862 = vset.pattern.permute.xlu0 4
  %7863 = vperm.xlu0 %7862, %v6701
  %v7864 = vpop.permute.xlu0 %7863
  %7865 = vset.pattern.permute.xlu0 4
  %7866 = vperm.xlu0 %7865, %v6702
  %v7867 = vpop.permute.xlu0 %7866
  %7868 = vset.pattern.permute.xlu0 4
  %7869 = vperm.xlu0 %7868, %v6703
  %v7870 = vpop.permute.xlu0 %7869
  %7871 = vset.pattern.permute.xlu0 4
  %7872 = vperm.xlu0 %7871, %v6704
  %v7873 = vpop.permute.xlu0 %7872
  %7874 = vset.pattern.permute.xlu0 4
  %7875 = vperm.xlu0 %7874, %v6705
  %v7876 = vpop.permute.xlu0 %7875
  %7877 = vset.pattern.permute.xlu0 4
  %7878 = vperm.xlu0 %7877, %v6706
  %v7879 = vpop.permute.xlu0 %7878
  %7880 = vset.pattern.permute.xlu0 4
  %7881 = vperm.xlu0 %7880, %v6707
  %v7882 = vpop.permute.xlu0 %7881
  %7883 = vset.pattern.permute.xlu0 4
  %7884 = vperm.xlu0 %7883, %v6708
  %v7885 = vpop.permute.xlu0 %7884
  %7886 = vset.pattern.permute.xlu0 4
  %7887 = vperm.xlu0 %7886, %v6709
  %v7888 = vpop.permute.xlu0 %7887
  %7889 = vset.pattern.permute.xlu0 4
  %7890 = vperm.xlu0 %7889, %v6710
  %v7891 = vpop.permute.xlu0 %7890
  %7892 = vset.pattern.permute.xlu0 4
  %7893 = vperm.xlu0 %7892, %v6711
  %v7894 = vpop.permute.xlu0 %7893
  %7895 = vset.pattern.permute.xlu0 4
  %7896 = vperm.xlu0 %7895, %v6712
  %v7897 = vpop.permute.xlu0 %7896
  %7898 = vset.pattern.permute.xlu0 4
  %7899 = vperm.xlu0 %7898, %v6713
  %v7900 = vpop.permute.xlu0 %7899
  %7901 = vset.pattern.permute.xlu0 4
  %7902 = vperm.xlu0 %7901, %v6714
  %v7903 = vpop.permute.xlu0 %7902
  %7904 = vset.pattern.permute.xlu0 4
  %7905 = vperm.xlu0 %7904, %v6715
  %v7906 = vpop.permute.xlu0 %7905
  %7907 = vset.pattern.permute.xlu0 4
  %7908 = vperm.xlu0 %7907, %v6716
  %v7909 = vpop.permute.xlu0 %7908
  %7910 = vset.pattern.permute.xlu0 4
  %7911 = vperm.xlu0 %7910, %v6717
  %v7912 = vpop.permute.xlu0 %7911
  %7913 = vset.pattern.permute.xlu0 4
  %7914 = vperm.xlu0 %7913, %v6718
  %v7915 = vpop.permute.xlu0 %7914
  %7916 = vset.pattern.permute.xlu0 4
  %7917 = vperm.xlu0 %7916, %v6719
  %v7918 = vpop.permute.xlu0 %7917
  %7919 = vset.pattern.permute.xlu0 4
  %7920 = vperm.xlu0 %7919, %v6720
  %v7921 = vpop.permute.xlu0 %7920
  %7922 = vset.pattern.permute.xlu0 4
  %7923 = vperm.xlu0 %7922, %v6721
  %v7924 = vpop.permute.xlu0 %7923
  %7925 = vset.pattern.permute.xlu0 4
  %7926 = vperm.xlu0 %7925, %v6722
  %v7927 = vpop.permute.xlu0 %7926
  %7928 = vset.pattern.permute.xlu0 4
  %7929 = vperm.xlu0 %7928, %v6723
  %v7930 = vpop.permute.xlu0 %7929
  %7931 = vset.pattern.permute.xlu0 4
  %7932 = vperm.xlu0 %7931, %v6724
  %v7933 = vpop.permute.xlu0 %7932
  %7934 = vset.pattern.permute.xlu0 4
  %7935 = vperm.xlu0 %7934, %v6725
  %v7936 = vpop.permute.xlu0 %7935
  %7937 = vset.pattern.permute.xlu0 4
  %7938 = vperm.xlu0 %7937, %v6726
  %v7939 = vpop.permute.xlu0 %7938
  %7940 = vset.pattern.permute.xlu0 4
  %7941 = vperm.xlu0 %7940, %v6727
  %v7942 = vpop.permute.xlu0 %7941
  %7943 = vset.pattern.permute.xlu0 4
  %7944 = vperm.xlu0 %7943, %v6728
  %v7945 = vpop.permute.xlu0 %7944
  %7946 = vset.pattern.permute.xlu0 4
  %7947 = vperm.xlu0 %7946, %v6729
  %v7948 = vpop.permute.xlu0 %7947
  %vm7949 = vcmp.eq.s32.totalorder %v55, %v7855
  %vm7950 = vcmp.eq.s32.totalorder %v55, %v7858
  %vm7951 = vcmp.eq.s32.totalorder %v55, %v7861
  %vm7952 = vcmp.eq.s32.totalorder %v55, %v7864
  %vm7953 = vcmp.eq.s32.totalorder %v55, %v7867
  %vm7954 = vcmp.eq.s32.totalorder %v55, %v7870
  %vm7955 = vcmp.eq.s32.totalorder %v55, %v7873
  %vm7956 = vcmp.eq.s32.totalorder %v55, %v7876
  %vm7957 = vcmp.eq.s32.totalorder %v55, %v7879
  %vm7958 = vcmp.eq.s32.totalorder %v55, %v7882
  %vm7959 = vcmp.eq.s32.totalorder %v55, %v7885
  %vm7960 = vcmp.eq.s32.totalorder %v55, %v7888
  %vm7961 = vcmp.eq.s32.totalorder %v55, %v7891
  %vm7962 = vcmp.eq.s32.totalorder %v55, %v7894
  %vm7963 = vcmp.eq.s32.totalorder %v55, %v7897
  %vm7964 = vcmp.eq.s32.totalorder %v55, %v7900
  %vm7965 = vcmp.eq.s32.totalorder %v55, %v7903
  %vm7966 = vcmp.eq.s32.totalorder %v55, %v7906
  %vm7967 = vcmp.eq.s32.totalorder %v55, %v7909
  %vm7968 = vcmp.eq.s32.totalorder %v55, %v7912
  %vm7969 = vcmp.eq.s32.totalorder %v55, %v7915
  %vm7970 = vcmp.eq.s32.totalorder %v55, %v7918
  %vm7971 = vcmp.eq.s32.totalorder %v55, %v7921
  %vm7972 = vcmp.eq.s32.totalorder %v55, %v7924
  %vm7973 = vcmp.eq.s32.totalorder %v55, %v7927
  %vm7974 = vcmp.eq.s32.totalorder %v55, %v7930
  %vm7975 = vcmp.eq.s32.totalorder %v55, %v7933
  %vm7976 = vcmp.eq.s32.totalorder %v55, %v7936
  %vm7977 = vcmp.eq.s32.totalorder %v55, %v7939
  %vm7978 = vcmp.eq.s32.totalorder %v55, %v7942
  %vm7979 = vcmp.eq.s32.totalorder %v55, %v7945
  %vm7980 = vcmp.eq.s32.totalorder %v55, %v7948
  %vm7981 = vmor %vm1018, %vm7949
  %vm7982 = vmor %vm1019, %vm7950
  %vm7983 = vmor %vm1020, %vm7951
  %vm7984 = vmor %vm1021, %vm7952
  %vm7985 = vmor %vm1022, %vm7953
  %vm7986 = vmor %vm1023, %vm7954
  %vm7987 = vmor %vm1024, %vm7955
  %vm7988 = vmor %vm1025, %vm7956
  %vm7989 = vmor %vm1026, %vm7957
  %vm7990 = vmor %vm1027, %vm7958
  %vm7991 = vmor %vm1028, %vm7959
  %vm7992 = vmor %vm1029, %vm7960
  %vm7993 = vmor %vm1030, %vm7961
  %vm7994 = vmor %vm1031, %vm7962
  %vm7995 = vmor %vm1032, %vm7963
  %vm7996 = vmor %vm1033, %vm7964
  %vm7997 = vmor %vm1034, %vm7965
  %vm7998 = vmor %vm1035, %vm7966
  %vm7999 = vmor %vm1036, %vm7967
  %vm8000 = vmor %vm1037, %vm7968
  %vm8001 = vmor %vm1038, %vm7969
  %vm8002 = vmor %vm1039, %vm7970
  %vm8003 = vmor %vm1040, %vm7971
  %vm8004 = vmor %vm1041, %vm7972
  %vm8005 = vmor %vm1042, %vm7973
  %vm8006 = vmor %vm1043, %vm7974
  %vm8007 = vmor %vm1044, %vm7975
  %vm8008 = vmor %vm1045, %vm7976
  %vm8009 = vmor %vm1046, %vm7977
  %vm8010 = vmor %vm1047, %vm7978
  %vm8011 = vmor %vm1048, %vm7979
  %vm8012 = vmor %vm1049, %vm7980
  %v8013 = vsel %vm7981, 1, 0
  %v8014 = vsel %vm7982, 1, 0
  %v8015 = vsel %vm7983, 1, 0
  %v8016 = vsel %vm7984, 1, 0
  %v8017 = vsel %vm7985, 1, 0
  %v8018 = vsel %vm7986, 1, 0
  %v8019 = vsel %vm7987, 1, 0
  %v8020 = vsel %vm7988, 1, 0
  %v8021 = vsel %vm7989, 1, 0
  %v8022 = vsel %vm7990, 1, 0
  %v8023 = vsel %vm7991, 1, 0
  %v8024 = vsel %vm7992, 1, 0
  %v8025 = vsel %vm7993, 1, 0
  %v8026 = vsel %vm7994, 1, 0
  %v8027 = vsel %vm7995, 1, 0
  %v8028 = vsel %vm7996, 1, 0
  %v8029 = vsel %vm7997, 1, 0
  %v8030 = vsel %vm7998, 1, 0
  %v8031 = vsel %vm7999, 1, 0
  %v8032 = vsel %vm8000, 1, 0
  %v8033 = vsel %vm8001, 1, 0
  %v8034 = vsel %vm8002, 1, 0
  %v8035 = vsel %vm8003, 1, 0
  %v8036 = vsel %vm8004, 1, 0
  %v8037 = vsel %vm8005, 1, 0
  %v8038 = vsel %vm8006, 1, 0
  %v8039 = vsel %vm8007, 1, 0
  %v8040 = vsel %vm8008, 1, 0
  %v8041 = vsel %vm8009, 1, 0
  %v8042 = vsel %vm8010, 1, 0
  %v8043 = vsel %vm8011, 1, 0
  %v8044 = vsel %vm8012, 1, 0
  %v8045 = vcvt.s32.f32 %v8013
  %v8046 = vcvt.s32.f32 %v8014
  %v8047 = vcvt.s32.f32 %v8015
  %v8048 = vcvt.s32.f32 %v8016
  %v8049 = vcvt.s32.f32 %v8017
  %v8050 = vcvt.s32.f32 %v8018
  %v8051 = vcvt.s32.f32 %v8019
  %v8052 = vcvt.s32.f32 %v8020
  %v8053 = vcvt.s32.f32 %v8021
  %v8054 = vcvt.s32.f32 %v8022
  %v8055 = vcvt.s32.f32 %v8023
  %v8056 = vcvt.s32.f32 %v8024
  %v8057 = vcvt.s32.f32 %v8025
  %v8058 = vcvt.s32.f32 %v8026
  %v8059 = vcvt.s32.f32 %v8027
  %v8060 = vcvt.s32.f32 %v8028
  %v8061 = vcvt.s32.f32 %v8029
  %v8062 = vcvt.s32.f32 %v8030
  %v8063 = vcvt.s32.f32 %v8031
  %v8064 = vcvt.s32.f32 %v8032
  %v8065 = vcvt.s32.f32 %v8033
  %v8066 = vcvt.s32.f32 %v8034
  %v8067 = vcvt.s32.f32 %v8035
  %v8068 = vcvt.s32.f32 %v8036
  %v8069 = vcvt.s32.f32 %v8037
  %v8070 = vcvt.s32.f32 %v8038
  %v8071 = vcvt.s32.f32 %v8039
  %v8072 = vcvt.s32.f32 %v8040
  %v8073 = vcvt.s32.f32 %v8041
  %v8074 = vcvt.s32.f32 %v8042
  %v8075 = vcvt.s32.f32 %v8043
  %v8076 = vcvt.s32.f32 %v8044
  %v8078 = vsel %vm6954, %v8045, 0
  %v8081 = vsel %vm6954, %v8046, 0
  %v8084 = vsel %vm6954, %v8047, 0
  %v8087 = vsel %vm6954, %v8048, 0
  %v8090 = vsel %vm6954, %v8049, 0
  %v8093 = vsel %vm6954, %v8050, 0
  %v8096 = vsel %vm6954, %v8051, 0
  %v8099 = vsel %vm6954, %v8052, 0
  %v8102 = vsel %vm6954, %v8053, 0
  %v8105 = vsel %vm6954, %v8054, 0
  %v8108 = vsel %vm6954, %v8055, 0
  %v8111 = vsel %vm6954, %v8056, 0
  %v8114 = vsel %vm6954, %v8057, 0
  %v8117 = vsel %vm6954, %v8058, 0
  %v8120 = vsel %vm6954, %v8059, 0
  %v8123 = vsel %vm6954, %v8060, 0
  %v8126 = vsel %vm6954, %v8061, 0
  %v8129 = vsel %vm6954, %v8062, 0
  %v8132 = vsel %vm6954, %v8063, 0
  %v8135 = vsel %vm6954, %v8064, 0
  %v8138 = vsel %vm6954, %v8065, 0
  %v8141 = vsel %vm6954, %v8066, 0
  %v8144 = vsel %vm6954, %v8067, 0
  %v8147 = vsel %vm6954, %v8068, 0
  %v8150 = vsel %vm6954, %v8069, 0
  %v8153 = vsel %vm6954, %v8070, 0
  %v8156 = vsel %vm6954, %v8071, 0
  %v8159 = vsel %vm6954, %v8072, 0
  %v8162 = vsel %vm6954, %v8073, 0
  %v8165 = vsel %vm6954, %v8074, 0
  %v8168 = vsel %vm6954, %v8075, 0
  %v8171 = vsel %vm6954, %v8076, 0
  %8173 = vmatprep.subr.mxu0 0.0
  %8174 = vmatpush1.msra.mxu0 %v6402
  %8175 = vmatprep.subr.mxu0 0.0
  %8176 = vmatpush1.msra.mxu0 %v6403
  %8177 = vmatprep.subr.mxu0 0.0
  %8178 = vmatpush1.msra.mxu0 %v6404
  %8179 = vmatprep.subr.mxu0 0.0
  %8180 = vmatpush1.msra.mxu0 %v6405
  %8181 = vmatprep.subr.mxu0 0.0
  %8182 = vmatpush1.msra.mxu0 %v6406
  %8183 = vmatprep.subr.mxu0 0.0
  %8184 = vmatpush1.msra.mxu0 %v6407
  %8185 = vmatprep.subr.mxu0 0.0
  %8186 = vmatpush1.msra.mxu0 %v6408
  %8187 = vmatprep.subr.mxu0 0.0
  %8188 = vmatpush1.msra.mxu0 %v6409
  %8189 = vmatprep.subr.mxu0 0.0
  %8190 = vmatpush1.msra.mxu0 0.0
  %8191 = vmatprep.subr.mxu0 0.0
  %8192 = vmatpush1.msra.mxu0 0.0
  %8193 = vmatprep.subr.mxu0 0.0
  %8194 = vmatpush1.msra.mxu0 0.0
  %8195 = vmatprep.subr.mxu0 0.0
  %8196 = vmatpush1.msra.mxu0 0.0
  %8197 = vmatprep.subr.mxu0 0.0
  %8198 = vmatpush1.msra.mxu0 0.0
  %8199 = vmatprep.subr.mxu0 0.0
  %8200 = vmatpush1.msra.mxu0 0.0
  %8201 = vmatprep.subr.mxu0 0.0
  %8202 = vmatpush1.msra.mxu0 0.0
  %8203 = vmatprep.subr.mxu0 0.0
  %8204 = vmatpush1.msra.mxu0 0.0
  %8205 = vmatprep.subr.mxu0 0.0
  %8206 = vmatpush1.msra.mxu0 0.0
  %8207 = vmatprep.subr.mxu0 0.0
  %8208 = vmatpush1.msra.mxu0 0.0
  %8209 = vmatprep.subr.mxu0 0.0
  %8210 = vmatpush1.msra.mxu0 0.0
  %8211 = vmatprep.subr.mxu0 0.0
  %8212 = vmatpush1.msra.mxu0 0.0
  %8213 = vmatprep.subr.mxu0 0.0
  %8214 = vmatpush1.msra.mxu0 0.0
  %8215 = vmatprep.subr.mxu0 0.0
  %8216 = vmatpush1.msra.mxu0 0.0
  %8217 = vmatprep.subr.mxu0 0.0
  %8218 = vmatpush1.msra.mxu0 0.0
  %8219 = vmatprep.subr.mxu0 0.0
  %8220 = vmatpush1.msra.mxu0 0.0
  %8221 = vmatprep.subr.mxu0 0.0
  %8222 = vmatpush1.msra.mxu0 0.0
  %8223 = vmatprep.subr.mxu0 0.0
  %8224 = vmatpush1.msra.mxu0 0.0
  %8225 = vmatprep.subr.mxu0 0.0
  %8226 = vmatpush1.msra.mxu0 0.0
  %8227 = vmatprep.subr.mxu0 0.0
  %8228 = vmatpush1.msra.mxu0 0.0
  %8229 = vmatprep.subr.mxu0 0.0
  %8230 = vmatpush1.msra.mxu0 0.0
  %8231 = vmatprep.subr.mxu0 0.0
  %8232 = vmatpush1.msra.mxu0 0.0
  %8233 = vmatprep.subr.mxu0 0.0
  %8234 = vmatpush1.msra.mxu0 0.0
  %8235 = vmatprep.subr.mxu0 0.0
  %8236 = vmatpush1.msra.mxu0 0.0
  %8237 = vmatprep.mubr.f32.mxu0 0.0
  %8238 = vmatmul.mubr.f32.gmra.mrb[0].mxu0 %v8078
  %v8239 = vpop.f32.mrb[0].mxu0
  %v8240 = vadd.f32 0.0, %v8239
  %v8241 = vpop.f32.mrb[0].mxu0
  %8242 = vmatprep.mubr.f32.mxu0 0.0
  %8243 = vmatmul.mubr.f32.gmra.mrb[0].mxu0 %v8081
  %v8244 = vpop.f32.mrb[0].mxu0
  %v8245 = vadd.f32 0.0, %v8244
  %v8246 = vpop.f32.mrb[0].mxu0
  %8247 = vmatprep.mubr.f32.mxu0 0.0
  %8248 = vmatmul.mubr.f32.gmra.mrb[0].mxu0 %v8084
  %v8249 = vpop.f32.mrb[0].mxu0
  %v8250 = vadd.f32 0.0, %v8249
  %v8251 = vpop.f32.mrb[0].mxu0
  %8252 = vmatprep.mubr.f32.mxu0 0.0
  %8253 = vmatmul.mubr.f32.gmra.mrb[0].mxu0 %v8087
  %v8254 = vpop.f32.mrb[0].mxu0
  %v8255 = vadd.f32 0.0, %v8254
  %v8256 = vpop.f32.mrb[0].mxu0
  %8257 = vmatprep.mubr.f32.mxu0 0.0
  %8258 = vmatmul.mubr.f32.gmra.mrb[0].mxu0 %v8090
  %v8259 = vpop.f32.mrb[0].mxu0
  %v8260 = vadd.f32 0.0, %v8259
  %v8261 = vpop.f32.mrb[0].mxu0
  %8262 = vmatprep.mubr.f32.mxu0 0.0
  %8263 = vmatmul.mubr.f32.gmra.mrb[0].mxu0 %v8093
  %v8264 = vpop.f32.mrb[0].mxu0
  %v8265 = vadd.f32 0.0, %v8264
  %v8266 = vpop.f32.mrb[0].mxu0
  %8267 = vmatprep.mubr.f32.mxu0 0.0
  %8268 = vmatmul.mubr.f32.gmra.mrb[0].mxu0 %v8096
  %v8269 = vpop.f32.mrb[0].mxu0
  %v8270 = vadd.f32 0.0, %v8269
  %v8271 = vpop.f32.mrb[0].mxu0
  %8272 = vmatprep.mubr.f32.mxu0 0.0
  %8273 = vmatmul.mubr.f32.gmra.mrb[0].mxu0 %v8099
  %v8274 = vpop.f32.mrb[0].mxu0
  %v8275 = vadd.f32 0.0, %v8274
  %v8276 = vpop.f32.mrb[0].mxu0
  %8277 = vmatprep.mubr.f32.mxu0 0.0
  %8278 = vmatmul.mubr.f32.gmra.mrb[0].mxu0 %v8102
  %v8279 = vpop.f32.mrb[0].mxu0
  %v8280 = vadd.f32 0.0, %v8279
  %v8281 = vpop.f32.mrb[0].mxu0
  %8282 = vmatprep.mubr.f32.mxu0 0.0
  %8283 = vmatmul.mubr.f32.gmra.mrb[0].mxu0 %v8105
  %v8284 = vpop.f32.mrb[0].mxu0
  %v8285 = vadd.f32 0.0, %v8284
  %v8286 = vpop.f32.mrb[0].mxu0
  %8287 = vmatprep.mubr.f32.mxu0 0.0
  %8288 = vmatmul.mubr.f32.gmra.mrb[0].mxu0 %v8108
  %v8289 = vpop.f32.mrb[0].mxu0
  %v8290 = vadd.f32 0.0, %v8289
  %v8291 = vpop.f32.mrb[0].mxu0
  %8292 = vmatprep.mubr.f32.mxu0 0.0
  %8293 = vmatmul.mubr.f32.gmra.mrb[0].mxu0 %v8111
  %v8294 = vpop.f32.mrb[0].mxu0
  %v8295 = vadd.f32 0.0, %v8294
  %v8296 = vpop.f32.mrb[0].mxu0
  %8297 = vmatprep.mubr.f32.mxu0 0.0
  %8298 = vmatmul.mubr.f32.gmra.mrb[0].mxu0 %v8114
  %v8299 = vpop.f32.mrb[0].mxu0
  %v8300 = vadd.f32 0.0, %v8299
  %v8301 = vpop.f32.mrb[0].mxu0
  %8302 = vmatprep.mubr.f32.mxu0 0.0
  %8303 = vmatmul.mubr.f32.gmra.mrb[0].mxu0 %v8117
  %v8304 = vpop.f32.mrb[0].mxu0
  %v8305 = vadd.f32 0.0, %v8304
  %v8306 = vpop.f32.mrb[0].mxu0
  %8307 = vmatprep.mubr.f32.mxu0 0.0
  %8308 = vmatmul.mubr.f32.gmra.mrb[0].mxu0 %v8120
  %v8309 = vpop.f32.mrb[0].mxu0
  %v8310 = vadd.f32 0.0, %v8309
  %v8311 = vpop.f32.mrb[0].mxu0
  %8312 = vmatprep.mubr.f32.mxu0 0.0
  %8313 = vmatmul.mubr.f32.gmra.mrb[0].mxu0 %v8123
  %v8314 = vpop.f32.mrb[0].mxu0
  %v8315 = vadd.f32 0.0, %v8314
  %v8316 = vpop.f32.mrb[0].mxu0
  %8317 = vmatprep.mubr.f32.mxu0 0.0
  %8318 = vmatmul.mubr.f32.gmra.mrb[0].mxu0 %v8126
  %v8319 = vpop.f32.mrb[0].mxu0
  %v8320 = vadd.f32 0.0, %v8319
  %v8321 = vpop.f32.mrb[0].mxu0
  %8322 = vmatprep.mubr.f32.mxu0 0.0
  %8323 = vmatmul.mubr.f32.gmra.mrb[0].mxu0 %v8129
  %v8324 = vpop.f32.mrb[0].mxu0
  %v8325 = vadd.f32 0.0, %v8324
  %v8326 = vpop.f32.mrb[0].mxu0
  %8327 = vmatprep.mubr.f32.mxu0 0.0
  %8328 = vmatmul.mubr.f32.gmra.mrb[0].mxu0 %v8132
  %v8329 = vpop.f32.mrb[0].mxu0
  %v8330 = vadd.f32 0.0, %v8329
  %v8331 = vpop.f32.mrb[0].mxu0
  %8332 = vmatprep.mubr.f32.mxu0 0.0
  %8333 = vmatmul.mubr.f32.gmra.mrb[0].mxu0 %v8135
  %v8334 = vpop.f32.mrb[0].mxu0
  %v8335 = vadd.f32 0.0, %v8334
  %v8336 = vpop.f32.mrb[0].mxu0
  %8337 = vmatprep.mubr.f32.mxu0 0.0
  %8338 = vmatmul.mubr.f32.gmra.mrb[0].mxu0 %v8138
  %v8339 = vpop.f32.mrb[0].mxu0
  %v8340 = vadd.f32 0.0, %v8339
  %v8341 = vpop.f32.mrb[0].mxu0
  %8342 = vmatprep.mubr.f32.mxu0 0.0
  %8343 = vmatmul.mubr.f32.gmra.mrb[0].mxu0 %v8141
  %v8344 = vpop.f32.mrb[0].mxu0
  %v8345 = vadd.f32 0.0, %v8344
  %v8346 = vpop.f32.mrb[0].mxu0
  %8347 = vmatprep.mubr.f32.mxu0 0.0
  %8348 = vmatmul.mubr.f32.gmra.mrb[0].mxu0 %v8144
  %v8349 = vpop.f32.mrb[0].mxu0
  %v8350 = vadd.f32 0.0, %v8349
  %v8351 = vpop.f32.mrb[0].mxu0
  %8352 = vmatprep.mubr.f32.mxu0 0.0
  %8353 = vmatmul.mubr.f32.gmra.mrb[0].mxu0 %v8147
  %v8354 = vpop.f32.mrb[0].mxu0
  %v8355 = vadd.f32 0.0, %v8354
  %v8356 = vpop.f32.mrb[0].mxu0
  %8357 = vmatprep.mubr.f32.mxu0 0.0
  %8358 = vmatmul.mubr.f32.gmra.mrb[0].mxu0 %v8150
  %v8359 = vpop.f32.mrb[0].mxu0
  %v8360 = vadd.f32 0.0, %v8359
  %v8361 = vpop.f32.mrb[0].mxu0
  %8362 = vmatprep.mubr.f32.mxu0 0.0
  %8363 = vmatmul.mubr.f32.gmra.mrb[0].mxu0 %v8153
  %v8364 = vpop.f32.mrb[0].mxu0
  %v8365 = vadd.f32 0.0, %v8364
  %v8366 = vpop.f32.mrb[0].mxu0
  %8367 = vmatprep.mubr.f32.mxu0 0.0
  %8368 = vmatmul.mubr.f32.gmra.mrb[0].mxu0 %v8156
  %v8369 = vpop.f32.mrb[0].mxu0
  %v8370 = vadd.f32 0.0, %v8369
  %v8371 = vpop.f32.mrb[0].mxu0
  %8372 = vmatprep.mubr.f32.mxu0 0.0
  %8373 = vmatmul.mubr.f32.gmra.mrb[0].mxu0 %v8159
  %v8374 = vpop.f32.mrb[0].mxu0
  %v8375 = vadd.f32 0.0, %v8374
  %v8376 = vpop.f32.mrb[0].mxu0
  %8377 = vmatprep.mubr.f32.mxu0 0.0
  %8378 = vmatmul.mubr.f32.gmra.mrb[0].mxu0 %v8162
  %v8379 = vpop.f32.mrb[0].mxu0
  %v8380 = vadd.f32 0.0, %v8379
  %v8381 = vpop.f32.mrb[0].mxu0
  %8382 = vmatprep.mubr.f32.mxu0 0.0
  %8383 = vmatmul.mubr.f32.gmra.mrb[0].mxu0 %v8165
  %v8384 = vpop.f32.mrb[0].mxu0
  %v8385 = vadd.f32 0.0, %v8384
  %v8386 = vpop.f32.mrb[0].mxu0
  %8387 = vmatprep.mubr.f32.mxu0 0.0
  %8388 = vmatmul.mubr.f32.gmra.mrb[0].mxu0 %v8168
  %v8389 = vpop.f32.mrb[0].mxu0
  %v8390 = vadd.f32 0.0, %v8389
  %v8391 = vpop.f32.mrb[0].mxu0
  %8392 = vmatprep.mubr.f32.mxu0 0.0
  %8393 = vmatmul.mubr.f32.gmra.mrb[0].mxu0 %v8171
  %v8394 = vpop.f32.mrb[0].mxu0
  %v8395 = vadd.f32 0.0, %v8394
  %v8396 = vpop.f32.mrb[0].mxu0
  %8397 = vdwg.mxu0
  %v8398 = vmax.f32 %v7821, %v8240
  %v8399 = vmax.f32 %v7822, %v8245
  %v8400 = vmax.f32 %v7823, %v8250
  %v8401 = vmax.f32 %v7824, %v8255
  %v8402 = vmax.f32 %v7825, %v8260
  %v8403 = vmax.f32 %v7826, %v8265
  %v8404 = vmax.f32 %v7827, %v8270
  %v8405 = vmax.f32 %v7828, %v8275
  %v8406 = vmax.f32 %v7829, %v8280
  %v8407 = vmax.f32 %v7830, %v8285
  %v8408 = vmax.f32 %v7831, %v8290
  %v8409 = vmax.f32 %v7832, %v8295
  %v8410 = vmax.f32 %v7833, %v8300
  %v8411 = vmax.f32 %v7834, %v8305
  %v8412 = vmax.f32 %v7835, %v8310
  %v8413 = vmax.f32 %v7836, %v8315
  %v8414 = vmax.f32 %v7837, %v8320
  %v8415 = vmax.f32 %v7838, %v8325
  %v8416 = vmax.f32 %v7839, %v8330
  %v8417 = vmax.f32 %v7840, %v8335
  %v8418 = vmax.f32 %v7841, %v8340
  %v8419 = vmax.f32 %v7842, %v8345
  %v8420 = vmax.f32 %v7843, %v8350
  %v8421 = vmax.f32 %v7844, %v8355
  %v8422 = vmax.f32 %v7845, %v8360
  %v8423 = vmax.f32 %v7846, %v8365
  %v8424 = vmax.f32 %v7847, %v8370
  %v8425 = vmax.f32 %v7848, %v8375
  %v8426 = vmax.f32 %v7849, %v8380
  %v8427 = vmax.f32 %v7850, %v8385
  %v8428 = vmax.f32 %v7851, %v8390
  %v8429 = vmax.f32 %v7852, %v8395
  %8430 = vset.pattern.permute.xlu0 5
  %8431 = vperm.xlu0 %8430, %v6698
  %v8432 = vpop.permute.xlu0 %8431
  %8433 = vset.pattern.permute.xlu0 5
  %8434 = vperm.xlu0 %8433, %v6699
  %v8435 = vpop.permute.xlu0 %8434
  %8436 = vset.pattern.permute.xlu0 5
  %8437 = vperm.xlu0 %8436, %v6700
  %v8438 = vpop.permute.xlu0 %8437
  %8439 = vset.pattern.permute.xlu0 5
  %8440 = vperm.xlu0 %8439, %v6701
  %v8441 = vpop.permute.xlu0 %8440
  %8442 = vset.pattern.permute.xlu0 5
  %8443 = vperm.xlu0 %8442, %v6702
  %v8444 = vpop.permute.xlu0 %8443
  %8445 = vset.pattern.permute.xlu0 5
  %8446 = vperm.xlu0 %8445, %v6703
  %v8447 = vpop.permute.xlu0 %8446
  %8448 = vset.pattern.permute.xlu0 5
  %8449 = vperm.xlu0 %8448, %v6704
  %v8450 = vpop.permute.xlu0 %8449
  %8451 = vset.pattern.permute.xlu0 5
  %8452 = vperm.xlu0 %8451, %v6705
  %v8453 = vpop.permute.xlu0 %8452
  %8454 = vset.pattern.permute.xlu0 5
  %8455 = vperm.xlu0 %8454, %v6706
  %v8456 = vpop.permute.xlu0 %8455
  %8457 = vset.pattern.permute.xlu0 5
  %8458 = vperm.xlu0 %8457, %v6707
  %v8459 = vpop.permute.xlu0 %8458
  %8460 = vset.pattern.permute.xlu0 5
  %8461 = vperm.xlu0 %8460, %v6708
  %v8462 = vpop.permute.xlu0 %8461
  %8463 = vset.pattern.permute.xlu0 5
  %8464 = vperm.xlu0 %8463, %v6709
  %v8465 = vpop.permute.xlu0 %8464
  %8466 = vset.pattern.permute.xlu0 5
  %8467 = vperm.xlu0 %8466, %v6710
  %v8468 = vpop.permute.xlu0 %8467
  %8469 = vset.pattern.permute.xlu0 5
  %8470 = vperm.xlu0 %8469, %v6711
  %v8471 = vpop.permute.xlu0 %8470
  %8472 = vset.pattern.permute.xlu0 5
  %8473 = vperm.xlu0 %8472, %v6712
  %v8474 = vpop.permute.xlu0 %8473
  %8475 = vset.pattern.permute.xlu0 5
  %8476 = vperm.xlu0 %8475, %v6713
  %v8477 = vpop.permute.xlu0 %8476
  %8478 = vset.pattern.permute.xlu0 5
  %8479 = vperm.xlu0 %8478, %v6714
  %v8480 = vpop.permute.xlu0 %8479
  %8481 = vset.pattern.permute.xlu0 5
  %8482 = vperm.xlu0 %8481, %v6715
  %v8483 = vpop.permute.xlu0 %8482
  %8484 = vset.pattern.permute.xlu0 5
  %8485 = vperm.xlu0 %8484, %v6716
  %v8486 = vpop.permute.xlu0 %8485
  %8487 = vset.pattern.permute.xlu0 5
  %8488 = vperm.xlu0 %8487, %v6717
  %v8489 = vpop.permute.xlu0 %8488
  %8490 = vset.pattern.permute.xlu0 5
  %8491 = vperm.xlu0 %8490, %v6718
  %v8492 = vpop.permute.xlu0 %8491
  %8493 = vset.pattern.permute.xlu0 5
  %8494 = vperm.xlu0 %8493, %v6719
  %v8495 = vpop.permute.xlu0 %8494
  %8496 = vset.pattern.permute.xlu0 5
  %8497 = vperm.xlu0 %8496, %v6720
  %v8498 = vpop.permute.xlu0 %8497
  %8499 = vset.pattern.permute.xlu0 5
  %8500 = vperm.xlu0 %8499, %v6721
  %v8501 = vpop.permute.xlu0 %8500
  %8502 = vset.pattern.permute.xlu0 5
  %8503 = vperm.xlu0 %8502, %v6722
  %v8504 = vpop.permute.xlu0 %8503
  %8505 = vset.pattern.permute.xlu0 5
  %8506 = vperm.xlu0 %8505, %v6723
  %v8507 = vpop.permute.xlu0 %8506
  %8508 = vset.pattern.permute.xlu0 5
  %8509 = vperm.xlu0 %8508, %v6724
  %v8510 = vpop.permute.xlu0 %8509
  %8511 = vset.pattern.permute.xlu0 5
  %8512 = vperm.xlu0 %8511, %v6725
  %v8513 = vpop.permute.xlu0 %8512
  %8514 = vset.pattern.permute.xlu0 5
  %8515 = vperm.xlu0 %8514, %v6726
  %v8516 = vpop.permute.xlu0 %8515
  %8517 = vset.pattern.permute.xlu0 5
  %8518 = vperm.xlu0 %8517, %v6727
  %v8519 = vpop.permute.xlu0 %8518
  %8520 = vset.pattern.permute.xlu0 5
  %8521 = vperm.xlu0 %8520, %v6728
  %v8522 = vpop.permute.xlu0 %8521
  %8523 = vset.pattern.permute.xlu0 5
  %8524 = vperm.xlu0 %8523, %v6729
  %v8525 = vpop.permute.xlu0 %8524
  %vm8526 = vcmp.eq.s32.totalorder %v55, %v8432
  %vm8527 = vcmp.eq.s32.totalorder %v55, %v8435
  %vm8528 = vcmp.eq.s32.totalorder %v55, %v8438
  %vm8529 = vcmp.eq.s32.totalorder %v55, %v8441
  %vm8530 = vcmp.eq.s32.totalorder %v55, %v8444
  %vm8531 = vcmp.eq.s32.totalorder %v55, %v8447
  %vm8532 = vcmp.eq.s32.totalorder %v55, %v8450
  %vm8533 = vcmp.eq.s32.totalorder %v55, %v8453
  %vm8534 = vcmp.eq.s32.totalorder %v55, %v8456
  %vm8535 = vcmp.eq.s32.totalorder %v55, %v8459
  %vm8536 = vcmp.eq.s32.totalorder %v55, %v8462
  %vm8537 = vcmp.eq.s32.totalorder %v55, %v8465
  %vm8538 = vcmp.eq.s32.totalorder %v55, %v8468
  %vm8539 = vcmp.eq.s32.totalorder %v55, %v8471
  %vm8540 = vcmp.eq.s32.totalorder %v55, %v8474
  %vm8541 = vcmp.eq.s32.totalorder %v55, %v8477
  %vm8542 = vcmp.eq.s32.totalorder %v55, %v8480
  %vm8543 = vcmp.eq.s32.totalorder %v55, %v8483
  %vm8544 = vcmp.eq.s32.totalorder %v55, %v8486
  %vm8545 = vcmp.eq.s32.totalorder %v55, %v8489
  %vm8546 = vcmp.eq.s32.totalorder %v55, %v8492
  %vm8547 = vcmp.eq.s32.totalorder %v55, %v8495
  %vm8548 = vcmp.eq.s32.totalorder %v55, %v8498
  %vm8549 = vcmp.eq.s32.totalorder %v55, %v8501
  %vm8550 = vcmp.eq.s32.totalorder %v55, %v8504
  %vm8551 = vcmp.eq.s32.totalorder %v55, %v8507
  %vm8552 = vcmp.eq.s32.totalorder %v55, %v8510
  %vm8553 = vcmp.eq.s32.totalorder %v55, %v8513
  %vm8554 = vcmp.eq.s32.totalorder %v55, %v8516
  %vm8555 = vcmp.eq.s32.totalorder %v55, %v8519
  %vm8556 = vcmp.eq.s32.totalorder %v55, %v8522
  %vm8557 = vcmp.eq.s32.totalorder %v55, %v8525
  %vm8558 = vmor %vm1723, %vm8526
  %vm8559 = vmor %vm1724, %vm8527
  %vm8560 = vmor %vm1725, %vm8528
  %vm8561 = vmor %vm1726, %vm8529
  %vm8562 = vmor %vm1727, %vm8530
  %vm8563 = vmor %vm1728, %vm8531
  %vm8564 = vmor %vm1729, %vm8532
  %vm8565 = vmor %vm1730, %vm8533
  %vm8566 = vmor %vm1731, %vm8534
  %vm8567 = vmor %vm1732, %vm8535
  %vm8568 = vmor %vm1733, %vm8536
  %vm8569 = vmor %vm1734, %vm8537
  %vm8570 = vmor %vm1735, %vm8538
  %vm8571 = vmor %vm1736, %vm8539
  %vm8572 = vmor %vm1737, %vm8540
  %vm8573 = vmor %vm1738, %vm8541
  %vm8574 = vmor %vm1739, %vm8542
  %vm8575 = vmor %vm1740, %vm8543
  %vm8576 = vmor %vm1741, %vm8544
  %vm8577 = vmor %vm1742, %vm8545
  %vm8578 = vmor %vm1743, %vm8546
  %vm8579 = vmor %vm1744, %vm8547
  %vm8580 = vmor %vm1745, %vm8548
  %vm8581 = vmor %vm1746, %vm8549
  %vm8582 = vmor %vm1747, %vm8550
  %vm8583 = vmor %vm1748, %vm8551
  %vm8584 = vmor %vm1749, %vm8552
  %vm8585 = vmor %vm1750, %vm8553
  %vm8586 = vmor %vm1751, %vm8554
  %vm8587 = vmor %vm1752, %vm8555
  %vm8588 = vmor %vm1753, %vm8556
  %vm8589 = vmor %vm1754, %vm8557
  %v8590 = vsel %vm8558, 1, 0
  %v8591 = vsel %vm8559, 1, 0
  %v8592 = vsel %vm8560, 1, 0
  %v8593 = vsel %vm8561, 1, 0
  %v8594 = vsel %vm8562, 1, 0
  %v8595 = vsel %vm8563, 1, 0
  %v8596 = vsel %vm8564, 1, 0
  %v8597 = vsel %vm8565, 1, 0
  %v8598 = vsel %vm8566, 1, 0
  %v8599 = vsel %vm8567, 1, 0
  %v8600 = vsel %vm8568, 1, 0
  %v8601 = vsel %vm8569, 1, 0
  %v8602 = vsel %vm8570, 1, 0
  %v8603 = vsel %vm8571, 1, 0
  %v8604 = vsel %vm8572, 1, 0
  %v8605 = vsel %vm8573, 1, 0
  %v8606 = vsel %vm8574, 1, 0
  %v8607 = vsel %vm8575, 1, 0
  %v8608 = vsel %vm8576, 1, 0
  %v8609 = vsel %vm8577, 1, 0
  %v8610 = vsel %vm8578, 1, 0
  %v8611 = vsel %vm8579, 1, 0
  %v8612 = vsel %vm8580, 1, 0
  %v8613 = vsel %vm8581, 1, 0
  %v8614 = vsel %vm8582, 1, 0
  %v8615 = vsel %vm8583, 1, 0
  %v8616 = vsel %vm8584, 1, 0
  %v8617 = vsel %vm8585, 1, 0
  %v8618 = vsel %vm8586, 1, 0
  %v8619 = vsel %vm8587, 1, 0
  %v8620 = vsel %vm8588, 1, 0
  %v8621 = vsel %vm8589, 1, 0
  %v8622 = vcvt.s32.f32 %v8590
  %v8623 = vcvt.s32.f32 %v8591
  %v8624 = vcvt.s32.f32 %v8592
  %v8625 = vcvt.s32.f32 %v8593
  %v8626 = vcvt.s32.f32 %v8594
  %v8627 = vcvt.s32.f32 %v8595
  %v8628 = vcvt.s32.f32 %v8596
  %v8629 = vcvt.s32.f32 %v8597
  %v8630 = vcvt.s32.f32 %v8598
  %v8631 = vcvt.s32.f32 %v8599
  %v8632 = vcvt.s32.f32 %v8600
  %v8633 = vcvt.s32.f32 %v8601
  %v8634 = vcvt.s32.f32 %v8602
  %v8635 = vcvt.s32.f32 %v8603
  %v8636 = vcvt.s32.f32 %v8604
  %v8637 = vcvt.s32.f32 %v8605
  %v8638 = vcvt.s32.f32 %v8606
  %v8639 = vcvt.s32.f32 %v8607
  %v8640 = vcvt.s32.f32 %v8608
  %v8641 = vcvt.s32.f32 %v8609
  %v8642 = vcvt.s32.f32 %v8610
  %v8643 = vcvt.s32.f32 %v8611
  %v8644 = vcvt.s32.f32 %v8612
  %v8645 = vcvt.s32.f32 %v8613
  %v8646 = vcvt.s32.f32 %v8614
  %v8647 = vcvt.s32.f32 %v8615
  %v8648 = vcvt.s32.f32 %v8616
  %v8649 = vcvt.s32.f32 %v8617
  %v8650 = vcvt.s32.f32 %v8618
  %v8651 = vcvt.s32.f32 %v8619
  %v8652 = vcvt.s32.f32 %v8620
  %v8653 = vcvt.s32.f32 %v8621
  %v8655 = vsel %vm6954, %v8622, 0
  %v8658 = vsel %vm6954, %v8623, 0
  %v8661 = vsel %vm6954, %v8624, 0
  %v8664 = vsel %vm6954, %v8625, 0
  %v8667 = vsel %vm6954, %v8626, 0
  %v8670 = vsel %vm6954, %v8627, 0
  %v8673 = vsel %vm6954, %v8628, 0
  %v8676 = vsel %vm6954, %v8629, 0
  %v8679 = vsel %vm6954, %v8630, 0
  %v8682 = vsel %vm6954, %v8631, 0
  %v8685 = vsel %vm6954, %v8632, 0
  %v8688 = vsel %vm6954, %v8633, 0
  %v8691 = vsel %vm6954, %v8634, 0
  %v8694 = vsel %vm6954, %v8635, 0
  %v8697 = vsel %vm6954, %v8636, 0
  %v8700 = vsel %vm6954, %v8637, 0
  %v8703 = vsel %vm6954, %v8638, 0
  %v8706 = vsel %vm6954, %v8639, 0
  %v8709 = vsel %vm6954, %v8640, 0
  %v8712 = vsel %vm6954, %v8641, 0
  %v8715 = vsel %vm6954, %v8642, 0
  %v8718 = vsel %vm6954, %v8643, 0
  %v8721 = vsel %vm6954, %v8644, 0
  %v8724 = vsel %vm6954, %v8645, 0
  %v8727 = vsel %vm6954, %v8646, 0
  %v8730 = vsel %vm6954, %v8647, 0
  %v8733 = vsel %vm6954, %v8648, 0
  %v8736 = vsel %vm6954, %v8649, 0
  %v8739 = vsel %vm6954, %v8650, 0
  %v8742 = vsel %vm6954, %v8651, 0
  %v8745 = vsel %vm6954, %v8652, 0
  %v8748 = vsel %vm6954, %v8653, 0
  %8750 = vmatprep.subr.mxu0 0.0
  %8751 = vmatpush1.msra.mxu0 %v6402
  %8752 = vmatprep.subr.mxu0 0.0
  %8753 = vmatpush1.msra.mxu0 %v6403
  %8754 = vmatprep.subr.mxu0 0.0
  %8755 = vmatpush1.msra.mxu0 %v6404
  %8756 = vmatprep.subr.mxu0 0.0
  %8757 = vmatpush1.msra.mxu0 %v6405
  %8758 = vmatprep.subr.mxu0 0.0
  %8759 = vmatpush1.msra.mxu0 %v6406
  %8760 = vmatprep.subr.mxu0 0.0
  %8761 = vmatpush1.msra.mxu0 %v6407
  %8762 = vmatprep.subr.mxu0 0.0
  %8763 = vmatpush1.msra.mxu0 %v6408
  %8764 = vmatprep.subr.mxu0 0.0
  %8765 = vmatpush1.msra.mxu0 %v6409
  %8766 = vmatprep.subr.mxu0 0.0
  %8767 = vmatpush1.msra.mxu0 0.0
  %8768 = vmatprep.subr.mxu0 0.0
  %8769 = vmatpush1.msra.mxu0 0.0
  %8770 = vmatprep.subr.mxu0 0.0
  %8771 = vmatpush1.msra.mxu0 0.0
  %8772 = vmatprep.subr.mxu0 0.0
  %8773 = vmatpush1.msra.mxu0 0.0
  %8774 = vmatprep.subr.mxu0 0.0
  %8775 = vmatpush1.msra.mxu0 0.0
  %8776 = vmatprep.subr.mxu0 0.0
  %8777 = vmatpush1.msra.mxu0 0.0
  %8778 = vmatprep.subr.mxu0 0.0
  %8779 = vmatpush1.msra.mxu0 0.0
  %8780 = vmatprep.subr.mxu0 0.0
  %8781 = vmatpush1.msra.mxu0 0.0
  %8782 = vmatprep.subr.mxu0 0.0
  %8783 = vmatpush1.msra.mxu0 0.0
  %8784 = vmatprep.subr.mxu0 0.0
  %8785 = vmatpush1.msra.mxu0 0.0
  %8786 = vmatprep.subr.mxu0 0.0
  %8787 = vmatpush1.msra.mxu0 0.0
  %8788 = vmatprep.subr.mxu0 0.0
  %8789 = vmatpush1.msra.mxu0 0.0
  %8790 = vmatprep.subr.mxu0 0.0
  %8791 = vmatpush1.msra.mxu0 0.0
  %8792 = vmatprep.subr.mxu0 0.0
  %8793 = vmatpush1.msra.mxu0 0.0
  %8794 = vmatprep.subr.mxu0 0.0
  %8795 = vmatpush1.msra.mxu0 0.0
  %8796 = vmatprep.subr.mxu0 0.0
  %8797 = vmatpush1.msra.mxu0 0.0
  %8798 = vmatprep.subr.mxu0 0.0
  %8799 = vmatpush1.msra.mxu0 0.0
  %8800 = vmatprep.subr.mxu0 0.0
  %8801 = vmatpush1.msra.mxu0 0.0
  %8802 = vmatprep.subr.mxu0 0.0
  %8803 = vmatpush1.msra.mxu0 0.0
  %8804 = vmatprep.subr.mxu0 0.0
  %8805 = vmatpush1.msra.mxu0 0.0
  %8806 = vmatprep.subr.mxu0 0.0
  %8807 = vmatpush1.msra.mxu0 0.0
  %8808 = vmatprep.subr.mxu0 0.0
  %8809 = vmatpush1.msra.mxu0 0.0
  %8810 = vmatprep.subr.mxu0 0.0
  %8811 = vmatpush1.msra.mxu0 0.0
  %8812 = vmatprep.subr.mxu0 0.0
  %8813 = vmatpush1.msra.mxu0 0.0
  %8814 = vmatprep.mubr.f32.mxu0 0.0
  %8815 = vmatmul.mubr.f32.gmra.mrb[0].mxu0 %v8655
  %v8816 = vpop.f32.mrb[0].mxu0
  %v8817 = vadd.f32 0.0, %v8816
  %v8818 = vpop.f32.mrb[0].mxu0
  %8819 = vmatprep.mubr.f32.mxu0 0.0
  %8820 = vmatmul.mubr.f32.gmra.mrb[0].mxu0 %v8658
  %v8821 = vpop.f32.mrb[0].mxu0
  %v8822 = vadd.f32 0.0, %v8821
  %v8823 = vpop.f32.mrb[0].mxu0
  %8824 = vmatprep.mubr.f32.mxu0 0.0
  %8825 = vmatmul.mubr.f32.gmra.mrb[0].mxu0 %v8661
  %v8826 = vpop.f32.mrb[0].mxu0
  %v8827 = vadd.f32 0.0, %v8826
  %v8828 = vpop.f32.mrb[0].mxu0
  %8829 = vmatprep.mubr.f32.mxu0 0.0
  %8830 = vmatmul.mubr.f32.gmra.mrb[0].mxu0 %v8664
  %v8831 = vpop.f32.mrb[0].mxu0
  %v8832 = vadd.f32 0.0, %v8831
  %v8833 = vpop.f32.mrb[0].mxu0
  %8834 = vmatprep.mubr.f32.mxu0 0.0
  %8835 = vmatmul.mubr.f32.gmra.mrb[0].mxu0 %v8667
  %v8836 = vpop.f32.mrb[0].mxu0
  %v8837 = vadd.f32 0.0, %v8836
  %v8838 = vpop.f32.mrb[0].mxu0
  %8839 = vmatprep.mubr.f32.mxu0 0.0
  %8840 = vmatmul.mubr.f32.gmra.mrb[0].mxu0 %v8670
  %v8841 = vpop.f32.mrb[0].mxu0
  %v8842 = vadd.f32 0.0, %v8841
  %v8843 = vpop.f32.mrb[0].mxu0
  %8844 = vmatprep.mubr.f32.mxu0 0.0
  %8845 = vmatmul.mubr.f32.gmra.mrb[0].mxu0 %v8673
  %v8846 = vpop.f32.mrb[0].mxu0
  %v8847 = vadd.f32 0.0, %v8846
  %v8848 = vpop.f32.mrb[0].mxu0
  %8849 = vmatprep.mubr.f32.mxu0 0.0
  %8850 = vmatmul.mubr.f32.gmra.mrb[0].mxu0 %v8676
  %v8851 = vpop.f32.mrb[0].mxu0
  %v8852 = vadd.f32 0.0, %v8851
  %v8853 = vpop.f32.mrb[0].mxu0
  %8854 = vmatprep.mubr.f32.mxu0 0.0
  %8855 = vmatmul.mubr.f32.gmra.mrb[0].mxu0 %v8679
  %v8856 = vpop.f32.mrb[0].mxu0
  %v8857 = vadd.f32 0.0, %v8856
  %v8858 = vpop.f32.mrb[0].mxu0
  %8859 = vmatprep.mubr.f32.mxu0 0.0
  %8860 = vmatmul.mubr.f32.gmra.mrb[0].mxu0 %v8682
  %v8861 = vpop.f32.mrb[0].mxu0
  %v8862 = vadd.f32 0.0, %v8861
  %v8863 = vpop.f32.mrb[0].mxu0
  %8864 = vmatprep.mubr.f32.mxu0 0.0
  %8865 = vmatmul.mubr.f32.gmra.mrb[0].mxu0 %v8685
  %v8866 = vpop.f32.mrb[0].mxu0
  %v8867 = vadd.f32 0.0, %v8866
  %v8868 = vpop.f32.mrb[0].mxu0
  %8869 = vmatprep.mubr.f32.mxu0 0.0
  %8870 = vmatmul.mubr.f32.gmra.mrb[0].mxu0 %v8688
  %v8871 = vpop.f32.mrb[0].mxu0
  %v8872 = vadd.f32 0.0, %v8871
  %v8873 = vpop.f32.mrb[0].mxu0
  %8874 = vmatprep.mubr.f32.mxu0 0.0
  %8875 = vmatmul.mubr.f32.gmra.mrb[0].mxu0 %v8691
  %v8876 = vpop.f32.mrb[0].mxu0
  %v8877 = vadd.f32 0.0, %v8876
  %v8878 = vpop.f32.mrb[0].mxu0
  %8879 = vmatprep.mubr.f32.mxu0 0.0
  %8880 = vmatmul.mubr.f32.gmra.mrb[0].mxu0 %v8694
  %v8881 = vpop.f32.mrb[0].mxu0
  %v8882 = vadd.f32 0.0, %v8881
  %v8883 = vpop.f32.mrb[0].mxu0
  %8884 = vmatprep.mubr.f32.mxu0 0.0
  %8885 = vmatmul.mubr.f32.gmra.mrb[0].mxu0 %v8697
  %v8886 = vpop.f32.mrb[0].mxu0
  %v8887 = vadd.f32 0.0, %v8886
  %v8888 = vpop.f32.mrb[0].mxu0
  %8889 = vmatprep.mubr.f32.mxu0 0.0
  %8890 = vmatmul.mubr.f32.gmra.mrb[0].mxu0 %v8700
  %v8891 = vpop.f32.mrb[0].mxu0
  %v8892 = vadd.f32 0.0, %v8891
  %v8893 = vpop.f32.mrb[0].mxu0
  %8894 = vmatprep.mubr.f32.mxu0 0.0
  %8895 = vmatmul.mubr.f32.gmra.mrb[0].mxu0 %v8703
  %v8896 = vpop.f32.mrb[0].mxu0
  %v8897 = vadd.f32 0.0, %v8896
  %v8898 = vpop.f32.mrb[0].mxu0
  %8899 = vmatprep.mubr.f32.mxu0 0.0
  %8900 = vmatmul.mubr.f32.gmra.mrb[0].mxu0 %v8706
  %v8901 = vpop.f32.mrb[0].mxu0
  %v8902 = vadd.f32 0.0, %v8901
  %v8903 = vpop.f32.mrb[0].mxu0
  %8904 = vmatprep.mubr.f32.mxu0 0.0
  %8905 = vmatmul.mubr.f32.gmra.mrb[0].mxu0 %v8709
  %v8906 = vpop.f32.mrb[0].mxu0
  %v8907 = vadd.f32 0.0, %v8906
  %v8908 = vpop.f32.mrb[0].mxu0
  %8909 = vmatprep.mubr.f32.mxu0 0.0
  %8910 = vmatmul.mubr.f32.gmra.mrb[0].mxu0 %v8712
  %v8911 = vpop.f32.mrb[0].mxu0
  %v8912 = vadd.f32 0.0, %v8911
  %v8913 = vpop.f32.mrb[0].mxu0
  %8914 = vmatprep.mubr.f32.mxu0 0.0
  %8915 = vmatmul.mubr.f32.gmra.mrb[0].mxu0 %v8715
  %v8916 = vpop.f32.mrb[0].mxu0
  %v8917 = vadd.f32 0.0, %v8916
  %v8918 = vpop.f32.mrb[0].mxu0
  %8919 = vmatprep.mubr.f32.mxu0 0.0
  %8920 = vmatmul.mubr.f32.gmra.mrb[0].mxu0 %v8718
  %v8921 = vpop.f32.mrb[0].mxu0
  %v8922 = vadd.f32 0.0, %v8921
  %v8923 = vpop.f32.mrb[0].mxu0
  %8924 = vmatprep.mubr.f32.mxu0 0.0
  %8925 = vmatmul.mubr.f32.gmra.mrb[0].mxu0 %v8721
  %v8926 = vpop.f32.mrb[0].mxu0
  %v8927 = vadd.f32 0.0, %v8926
  %v8928 = vpop.f32.mrb[0].mxu0
  %8929 = vmatprep.mubr.f32.mxu0 0.0
  %8930 = vmatmul.mubr.f32.gmra.mrb[0].mxu0 %v8724
  %v8931 = vpop.f32.mrb[0].mxu0
  %v8932 = vadd.f32 0.0, %v8931
  %v8933 = vpop.f32.mrb[0].mxu0
  %8934 = vmatprep.mubr.f32.mxu0 0.0
  %8935 = vmatmul.mubr.f32.gmra.mrb[0].mxu0 %v8727
  %v8936 = vpop.f32.mrb[0].mxu0
  %v8937 = vadd.f32 0.0, %v8936
  %v8938 = vpop.f32.mrb[0].mxu0
  %8939 = vmatprep.mubr.f32.mxu0 0.0
  %8940 = vmatmul.mubr.f32.gmra.mrb[0].mxu0 %v8730
  %v8941 = vpop.f32.mrb[0].mxu0
  %v8942 = vadd.f32 0.0, %v8941
  %v8943 = vpop.f32.mrb[0].mxu0
  %8944 = vmatprep.mubr.f32.mxu0 0.0
  %8945 = vmatmul.mubr.f32.gmra.mrb[0].mxu0 %v8733
  %v8946 = vpop.f32.mrb[0].mxu0
  %v8947 = vadd.f32 0.0, %v8946
  %v8948 = vpop.f32.mrb[0].mxu0
  %8949 = vmatprep.mubr.f32.mxu0 0.0
  %8950 = vmatmul.mubr.f32.gmra.mrb[0].mxu0 %v8736
  %v8951 = vpop.f32.mrb[0].mxu0
  %v8952 = vadd.f32 0.0, %v8951
  %v8953 = vpop.f32.mrb[0].mxu0
  %8954 = vmatprep.mubr.f32.mxu0 0.0
  %8955 = vmatmul.mubr.f32.gmra.mrb[0].mxu0 %v8739
  %v8956 = vpop.f32.mrb[0].mxu0
  %v8957 = vadd.f32 0.0, %v8956
  %v8958 = vpop.f32.mrb[0].mxu0
  %8959 = vmatprep.mubr.f32.mxu0 0.0
  %8960 = vmatmul.mubr.f32.gmra.mrb[0].mxu0 %v8742
  %v8961 = vpop.f32.mrb[0].mxu0
  %v8962 = vadd.f32 0.0, %v8961
  %v8963 = vpop.f32.mrb[0].mxu0
  %8964 = vmatprep.mubr.f32.mxu0 0.0
  %8965 = vmatmul.mubr.f32.gmra.mrb[0].mxu0 %v8745
  %v8966 = vpop.f32.mrb[0].mxu0
  %v8967 = vadd.f32 0.0, %v8966
  %v8968 = vpop.f32.mrb[0].mxu0
  %8969 = vmatprep.mubr.f32.mxu0 0.0
  %8970 = vmatmul.mubr.f32.gmra.mrb[0].mxu0 %v8748
  %v8971 = vpop.f32.mrb[0].mxu0
  %v8972 = vadd.f32 0.0, %v8971
  %v8973 = vpop.f32.mrb[0].mxu0
  %8974 = vdwg.mxu0
  %v8975 = vmax.f32 %v8398, %v8817
  %v8976 = vmax.f32 %v8399, %v8822
  %v8977 = vmax.f32 %v8400, %v8827
  %v8978 = vmax.f32 %v8401, %v8832
  %v8979 = vmax.f32 %v8402, %v8837
  %v8980 = vmax.f32 %v8403, %v8842
  %v8981 = vmax.f32 %v8404, %v8847
  %v8982 = vmax.f32 %v8405, %v8852
  %v8983 = vmax.f32 %v8406, %v8857
  %v8984 = vmax.f32 %v8407, %v8862
  %v8985 = vmax.f32 %v8408, %v8867
  %v8986 = vmax.f32 %v8409, %v8872
  %v8987 = vmax.f32 %v8410, %v8877
  %v8988 = vmax.f32 %v8411, %v8882
  %v8989 = vmax.f32 %v8412, %v8887
  %v8990 = vmax.f32 %v8413, %v8892
  %v8991 = vmax.f32 %v8414, %v8897
  %v8992 = vmax.f32 %v8415, %v8902
  %v8993 = vmax.f32 %v8416, %v8907
  %v8994 = vmax.f32 %v8417, %v8912
  %v8995 = vmax.f32 %v8418, %v8917
  %v8996 = vmax.f32 %v8419, %v8922
  %v8997 = vmax.f32 %v8420, %v8927
  %v8998 = vmax.f32 %v8421, %v8932
  %v8999 = vmax.f32 %v8422, %v8937
  %v9000 = vmax.f32 %v8423, %v8942
  %v9001 = vmax.f32 %v8424, %v8947
  %v9002 = vmax.f32 %v8425, %v8952
  %v9003 = vmax.f32 %v8426, %v8957
  %v9004 = vmax.f32 %v8427, %v8962
  %v9005 = vmax.f32 %v8428, %v8967
  %v9006 = vmax.f32 %v8429, %v8972
  %9007 = vset.pattern.permute.xlu0 6
  %9008 = vperm.xlu0 %9007, %v6698
  %v9009 = vpop.permute.xlu0 %9008
  %9010 = vset.pattern.permute.xlu0 6
  %9011 = vperm.xlu0 %9010, %v6699
  %v9012 = vpop.permute.xlu0 %9011
  %9013 = vset.pattern.permute.xlu0 6
  %9014 = vperm.xlu0 %9013, %v6700
  %v9015 = vpop.permute.xlu0 %9014
  %9016 = vset.pattern.permute.xlu0 6
  %9017 = vperm.xlu0 %9016, %v6701
  %v9018 = vpop.permute.xlu0 %9017
  %9019 = vset.pattern.permute.xlu0 6
  %9020 = vperm.xlu0 %9019, %v6702
  %v9021 = vpop.permute.xlu0 %9020
  %9022 = vset.pattern.permute.xlu0 6
  %9023 = vperm.xlu0 %9022, %v6703
  %v9024 = vpop.permute.xlu0 %9023
  %9025 = vset.pattern.permute.xlu0 6
  %9026 = vperm.xlu0 %9025, %v6704
  %v9027 = vpop.permute.xlu0 %9026
  %9028 = vset.pattern.permute.xlu0 6
  %9029 = vperm.xlu0 %9028, %v6705
  %v9030 = vpop.permute.xlu0 %9029
  %9031 = vset.pattern.permute.xlu0 6
  %9032 = vperm.xlu0 %9031, %v6706
  %v9033 = vpop.permute.xlu0 %9032
  %9034 = vset.pattern.permute.xlu0 6
  %9035 = vperm.xlu0 %9034, %v6707
  %v9036 = vpop.permute.xlu0 %9035
  %9037 = vset.pattern.permute.xlu0 6
  %9038 = vperm.xlu0 %9037, %v6708
  %v9039 = vpop.permute.xlu0 %9038
  %9040 = vset.pattern.permute.xlu0 6
  %9041 = vperm.xlu0 %9040, %v6709
  %v9042 = vpop.permute.xlu0 %9041
  %9043 = vset.pattern.permute.xlu0 6
  %9044 = vperm.xlu0 %9043, %v6710
  %v9045 = vpop.permute.xlu0 %9044
  %9046 = vset.pattern.permute.xlu0 6
  %9047 = vperm.xlu0 %9046, %v6711
  %v9048 = vpop.permute.xlu0 %9047
  %9049 = vset.pattern.permute.xlu0 6
  %9050 = vperm.xlu0 %9049, %v6712
  %v9051 = vpop.permute.xlu0 %9050
  %9052 = vset.pattern.permute.xlu0 6
  %9053 = vperm.xlu0 %9052, %v6713
  %v9054 = vpop.permute.xlu0 %9053
  %9055 = vset.pattern.permute.xlu0 6
  %9056 = vperm.xlu0 %9055, %v6714
  %v9057 = vpop.permute.xlu0 %9056
  %9058 = vset.pattern.permute.xlu0 6
  %9059 = vperm.xlu0 %9058, %v6715
  %v9060 = vpop.permute.xlu0 %9059
  %9061 = vset.pattern.permute.xlu0 6
  %9062 = vperm.xlu0 %9061, %v6716
  %v9063 = vpop.permute.xlu0 %9062
  %9064 = vset.pattern.permute.xlu0 6
  %9065 = vperm.xlu0 %9064, %v6717
  %v9066 = vpop.permute.xlu0 %9065
  %9067 = vset.pattern.permute.xlu0 6
  %9068 = vperm.xlu0 %9067, %v6718
  %v9069 = vpop.permute.xlu0 %9068
  %9070 = vset.pattern.permute.xlu0 6
  %9071 = vperm.xlu0 %9070, %v6719
  %v9072 = vpop.permute.xlu0 %9071
  %9073 = vset.pattern.permute.xlu0 6
  %9074 = vperm.xlu0 %9073, %v6720
  %v9075 = vpop.permute.xlu0 %9074
  %9076 = vset.pattern.permute.xlu0 6
  %9077 = vperm.xlu0 %9076, %v6721
  %v9078 = vpop.permute.xlu0 %9077
  %9079 = vset.pattern.permute.xlu0 6
  %9080 = vperm.xlu0 %9079, %v6722
  %v9081 = vpop.permute.xlu0 %9080
  %9082 = vset.pattern.permute.xlu0 6
  %9083 = vperm.xlu0 %9082, %v6723
  %v9084 = vpop.permute.xlu0 %9083
  %9085 = vset.pattern.permute.xlu0 6
  %9086 = vperm.xlu0 %9085, %v6724
  %v9087 = vpop.permute.xlu0 %9086
  %9088 = vset.pattern.permute.xlu0 6
  %9089 = vperm.xlu0 %9088, %v6725
  %v9090 = vpop.permute.xlu0 %9089
  %9091 = vset.pattern.permute.xlu0 6
  %9092 = vperm.xlu0 %9091, %v6726
  %v9093 = vpop.permute.xlu0 %9092
  %9094 = vset.pattern.permute.xlu0 6
  %9095 = vperm.xlu0 %9094, %v6727
  %v9096 = vpop.permute.xlu0 %9095
  %9097 = vset.pattern.permute.xlu0 6
  %9098 = vperm.xlu0 %9097, %v6728
  %v9099 = vpop.permute.xlu0 %9098
  %9100 = vset.pattern.permute.xlu0 6
  %9101 = vperm.xlu0 %9100, %v6729
  %v9102 = vpop.permute.xlu0 %9101
  %vm9103 = vcmp.eq.s32.totalorder %v55, %v9009
  %vm9104 = vcmp.eq.s32.totalorder %v55, %v9012
  %vm9105 = vcmp.eq.s32.totalorder %v55, %v9015
  %vm9106 = vcmp.eq.s32.totalorder %v55, %v9018
  %vm9107 = vcmp.eq.s32.totalorder %v55, %v9021
  %vm9108 = vcmp.eq.s32.totalorder %v55, %v9024
  %vm9109 = vcmp.eq.s32.totalorder %v55, %v9027
  %vm9110 = vcmp.eq.s32.totalorder %v55, %v9030
  %vm9111 = vcmp.eq.s32.totalorder %v55, %v9033
  %vm9112 = vcmp.eq.s32.totalorder %v55, %v9036
  %vm9113 = vcmp.eq.s32.totalorder %v55, %v9039
  %vm9114 = vcmp.eq.s32.totalorder %v55, %v9042
  %vm9115 = vcmp.eq.s32.totalorder %v55, %v9045
  %vm9116 = vcmp.eq.s32.totalorder %v55, %v9048
  %vm9117 = vcmp.eq.s32.totalorder %v55, %v9051
  %vm9118 = vcmp.eq.s32.totalorder %v55, %v9054
  %vm9119 = vcmp.eq.s32.totalorder %v55, %v9057
  %vm9120 = vcmp.eq.s32.totalorder %v55, %v9060
  %vm9121 = vcmp.eq.s32.totalorder %v55, %v9063
  %vm9122 = vcmp.eq.s32.totalorder %v55, %v9066
  %vm9123 = vcmp.eq.s32.totalorder %v55, %v9069
  %vm9124 = vcmp.eq.s32.totalorder %v55, %v9072
  %vm9125 = vcmp.eq.s32.totalorder %v55, %v9075
  %vm9126 = vcmp.eq.s32.totalorder %v55, %v9078
  %vm9127 = vcmp.eq.s32.totalorder %v55, %v9081
  %vm9128 = vcmp.eq.s32.totalorder %v55, %v9084
  %vm9129 = vcmp.eq.s32.totalorder %v55, %v9087
  %vm9130 = vcmp.eq.s32.totalorder %v55, %v9090
  %vm9131 = vcmp.eq.s32.totalorder %v55, %v9093
  %vm9132 = vcmp.eq.s32.totalorder %v55, %v9096
  %vm9133 = vcmp.eq.s32.totalorder %v55, %v9099
  %vm9134 = vcmp.eq.s32.totalorder %v55, %v9102
  %vm9135 = vmor %vm2428, %vm9103
  %vm9136 = vmor %vm2429, %vm9104
  %vm9137 = vmor %vm2430, %vm9105
  %vm9138 = vmor %vm2431, %vm9106
  %vm9139 = vmor %vm2432, %vm9107
  %vm9140 = vmor %vm2433, %vm9108
  %vm9141 = vmor %vm2434, %vm9109
  %vm9142 = vmor %vm2435, %vm9110
  %vm9143 = vmor %vm2436, %vm9111
  %vm9144 = vmor %vm2437, %vm9112
  %vm9145 = vmor %vm2438, %vm9113
  %vm9146 = vmor %vm2439, %vm9114
  %vm9147 = vmor %vm2440, %vm9115
  %vm9148 = vmor %vm2441, %vm9116
  %vm9149 = vmor %vm2442, %vm9117
  %vm9150 = vmor %vm2443, %vm9118
  %vm9151 = vmor %vm2444, %vm9119
  %vm9152 = vmor %vm2445, %vm9120
  %vm9153 = vmor %vm2446, %vm9121
  %vm9154 = vmor %vm2447, %vm9122
  %vm9155 = vmor %vm2448, %vm9123
  %vm9156 = vmor %vm2449, %vm9124
  %vm9157 = vmor %vm2450, %vm9125
  %vm9158 = vmor %vm2451, %vm9126
  %vm9159 = vmor %vm2452, %vm9127
  %vm9160 = vmor %vm2453, %vm9128
  %vm9161 = vmor %vm2454, %vm9129
  %vm9162 = vmor %vm2455, %vm9130
  %vm9163 = vmor %vm2456, %vm9131
  %vm9164 = vmor %vm2457, %vm9132
  %vm9165 = vmor %vm2458, %vm9133
  %vm9166 = vmor %vm2459, %vm9134
  %v9167 = vsel %vm9135, 1, 0
  %v9168 = vsel %vm9136, 1, 0
  %v9169 = vsel %vm9137, 1, 0
  %v9170 = vsel %vm9138, 1, 0
  %v9171 = vsel %vm9139, 1, 0
  %v9172 = vsel %vm9140, 1, 0
  %v9173 = vsel %vm9141, 1, 0
  %v9174 = vsel %vm9142, 1, 0
  %v9175 = vsel %vm9143, 1, 0
  %v9176 = vsel %vm9144, 1, 0
  %v9177 = vsel %vm9145, 1, 0
  %v9178 = vsel %vm9146, 1, 0
  %v9179 = vsel %vm9147, 1, 0
  %v9180 = vsel %vm9148, 1, 0
  %v9181 = vsel %vm9149, 1, 0
  %v9182 = vsel %vm9150, 1, 0
  %v9183 = vsel %vm9151, 1, 0
  %v9184 = vsel %vm9152, 1, 0
  %v9185 = vsel %vm9153, 1, 0
  %v9186 = vsel %vm9154, 1, 0
  %v9187 = vsel %vm9155, 1, 0
  %v9188 = vsel %vm9156, 1, 0
  %v9189 = vsel %vm9157, 1, 0
  %v9190 = vsel %vm9158, 1, 0
  %v9191 = vsel %vm9159, 1, 0
  %v9192 = vsel %vm9160, 1, 0
  %v9193 = vsel %vm9161, 1, 0
  %v9194 = vsel %vm9162, 1, 0
  %v9195 = vsel %vm9163, 1, 0
  %v9196 = vsel %vm9164, 1, 0
  %v9197 = vsel %vm9165, 1, 0
  %v9198 = vsel %vm9166, 1, 0
  %v9199 = vcvt.s32.f32 %v9167
  %v9200 = vcvt.s32.f32 %v9168
  %v9201 = vcvt.s32.f32 %v9169
  %v9202 = vcvt.s32.f32 %v9170
  %v9203 = vcvt.s32.f32 %v9171
  %v9204 = vcvt.s32.f32 %v9172
  %v9205 = vcvt.s32.f32 %v9173
  %v9206 = vcvt.s32.f32 %v9174
  %v9207 = vcvt.s32.f32 %v9175
  %v9208 = vcvt.s32.f32 %v9176
  %v9209 = vcvt.s32.f32 %v9177
  %v9210 = vcvt.s32.f32 %v9178
  %v9211 = vcvt.s32.f32 %v9179
  %v9212 = vcvt.s32.f32 %v9180
  %v9213 = vcvt.s32.f32 %v9181
  %v9214 = vcvt.s32.f32 %v9182
  %v9215 = vcvt.s32.f32 %v9183
  %v9216 = vcvt.s32.f32 %v9184
  %v9217 = vcvt.s32.f32 %v9185
  %v9218 = vcvt.s32.f32 %v9186
  %v9219 = vcvt.s32.f32 %v9187
  %v9220 = vcvt.s32.f32 %v9188
  %v9221 = vcvt.s32.f32 %v9189
  %v9222 = vcvt.s32.f32 %v9190
  %v9223 = vcvt.s32.f32 %v9191
  %v9224 = vcvt.s32.f32 %v9192
  %v9225 = vcvt.s32.f32 %v9193
  %v9226 = vcvt.s32.f32 %v9194
  %v9227 = vcvt.s32.f32 %v9195
  %v9228 = vcvt.s32.f32 %v9196
  %v9229 = vcvt.s32.f32 %v9197
  %v9230 = vcvt.s32.f32 %v9198
  %v9232 = vsel %vm6954, %v9199, 0
  %v9235 = vsel %vm6954, %v9200, 0
  %v9238 = vsel %vm6954, %v9201, 0
  %v9241 = vsel %vm6954, %v9202, 0
  %v9244 = vsel %vm6954, %v9203, 0
  %v9247 = vsel %vm6954, %v9204, 0
  %v9250 = vsel %vm6954, %v9205, 0
  %v9253 = vsel %vm6954, %v9206, 0
  %v9256 = vsel %vm6954, %v9207, 0
  %v9259 = vsel %vm6954, %v9208, 0
  %v9262 = vsel %vm6954, %v9209, 0
  %v9265 = vsel %vm6954, %v9210, 0
  %v9268 = vsel %vm6954, %v9211, 0
  %v9271 = vsel %vm6954, %v9212, 0
  %v9274 = vsel %vm6954, %v9213, 0
  %v9277 = vsel %vm6954, %v9214, 0
  %v9280 = vsel %vm6954, %v9215, 0
  %v9283 = vsel %vm6954, %v9216, 0
  %v9286 = vsel %vm6954, %v9217, 0
  %v9289 = vsel %vm6954, %v9218, 0
  %v9292 = vsel %vm6954, %v9219, 0
  %v9295 = vsel %vm6954, %v9220, 0
  %v9298 = vsel %vm6954, %v9221, 0
  %v9301 = vsel %vm6954, %v9222, 0
  %v9304 = vsel %vm6954, %v9223, 0
  %v9307 = vsel %vm6954, %v9224, 0
  %v9310 = vsel %vm6954, %v9225, 0
  %v9313 = vsel %vm6954, %v9226, 0
  %v9316 = vsel %vm6954, %v9227, 0
  %v9319 = vsel %vm6954, %v9228, 0
  %v9322 = vsel %vm6954, %v9229, 0
  %v9325 = vsel %vm6954, %v9230, 0
  %9327 = vmatprep.subr.mxu0 0.0
  %9328 = vmatpush1.msra.mxu0 %v6402
  %9329 = vmatprep.subr.mxu0 0.0
  %9330 = vmatpush1.msra.mxu0 %v6403
  %9331 = vmatprep.subr.mxu0 0.0
  %9332 = vmatpush1.msra.mxu0 %v6404
  %9333 = vmatprep.subr.mxu0 0.0
  %9334 = vmatpush1.msra.mxu0 %v6405
  %9335 = vmatprep.subr.mxu0 0.0
  %9336 = vmatpush1.msra.mxu0 %v6406
  %9337 = vmatprep.subr.mxu0 0.0
  %9338 = vmatpush1.msra.mxu0 %v6407
  %9339 = vmatprep.subr.mxu0 0.0
  %9340 = vmatpush1.msra.mxu0 %v6408
  %9341 = vmatprep.subr.mxu0 0.0
  %9342 = vmatpush1.msra.mxu0 %v6409
  %9343 = vmatprep.subr.mxu0 0.0
  %9344 = vmatpush1.msra.mxu0 0.0
  %9345 = vmatprep.subr.mxu0 0.0
  %9346 = vmatpush1.msra.mxu0 0.0
  %9347 = vmatprep.subr.mxu0 0.0
  %9348 = vmatpush1.msra.mxu0 0.0
  %9349 = vmatprep.subr.mxu0 0.0
  %9350 = vmatpush1.msra.mxu0 0.0
  %9351 = vmatprep.subr.mxu0 0.0
  %9352 = vmatpush1.msra.mxu0 0.0
  %9353 = vmatprep.subr.mxu0 0.0
  %9354 = vmatpush1.msra.mxu0 0.0
  %9355 = vmatprep.subr.mxu0 0.0
  %9356 = vmatpush1.msra.mxu0 0.0
  %9357 = vmatprep.subr.mxu0 0.0
  %9358 = vmatpush1.msra.mxu0 0.0
  %9359 = vmatprep.subr.mxu0 0.0
  %9360 = vmatpush1.msra.mxu0 0.0
  %9361 = vmatprep.subr.mxu0 0.0
  %9362 = vmatpush1.msra.mxu0 0.0
  %9363 = vmatprep.subr.mxu0 0.0
  %9364 = vmatpush1.msra.mxu0 0.0
  %9365 = vmatprep.subr.mxu0 0.0
  %9366 = vmatpush1.msra.mxu0 0.0
  %9367 = vmatprep.subr.mxu0 0.0
  %9368 = vmatpush1.msra.mxu0 0.0
  %9369 = vmatprep.subr.mxu0 0.0
  %9370 = vmatpush1.msra.mxu0 0.0
  %9371 = vmatprep.subr.mxu0 0.0
  %9372 = vmatpush1.msra.mxu0 0.0
  %9373 = vmatprep.subr.mxu0 0.0
  %9374 = vmatpush1.msra.mxu0 0.0
  %9375 = vmatprep.subr.mxu0 0.0
  %9376 = vmatpush1.msra.mxu0 0.0
  %9377 = vmatprep.subr.mxu0 0.0
  %9378 = vmatpush1.msra.mxu0 0.0
  %9379 = vmatprep.subr.mxu0 0.0
  %9380 = vmatpush1.msra.mxu0 0.0
  %9381 = vmatprep.subr.mxu0 0.0
  %9382 = vmatpush1.msra.mxu0 0.0
  %9383 = vmatprep.subr.mxu0 0.0
  %9384 = vmatpush1.msra.mxu0 0.0
  %9385 = vmatprep.subr.mxu0 0.0
  %9386 = vmatpush1.msra.mxu0 0.0
  %9387 = vmatprep.subr.mxu0 0.0
  %9388 = vmatpush1.msra.mxu0 0.0
  %9389 = vmatprep.subr.mxu0 0.0
  %9390 = vmatpush1.msra.mxu0 0.0
  %9391 = vmatprep.mubr.f32.mxu0 0.0
  %9392 = vmatmul.mubr.f32.gmra.mrb[0].mxu0 %v9232
  %v9393 = vpop.f32.mrb[0].mxu0
  %v9394 = vadd.f32 0.0, %v9393
  %v9395 = vpop.f32.mrb[0].mxu0
  %9396 = vmatprep.mubr.f32.mxu0 0.0
  %9397 = vmatmul.mubr.f32.gmra.mrb[0].mxu0 %v9235
  %v9398 = vpop.f32.mrb[0].mxu0
  %v9399 = vadd.f32 0.0, %v9398
  %v9400 = vpop.f32.mrb[0].mxu0
  %9401 = vmatprep.mubr.f32.mxu0 0.0
  %9402 = vmatmul.mubr.f32.gmra.mrb[0].mxu0 %v9238
  %v9403 = vpop.f32.mrb[0].mxu0
  %v9404 = vadd.f32 0.0, %v9403
  %v9405 = vpop.f32.mrb[0].mxu0
  %9406 = vmatprep.mubr.f32.mxu0 0.0
  %9407 = vmatmul.mubr.f32.gmra.mrb[0].mxu0 %v9241
  %v9408 = vpop.f32.mrb[0].mxu0
  %v9409 = vadd.f32 0.0, %v9408
  %v9410 = vpop.f32.mrb[0].mxu0
  %9411 = vmatprep.mubr.f32.mxu0 0.0
  %9412 = vmatmul.mubr.f32.gmra.mrb[0].mxu0 %v9244
  %v9413 = vpop.f32.mrb[0].mxu0
  %v9414 = vadd.f32 0.0, %v9413
  %v9415 = vpop.f32.mrb[0].mxu0
  %9416 = vmatprep.mubr.f32.mxu0 0.0
  %9417 = vmatmul.mubr.f32.gmra.mrb[0].mxu0 %v9247
  %v9418 = vpop.f32.mrb[0].mxu0
  %v9419 = vadd.f32 0.0, %v9418
  %v9420 = vpop.f32.mrb[0].mxu0
  %9421 = vmatprep.mubr.f32.mxu0 0.0
  %9422 = vmatmul.mubr.f32.gmra.mrb[0].mxu0 %v9250
  %v9423 = vpop.f32.mrb[0].mxu0
  %v9424 = vadd.f32 0.0, %v9423
  %v9425 = vpop.f32.mrb[0].mxu0
  %9426 = vmatprep.mubr.f32.mxu0 0.0
  %9427 = vmatmul.mubr.f32.gmra.mrb[0].mxu0 %v9253
  %v9428 = vpop.f32.mrb[0].mxu0
  %v9429 = vadd.f32 0.0, %v9428
  %v9430 = vpop.f32.mrb[0].mxu0
  %9431 = vmatprep.mubr.f32.mxu0 0.0
  %9432 = vmatmul.mubr.f32.gmra.mrb[0].mxu0 %v9256
  %v9433 = vpop.f32.mrb[0].mxu0
  %v9434 = vadd.f32 0.0, %v9433
  %v9435 = vpop.f32.mrb[0].mxu0
  %9436 = vmatprep.mubr.f32.mxu0 0.0
  %9437 = vmatmul.mubr.f32.gmra.mrb[0].mxu0 %v9259
  %v9438 = vpop.f32.mrb[0].mxu0
  %v9439 = vadd.f32 0.0, %v9438
  %v9440 = vpop.f32.mrb[0].mxu0
  %9441 = vmatprep.mubr.f32.mxu0 0.0
  %9442 = vmatmul.mubr.f32.gmra.mrb[0].mxu0 %v9262
  %v9443 = vpop.f32.mrb[0].mxu0
  %v9444 = vadd.f32 0.0, %v9443
  %v9445 = vpop.f32.mrb[0].mxu0
  %9446 = vmatprep.mubr.f32.mxu0 0.0
  %9447 = vmatmul.mubr.f32.gmra.mrb[0].mxu0 %v9265
  %v9448 = vpop.f32.mrb[0].mxu0
  %v9449 = vadd.f32 0.0, %v9448
  %v9450 = vpop.f32.mrb[0].mxu0
  %9451 = vmatprep.mubr.f32.mxu0 0.0
  %9452 = vmatmul.mubr.f32.gmra.mrb[0].mxu0 %v9268
  %v9453 = vpop.f32.mrb[0].mxu0
  %v9454 = vadd.f32 0.0, %v9453
  %v9455 = vpop.f32.mrb[0].mxu0
  %9456 = vmatprep.mubr.f32.mxu0 0.0
  %9457 = vmatmul.mubr.f32.gmra.mrb[0].mxu0 %v9271
  %v9458 = vpop.f32.mrb[0].mxu0
  %v9459 = vadd.f32 0.0, %v9458
  %v9460 = vpop.f32.mrb[0].mxu0
  %9461 = vmatprep.mubr.f32.mxu0 0.0
  %9462 = vmatmul.mubr.f32.gmra.mrb[0].mxu0 %v9274
  %v9463 = vpop.f32.mrb[0].mxu0
  %v9464 = vadd.f32 0.0, %v9463
  %v9465 = vpop.f32.mrb[0].mxu0
  %9466 = vmatprep.mubr.f32.mxu0 0.0
  %9467 = vmatmul.mubr.f32.gmra.mrb[0].mxu0 %v9277
  %v9468 = vpop.f32.mrb[0].mxu0
  %v9469 = vadd.f32 0.0, %v9468
  %v9470 = vpop.f32.mrb[0].mxu0
  %9471 = vmatprep.mubr.f32.mxu0 0.0
  %9472 = vmatmul.mubr.f32.gmra.mrb[0].mxu0 %v9280
  %v9473 = vpop.f32.mrb[0].mxu0
  %v9474 = vadd.f32 0.0, %v9473
  %v9475 = vpop.f32.mrb[0].mxu0
  %9476 = vmatprep.mubr.f32.mxu0 0.0
  %9477 = vmatmul.mubr.f32.gmra.mrb[0].mxu0 %v9283
  %v9478 = vpop.f32.mrb[0].mxu0
  %v9479 = vadd.f32 0.0, %v9478
  %v9480 = vpop.f32.mrb[0].mxu0
  %9481 = vmatprep.mubr.f32.mxu0 0.0
  %9482 = vmatmul.mubr.f32.gmra.mrb[0].mxu0 %v9286
  %v9483 = vpop.f32.mrb[0].mxu0
  %v9484 = vadd.f32 0.0, %v9483
  %v9485 = vpop.f32.mrb[0].mxu0
  %9486 = vmatprep.mubr.f32.mxu0 0.0
  %9487 = vmatmul.mubr.f32.gmra.mrb[0].mxu0 %v9289
  %v9488 = vpop.f32.mrb[0].mxu0
  %v9489 = vadd.f32 0.0, %v9488
  %v9490 = vpop.f32.mrb[0].mxu0
  %9491 = vmatprep.mubr.f32.mxu0 0.0
  %9492 = vmatmul.mubr.f32.gmra.mrb[0].mxu0 %v9292
  %v9493 = vpop.f32.mrb[0].mxu0
  %v9494 = vadd.f32 0.0, %v9493
  %v9495 = vpop.f32.mrb[0].mxu0
  %9496 = vmatprep.mubr.f32.mxu0 0.0
  %9497 = vmatmul.mubr.f32.gmra.mrb[0].mxu0 %v9295
  %v9498 = vpop.f32.mrb[0].mxu0
  %v9499 = vadd.f32 0.0, %v9498
  %v9500 = vpop.f32.mrb[0].mxu0
  %9501 = vmatprep.mubr.f32.mxu0 0.0
  %9502 = vmatmul.mubr.f32.gmra.mrb[0].mxu0 %v9298
  %v9503 = vpop.f32.mrb[0].mxu0
  %v9504 = vadd.f32 0.0, %v9503
  %v9505 = vpop.f32.mrb[0].mxu0
  %9506 = vmatprep.mubr.f32.mxu0 0.0
  %9507 = vmatmul.mubr.f32.gmra.mrb[0].mxu0 %v9301
  %v9508 = vpop.f32.mrb[0].mxu0
  %v9509 = vadd.f32 0.0, %v9508
  %v9510 = vpop.f32.mrb[0].mxu0
  %9511 = vmatprep.mubr.f32.mxu0 0.0
  %9512 = vmatmul.mubr.f32.gmra.mrb[0].mxu0 %v9304
  %v9513 = vpop.f32.mrb[0].mxu0
  %v9514 = vadd.f32 0.0, %v9513
  %v9515 = vpop.f32.mrb[0].mxu0
  %9516 = vmatprep.mubr.f32.mxu0 0.0
  %9517 = vmatmul.mubr.f32.gmra.mrb[0].mxu0 %v9307
  %v9518 = vpop.f32.mrb[0].mxu0
  %v9519 = vadd.f32 0.0, %v9518
  %v9520 = vpop.f32.mrb[0].mxu0
  %9521 = vmatprep.mubr.f32.mxu0 0.0
  %9522 = vmatmul.mubr.f32.gmra.mrb[0].mxu0 %v9310
  %v9523 = vpop.f32.mrb[0].mxu0
  %v9524 = vadd.f32 0.0, %v9523
  %v9525 = vpop.f32.mrb[0].mxu0
  %9526 = vmatprep.mubr.f32.mxu0 0.0
  %9527 = vmatmul.mubr.f32.gmra.mrb[0].mxu0 %v9313
  %v9528 = vpop.f32.mrb[0].mxu0
  %v9529 = vadd.f32 0.0, %v9528
  %v9530 = vpop.f32.mrb[0].mxu0
  %9531 = vmatprep.mubr.f32.mxu0 0.0
  %9532 = vmatmul.mubr.f32.gmra.mrb[0].mxu0 %v9316
  %v9533 = vpop.f32.mrb[0].mxu0
  %v9534 = vadd.f32 0.0, %v9533
  %v9535 = vpop.f32.mrb[0].mxu0
  %9536 = vmatprep.mubr.f32.mxu0 0.0
  %9537 = vmatmul.mubr.f32.gmra.mrb[0].mxu0 %v9319
  %v9538 = vpop.f32.mrb[0].mxu0
  %v9539 = vadd.f32 0.0, %v9538
  %v9540 = vpop.f32.mrb[0].mxu0
  %9541 = vmatprep.mubr.f32.mxu0 0.0
  %9542 = vmatmul.mubr.f32.gmra.mrb[0].mxu0 %v9322
  %v9543 = vpop.f32.mrb[0].mxu0
  %v9544 = vadd.f32 0.0, %v9543
  %v9545 = vpop.f32.mrb[0].mxu0
  %9546 = vmatprep.mubr.f32.mxu0 0.0
  %9547 = vmatmul.mubr.f32.gmra.mrb[0].mxu0 %v9325
  %v9548 = vpop.f32.mrb[0].mxu0
  %v9549 = vadd.f32 0.0, %v9548
  %v9550 = vpop.f32.mrb[0].mxu0
  %9551 = vdwg.mxu0
  %v9552 = vmax.f32 %v8975, %v9394
  %v9553 = vmax.f32 %v8976, %v9399
  %v9554 = vmax.f32 %v8977, %v9404
  %v9555 = vmax.f32 %v8978, %v9409
  %v9556 = vmax.f32 %v8979, %v9414
  %v9557 = vmax.f32 %v8980, %v9419
  %v9558 = vmax.f32 %v8981, %v9424
  %v9559 = vmax.f32 %v8982, %v9429
  %v9560 = vmax.f32 %v8983, %v9434
  %v9561 = vmax.f32 %v8984, %v9439
  %v9562 = vmax.f32 %v8985, %v9444
  %v9563 = vmax.f32 %v8986, %v9449
  %v9564 = vmax.f32 %v8987, %v9454
  %v9565 = vmax.f32 %v8988, %v9459
  %v9566 = vmax.f32 %v8989, %v9464
  %v9567 = vmax.f32 %v8990, %v9469
  %v9568 = vmax.f32 %v8991, %v9474
  %v9569 = vmax.f32 %v8992, %v9479
  %v9570 = vmax.f32 %v8993, %v9484
  %v9571 = vmax.f32 %v8994, %v9489
  %v9572 = vmax.f32 %v8995, %v9494
  %v9573 = vmax.f32 %v8996, %v9499
  %v9574 = vmax.f32 %v8997, %v9504
  %v9575 = vmax.f32 %v8998, %v9509
  %v9576 = vmax.f32 %v8999, %v9514
  %v9577 = vmax.f32 %v9000, %v9519
  %v9578 = vmax.f32 %v9001, %v9524
  %v9579 = vmax.f32 %v9002, %v9529
  %v9580 = vmax.f32 %v9003, %v9534
  %v9581 = vmax.f32 %v9004, %v9539
  %v9582 = vmax.f32 %v9005, %v9544
  %v9583 = vmax.f32 %v9006, %v9549
  %9584 = vset.pattern.permute.xlu0 7
  %9585 = vperm.xlu0 %9584, %v6698
  %v9586 = vpop.permute.xlu0 %9585
  %9587 = vset.pattern.permute.xlu0 7
  %9588 = vperm.xlu0 %9587, %v6699
  %v9589 = vpop.permute.xlu0 %9588
  %9590 = vset.pattern.permute.xlu0 7
  %9591 = vperm.xlu0 %9590, %v6700
  %v9592 = vpop.permute.xlu0 %9591
  %9593 = vset.pattern.permute.xlu0 7
  %9594 = vperm.xlu0 %9593, %v6701
  %v9595 = vpop.permute.xlu0 %9594
  %9596 = vset.pattern.permute.xlu0 7
  %9597 = vperm.xlu0 %9596, %v6702
  %v9598 = vpop.permute.xlu0 %9597
  %9599 = vset.pattern.permute.xlu0 7
  %9600 = vperm.xlu0 %9599, %v6703
  %v9601 = vpop.permute.xlu0 %9600
  %9602 = vset.pattern.permute.xlu0 7
  %9603 = vperm.xlu0 %9602, %v6704
  %v9604 = vpop.permute.xlu0 %9603
  %9605 = vset.pattern.permute.xlu0 7
  %9606 = vperm.xlu0 %9605, %v6705
  %v9607 = vpop.permute.xlu0 %9606
  %9608 = vset.pattern.permute.xlu0 7
  %9609 = vperm.xlu0 %9608, %v6706
  %v9610 = vpop.permute.xlu0 %9609
  %9611 = vset.pattern.permute.xlu0 7
  %9612 = vperm.xlu0 %9611, %v6707
  %v9613 = vpop.permute.xlu0 %9612
  %9614 = vset.pattern.permute.xlu0 7
  %9615 = vperm.xlu0 %9614, %v6708
  %v9616 = vpop.permute.xlu0 %9615
  %9617 = vset.pattern.permute.xlu0 7
  %9618 = vperm.xlu0 %9617, %v6709
  %v9619 = vpop.permute.xlu0 %9618
  %9620 = vset.pattern.permute.xlu0 7
  %9621 = vperm.xlu0 %9620, %v6710
  %v9622 = vpop.permute.xlu0 %9621
  %9623 = vset.pattern.permute.xlu0 7
  %9624 = vperm.xlu0 %9623, %v6711
  %v9625 = vpop.permute.xlu0 %9624
  %9626 = vset.pattern.permute.xlu0 7
  %9627 = vperm.xlu0 %9626, %v6712
  %v9628 = vpop.permute.xlu0 %9627
  %9629 = vset.pattern.permute.xlu0 7
  %9630 = vperm.xlu0 %9629, %v6713
  %v9631 = vpop.permute.xlu0 %9630
  %9632 = vset.pattern.permute.xlu0 7
  %9633 = vperm.xlu0 %9632, %v6714
  %v9634 = vpop.permute.xlu0 %9633
  %9635 = vset.pattern.permute.xlu0 7
  %9636 = vperm.xlu0 %9635, %v6715
  %v9637 = vpop.permute.xlu0 %9636
  %9638 = vset.pattern.permute.xlu0 7
  %9639 = vperm.xlu0 %9638, %v6716
  %v9640 = vpop.permute.xlu0 %9639
  %9641 = vset.pattern.permute.xlu0 7
  %9642 = vperm.xlu0 %9641, %v6717
  %v9643 = vpop.permute.xlu0 %9642
  %9644 = vset.pattern.permute.xlu0 7
  %9645 = vperm.xlu0 %9644, %v6718
  %v9646 = vpop.permute.xlu0 %9645
  %9647 = vset.pattern.permute.xlu0 7
  %9648 = vperm.xlu0 %9647, %v6719
  %v9649 = vpop.permute.xlu0 %9648
  %9650 = vset.pattern.permute.xlu0 7
  %9651 = vperm.xlu0 %9650, %v6720
  %v9652 = vpop.permute.xlu0 %9651
  %9653 = vset.pattern.permute.xlu0 7
  %9654 = vperm.xlu0 %9653, %v6721
  %v9655 = vpop.permute.xlu0 %9654
  %9656 = vset.pattern.permute.xlu0 7
  %9657 = vperm.xlu0 %9656, %v6722
  %v9658 = vpop.permute.xlu0 %9657
  %9659 = vset.pattern.permute.xlu0 7
  %9660 = vperm.xlu0 %9659, %v6723
  %v9661 = vpop.permute.xlu0 %9660
  %9662 = vset.pattern.permute.xlu0 7
  %9663 = vperm.xlu0 %9662, %v6724
  %v9664 = vpop.permute.xlu0 %9663
  %9665 = vset.pattern.permute.xlu0 7
  %9666 = vperm.xlu0 %9665, %v6725
  %v9667 = vpop.permute.xlu0 %9666
  %9668 = vset.pattern.permute.xlu0 7
  %9669 = vperm.xlu0 %9668, %v6726
  %v9670 = vpop.permute.xlu0 %9669
  %9671 = vset.pattern.permute.xlu0 7
  %9672 = vperm.xlu0 %9671, %v6727
  %v9673 = vpop.permute.xlu0 %9672
  %9674 = vset.pattern.permute.xlu0 7
  %9675 = vperm.xlu0 %9674, %v6728
  %v9676 = vpop.permute.xlu0 %9675
  %9677 = vset.pattern.permute.xlu0 7
  %9678 = vperm.xlu0 %9677, %v6729
  %v9679 = vpop.permute.xlu0 %9678
  %vm9680 = vcmp.eq.s32.totalorder %v55, %v9586
  %vm9681 = vcmp.eq.s32.totalorder %v55, %v9589
  %vm9682 = vcmp.eq.s32.totalorder %v55, %v9592
  %vm9683 = vcmp.eq.s32.totalorder %v55, %v9595
  %vm9684 = vcmp.eq.s32.totalorder %v55, %v9598
  %vm9685 = vcmp.eq.s32.totalorder %v55, %v9601
  %vm9686 = vcmp.eq.s32.totalorder %v55, %v9604
  %vm9687 = vcmp.eq.s32.totalorder %v55, %v9607
  %vm9688 = vcmp.eq.s32.totalorder %v55, %v9610
  %vm9689 = vcmp.eq.s32.totalorder %v55, %v9613
  %vm9690 = vcmp.eq.s32.totalorder %v55, %v9616
  %vm9691 = vcmp.eq.s32.totalorder %v55, %v9619
  %vm9692 = vcmp.eq.s32.totalorder %v55, %v9622
  %vm9693 = vcmp.eq.s32.totalorder %v55, %v9625
  %vm9694 = vcmp.eq.s32.totalorder %v55, %v9628
  %vm9695 = vcmp.eq.s32.totalorder %v55, %v9631
  %vm9696 = vcmp.eq.s32.totalorder %v55, %v9634
  %vm9697 = vcmp.eq.s32.totalorder %v55, %v9637
  %vm9698 = vcmp.eq.s32.totalorder %v55, %v9640
  %vm9699 = vcmp.eq.s32.totalorder %v55, %v9643
  %vm9700 = vcmp.eq.s32.totalorder %v55, %v9646
  %vm9701 = vcmp.eq.s32.totalorder %v55, %v9649
  %vm9702 = vcmp.eq.s32.totalorder %v55, %v9652
  %vm9703 = vcmp.eq.s32.totalorder %v55, %v9655
  %vm9704 = vcmp.eq.s32.totalorder %v55, %v9658
  %vm9705 = vcmp.eq.s32.totalorder %v55, %v9661
  %vm9706 = vcmp.eq.s32.totalorder %v55, %v9664
  %vm9707 = vcmp.eq.s32.totalorder %v55, %v9667
  %vm9708 = vcmp.eq.s32.totalorder %v55, %v9670
  %vm9709 = vcmp.eq.s32.totalorder %v55, %v9673
  %vm9710 = vcmp.eq.s32.totalorder %v55, %v9676
  %vm9711 = vcmp.eq.s32.totalorder %v55, %v9679
  %vm9712 = vmor %vm3133, %vm9680
  %vm9713 = vmor %vm3134, %vm9681
  %vm9714 = vmor %vm3135, %vm9682
  %vm9715 = vmor %vm3136, %vm9683
  %vm9716 = vmor %vm3137, %vm9684
  %vm9717 = vmor %vm3138, %vm9685
  %vm9718 = vmor %vm3139, %vm9686
  %vm9719 = vmor %vm3140, %vm9687
  %vm9720 = vmor %vm3141, %vm9688
  %vm9721 = vmor %vm3142, %vm9689
  %vm9722 = vmor %vm3143, %vm9690
  %vm9723 = vmor %vm3144, %vm9691
  %vm9724 = vmor %vm3145, %vm9692
  %vm9725 = vmor %vm3146, %vm9693
  %vm9726 = vmor %vm3147, %vm9694
  %vm9727 = vmor %vm3148, %vm9695
  %vm9728 = vmor %vm3149, %vm9696
  %vm9729 = vmor %vm3150, %vm9697
  %vm9730 = vmor %vm3151, %vm9698
  %vm9731 = vmor %vm3152, %vm9699
  %vm9732 = vmor %vm3153, %vm9700
  %vm9733 = vmor %vm3154, %vm9701
  %vm9734 = vmor %vm3155, %vm9702
  %vm9735 = vmor %vm3156, %vm9703
  %vm9736 = vmor %vm3157, %vm9704
  %vm9737 = vmor %vm3158, %vm9705
  %vm9738 = vmor %vm3159, %vm9706
  %vm9739 = vmor %vm3160, %vm9707
  %vm9740 = vmor %vm3161, %vm9708
  %vm9741 = vmor %vm3162, %vm9709
  %vm9742 = vmor %vm3163, %vm9710
  %vm9743 = vmor %vm3164, %vm9711
  %v9744 = vsel %vm9712, 1, 0
  %v9745 = vsel %vm9713, 1, 0
  %v9746 = vsel %vm9714, 1, 0
  %v9747 = vsel %vm9715, 1, 0
  %v9748 = vsel %vm9716, 1, 0
  %v9749 = vsel %vm9717, 1, 0
  %v9750 = vsel %vm9718, 1, 0
  %v9751 = vsel %vm9719, 1, 0
  %v9752 = vsel %vm9720, 1, 0
  %v9753 = vsel %vm9721, 1, 0
  %v9754 = vsel %vm9722, 1, 0
  %v9755 = vsel %vm9723, 1, 0
  %v9756 = vsel %vm9724, 1, 0
  %v9757 = vsel %vm9725, 1, 0
  %v9758 = vsel %vm9726, 1, 0
  %v9759 = vsel %vm9727, 1, 0
  %v9760 = vsel %vm9728, 1, 0
  %v9761 = vsel %vm9729, 1, 0
  %v9762 = vsel %vm9730, 1, 0
  %v9763 = vsel %vm9731, 1, 0
  %v9764 = vsel %vm9732, 1, 0
  %v9765 = vsel %vm9733, 1, 0
  %v9766 = vsel %vm9734, 1, 0
  %v9767 = vsel %vm9735, 1, 0
  %v9768 = vsel %vm9736, 1, 0
  %v9769 = vsel %vm9737, 1, 0
  %v9770 = vsel %vm9738, 1, 0
  %v9771 = vsel %vm9739, 1, 0
  %v9772 = vsel %vm9740, 1, 0
  %v9773 = vsel %vm9741, 1, 0
  %v9774 = vsel %vm9742, 1, 0
  %v9775 = vsel %vm9743, 1, 0
  %v9776 = vcvt.s32.f32 %v9744
  %v9777 = vcvt.s32.f32 %v9745
  %v9778 = vcvt.s32.f32 %v9746
  %v9779 = vcvt.s32.f32 %v9747
  %v9780 = vcvt.s32.f32 %v9748
  %v9781 = vcvt.s32.f32 %v9749
  %v9782 = vcvt.s32.f32 %v9750
  %v9783 = vcvt.s32.f32 %v9751
  %v9784 = vcvt.s32.f32 %v9752
  %v9785 = vcvt.s32.f32 %v9753
  %v9786 = vcvt.s32.f32 %v9754
  %v9787 = vcvt.s32.f32 %v9755
  %v9788 = vcvt.s32.f32 %v9756
  %v9789 = vcvt.s32.f32 %v9757
  %v9790 = vcvt.s32.f32 %v9758
  %v9791 = vcvt.s32.f32 %v9759
  %v9792 = vcvt.s32.f32 %v9760
  %v9793 = vcvt.s32.f32 %v9761
  %v9794 = vcvt.s32.f32 %v9762
  %v9795 = vcvt.s32.f32 %v9763
  %v9796 = vcvt.s32.f32 %v9764
  %v9797 = vcvt.s32.f32 %v9765
  %v9798 = vcvt.s32.f32 %v9766
  %v9799 = vcvt.s32.f32 %v9767
  %v9800 = vcvt.s32.f32 %v9768
  %v9801 = vcvt.s32.f32 %v9769
  %v9802 = vcvt.s32.f32 %v9770
  %v9803 = vcvt.s32.f32 %v9771
  %v9804 = vcvt.s32.f32 %v9772
  %v9805 = vcvt.s32.f32 %v9773
  %v9806 = vcvt.s32.f32 %v9774
  %v9807 = vcvt.s32.f32 %v9775
  %v9809 = vsel %vm6954, %v9776, 0
  %v9812 = vsel %vm6954, %v9777, 0
  %v9815 = vsel %vm6954, %v9778, 0
  %v9818 = vsel %vm6954, %v9779, 0
  %v9821 = vsel %vm6954, %v9780, 0
  %v9824 = vsel %vm6954, %v9781, 0
  %v9827 = vsel %vm6954, %v9782, 0
  %v9830 = vsel %vm6954, %v9783, 0
  %v9833 = vsel %vm6954, %v9784, 0
  %v9836 = vsel %vm6954, %v9785, 0
  %v9839 = vsel %vm6954, %v9786, 0
  %v9842 = vsel %vm6954, %v9787, 0
  %v9845 = vsel %vm6954, %v9788, 0
  %v9848 = vsel %vm6954, %v9789, 0
  %v9851 = vsel %vm6954, %v9790, 0
  %v9854 = vsel %vm6954, %v9791, 0
  %v9857 = vsel %vm6954, %v9792, 0
  %v9860 = vsel %vm6954, %v9793, 0
  %v9863 = vsel %vm6954, %v9794, 0
  %v9866 = vsel %vm6954, %v9795, 0
  %v9869 = vsel %vm6954, %v9796, 0
  %v9872 = vsel %vm6954, %v9797, 0
  %v9875 = vsel %vm6954, %v9798, 0
  %v9878 = vsel %vm6954, %v9799, 0
  %v9881 = vsel %vm6954, %v9800, 0
  %v9884 = vsel %vm6954, %v9801, 0
  %v9887 = vsel %vm6954, %v9802, 0
  %v9890 = vsel %vm6954, %v9803, 0
  %v9893 = vsel %vm6954, %v9804, 0
  %v9896 = vsel %vm6954, %v9805, 0
  %v9899 = vsel %vm6954, %v9806, 0
  %v9902 = vsel %vm6954, %v9807, 0
  %9904 = vmatprep.subr.mxu0 0.0
  %9905 = vmatpush1.msra.mxu0 %v6402
  %9906 = vmatprep.subr.mxu0 0.0
  %9907 = vmatpush1.msra.mxu0 %v6403
  %9908 = vmatprep.subr.mxu0 0.0
  %9909 = vmatpush1.msra.mxu0 %v6404
  %9910 = vmatprep.subr.mxu0 0.0
  %9911 = vmatpush1.msra.mxu0 %v6405
  %9912 = vmatprep.subr.mxu0 0.0
  %9913 = vmatpush1.msra.mxu0 %v6406
  %9914 = vmatprep.subr.mxu0 0.0
  %9915 = vmatpush1.msra.mxu0 %v6407
  %9916 = vmatprep.subr.mxu0 0.0
  %9917 = vmatpush1.msra.mxu0 %v6408
  %9918 = vmatprep.subr.mxu0 0.0
  %9919 = vmatpush1.msra.mxu0 %v6409
  %9920 = vmatprep.subr.mxu0 0.0
  %9921 = vmatpush1.msra.mxu0 0.0
  %9922 = vmatprep.subr.mxu0 0.0
  %9923 = vmatpush1.msra.mxu0 0.0
  %9924 = vmatprep.subr.mxu0 0.0
  %9925 = vmatpush1.msra.mxu0 0.0
  %9926 = vmatprep.subr.mxu0 0.0
  %9927 = vmatpush1.msra.mxu0 0.0
  %9928 = vmatprep.subr.mxu0 0.0
  %9929 = vmatpush1.msra.mxu0 0.0
  %9930 = vmatprep.subr.mxu0 0.0
  %9931 = vmatpush1.msra.mxu0 0.0
  %9932 = vmatprep.subr.mxu0 0.0
  %9933 = vmatpush1.msra.mxu0 0.0
  %9934 = vmatprep.subr.mxu0 0.0
  %9935 = vmatpush1.msra.mxu0 0.0
  %9936 = vmatprep.subr.mxu0 0.0
  %9937 = vmatpush1.msra.mxu0 0.0
  %9938 = vmatprep.subr.mxu0 0.0
  %9939 = vmatpush1.msra.mxu0 0.0
  %9940 = vmatprep.subr.mxu0 0.0
  %9941 = vmatpush1.msra.mxu0 0.0
  %9942 = vmatprep.subr.mxu0 0.0
  %9943 = vmatpush1.msra.mxu0 0.0
  %9944 = vmatprep.subr.mxu0 0.0
  %9945 = vmatpush1.msra.mxu0 0.0
  %9946 = vmatprep.subr.mxu0 0.0
  %9947 = vmatpush1.msra.mxu0 0.0
  %9948 = vmatprep.subr.mxu0 0.0
  %9949 = vmatpush1.msra.mxu0 0.0
  %9950 = vmatprep.subr.mxu0 0.0
  %9951 = vmatpush1.msra.mxu0 0.0
  %9952 = vmatprep.subr.mxu0 0.0
  %9953 = vmatpush1.msra.mxu0 0.0
  %9954 = vmatprep.subr.mxu0 0.0
  %9955 = vmatpush1.msra.mxu0 0.0
  %9956 = vmatprep.subr.mxu0 0.0
  %9957 = vmatpush1.msra.mxu0 0.0
  %9958 = vmatprep.subr.mxu0 0.0
  %9959 = vmatpush1.msra.mxu0 0.0
  %9960 = vmatprep.subr.mxu0 0.0
  %9961 = vmatpush1.msra.mxu0 0.0
  %9962 = vmatprep.subr.mxu0 0.0
  %9963 = vmatpush1.msra.mxu0 0.0
  %9964 = vmatprep.subr.mxu0 0.0
  %9965 = vmatpush1.msra.mxu0 0.0
  %9966 = vmatprep.subr.mxu0 0.0
  %9967 = vmatpush1.msra.mxu0 0.0
  %9968 = vmatprep.mubr.f32.mxu0 0.0
  %9969 = vmatmul.mubr.f32.gmra.mrb[0].mxu0 %v9809
  %v9970 = vpop.f32.mrb[0].mxu0
  %v9971 = vadd.f32 0.0, %v9970
  %v9972 = vpop.f32.mrb[0].mxu0
  %9973 = vmatprep.mubr.f32.mxu0 0.0
  %9974 = vmatmul.mubr.f32.gmra.mrb[0].mxu0 %v9812
  %v9975 = vpop.f32.mrb[0].mxu0
  %v9976 = vadd.f32 0.0, %v9975
  %v9977 = vpop.f32.mrb[0].mxu0
  %9978 = vmatprep.mubr.f32.mxu0 0.0
  %9979 = vmatmul.mubr.f32.gmra.mrb[0].mxu0 %v9815
  %v9980 = vpop.f32.mrb[0].mxu0
  %v9981 = vadd.f32 0.0, %v9980
  %v9982 = vpop.f32.mrb[0].mxu0
  %9983 = vmatprep.mubr.f32.mxu0 0.0
  %9984 = vmatmul.mubr.f32.gmra.mrb[0].mxu0 %v9818
  %v9985 = vpop.f32.mrb[0].mxu0
  %v9986 = vadd.f32 0.0, %v9985
  %v9987 = vpop.f32.mrb[0].mxu0
  %9988 = vmatprep.mubr.f32.mxu0 0.0
  %9989 = vmatmul.mubr.f32.gmra.mrb[0].mxu0 %v9821
  %v9990 = vpop.f32.mrb[0].mxu0
  %v9991 = vadd.f32 0.0, %v9990
  %v9992 = vpop.f32.mrb[0].mxu0
  %9993 = vmatprep.mubr.f32.mxu0 0.0
  %9994 = vmatmul.mubr.f32.gmra.mrb[0].mxu0 %v9824
  %v9995 = vpop.f32.mrb[0].mxu0
  %v9996 = vadd.f32 0.0, %v9995
  %v9997 = vpop.f32.mrb[0].mxu0
  %9998 = vmatprep.mubr.f32.mxu0 0.0
  %9999 = vmatmul.mubr.f32.gmra.mrb[0].mxu0 %v9827
  %v10000 = vpop.f32.mrb[0].mxu0
  %v10001 = vadd.f32 0.0, %v10000
  %v10002 = vpop.f32.mrb[0].mxu0
  %10003 = vmatprep.mubr.f32.mxu0 0.0
  %10004 = vmatmul.mubr.f32.gmra.mrb[0].mxu0 %v9830
  %v10005 = vpop.f32.mrb[0].mxu0
  %v10006 = vadd.f32 0.0, %v10005
  %v10007 = vpop.f32.mrb[0].mxu0
  %10008 = vmatprep.mubr.f32.mxu0 0.0
  %10009 = vmatmul.mubr.f32.gmra.mrb[0].mxu0 %v9833
  %v10010 = vpop.f32.mrb[0].mxu0
  %v10011 = vadd.f32 0.0, %v10010
  %v10012 = vpop.f32.mrb[0].mxu0
  %10013 = vmatprep.mubr.f32.mxu0 0.0
  %10014 = vmatmul.mubr.f32.gmra.mrb[0].mxu0 %v9836
  %v10015 = vpop.f32.mrb[0].mxu0
  %v10016 = vadd.f32 0.0, %v10015
  %v10017 = vpop.f32.mrb[0].mxu0
  %10018 = vmatprep.mubr.f32.mxu0 0.0
  %10019 = vmatmul.mubr.f32.gmra.mrb[0].mxu0 %v9839
  %v10020 = vpop.f32.mrb[0].mxu0
  %v10021 = vadd.f32 0.0, %v10020
  %v10022 = vpop.f32.mrb[0].mxu0
  %10023 = vmatprep.mubr.f32.mxu0 0.0
  %10024 = vmatmul.mubr.f32.gmra.mrb[0].mxu0 %v9842
  %v10025 = vpop.f32.mrb[0].mxu0
  %v10026 = vadd.f32 0.0, %v10025
  %v10027 = vpop.f32.mrb[0].mxu0
  %10028 = vmatprep.mubr.f32.mxu0 0.0
  %10029 = vmatmul.mubr.f32.gmra.mrb[0].mxu0 %v9845
  %v10030 = vpop.f32.mrb[0].mxu0
  %v10031 = vadd.f32 0.0, %v10030
  %v10032 = vpop.f32.mrb[0].mxu0
  %10033 = vmatprep.mubr.f32.mxu0 0.0
  %10034 = vmatmul.mubr.f32.gmra.mrb[0].mxu0 %v9848
  %v10035 = vpop.f32.mrb[0].mxu0
  %v10036 = vadd.f32 0.0, %v10035
  %v10037 = vpop.f32.mrb[0].mxu0
  %10038 = vmatprep.mubr.f32.mxu0 0.0
  %10039 = vmatmul.mubr.f32.gmra.mrb[0].mxu0 %v9851
  %v10040 = vpop.f32.mrb[0].mxu0
  %v10041 = vadd.f32 0.0, %v10040
  %v10042 = vpop.f32.mrb[0].mxu0
  %10043 = vmatprep.mubr.f32.mxu0 0.0
  %10044 = vmatmul.mubr.f32.gmra.mrb[0].mxu0 %v9854
  %v10045 = vpop.f32.mrb[0].mxu0
  %v10046 = vadd.f32 0.0, %v10045
  %v10047 = vpop.f32.mrb[0].mxu0
  %10048 = vmatprep.mubr.f32.mxu0 0.0
  %10049 = vmatmul.mubr.f32.gmra.mrb[0].mxu0 %v9857
  %v10050 = vpop.f32.mrb[0].mxu0
  %v10051 = vadd.f32 0.0, %v10050
  %v10052 = vpop.f32.mrb[0].mxu0
  %10053 = vmatprep.mubr.f32.mxu0 0.0
  %10054 = vmatmul.mubr.f32.gmra.mrb[0].mxu0 %v9860
  %v10055 = vpop.f32.mrb[0].mxu0
  %v10056 = vadd.f32 0.0, %v10055
  %v10057 = vpop.f32.mrb[0].mxu0
  %10058 = vmatprep.mubr.f32.mxu0 0.0
  %10059 = vmatmul.mubr.f32.gmra.mrb[0].mxu0 %v9863
  %v10060 = vpop.f32.mrb[0].mxu0
  %v10061 = vadd.f32 0.0, %v10060
  %v10062 = vpop.f32.mrb[0].mxu0
  %10063 = vmatprep.mubr.f32.mxu0 0.0
  %10064 = vmatmul.mubr.f32.gmra.mrb[0].mxu0 %v9866
  %v10065 = vpop.f32.mrb[0].mxu0
  %v10066 = vadd.f32 0.0, %v10065
  %v10067 = vpop.f32.mrb[0].mxu0
  %10068 = vmatprep.mubr.f32.mxu0 0.0
  %10069 = vmatmul.mubr.f32.gmra.mrb[0].mxu0 %v9869
  %v10070 = vpop.f32.mrb[0].mxu0
  %v10071 = vadd.f32 0.0, %v10070
  %v10072 = vpop.f32.mrb[0].mxu0
  %10073 = vmatprep.mubr.f32.mxu0 0.0
  %10074 = vmatmul.mubr.f32.gmra.mrb[0].mxu0 %v9872
  %v10075 = vpop.f32.mrb[0].mxu0
  %v10076 = vadd.f32 0.0, %v10075
  %v10077 = vpop.f32.mrb[0].mxu0
  %10078 = vmatprep.mubr.f32.mxu0 0.0
  %10079 = vmatmul.mubr.f32.gmra.mrb[0].mxu0 %v9875
  %v10080 = vpop.f32.mrb[0].mxu0
  %v10081 = vadd.f32 0.0, %v10080
  %v10082 = vpop.f32.mrb[0].mxu0
  %10083 = vmatprep.mubr.f32.mxu0 0.0
  %10084 = vmatmul.mubr.f32.gmra.mrb[0].mxu0 %v9878
  %v10085 = vpop.f32.mrb[0].mxu0
  %v10086 = vadd.f32 0.0, %v10085
  %v10087 = vpop.f32.mrb[0].mxu0
  %10088 = vmatprep.mubr.f32.mxu0 0.0
  %10089 = vmatmul.mubr.f32.gmra.mrb[0].mxu0 %v9881
  %v10090 = vpop.f32.mrb[0].mxu0
  %v10091 = vadd.f32 0.0, %v10090
  %v10092 = vpop.f32.mrb[0].mxu0
  %10093 = vmatprep.mubr.f32.mxu0 0.0
  %10094 = vmatmul.mubr.f32.gmra.mrb[0].mxu0 %v9884
  %v10095 = vpop.f32.mrb[0].mxu0
  %v10096 = vadd.f32 0.0, %v10095
  %v10097 = vpop.f32.mrb[0].mxu0
  %10098 = vmatprep.mubr.f32.mxu0 0.0
  %10099 = vmatmul.mubr.f32.gmra.mrb[0].mxu0 %v9887
  %v10100 = vpop.f32.mrb[0].mxu0
  %v10101 = vadd.f32 0.0, %v10100
  %v10102 = vpop.f32.mrb[0].mxu0
  %10103 = vmatprep.mubr.f32.mxu0 0.0
  %10104 = vmatmul.mubr.f32.gmra.mrb[0].mxu0 %v9890
  %v10105 = vpop.f32.mrb[0].mxu0
  %v10106 = vadd.f32 0.0, %v10105
  %v10107 = vpop.f32.mrb[0].mxu0
  %10108 = vmatprep.mubr.f32.mxu0 0.0
  %10109 = vmatmul.mubr.f32.gmra.mrb[0].mxu0 %v9893
  %v10110 = vpop.f32.mrb[0].mxu0
  %v10111 = vadd.f32 0.0, %v10110
  %v10112 = vpop.f32.mrb[0].mxu0
  %10113 = vmatprep.mubr.f32.mxu0 0.0
  %10114 = vmatmul.mubr.f32.gmra.mrb[0].mxu0 %v9896
  %v10115 = vpop.f32.mrb[0].mxu0
  %v10116 = vadd.f32 0.0, %v10115
  %v10117 = vpop.f32.mrb[0].mxu0
  %10118 = vmatprep.mubr.f32.mxu0 0.0
  %10119 = vmatmul.mubr.f32.gmra.mrb[0].mxu0 %v9899
  %v10120 = vpop.f32.mrb[0].mxu0
  %v10121 = vadd.f32 0.0, %v10120
  %v10122 = vpop.f32.mrb[0].mxu0
  %10123 = vmatprep.mubr.f32.mxu0 0.0
  %10124 = vmatmul.mubr.f32.gmra.mrb[0].mxu0 %v9902
  %v10125 = vpop.f32.mrb[0].mxu0
  %v10126 = vadd.f32 0.0, %v10125
  %v10127 = vpop.f32.mrb[0].mxu0
  %10128 = vdwg.mxu0
  %v10129 = vmax.f32 %v9552, %v9971
  %v10130 = vmax.f32 %v9553, %v9976
  %v10131 = vmax.f32 %v9554, %v9981
  %v10132 = vmax.f32 %v9555, %v9986
  %v10133 = vmax.f32 %v9556, %v9991
  %v10134 = vmax.f32 %v9557, %v9996
  %v10135 = vmax.f32 %v9558, %v10001
  %v10136 = vmax.f32 %v9559, %v10006
  %v10137 = vmax.f32 %v9560, %v10011
  %v10138 = vmax.f32 %v9561, %v10016
  %v10139 = vmax.f32 %v9562, %v10021
  %v10140 = vmax.f32 %v9563, %v10026
  %v10141 = vmax.f32 %v9564, %v10031
  %v10142 = vmax.f32 %v9565, %v10036
  %v10143 = vmax.f32 %v9566, %v10041
  %v10144 = vmax.f32 %v9567, %v10046
  %v10145 = vmax.f32 %v9568, %v10051
  %v10146 = vmax.f32 %v9569, %v10056
  %v10147 = vmax.f32 %v9570, %v10061
  %v10148 = vmax.f32 %v9571, %v10066
  %v10149 = vmax.f32 %v9572, %v10071
  %v10150 = vmax.f32 %v9573, %v10076
  %v10151 = vmax.f32 %v9574, %v10081
  %v10152 = vmax.f32 %v9575, %v10086
  %v10153 = vmax.f32 %v9576, %v10091
  %v10154 = vmax.f32 %v9577, %v10096
  %v10155 = vmax.f32 %v9578, %v10101
  %v10156 = vmax.f32 %v9579, %v10106
  %v10157 = vmax.f32 %v9580, %v10111
  %v10158 = vmax.f32 %v9581, %v10116
  %v10159 = vmax.f32 %v9582, %v10121
  %v10160 = vmax.f32 %v9583, %v10126
  %10161 = vset.pattern.permute.xlu0 8
  %10162 = vperm.xlu0 %10161, %v6698
  %v10163 = vpop.permute.xlu0 %10162
  %10164 = vset.pattern.permute.xlu0 8
  %10165 = vperm.xlu0 %10164, %v6699
  %v10166 = vpop.permute.xlu0 %10165
  %10167 = vset.pattern.permute.xlu0 8
  %10168 = vperm.xlu0 %10167, %v6700
  %v10169 = vpop.permute.xlu0 %10168
  %10170 = vset.pattern.permute.xlu0 8
  %10171 = vperm.xlu0 %10170, %v6701
  %v10172 = vpop.permute.xlu0 %10171
  %10173 = vset.pattern.permute.xlu0 8
  %10174 = vperm.xlu0 %10173, %v6702
  %v10175 = vpop.permute.xlu0 %10174
  %10176 = vset.pattern.permute.xlu0 8
  %10177 = vperm.xlu0 %10176, %v6703
  %v10178 = vpop.permute.xlu0 %10177
  %10179 = vset.pattern.permute.xlu0 8
  %10180 = vperm.xlu0 %10179, %v6704
  %v10181 = vpop.permute.xlu0 %10180
  %10182 = vset.pattern.permute.xlu0 8
  %10183 = vperm.xlu0 %10182, %v6705
  %v10184 = vpop.permute.xlu0 %10183
  %10185 = vset.pattern.permute.xlu0 8
  %10186 = vperm.xlu0 %10185, %v6706
  %v10187 = vpop.permute.xlu0 %10186
  %10188 = vset.pattern.permute.xlu0 8
  %10189 = vperm.xlu0 %10188, %v6707
  %v10190 = vpop.permute.xlu0 %10189
  %10191 = vset.pattern.permute.xlu0 8
  %10192 = vperm.xlu0 %10191, %v6708
  %v10193 = vpop.permute.xlu0 %10192
  %10194 = vset.pattern.permute.xlu0 8
  %10195 = vperm.xlu0 %10194, %v6709
  %v10196 = vpop.permute.xlu0 %10195
  %10197 = vset.pattern.permute.xlu0 8
  %10198 = vperm.xlu0 %10197, %v6710
  %v10199 = vpop.permute.xlu0 %10198
  %10200 = vset.pattern.permute.xlu0 8
  %10201 = vperm.xlu0 %10200, %v6711
  %v10202 = vpop.permute.xlu0 %10201
  %10203 = vset.pattern.permute.xlu0 8
  %10204 = vperm.xlu0 %10203, %v6712
  %v10205 = vpop.permute.xlu0 %10204
  %10206 = vset.pattern.permute.xlu0 8
  %10207 = vperm.xlu0 %10206, %v6713
  %v10208 = vpop.permute.xlu0 %10207
  %10209 = vset.pattern.permute.xlu0 8
  %10210 = vperm.xlu0 %10209, %v6714
  %v10211 = vpop.permute.xlu0 %10210
  %10212 = vset.pattern.permute.xlu0 8
  %10213 = vperm.xlu0 %10212, %v6715
  %v10214 = vpop.permute.xlu0 %10213
  %10215 = vset.pattern.permute.xlu0 8
  %10216 = vperm.xlu0 %10215, %v6716
  %v10217 = vpop.permute.xlu0 %10216
  %10218 = vset.pattern.permute.xlu0 8
  %10219 = vperm.xlu0 %10218, %v6717
  %v10220 = vpop.permute.xlu0 %10219
  %10221 = vset.pattern.permute.xlu0 8
  %10222 = vperm.xlu0 %10221, %v6718
  %v10223 = vpop.permute.xlu0 %10222
  %10224 = vset.pattern.permute.xlu0 8
  %10225 = vperm.xlu0 %10224, %v6719
  %v10226 = vpop.permute.xlu0 %10225
  %10227 = vset.pattern.permute.xlu0 8
  %10228 = vperm.xlu0 %10227, %v6720
  %v10229 = vpop.permute.xlu0 %10228
  %10230 = vset.pattern.permute.xlu0 8
  %10231 = vperm.xlu0 %10230, %v6721
  %v10232 = vpop.permute.xlu0 %10231
  %10233 = vset.pattern.permute.xlu0 8
  %10234 = vperm.xlu0 %10233, %v6722
  %v10235 = vpop.permute.xlu0 %10234
  %10236 = vset.pattern.permute.xlu0 8
  %10237 = vperm.xlu0 %10236, %v6723
  %v10238 = vpop.permute.xlu0 %10237
  %10239 = vset.pattern.permute.xlu0 8
  %10240 = vperm.xlu0 %10239, %v6724
  %v10241 = vpop.permute.xlu0 %10240
  %10242 = vset.pattern.permute.xlu0 8
  %10243 = vperm.xlu0 %10242, %v6725
  %v10244 = vpop.permute.xlu0 %10243
  %10245 = vset.pattern.permute.xlu0 8
  %10246 = vperm.xlu0 %10245, %v6726
  %v10247 = vpop.permute.xlu0 %10246
  %10248 = vset.pattern.permute.xlu0 8
  %10249 = vperm.xlu0 %10248, %v6727
  %v10250 = vpop.permute.xlu0 %10249
  %10251 = vset.pattern.permute.xlu0 8
  %10252 = vperm.xlu0 %10251, %v6728
  %v10253 = vpop.permute.xlu0 %10252
  %10254 = vset.pattern.permute.xlu0 8
  %10255 = vperm.xlu0 %10254, %v6729
  %v10256 = vpop.permute.xlu0 %10255
  %vm10257 = vcmp.eq.s32.totalorder %v55, %v10163
  %vm10258 = vcmp.eq.s32.totalorder %v55, %v10166
  %vm10259 = vcmp.eq.s32.totalorder %v55, %v10169
  %vm10260 = vcmp.eq.s32.totalorder %v55, %v10172
  %vm10261 = vcmp.eq.s32.totalorder %v55, %v10175
  %vm10262 = vcmp.eq.s32.totalorder %v55, %v10178
  %vm10263 = vcmp.eq.s32.totalorder %v55, %v10181
  %vm10264 = vcmp.eq.s32.totalorder %v55, %v10184
  %vm10265 = vcmp.eq.s32.totalorder %v55, %v10187
  %vm10266 = vcmp.eq.s32.totalorder %v55, %v10190
  %vm10267 = vcmp.eq.s32.totalorder %v55, %v10193
  %vm10268 = vcmp.eq.s32.totalorder %v55, %v10196
  %vm10269 = vcmp.eq.s32.totalorder %v55, %v10199
  %vm10270 = vcmp.eq.s32.totalorder %v55, %v10202
  %vm10271 = vcmp.eq.s32.totalorder %v55, %v10205
  %vm10272 = vcmp.eq.s32.totalorder %v55, %v10208
  %vm10273 = vcmp.eq.s32.totalorder %v55, %v10211
  %vm10274 = vcmp.eq.s32.totalorder %v55, %v10214
  %vm10275 = vcmp.eq.s32.totalorder %v55, %v10217
  %vm10276 = vcmp.eq.s32.totalorder %v55, %v10220
  %vm10277 = vcmp.eq.s32.totalorder %v55, %v10223
  %vm10278 = vcmp.eq.s32.totalorder %v55, %v10226
  %vm10279 = vcmp.eq.s32.totalorder %v55, %v10229
  %vm10280 = vcmp.eq.s32.totalorder %v55, %v10232
  %vm10281 = vcmp.eq.s32.totalorder %v55, %v10235
  %vm10282 = vcmp.eq.s32.totalorder %v55, %v10238
  %vm10283 = vcmp.eq.s32.totalorder %v55, %v10241
  %vm10284 = vcmp.eq.s32.totalorder %v55, %v10244
  %vm10285 = vcmp.eq.s32.totalorder %v55, %v10247
  %vm10286 = vcmp.eq.s32.totalorder %v55, %v10250
  %vm10287 = vcmp.eq.s32.totalorder %v55, %v10253
  %vm10288 = vcmp.eq.s32.totalorder %v55, %v10256
  %vm10289 = vmor %vm3838, %vm10257
  %vm10290 = vmor %vm3839, %vm10258
  %vm10291 = vmor %vm3840, %vm10259
  %vm10292 = vmor %vm3841, %vm10260
  %vm10293 = vmor %vm3842, %vm10261
  %vm10294 = vmor %vm3843, %vm10262
  %vm10295 = vmor %vm3844, %vm10263
  %vm10296 = vmor %vm3845, %vm10264
  %vm10297 = vmor %vm3846, %vm10265
  %vm10298 = vmor %vm3847, %vm10266
  %vm10299 = vmor %vm3848, %vm10267
  %vm10300 = vmor %vm3849, %vm10268
  %vm10301 = vmor %vm3850, %vm10269
  %vm10302 = vmor %vm3851, %vm10270
  %vm10303 = vmor %vm3852, %vm10271
  %vm10304 = vmor %vm3853, %vm10272
  %vm10305 = vmor %vm3854, %vm10273
  %vm10306 = vmor %vm3855, %vm10274
  %vm10307 = vmor %vm3856, %vm10275
  %vm10308 = vmor %vm3857, %vm10276
  %vm10309 = vmor %vm3858, %vm10277
  %vm10310 = vmor %vm3859, %vm10278
  %vm10311 = vmor %vm3860, %vm10279
  %vm10312 = vmor %vm3861, %vm10280
  %vm10313 = vmor %vm3862, %vm10281
  %vm10314 = vmor %vm3863, %vm10282
  %vm10315 = vmor %vm3864, %vm10283
  %vm10316 = vmor %vm3865, %vm10284
  %vm10317 = vmor %vm3866, %vm10285
  %vm10318 = vmor %vm3867, %vm10286
  %vm10319 = vmor %vm3868, %vm10287
  %vm10320 = vmor %vm3869, %vm10288
  %v10321 = vsel %vm10289, 1, 0
  %v10322 = vsel %vm10290, 1, 0
  %v10323 = vsel %vm10291, 1, 0
  %v10324 = vsel %vm10292, 1, 0
  %v10325 = vsel %vm10293, 1, 0
  %v10326 = vsel %vm10294, 1, 0
  %v10327 = vsel %vm10295, 1, 0
  %v10328 = vsel %vm10296, 1, 0
  %v10329 = vsel %vm10297, 1, 0
  %v10330 = vsel %vm10298, 1, 0
  %v10331 = vsel %vm10299, 1, 0
  %v10332 = vsel %vm10300, 1, 0
  %v10333 = vsel %vm10301, 1, 0
  %v10334 = vsel %vm10302, 1, 0
  %v10335 = vsel %vm10303, 1, 0
  %v10336 = vsel %vm10304, 1, 0
  %v10337 = vsel %vm10305, 1, 0
  %v10338 = vsel %vm10306, 1, 0
  %v10339 = vsel %vm10307, 1, 0
  %v10340 = vsel %vm10308, 1, 0
  %v10341 = vsel %vm10309, 1, 0
  %v10342 = vsel %vm10310, 1, 0
  %v10343 = vsel %vm10311, 1, 0
  %v10344 = vsel %vm10312, 1, 0
  %v10345 = vsel %vm10313, 1, 0
  %v10346 = vsel %vm10314, 1, 0
  %v10347 = vsel %vm10315, 1, 0
  %v10348 = vsel %vm10316, 1, 0
  %v10349 = vsel %vm10317, 1, 0
  %v10350 = vsel %vm10318, 1, 0
  %v10351 = vsel %vm10319, 1, 0
  %v10352 = vsel %vm10320, 1, 0
  %v10353 = vcvt.s32.f32 %v10321
  %v10354 = vcvt.s32.f32 %v10322
  %v10355 = vcvt.s32.f32 %v10323
  %v10356 = vcvt.s32.f32 %v10324
  %v10357 = vcvt.s32.f32 %v10325
  %v10358 = vcvt.s32.f32 %v10326
  %v10359 = vcvt.s32.f32 %v10327
  %v10360 = vcvt.s32.f32 %v10328
  %v10361 = vcvt.s32.f32 %v10329
  %v10362 = vcvt.s32.f32 %v10330
  %v10363 = vcvt.s32.f32 %v10331
  %v10364 = vcvt.s32.f32 %v10332
  %v10365 = vcvt.s32.f32 %v10333
  %v10366 = vcvt.s32.f32 %v10334
  %v10367 = vcvt.s32.f32 %v10335
  %v10368 = vcvt.s32.f32 %v10336
  %v10369 = vcvt.s32.f32 %v10337
  %v10370 = vcvt.s32.f32 %v10338
  %v10371 = vcvt.s32.f32 %v10339
  %v10372 = vcvt.s32.f32 %v10340
  %v10373 = vcvt.s32.f32 %v10341
  %v10374 = vcvt.s32.f32 %v10342
  %v10375 = vcvt.s32.f32 %v10343
  %v10376 = vcvt.s32.f32 %v10344
  %v10377 = vcvt.s32.f32 %v10345
  %v10378 = vcvt.s32.f32 %v10346
  %v10379 = vcvt.s32.f32 %v10347
  %v10380 = vcvt.s32.f32 %v10348
  %v10381 = vcvt.s32.f32 %v10349
  %v10382 = vcvt.s32.f32 %v10350
  %v10383 = vcvt.s32.f32 %v10351
  %v10384 = vcvt.s32.f32 %v10352
  %v10386 = vsel %vm6954, %v10353, 0
  %v10389 = vsel %vm6954, %v10354, 0
  %v10392 = vsel %vm6954, %v10355, 0
  %v10395 = vsel %vm6954, %v10356, 0
  %v10398 = vsel %vm6954, %v10357, 0
  %v10401 = vsel %vm6954, %v10358, 0
  %v10404 = vsel %vm6954, %v10359, 0
  %v10407 = vsel %vm6954, %v10360, 0
  %v10410 = vsel %vm6954, %v10361, 0
  %v10413 = vsel %vm6954, %v10362, 0
  %v10416 = vsel %vm6954, %v10363, 0
  %v10419 = vsel %vm6954, %v10364, 0
  %v10422 = vsel %vm6954, %v10365, 0
  %v10425 = vsel %vm6954, %v10366, 0
  %v10428 = vsel %vm6954, %v10367, 0
  %v10431 = vsel %vm6954, %v10368, 0
  %v10434 = vsel %vm6954, %v10369, 0
  %v10437 = vsel %vm6954, %v10370, 0
  %v10440 = vsel %vm6954, %v10371, 0
  %v10443 = vsel %vm6954, %v10372, 0
  %v10446 = vsel %vm6954, %v10373, 0
  %v10449 = vsel %vm6954, %v10374, 0
  %v10452 = vsel %vm6954, %v10375, 0
  %v10455 = vsel %vm6954, %v10376, 0
  %v10458 = vsel %vm6954, %v10377, 0
  %v10461 = vsel %vm6954, %v10378, 0
  %v10464 = vsel %vm6954, %v10379, 0
  %v10467 = vsel %vm6954, %v10380, 0
  %v10470 = vsel %vm6954, %v10381, 0
  %v10473 = vsel %vm6954, %v10382, 0
  %v10476 = vsel %vm6954, %v10383, 0
  %v10479 = vsel %vm6954, %v10384, 0
  %10481 = vmatprep.subr.mxu0 0.0
  %10482 = vmatpush1.msra.mxu0 %v6402
  %10483 = vmatprep.subr.mxu0 0.0
  %10484 = vmatpush1.msra.mxu0 %v6403
  %10485 = vmatprep.subr.mxu0 0.0
  %10486 = vmatpush1.msra.mxu0 %v6404
  %10487 = vmatprep.subr.mxu0 0.0
  %10488 = vmatpush1.msra.mxu0 %v6405
  %10489 = vmatprep.subr.mxu0 0.0
  %10490 = vmatpush1.msra.mxu0 %v6406
  %10491 = vmatprep.subr.mxu0 0.0
  %10492 = vmatpush1.msra.mxu0 %v6407
  %10493 = vmatprep.subr.mxu0 0.0
  %10494 = vmatpush1.msra.mxu0 %v6408
  %10495 = vmatprep.subr.mxu0 0.0
  %10496 = vmatpush1.msra.mxu0 %v6409
  %10497 = vmatprep.subr.mxu0 0.0
  %10498 = vmatpush1.msra.mxu0 0.0
  %10499 = vmatprep.subr.mxu0 0.0
  %10500 = vmatpush1.msra.mxu0 0.0
  %10501 = vmatprep.subr.mxu0 0.0
  %10502 = vmatpush1.msra.mxu0 0.0
  %10503 = vmatprep.subr.mxu0 0.0
  %10504 = vmatpush1.msra.mxu0 0.0
  %10505 = vmatprep.subr.mxu0 0.0
  %10506 = vmatpush1.msra.mxu0 0.0
  %10507 = vmatprep.subr.mxu0 0.0
  %10508 = vmatpush1.msra.mxu0 0.0
  %10509 = vmatprep.subr.mxu0 0.0
  %10510 = vmatpush1.msra.mxu0 0.0
  %10511 = vmatprep.subr.mxu0 0.0
  %10512 = vmatpush1.msra.mxu0 0.0
  %10513 = vmatprep.subr.mxu0 0.0
  %10514 = vmatpush1.msra.mxu0 0.0
  %10515 = vmatprep.subr.mxu0 0.0
  %10516 = vmatpush1.msra.mxu0 0.0
  %10517 = vmatprep.subr.mxu0 0.0
  %10518 = vmatpush1.msra.mxu0 0.0
  %10519 = vmatprep.subr.mxu0 0.0
  %10520 = vmatpush1.msra.mxu0 0.0
  %10521 = vmatprep.subr.mxu0 0.0
  %10522 = vmatpush1.msra.mxu0 0.0
  %10523 = vmatprep.subr.mxu0 0.0
  %10524 = vmatpush1.msra.mxu0 0.0
  %10525 = vmatprep.subr.mxu0 0.0
  %10526 = vmatpush1.msra.mxu0 0.0
  %10527 = vmatprep.subr.mxu0 0.0
  %10528 = vmatpush1.msra.mxu0 0.0
  %10529 = vmatprep.subr.mxu0 0.0
  %10530 = vmatpush1.msra.mxu0 0.0
  %10531 = vmatprep.subr.mxu0 0.0
  %10532 = vmatpush1.msra.mxu0 0.0
  %10533 = vmatprep.subr.mxu0 0.0
  %10534 = vmatpush1.msra.mxu0 0.0
  %10535 = vmatprep.subr.mxu0 0.0
  %10536 = vmatpush1.msra.mxu0 0.0
  %10537 = vmatprep.subr.mxu0 0.0
  %10538 = vmatpush1.msra.mxu0 0.0
  %10539 = vmatprep.subr.mxu0 0.0
  %10540 = vmatpush1.msra.mxu0 0.0
  %10541 = vmatprep.subr.mxu0 0.0
  %10542 = vmatpush1.msra.mxu0 0.0
  %10543 = vmatprep.subr.mxu0 0.0
  %10544 = vmatpush1.msra.mxu0 0.0
  %10545 = vmatprep.mubr.f32.mxu0 0.0
  %10546 = vmatmul.mubr.f32.gmra.mrb[0].mxu0 %v10386
  %v10547 = vpop.f32.mrb[0].mxu0
  %v10548 = vadd.f32 0.0, %v10547
  %v10549 = vpop.f32.mrb[0].mxu0
  %10550 = vmatprep.mubr.f32.mxu0 0.0
  %10551 = vmatmul.mubr.f32.gmra.mrb[0].mxu0 %v10389
  %v10552 = vpop.f32.mrb[0].mxu0
  %v10553 = vadd.f32 0.0, %v10552
  %v10554 = vpop.f32.mrb[0].mxu0
  %10555 = vmatprep.mubr.f32.mxu0 0.0
  %10556 = vmatmul.mubr.f32.gmra.mrb[0].mxu0 %v10392
  %v10557 = vpop.f32.mrb[0].mxu0
  %v10558 = vadd.f32 0.0, %v10557
  %v10559 = vpop.f32.mrb[0].mxu0
  %10560 = vmatprep.mubr.f32.mxu0 0.0
  %10561 = vmatmul.mubr.f32.gmra.mrb[0].mxu0 %v10395
  %v10562 = vpop.f32.mrb[0].mxu0
  %v10563 = vadd.f32 0.0, %v10562
  %v10564 = vpop.f32.mrb[0].mxu0
  %10565 = vmatprep.mubr.f32.mxu0 0.0
  %10566 = vmatmul.mubr.f32.gmra.mrb[0].mxu0 %v10398
  %v10567 = vpop.f32.mrb[0].mxu0
  %v10568 = vadd.f32 0.0, %v10567
  %v10569 = vpop.f32.mrb[0].mxu0
  %10570 = vmatprep.mubr.f32.mxu0 0.0
  %10571 = vmatmul.mubr.f32.gmra.mrb[0].mxu0 %v10401
  %v10572 = vpop.f32.mrb[0].mxu0
  %v10573 = vadd.f32 0.0, %v10572
  %v10574 = vpop.f32.mrb[0].mxu0
  %10575 = vmatprep.mubr.f32.mxu0 0.0
  %10576 = vmatmul.mubr.f32.gmra.mrb[0].mxu0 %v10404
  %v10577 = vpop.f32.mrb[0].mxu0
  %v10578 = vadd.f32 0.0, %v10577
  %v10579 = vpop.f32.mrb[0].mxu0
  %10580 = vmatprep.mubr.f32.mxu0 0.0
  %10581 = vmatmul.mubr.f32.gmra.mrb[0].mxu0 %v10407
  %v10582 = vpop.f32.mrb[0].mxu0
  %v10583 = vadd.f32 0.0, %v10582
  %v10584 = vpop.f32.mrb[0].mxu0
  %10585 = vmatprep.mubr.f32.mxu0 0.0
  %10586 = vmatmul.mubr.f32.gmra.mrb[0].mxu0 %v10410
  %v10587 = vpop.f32.mrb[0].mxu0
  %v10588 = vadd.f32 0.0, %v10587
  %v10589 = vpop.f32.mrb[0].mxu0
  %10590 = vmatprep.mubr.f32.mxu0 0.0
  %10591 = vmatmul.mubr.f32.gmra.mrb[0].mxu0 %v10413
  %v10592 = vpop.f32.mrb[0].mxu0
  %v10593 = vadd.f32 0.0, %v10592
  %v10594 = vpop.f32.mrb[0].mxu0
  %10595 = vmatprep.mubr.f32.mxu0 0.0
  %10596 = vmatmul.mubr.f32.gmra.mrb[0].mxu0 %v10416
  %v10597 = vpop.f32.mrb[0].mxu0
  %v10598 = vadd.f32 0.0, %v10597
  %v10599 = vpop.f32.mrb[0].mxu0
  %10600 = vmatprep.mubr.f32.mxu0 0.0
  %10601 = vmatmul.mubr.f32.gmra.mrb[0].mxu0 %v10419
  %v10602 = vpop.f32.mrb[0].mxu0
  %v10603 = vadd.f32 0.0, %v10602
  %v10604 = vpop.f32.mrb[0].mxu0
  %10605 = vmatprep.mubr.f32.mxu0 0.0
  %10606 = vmatmul.mubr.f32.gmra.mrb[0].mxu0 %v10422
  %v10607 = vpop.f32.mrb[0].mxu0
  %v10608 = vadd.f32 0.0, %v10607
  %v10609 = vpop.f32.mrb[0].mxu0
  %10610 = vmatprep.mubr.f32.mxu0 0.0
  %10611 = vmatmul.mubr.f32.gmra.mrb[0].mxu0 %v10425
  %v10612 = vpop.f32.mrb[0].mxu0
  %v10613 = vadd.f32 0.0, %v10612
  %v10614 = vpop.f32.mrb[0].mxu0
  %10615 = vmatprep.mubr.f32.mxu0 0.0
  %10616 = vmatmul.mubr.f32.gmra.mrb[0].mxu0 %v10428
  %v10617 = vpop.f32.mrb[0].mxu0
  %v10618 = vadd.f32 0.0, %v10617
  %v10619 = vpop.f32.mrb[0].mxu0
  %10620 = vmatprep.mubr.f32.mxu0 0.0
  %10621 = vmatmul.mubr.f32.gmra.mrb[0].mxu0 %v10431
  %v10622 = vpop.f32.mrb[0].mxu0
  %v10623 = vadd.f32 0.0, %v10622
  %v10624 = vpop.f32.mrb[0].mxu0
  %10625 = vmatprep.mubr.f32.mxu0 0.0
  %10626 = vmatmul.mubr.f32.gmra.mrb[0].mxu0 %v10434
  %v10627 = vpop.f32.mrb[0].mxu0
  %v10628 = vadd.f32 0.0, %v10627
  %v10629 = vpop.f32.mrb[0].mxu0
  %10630 = vmatprep.mubr.f32.mxu0 0.0
  %10631 = vmatmul.mubr.f32.gmra.mrb[0].mxu0 %v10437
  %v10632 = vpop.f32.mrb[0].mxu0
  %v10633 = vadd.f32 0.0, %v10632
  %v10634 = vpop.f32.mrb[0].mxu0
  %10635 = vmatprep.mubr.f32.mxu0 0.0
  %10636 = vmatmul.mubr.f32.gmra.mrb[0].mxu0 %v10440
  %v10637 = vpop.f32.mrb[0].mxu0
  %v10638 = vadd.f32 0.0, %v10637
  %v10639 = vpop.f32.mrb[0].mxu0
  %10640 = vmatprep.mubr.f32.mxu0 0.0
  %10641 = vmatmul.mubr.f32.gmra.mrb[0].mxu0 %v10443
  %v10642 = vpop.f32.mrb[0].mxu0
  %v10643 = vadd.f32 0.0, %v10642
  %v10644 = vpop.f32.mrb[0].mxu0
  %10645 = vmatprep.mubr.f32.mxu0 0.0
  %10646 = vmatmul.mubr.f32.gmra.mrb[0].mxu0 %v10446
  %v10647 = vpop.f32.mrb[0].mxu0
  %v10648 = vadd.f32 0.0, %v10647
  %v10649 = vpop.f32.mrb[0].mxu0
  %10650 = vmatprep.mubr.f32.mxu0 0.0
  %10651 = vmatmul.mubr.f32.gmra.mrb[0].mxu0 %v10449
  %v10652 = vpop.f32.mrb[0].mxu0
  %v10653 = vadd.f32 0.0, %v10652
  %v10654 = vpop.f32.mrb[0].mxu0
  %10655 = vmatprep.mubr.f32.mxu0 0.0
  %10656 = vmatmul.mubr.f32.gmra.mrb[0].mxu0 %v10452
  %v10657 = vpop.f32.mrb[0].mxu0
  %v10658 = vadd.f32 0.0, %v10657
  %v10659 = vpop.f32.mrb[0].mxu0
  %10660 = vmatprep.mubr.f32.mxu0 0.0
  %10661 = vmatmul.mubr.f32.gmra.mrb[0].mxu0 %v10455
  %v10662 = vpop.f32.mrb[0].mxu0
  %v10663 = vadd.f32 0.0, %v10662
  %v10664 = vpop.f32.mrb[0].mxu0
  %10665 = vmatprep.mubr.f32.mxu0 0.0
  %10666 = vmatmul.mubr.f32.gmra.mrb[0].mxu0 %v10458
  %v10667 = vpop.f32.mrb[0].mxu0
  %v10668 = vadd.f32 0.0, %v10667
  %v10669 = vpop.f32.mrb[0].mxu0
  %10670 = vmatprep.mubr.f32.mxu0 0.0
  %10671 = vmatmul.mubr.f32.gmra.mrb[0].mxu0 %v10461
  %v10672 = vpop.f32.mrb[0].mxu0
  %v10673 = vadd.f32 0.0, %v10672
  %v10674 = vpop.f32.mrb[0].mxu0
  %10675 = vmatprep.mubr.f32.mxu0 0.0
  %10676 = vmatmul.mubr.f32.gmra.mrb[0].mxu0 %v10464
  %v10677 = vpop.f32.mrb[0].mxu0
  %v10678 = vadd.f32 0.0, %v10677
  %v10679 = vpop.f32.mrb[0].mxu0
  %10680 = vmatprep.mubr.f32.mxu0 0.0
  %10681 = vmatmul.mubr.f32.gmra.mrb[0].mxu0 %v10467
  %v10682 = vpop.f32.mrb[0].mxu0
  %v10683 = vadd.f32 0.0, %v10682
  %v10684 = vpop.f32.mrb[0].mxu0
  %10685 = vmatprep.mubr.f32.mxu0 0.0
  %10686 = vmatmul.mubr.f32.gmra.mrb[0].mxu0 %v10470
  %v10687 = vpop.f32.mrb[0].mxu0
  %v10688 = vadd.f32 0.0, %v10687
  %v10689 = vpop.f32.mrb[0].mxu0
  %10690 = vmatprep.mubr.f32.mxu0 0.0
  %10691 = vmatmul.mubr.f32.gmra.mrb[0].mxu0 %v10473
  %v10692 = vpop.f32.mrb[0].mxu0
  %v10693 = vadd.f32 0.0, %v10692
  %v10694 = vpop.f32.mrb[0].mxu0
  %10695 = vmatprep.mubr.f32.mxu0 0.0
  %10696 = vmatmul.mubr.f32.gmra.mrb[0].mxu0 %v10476
  %v10697 = vpop.f32.mrb[0].mxu0
  %v10698 = vadd.f32 0.0, %v10697
  %v10699 = vpop.f32.mrb[0].mxu0
  %10700 = vmatprep.mubr.f32.mxu0 0.0
  %10701 = vmatmul.mubr.f32.gmra.mrb[0].mxu0 %v10479
  %v10702 = vpop.f32.mrb[0].mxu0
  %v10703 = vadd.f32 0.0, %v10702
  %v10704 = vpop.f32.mrb[0].mxu0
  %10705 = vdwg.mxu0
  %v10706 = vmax.f32 %v10129, %v10548
  %v10707 = vmax.f32 %v10130, %v10553
  %v10708 = vmax.f32 %v10131, %v10558
  %v10709 = vmax.f32 %v10132, %v10563
  %v10710 = vmax.f32 %v10133, %v10568
  %v10711 = vmax.f32 %v10134, %v10573
  %v10712 = vmax.f32 %v10135, %v10578
  %v10713 = vmax.f32 %v10136, %v10583
  %v10714 = vmax.f32 %v10137, %v10588
  %v10715 = vmax.f32 %v10138, %v10593
  %v10716 = vmax.f32 %v10139, %v10598
  %v10717 = vmax.f32 %v10140, %v10603
  %v10718 = vmax.f32 %v10141, %v10608
  %v10719 = vmax.f32 %v10142, %v10613
  %v10720 = vmax.f32 %v10143, %v10618
  %v10721 = vmax.f32 %v10144, %v10623
  %v10722 = vmax.f32 %v10145, %v10628
  %v10723 = vmax.f32 %v10146, %v10633
  %v10724 = vmax.f32 %v10147, %v10638
  %v10725 = vmax.f32 %v10148, %v10643
  %v10726 = vmax.f32 %v10149, %v10648
  %v10727 = vmax.f32 %v10150, %v10653
  %v10728 = vmax.f32 %v10151, %v10658
  %v10729 = vmax.f32 %v10152, %v10663
  %v10730 = vmax.f32 %v10153, %v10668
  %v10731 = vmax.f32 %v10154, %v10673
  %v10732 = vmax.f32 %v10155, %v10678
  %v10733 = vmax.f32 %v10156, %v10683
  %v10734 = vmax.f32 %v10157, %v10688
  %v10735 = vmax.f32 %v10158, %v10693
  %v10736 = vmax.f32 %v10159, %v10698
  %v10737 = vmax.f32 %v10160, %v10703
  %10738 = vset.pattern.permute.xlu0 9
  %10739 = vperm.xlu0 %10738, %v6698
  %v10740 = vpop.permute.xlu0 %10739
  %10741 = vset.pattern.permute.xlu0 9
  %10742 = vperm.xlu0 %10741, %v6699
  %v10743 = vpop.permute.xlu0 %10742
  %10744 = vset.pattern.permute.xlu0 9
  %10745 = vperm.xlu0 %10744, %v6700
  %v10746 = vpop.permute.xlu0 %10745
  %10747 = vset.pattern.permute.xlu0 9
  %10748 = vperm.xlu0 %10747, %v6701
  %v10749 = vpop.permute.xlu0 %10748
  %10750 = vset.pattern.permute.xlu0 9
  %10751 = vperm.xlu0 %10750, %v6702
  %v10752 = vpop.permute.xlu0 %10751
  %10753 = vset.pattern.permute.xlu0 9
  %10754 = vperm.xlu0 %10753, %v6703
  %v10755 = vpop.permute.xlu0 %10754
  %10756 = vset.pattern.permute.xlu0 9
  %10757 = vperm.xlu0 %10756, %v6704
  %v10758 = vpop.permute.xlu0 %10757
  %10759 = vset.pattern.permute.xlu0 9
  %10760 = vperm.xlu0 %10759, %v6705
  %v10761 = vpop.permute.xlu0 %10760
  %10762 = vset.pattern.permute.xlu0 9
  %10763 = vperm.xlu0 %10762, %v6706
  %v10764 = vpop.permute.xlu0 %10763
  %10765 = vset.pattern.permute.xlu0 9
  %10766 = vperm.xlu0 %10765, %v6707
  %v10767 = vpop.permute.xlu0 %10766
  %10768 = vset.pattern.permute.xlu0 9
  %10769 = vperm.xlu0 %10768, %v6708
  %v10770 = vpop.permute.xlu0 %10769
  %10771 = vset.pattern.permute.xlu0 9
  %10772 = vperm.xlu0 %10771, %v6709
  %v10773 = vpop.permute.xlu0 %10772
  %10774 = vset.pattern.permute.xlu0 9
  %10775 = vperm.xlu0 %10774, %v6710
  %v10776 = vpop.permute.xlu0 %10775
  %10777 = vset.pattern.permute.xlu0 9
  %10778 = vperm.xlu0 %10777, %v6711
  %v10779 = vpop.permute.xlu0 %10778
  %10780 = vset.pattern.permute.xlu0 9
  %10781 = vperm.xlu0 %10780, %v6712
  %v10782 = vpop.permute.xlu0 %10781
  %10783 = vset.pattern.permute.xlu0 9
  %10784 = vperm.xlu0 %10783, %v6713
  %v10785 = vpop.permute.xlu0 %10784
  %10786 = vset.pattern.permute.xlu0 9
  %10787 = vperm.xlu0 %10786, %v6714
  %v10788 = vpop.permute.xlu0 %10787
  %10789 = vset.pattern.permute.xlu0 9
  %10790 = vperm.xlu0 %10789, %v6715
  %v10791 = vpop.permute.xlu0 %10790
  %10792 = vset.pattern.permute.xlu0 9
  %10793 = vperm.xlu0 %10792, %v6716
  %v10794 = vpop.permute.xlu0 %10793
  %10795 = vset.pattern.permute.xlu0 9
  %10796 = vperm.xlu0 %10795, %v6717
  %v10797 = vpop.permute.xlu0 %10796
  %10798 = vset.pattern.permute.xlu0 9
  %10799 = vperm.xlu0 %10798, %v6718
  %v10800 = vpop.permute.xlu0 %10799
  %10801 = vset.pattern.permute.xlu0 9
  %10802 = vperm.xlu0 %10801, %v6719
  %v10803 = vpop.permute.xlu0 %10802
  %10804 = vset.pattern.permute.xlu0 9
  %10805 = vperm.xlu0 %10804, %v6720
  %v10806 = vpop.permute.xlu0 %10805
  %10807 = vset.pattern.permute.xlu0 9
  %10808 = vperm.xlu0 %10807, %v6721
  %v10809 = vpop.permute.xlu0 %10808
  %10810 = vset.pattern.permute.xlu0 9
  %10811 = vperm.xlu0 %10810, %v6722
  %v10812 = vpop.permute.xlu0 %10811
  %10813 = vset.pattern.permute.xlu0 9
  %10814 = vperm.xlu0 %10813, %v6723
  %v10815 = vpop.permute.xlu0 %10814
  %10816 = vset.pattern.permute.xlu0 9
  %10817 = vperm.xlu0 %10816, %v6724
  %v10818 = vpop.permute.xlu0 %10817
  %10819 = vset.pattern.permute.xlu0 9
  %10820 = vperm.xlu0 %10819, %v6725
  %v10821 = vpop.permute.xlu0 %10820
  %10822 = vset.pattern.permute.xlu0 9
  %10823 = vperm.xlu0 %10822, %v6726
  %v10824 = vpop.permute.xlu0 %10823
  %10825 = vset.pattern.permute.xlu0 9
  %10826 = vperm.xlu0 %10825, %v6727
  %v10827 = vpop.permute.xlu0 %10826
  %10828 = vset.pattern.permute.xlu0 9
  %10829 = vperm.xlu0 %10828, %v6728
  %v10830 = vpop.permute.xlu0 %10829
  %10831 = vset.pattern.permute.xlu0 9
  %10832 = vperm.xlu0 %10831, %v6729
  %v10833 = vpop.permute.xlu0 %10832
  %vm10834 = vcmp.eq.s32.totalorder %v55, %v10740
  %vm10835 = vcmp.eq.s32.totalorder %v55, %v10743
  %vm10836 = vcmp.eq.s32.totalorder %v55, %v10746
  %vm10837 = vcmp.eq.s32.totalorder %v55, %v10749
  %vm10838 = vcmp.eq.s32.totalorder %v55, %v10752
  %vm10839 = vcmp.eq.s32.totalorder %v55, %v10755
  %vm10840 = vcmp.eq.s32.totalorder %v55, %v10758
  %vm10841 = vcmp.eq.s32.totalorder %v55, %v10761
  %vm10842 = vcmp.eq.s32.totalorder %v55, %v10764
  %vm10843 = vcmp.eq.s32.totalorder %v55, %v10767
  %vm10844 = vcmp.eq.s32.totalorder %v55, %v10770
  %vm10845 = vcmp.eq.s32.totalorder %v55, %v10773
  %vm10846 = vcmp.eq.s32.totalorder %v55, %v10776
  %vm10847 = vcmp.eq.s32.totalorder %v55, %v10779
  %vm10848 = vcmp.eq.s32.totalorder %v55, %v10782
  %vm10849 = vcmp.eq.s32.totalorder %v55, %v10785
  %vm10850 = vcmp.eq.s32.totalorder %v55, %v10788
  %vm10851 = vcmp.eq.s32.totalorder %v55, %v10791
  %vm10852 = vcmp.eq.s32.totalorder %v55, %v10794
  %vm10853 = vcmp.eq.s32.totalorder %v55, %v10797
  %vm10854 = vcmp.eq.s32.totalorder %v55, %v10800
  %vm10855 = vcmp.eq.s32.totalorder %v55, %v10803
  %vm10856 = vcmp.eq.s32.totalorder %v55, %v10806
  %vm10857 = vcmp.eq.s32.totalorder %v55, %v10809
  %vm10858 = vcmp.eq.s32.totalorder %v55, %v10812
  %vm10859 = vcmp.eq.s32.totalorder %v55, %v10815
  %vm10860 = vcmp.eq.s32.totalorder %v55, %v10818
  %vm10861 = vcmp.eq.s32.totalorder %v55, %v10821
  %vm10862 = vcmp.eq.s32.totalorder %v55, %v10824
  %vm10863 = vcmp.eq.s32.totalorder %v55, %v10827
  %vm10864 = vcmp.eq.s32.totalorder %v55, %v10830
  %vm10865 = vcmp.eq.s32.totalorder %v55, %v10833
  %vm10866 = vmor %vm4543, %vm10834
  %vm10867 = vmor %vm4544, %vm10835
  %vm10868 = vmor %vm4545, %vm10836
  %vm10869 = vmor %vm4546, %vm10837
  %vm10870 = vmor %vm4547, %vm10838
  %vm10871 = vmor %vm4548, %vm10839
  %vm10872 = vmor %vm4549, %vm10840
  %vm10873 = vmor %vm4550, %vm10841
  %vm10874 = vmor %vm4551, %vm10842
  %vm10875 = vmor %vm4552, %vm10843
  %vm10876 = vmor %vm4553, %vm10844
  %vm10877 = vmor %vm4554, %vm10845
  %vm10878 = vmor %vm4555, %vm10846
  %vm10879 = vmor %vm4556, %vm10847
  %vm10880 = vmor %vm4557, %vm10848
  %vm10881 = vmor %vm4558, %vm10849
  %vm10882 = vmor %vm4559, %vm10850
  %vm10883 = vmor %vm4560, %vm10851
  %vm10884 = vmor %vm4561, %vm10852
  %vm10885 = vmor %vm4562, %vm10853
  %vm10886 = vmor %vm4563, %vm10854
  %vm10887 = vmor %vm4564, %vm10855
  %vm10888 = vmor %vm4565, %vm10856
  %vm10889 = vmor %vm4566, %vm10857
  %vm10890 = vmor %vm4567, %vm10858
  %vm10891 = vmor %vm4568, %vm10859
  %vm10892 = vmor %vm4569, %vm10860
  %vm10893 = vmor %vm4570, %vm10861
  %vm10894 = vmor %vm4571, %vm10862
  %vm10895 = vmor %vm4572, %vm10863
  %vm10896 = vmor %vm4573, %vm10864
  %vm10897 = vmor %vm4574, %vm10865
  %v10898 = vsel %vm10866, 1, 0
  %v10899 = vsel %vm10867, 1, 0
  %v10900 = vsel %vm10868, 1, 0
  %v10901 = vsel %vm10869, 1, 0
  %v10902 = vsel %vm10870, 1, 0
  %v10903 = vsel %vm10871, 1, 0
  %v10904 = vsel %vm10872, 1, 0
  %v10905 = vsel %vm10873, 1, 0
  %v10906 = vsel %vm10874, 1, 0
  %v10907 = vsel %vm10875, 1, 0
  %v10908 = vsel %vm10876, 1, 0
  %v10909 = vsel %vm10877, 1, 0
  %v10910 = vsel %vm10878, 1, 0
  %v10911 = vsel %vm10879, 1, 0
  %v10912 = vsel %vm10880, 1, 0
  %v10913 = vsel %vm10881, 1, 0
  %v10914 = vsel %vm10882, 1, 0
  %v10915 = vsel %vm10883, 1, 0
  %v10916 = vsel %vm10884, 1, 0
  %v10917 = vsel %vm10885, 1, 0
  %v10918 = vsel %vm10886, 1, 0
  %v10919 = vsel %vm10887, 1, 0
  %v10920 = vsel %vm10888, 1, 0
  %v10921 = vsel %vm10889, 1, 0
  %v10922 = vsel %vm10890, 1, 0
  %v10923 = vsel %vm10891, 1, 0
  %v10924 = vsel %vm10892, 1, 0
  %v10925 = vsel %vm10893, 1, 0
  %v10926 = vsel %vm10894, 1, 0
  %v10927 = vsel %vm10895, 1, 0
  %v10928 = vsel %vm10896, 1, 0
  %v10929 = vsel %vm10897, 1, 0
  %v10930 = vcvt.s32.f32 %v10898
  %v10931 = vcvt.s32.f32 %v10899
  %v10932 = vcvt.s32.f32 %v10900
  %v10933 = vcvt.s32.f32 %v10901
  %v10934 = vcvt.s32.f32 %v10902
  %v10935 = vcvt.s32.f32 %v10903
  %v10936 = vcvt.s32.f32 %v10904
  %v10937 = vcvt.s32.f32 %v10905
  %v10938 = vcvt.s32.f32 %v10906
  %v10939 = vcvt.s32.f32 %v10907
  %v10940 = vcvt.s32.f32 %v10908
  %v10941 = vcvt.s32.f32 %v10909
  %v10942 = vcvt.s32.f32 %v10910
  %v10943 = vcvt.s32.f32 %v10911
  %v10944 = vcvt.s32.f32 %v10912
  %v10945 = vcvt.s32.f32 %v10913
  %v10946 = vcvt.s32.f32 %v10914
  %v10947 = vcvt.s32.f32 %v10915
  %v10948 = vcvt.s32.f32 %v10916
  %v10949 = vcvt.s32.f32 %v10917
  %v10950 = vcvt.s32.f32 %v10918
  %v10951 = vcvt.s32.f32 %v10919
  %v10952 = vcvt.s32.f32 %v10920
  %v10953 = vcvt.s32.f32 %v10921
  %v10954 = vcvt.s32.f32 %v10922
  %v10955 = vcvt.s32.f32 %v10923
  %v10956 = vcvt.s32.f32 %v10924
  %v10957 = vcvt.s32.f32 %v10925
  %v10958 = vcvt.s32.f32 %v10926
  %v10959 = vcvt.s32.f32 %v10927
  %v10960 = vcvt.s32.f32 %v10928
  %v10961 = vcvt.s32.f32 %v10929
  %v10963 = vsel %vm6954, %v10930, 0
  %v10966 = vsel %vm6954, %v10931, 0
  %v10969 = vsel %vm6954, %v10932, 0
  %v10972 = vsel %vm6954, %v10933, 0
  %v10975 = vsel %vm6954, %v10934, 0
  %v10978 = vsel %vm6954, %v10935, 0
  %v10981 = vsel %vm6954, %v10936, 0
  %v10984 = vsel %vm6954, %v10937, 0
  %v10987 = vsel %vm6954, %v10938, 0
  %v10990 = vsel %vm6954, %v10939, 0
  %v10993 = vsel %vm6954, %v10940, 0
  %v10996 = vsel %vm6954, %v10941, 0
  %v10999 = vsel %vm6954, %v10942, 0
  %v11002 = vsel %vm6954, %v10943, 0
  %v11005 = vsel %vm6954, %v10944, 0
  %v11008 = vsel %vm6954, %v10945, 0
  %v11011 = vsel %vm6954, %v10946, 0
  %v11014 = vsel %vm6954, %v10947, 0
  %v11017 = vsel %vm6954, %v10948, 0
  %v11020 = vsel %vm6954, %v10949, 0
  %v11023 = vsel %vm6954, %v10950, 0
  %v11026 = vsel %vm6954, %v10951, 0
  %v11029 = vsel %vm6954, %v10952, 0
  %v11032 = vsel %vm6954, %v10953, 0
  %v11035 = vsel %vm6954, %v10954, 0
  %v11038 = vsel %vm6954, %v10955, 0
  %v11041 = vsel %vm6954, %v10956, 0
  %v11044 = vsel %vm6954, %v10957, 0
  %v11047 = vsel %vm6954, %v10958, 0
  %v11050 = vsel %vm6954, %v10959, 0
  %v11053 = vsel %vm6954, %v10960, 0
  %v11056 = vsel %vm6954, %v10961, 0
  %11058 = vmatprep.subr.mxu0 0.0
  %11059 = vmatpush1.msra.mxu0 %v6402
  %11060 = vmatprep.subr.mxu0 0.0
  %11061 = vmatpush1.msra.mxu0 %v6403
  %11062 = vmatprep.subr.mxu0 0.0
  %11063 = vmatpush1.msra.mxu0 %v6404
  %11064 = vmatprep.subr.mxu0 0.0
  %11065 = vmatpush1.msra.mxu0 %v6405
  %11066 = vmatprep.subr.mxu0 0.0
  %11067 = vmatpush1.msra.mxu0 %v6406
  %11068 = vmatprep.subr.mxu0 0.0
  %11069 = vmatpush1.msra.mxu0 %v6407
  %11070 = vmatprep.subr.mxu0 0.0
  %11071 = vmatpush1.msra.mxu0 %v6408
  %11072 = vmatprep.subr.mxu0 0.0
  %11073 = vmatpush1.msra.mxu0 %v6409
  %11074 = vmatprep.subr.mxu0 0.0
  %11075 = vmatpush1.msra.mxu0 0.0
  %11076 = vmatprep.subr.mxu0 0.0
  %11077 = vmatpush1.msra.mxu0 0.0
  %11078 = vmatprep.subr.mxu0 0.0
  %11079 = vmatpush1.msra.mxu0 0.0
  %11080 = vmatprep.subr.mxu0 0.0
  %11081 = vmatpush1.msra.mxu0 0.0
  %11082 = vmatprep.subr.mxu0 0.0
  %11083 = vmatpush1.msra.mxu0 0.0
  %11084 = vmatprep.subr.mxu0 0.0
  %11085 = vmatpush1.msra.mxu0 0.0
  %11086 = vmatprep.subr.mxu0 0.0
  %11087 = vmatpush1.msra.mxu0 0.0
  %11088 = vmatprep.subr.mxu0 0.0
  %11089 = vmatpush1.msra.mxu0 0.0
  %11090 = vmatprep.subr.mxu0 0.0
  %11091 = vmatpush1.msra.mxu0 0.0
  %11092 = vmatprep.subr.mxu0 0.0
  %11093 = vmatpush1.msra.mxu0 0.0
  %11094 = vmatprep.subr.mxu0 0.0
  %11095 = vmatpush1.msra.mxu0 0.0
  %11096 = vmatprep.subr.mxu0 0.0
  %11097 = vmatpush1.msra.mxu0 0.0
  %11098 = vmatprep.subr.mxu0 0.0
  %11099 = vmatpush1.msra.mxu0 0.0
  %11100 = vmatprep.subr.mxu0 0.0
  %11101 = vmatpush1.msra.mxu0 0.0
  %11102 = vmatprep.subr.mxu0 0.0
  %11103 = vmatpush1.msra.mxu0 0.0
  %11104 = vmatprep.subr.mxu0 0.0
  %11105 = vmatpush1.msra.mxu0 0.0
  %11106 = vmatprep.subr.mxu0 0.0
  %11107 = vmatpush1.msra.mxu0 0.0
  %11108 = vmatprep.subr.mxu0 0.0
  %11109 = vmatpush1.msra.mxu0 0.0
  %11110 = vmatprep.subr.mxu0 0.0
  %11111 = vmatpush1.msra.mxu0 0.0
  %11112 = vmatprep.subr.mxu0 0.0
  %11113 = vmatpush1.msra.mxu0 0.0
  %11114 = vmatprep.subr.mxu0 0.0
  %11115 = vmatpush1.msra.mxu0 0.0
  %11116 = vmatprep.subr.mxu0 0.0
  %11117 = vmatpush1.msra.mxu0 0.0
  %11118 = vmatprep.subr.mxu0 0.0
  %11119 = vmatpush1.msra.mxu0 0.0
  %11120 = vmatprep.subr.mxu0 0.0
  %11121 = vmatpush1.msra.mxu0 0.0
  %11122 = vmatprep.mubr.f32.mxu0 0.0
  %11123 = vmatmul.mubr.f32.gmra.mrb[0].mxu0 %v10963
  %v11124 = vpop.f32.mrb[0].mxu0
  %v11125 = vadd.f32 0.0, %v11124
  %v11126 = vpop.f32.mrb[0].mxu0
  %11127 = vmatprep.mubr.f32.mxu0 0.0
  %11128 = vmatmul.mubr.f32.gmra.mrb[0].mxu0 %v10966
  %v11129 = vpop.f32.mrb[0].mxu0
  %v11130 = vadd.f32 0.0, %v11129
  %v11131 = vpop.f32.mrb[0].mxu0
  %11132 = vmatprep.mubr.f32.mxu0 0.0
  %11133 = vmatmul.mubr.f32.gmra.mrb[0].mxu0 %v10969
  %v11134 = vpop.f32.mrb[0].mxu0
  %v11135 = vadd.f32 0.0, %v11134
  %v11136 = vpop.f32.mrb[0].mxu0
  %11137 = vmatprep.mubr.f32.mxu0 0.0
  %11138 = vmatmul.mubr.f32.gmra.mrb[0].mxu0 %v10972
  %v11139 = vpop.f32.mrb[0].mxu0
  %v11140 = vadd.f32 0.0, %v11139
  %v11141 = vpop.f32.mrb[0].mxu0
  %11142 = vmatprep.mubr.f32.mxu0 0.0
  %11143 = vmatmul.mubr.f32.gmra.mrb[0].mxu0 %v10975
  %v11144 = vpop.f32.mrb[0].mxu0
  %v11145 = vadd.f32 0.0, %v11144
  %v11146 = vpop.f32.mrb[0].mxu0
  %11147 = vmatprep.mubr.f32.mxu0 0.0
  %11148 = vmatmul.mubr.f32.gmra.mrb[0].mxu0 %v10978
  %v11149 = vpop.f32.mrb[0].mxu0
  %v11150 = vadd.f32 0.0, %v11149
  %v11151 = vpop.f32.mrb[0].mxu0
  %11152 = vmatprep.mubr.f32.mxu0 0.0
  %11153 = vmatmul.mubr.f32.gmra.mrb[0].mxu0 %v10981
  %v11154 = vpop.f32.mrb[0].mxu0
  %v11155 = vadd.f32 0.0, %v11154
  %v11156 = vpop.f32.mrb[0].mxu0
  %11157 = vmatprep.mubr.f32.mxu0 0.0
  %11158 = vmatmul.mubr.f32.gmra.mrb[0].mxu0 %v10984
  %v11159 = vpop.f32.mrb[0].mxu0
  %v11160 = vadd.f32 0.0, %v11159
  %v11161 = vpop.f32.mrb[0].mxu0
  %11162 = vmatprep.mubr.f32.mxu0 0.0
  %11163 = vmatmul.mubr.f32.gmra.mrb[0].mxu0 %v10987
  %v11164 = vpop.f32.mrb[0].mxu0
  %v11165 = vadd.f32 0.0, %v11164
  %v11166 = vpop.f32.mrb[0].mxu0
  %11167 = vmatprep.mubr.f32.mxu0 0.0
  %11168 = vmatmul.mubr.f32.gmra.mrb[0].mxu0 %v10990
  %v11169 = vpop.f32.mrb[0].mxu0
  %v11170 = vadd.f32 0.0, %v11169
  %v11171 = vpop.f32.mrb[0].mxu0
  %11172 = vmatprep.mubr.f32.mxu0 0.0
  %11173 = vmatmul.mubr.f32.gmra.mrb[0].mxu0 %v10993
  %v11174 = vpop.f32.mrb[0].mxu0
  %v11175 = vadd.f32 0.0, %v11174
  %v11176 = vpop.f32.mrb[0].mxu0
  %11177 = vmatprep.mubr.f32.mxu0 0.0
  %11178 = vmatmul.mubr.f32.gmra.mrb[0].mxu0 %v10996
  %v11179 = vpop.f32.mrb[0].mxu0
  %v11180 = vadd.f32 0.0, %v11179
  %v11181 = vpop.f32.mrb[0].mxu0
  %11182 = vmatprep.mubr.f32.mxu0 0.0
  %11183 = vmatmul.mubr.f32.gmra.mrb[0].mxu0 %v10999
  %v11184 = vpop.f32.mrb[0].mxu0
  %v11185 = vadd.f32 0.0, %v11184
  %v11186 = vpop.f32.mrb[0].mxu0
  %11187 = vmatprep.mubr.f32.mxu0 0.0
  %11188 = vmatmul.mubr.f32.gmra.mrb[0].mxu0 %v11002
  %v11189 = vpop.f32.mrb[0].mxu0
  %v11190 = vadd.f32 0.0, %v11189
  %v11191 = vpop.f32.mrb[0].mxu0
  %11192 = vmatprep.mubr.f32.mxu0 0.0
  %11193 = vmatmul.mubr.f32.gmra.mrb[0].mxu0 %v11005
  %v11194 = vpop.f32.mrb[0].mxu0
  %v11195 = vadd.f32 0.0, %v11194
  %v11196 = vpop.f32.mrb[0].mxu0
  %11197 = vmatprep.mubr.f32.mxu0 0.0
  %11198 = vmatmul.mubr.f32.gmra.mrb[0].mxu0 %v11008
  %v11199 = vpop.f32.mrb[0].mxu0
  %v11200 = vadd.f32 0.0, %v11199
  %v11201 = vpop.f32.mrb[0].mxu0
  %11202 = vmatprep.mubr.f32.mxu0 0.0
  %11203 = vmatmul.mubr.f32.gmra.mrb[0].mxu0 %v11011
  %v11204 = vpop.f32.mrb[0].mxu0
  %v11205 = vadd.f32 0.0, %v11204
  %v11206 = vpop.f32.mrb[0].mxu0
  %11207 = vmatprep.mubr.f32.mxu0 0.0
  %11208 = vmatmul.mubr.f32.gmra.mrb[0].mxu0 %v11014
  %v11209 = vpop.f32.mrb[0].mxu0
  %v11210 = vadd.f32 0.0, %v11209
  %v11211 = vpop.f32.mrb[0].mxu0
  %11212 = vmatprep.mubr.f32.mxu0 0.0
  %11213 = vmatmul.mubr.f32.gmra.mrb[0].mxu0 %v11017
  %v11214 = vpop.f32.mrb[0].mxu0
  %v11215 = vadd.f32 0.0, %v11214
  %v11216 = vpop.f32.mrb[0].mxu0
  %11217 = vmatprep.mubr.f32.mxu0 0.0
  %11218 = vmatmul.mubr.f32.gmra.mrb[0].mxu0 %v11020
  %v11219 = vpop.f32.mrb[0].mxu0
  %v11220 = vadd.f32 0.0, %v11219
  %v11221 = vpop.f32.mrb[0].mxu0
  %11222 = vmatprep.mubr.f32.mxu0 0.0
  %11223 = vmatmul.mubr.f32.gmra.mrb[0].mxu0 %v11023
  %v11224 = vpop.f32.mrb[0].mxu0
  %v11225 = vadd.f32 0.0, %v11224
  %v11226 = vpop.f32.mrb[0].mxu0
  %11227 = vmatprep.mubr.f32.mxu0 0.0
  %11228 = vmatmul.mubr.f32.gmra.mrb[0].mxu0 %v11026
  %v11229 = vpop.f32.mrb[0].mxu0
  %v11230 = vadd.f32 0.0, %v11229
  %v11231 = vpop.f32.mrb[0].mxu0
  %11232 = vmatprep.mubr.f32.mxu0 0.0
  %11233 = vmatmul.mubr.f32.gmra.mrb[0].mxu0 %v11029
  %v11234 = vpop.f32.mrb[0].mxu0
  %v11235 = vadd.f32 0.0, %v11234
  %v11236 = vpop.f32.mrb[0].mxu0
  %11237 = vmatprep.mubr.f32.mxu0 0.0
  %11238 = vmatmul.mubr.f32.gmra.mrb[0].mxu0 %v11032
  %v11239 = vpop.f32.mrb[0].mxu0
  %v11240 = vadd.f32 0.0, %v11239
  %v11241 = vpop.f32.mrb[0].mxu0
  %11242 = vmatprep.mubr.f32.mxu0 0.0
  %11243 = vmatmul.mubr.f32.gmra.mrb[0].mxu0 %v11035
  %v11244 = vpop.f32.mrb[0].mxu0
  %v11245 = vadd.f32 0.0, %v11244
  %v11246 = vpop.f32.mrb[0].mxu0
  %11247 = vmatprep.mubr.f32.mxu0 0.0
  %11248 = vmatmul.mubr.f32.gmra.mrb[0].mxu0 %v11038
  %v11249 = vpop.f32.mrb[0].mxu0
  %v11250 = vadd.f32 0.0, %v11249
  %v11251 = vpop.f32.mrb[0].mxu0
  %11252 = vmatprep.mubr.f32.mxu0 0.0
  %11253 = vmatmul.mubr.f32.gmra.mrb[0].mxu0 %v11041
  %v11254 = vpop.f32.mrb[0].mxu0
  %v11255 = vadd.f32 0.0, %v11254
  %v11256 = vpop.f32.mrb[0].mxu0
  %11257 = vmatprep.mubr.f32.mxu0 0.0
  %11258 = vmatmul.mubr.f32.gmra.mrb[0].mxu0 %v11044
  %v11259 = vpop.f32.mrb[0].mxu0
  %v11260 = vadd.f32 0.0, %v11259
  %v11261 = vpop.f32.mrb[0].mxu0
  %11262 = vmatprep.mubr.f32.mxu0 0.0
  %11263 = vmatmul.mubr.f32.gmra.mrb[0].mxu0 %v11047
  %v11264 = vpop.f32.mrb[0].mxu0
  %v11265 = vadd.f32 0.0, %v11264
  %v11266 = vpop.f32.mrb[0].mxu0
  %11267 = vmatprep.mubr.f32.mxu0 0.0
  %11268 = vmatmul.mubr.f32.gmra.mrb[0].mxu0 %v11050
  %v11269 = vpop.f32.mrb[0].mxu0
  %v11270 = vadd.f32 0.0, %v11269
  %v11271 = vpop.f32.mrb[0].mxu0
  %11272 = vmatprep.mubr.f32.mxu0 0.0
  %11273 = vmatmul.mubr.f32.gmra.mrb[0].mxu0 %v11053
  %v11274 = vpop.f32.mrb[0].mxu0
  %v11275 = vadd.f32 0.0, %v11274
  %v11276 = vpop.f32.mrb[0].mxu0
  %11277 = vmatprep.mubr.f32.mxu0 0.0
  %11278 = vmatmul.mubr.f32.gmra.mrb[0].mxu0 %v11056
  %v11279 = vpop.f32.mrb[0].mxu0
  %v11280 = vadd.f32 0.0, %v11279
  %v11281 = vpop.f32.mrb[0].mxu0
  %11282 = vdwg.mxu0
  %v11283 = vmax.f32 %v10706, %v11125
  %v11284 = vmax.f32 %v10707, %v11130
  %v11285 = vmax.f32 %v10708, %v11135
  %v11286 = vmax.f32 %v10709, %v11140
  %v11287 = vmax.f32 %v10710, %v11145
  %v11288 = vmax.f32 %v10711, %v11150
  %v11289 = vmax.f32 %v10712, %v11155
  %v11290 = vmax.f32 %v10713, %v11160
  %v11291 = vmax.f32 %v10714, %v11165
  %v11292 = vmax.f32 %v10715, %v11170
  %v11293 = vmax.f32 %v10716, %v11175
  %v11294 = vmax.f32 %v10717, %v11180
  %v11295 = vmax.f32 %v10718, %v11185
  %v11296 = vmax.f32 %v10719, %v11190
  %v11297 = vmax.f32 %v10720, %v11195
  %v11298 = vmax.f32 %v10721, %v11200
  %v11299 = vmax.f32 %v10722, %v11205
  %v11300 = vmax.f32 %v10723, %v11210
  %v11301 = vmax.f32 %v10724, %v11215
  %v11302 = vmax.f32 %v10725, %v11220
  %v11303 = vmax.f32 %v10726, %v11225
  %v11304 = vmax.f32 %v10727, %v11230
  %v11305 = vmax.f32 %v10728, %v11235
  %v11306 = vmax.f32 %v10729, %v11240
  %v11307 = vmax.f32 %v10730, %v11245
  %v11308 = vmax.f32 %v10731, %v11250
  %v11309 = vmax.f32 %v10732, %v11255
  %v11310 = vmax.f32 %v10733, %v11260
  %v11311 = vmax.f32 %v10734, %v11265
  %v11312 = vmax.f32 %v10735, %v11270
  %v11313 = vmax.f32 %v10736, %v11275
  %v11314 = vmax.f32 %v10737, %v11280
  %11315 = vset.pattern.permute.xlu0 10
  %11316 = vperm.xlu0 %11315, %v6698
  %v11317 = vpop.permute.xlu0 %11316
  %11318 = vset.pattern.permute.xlu0 10
  %11319 = vperm.xlu0 %11318, %v6699
  %v11320 = vpop.permute.xlu0 %11319
  %11321 = vset.pattern.permute.xlu0 10
  %11322 = vperm.xlu0 %11321, %v6700
  %v11323 = vpop.permute.xlu0 %11322
  %11324 = vset.pattern.permute.xlu0 10
  %11325 = vperm.xlu0 %11324, %v6701
  %v11326 = vpop.permute.xlu0 %11325
  %11327 = vset.pattern.permute.xlu0 10
  %11328 = vperm.xlu0 %11327, %v6702
  %v11329 = vpop.permute.xlu0 %11328
  %11330 = vset.pattern.permute.xlu0 10
  %11331 = vperm.xlu0 %11330, %v6703
  %v11332 = vpop.permute.xlu0 %11331
  %11333 = vset.pattern.permute.xlu0 10
  %11334 = vperm.xlu0 %11333, %v6704
  %v11335 = vpop.permute.xlu0 %11334
  %11336 = vset.pattern.permute.xlu0 10
  %11337 = vperm.xlu0 %11336, %v6705
  %v11338 = vpop.permute.xlu0 %11337
  %11339 = vset.pattern.permute.xlu0 10
  %11340 = vperm.xlu0 %11339, %v6706
  %v11341 = vpop.permute.xlu0 %11340
  %11342 = vset.pattern.permute.xlu0 10
  %11343 = vperm.xlu0 %11342, %v6707
  %v11344 = vpop.permute.xlu0 %11343
  %11345 = vset.pattern.permute.xlu0 10
  %11346 = vperm.xlu0 %11345, %v6708
  %v11347 = vpop.permute.xlu0 %11346
  %11348 = vset.pattern.permute.xlu0 10
  %11349 = vperm.xlu0 %11348, %v6709
  %v11350 = vpop.permute.xlu0 %11349
  %11351 = vset.pattern.permute.xlu0 10
  %11352 = vperm.xlu0 %11351, %v6710
  %v11353 = vpop.permute.xlu0 %11352
  %11354 = vset.pattern.permute.xlu0 10
  %11355 = vperm.xlu0 %11354, %v6711
  %v11356 = vpop.permute.xlu0 %11355
  %11357 = vset.pattern.permute.xlu0 10
  %11358 = vperm.xlu0 %11357, %v6712
  %v11359 = vpop.permute.xlu0 %11358
  %11360 = vset.pattern.permute.xlu0 10
  %11361 = vperm.xlu0 %11360, %v6713
  %v11362 = vpop.permute.xlu0 %11361
  %11363 = vset.pattern.permute.xlu0 10
  %11364 = vperm.xlu0 %11363, %v6714
  %v11365 = vpop.permute.xlu0 %11364
  %11366 = vset.pattern.permute.xlu0 10
  %11367 = vperm.xlu0 %11366, %v6715
  %v11368 = vpop.permute.xlu0 %11367
  %11369 = vset.pattern.permute.xlu0 10
  %11370 = vperm.xlu0 %11369, %v6716
  %v11371 = vpop.permute.xlu0 %11370
  %11372 = vset.pattern.permute.xlu0 10
  %11373 = vperm.xlu0 %11372, %v6717
  %v11374 = vpop.permute.xlu0 %11373
  %11375 = vset.pattern.permute.xlu0 10
  %11376 = vperm.xlu0 %11375, %v6718
  %v11377 = vpop.permute.xlu0 %11376
  %11378 = vset.pattern.permute.xlu0 10
  %11379 = vperm.xlu0 %11378, %v6719
  %v11380 = vpop.permute.xlu0 %11379
  %11381 = vset.pattern.permute.xlu0 10
  %11382 = vperm.xlu0 %11381, %v6720
  %v11383 = vpop.permute.xlu0 %11382
  %11384 = vset.pattern.permute.xlu0 10
  %11385 = vperm.xlu0 %11384, %v6721
  %v11386 = vpop.permute.xlu0 %11385
  %11387 = vset.pattern.permute.xlu0 10
  %11388 = vperm.xlu0 %11387, %v6722
  %v11389 = vpop.permute.xlu0 %11388
  %11390 = vset.pattern.permute.xlu0 10
  %11391 = vperm.xlu0 %11390, %v6723
  %v11392 = vpop.permute.xlu0 %11391
  %11393 = vset.pattern.permute.xlu0 10
  %11394 = vperm.xlu0 %11393, %v6724
  %v11395 = vpop.permute.xlu0 %11394
  %11396 = vset.pattern.permute.xlu0 10
  %11397 = vperm.xlu0 %11396, %v6725
  %v11398 = vpop.permute.xlu0 %11397
  %11399 = vset.pattern.permute.xlu0 10
  %11400 = vperm.xlu0 %11399, %v6726
  %v11401 = vpop.permute.xlu0 %11400
  %11402 = vset.pattern.permute.xlu0 10
  %11403 = vperm.xlu0 %11402, %v6727
  %v11404 = vpop.permute.xlu0 %11403
  %11405 = vset.pattern.permute.xlu0 10
  %11406 = vperm.xlu0 %11405, %v6728
  %v11407 = vpop.permute.xlu0 %11406
  %11408 = vset.pattern.permute.xlu0 10
  %11409 = vperm.xlu0 %11408, %v6729
  %v11410 = vpop.permute.xlu0 %11409
  %vm11411 = vcmp.eq.s32.totalorder %v55, %v11317
  %vm11412 = vcmp.eq.s32.totalorder %v55, %v11320
  %vm11413 = vcmp.eq.s32.totalorder %v55, %v11323
  %vm11414 = vcmp.eq.s32.totalorder %v55, %v11326
  %vm11415 = vcmp.eq.s32.totalorder %v55, %v11329
  %vm11416 = vcmp.eq.s32.totalorder %v55, %v11332
  %vm11417 = vcmp.eq.s32.totalorder %v55, %v11335
  %vm11418 = vcmp.eq.s32.totalorder %v55, %v11338
  %vm11419 = vcmp.eq.s32.totalorder %v55, %v11341
  %vm11420 = vcmp.eq.s32.totalorder %v55, %v11344
  %vm11421 = vcmp.eq.s32.totalorder %v55, %v11347
  %vm11422 = vcmp.eq.s32.totalorder %v55, %v11350
  %vm11423 = vcmp.eq.s32.totalorder %v55, %v11353
  %vm11424 = vcmp.eq.s32.totalorder %v55, %v11356
  %vm11425 = vcmp.eq.s32.totalorder %v55, %v11359
  %vm11426 = vcmp.eq.s32.totalorder %v55, %v11362
  %vm11427 = vcmp.eq.s32.totalorder %v55, %v11365
  %vm11428 = vcmp.eq.s32.totalorder %v55, %v11368
  %vm11429 = vcmp.eq.s32.totalorder %v55, %v11371
  %vm11430 = vcmp.eq.s32.totalorder %v55, %v11374
  %vm11431 = vcmp.eq.s32.totalorder %v55, %v11377
  %vm11432 = vcmp.eq.s32.totalorder %v55, %v11380
  %vm11433 = vcmp.eq.s32.totalorder %v55, %v11383
  %vm11434 = vcmp.eq.s32.totalorder %v55, %v11386
  %vm11435 = vcmp.eq.s32.totalorder %v55, %v11389
  %vm11436 = vcmp.eq.s32.totalorder %v55, %v11392
  %vm11437 = vcmp.eq.s32.totalorder %v55, %v11395
  %vm11438 = vcmp.eq.s32.totalorder %v55, %v11398
  %vm11439 = vcmp.eq.s32.totalorder %v55, %v11401
  %vm11440 = vcmp.eq.s32.totalorder %v55, %v11404
  %vm11441 = vcmp.eq.s32.totalorder %v55, %v11407
  %vm11442 = vcmp.eq.s32.totalorder %v55, %v11410
  %vm11443 = vmor %vm5248, %vm11411
  %vm11444 = vmor %vm5249, %vm11412
  %vm11445 = vmor %vm5250, %vm11413
  %vm11446 = vmor %vm5251, %vm11414
  %vm11447 = vmor %vm5252, %vm11415
  %vm11448 = vmor %vm5253, %vm11416
  %vm11449 = vmor %vm5254, %vm11417
  %vm11450 = vmor %vm5255, %vm11418
  %vm11451 = vmor %vm5256, %vm11419
  %vm11452 = vmor %vm5257, %vm11420
  %vm11453 = vmor %vm5258, %vm11421
  %vm11454 = vmor %vm5259, %vm11422
  %vm11455 = vmor %vm5260, %vm11423
  %vm11456 = vmor %vm5261, %vm11424
  %vm11457 = vmor %vm5262, %vm11425
  %vm11458 = vmor %vm5263, %vm11426
  %vm11459 = vmor %vm5264, %vm11427
  %vm11460 = vmor %vm5265, %vm11428
  %vm11461 = vmor %vm5266, %vm11429
  %vm11462 = vmor %vm5267, %vm11430
  %vm11463 = vmor %vm5268, %vm11431
  %vm11464 = vmor %vm5269, %vm11432
  %vm11465 = vmor %vm5270, %vm11433
  %vm11466 = vmor %vm5271, %vm11434
  %vm11467 = vmor %vm5272, %vm11435
  %vm11468 = vmor %vm5273, %vm11436
  %vm11469 = vmor %vm5274, %vm11437
  %vm11470 = vmor %vm5275, %vm11438
  %vm11471 = vmor %vm5276, %vm11439
  %vm11472 = vmor %vm5277, %vm11440
  %vm11473 = vmor %vm5278, %vm11441
  %vm11474 = vmor %vm5279, %vm11442
  %v11475 = vsel %vm11443, 1, 0
  %v11476 = vsel %vm11444, 1, 0
  %v11477 = vsel %vm11445, 1, 0
  %v11478 = vsel %vm11446, 1, 0
  %v11479 = vsel %vm11447, 1, 0
  %v11480 = vsel %vm11448, 1, 0
  %v11481 = vsel %vm11449, 1, 0
  %v11482 = vsel %vm11450, 1, 0
  %v11483 = vsel %vm11451, 1, 0
  %v11484 = vsel %vm11452, 1, 0
  %v11485 = vsel %vm11453, 1, 0
  %v11486 = vsel %vm11454, 1, 0
  %v11487 = vsel %vm11455, 1, 0
  %v11488 = vsel %vm11456, 1, 0
  %v11489 = vsel %vm11457, 1, 0
  %v11490 = vsel %vm11458, 1, 0
  %v11491 = vsel %vm11459, 1, 0
  %v11492 = vsel %vm11460, 1, 0
  %v11493 = vsel %vm11461, 1, 0
  %v11494 = vsel %vm11462, 1, 0
  %v11495 = vsel %vm11463, 1, 0
  %v11496 = vsel %vm11464, 1, 0
  %v11497 = vsel %vm11465, 1, 0
  %v11498 = vsel %vm11466, 1, 0
  %v11499 = vsel %vm11467, 1, 0
  %v11500 = vsel %vm11468, 1, 0
  %v11501 = vsel %vm11469, 1, 0
  %v11502 = vsel %vm11470, 1, 0
  %v11503 = vsel %vm11471, 1, 0
  %v11504 = vsel %vm11472, 1, 0
  %v11505 = vsel %vm11473, 1, 0
  %v11506 = vsel %vm11474, 1, 0
  %v11507 = vcvt.s32.f32 %v11475
  %v11508 = vcvt.s32.f32 %v11476
  %v11509 = vcvt.s32.f32 %v11477
  %v11510 = vcvt.s32.f32 %v11478
  %v11511 = vcvt.s32.f32 %v11479
  %v11512 = vcvt.s32.f32 %v11480
  %v11513 = vcvt.s32.f32 %v11481
  %v11514 = vcvt.s32.f32 %v11482
  %v11515 = vcvt.s32.f32 %v11483
  %v11516 = vcvt.s32.f32 %v11484
  %v11517 = vcvt.s32.f32 %v11485
  %v11518 = vcvt.s32.f32 %v11486
  %v11519 = vcvt.s32.f32 %v11487
  %v11520 = vcvt.s32.f32 %v11488
  %v11521 = vcvt.s32.f32 %v11489
  %v11522 = vcvt.s32.f32 %v11490
  %v11523 = vcvt.s32.f32 %v11491
  %v11524 = vcvt.s32.f32 %v11492
  %v11525 = vcvt.s32.f32 %v11493
  %v11526 = vcvt.s32.f32 %v11494
  %v11527 = vcvt.s32.f32 %v11495
  %v11528 = vcvt.s32.f32 %v11496
  %v11529 = vcvt.s32.f32 %v11497
  %v11530 = vcvt.s32.f32 %v11498
  %v11531 = vcvt.s32.f32 %v11499
  %v11532 = vcvt.s32.f32 %v11500
  %v11533 = vcvt.s32.f32 %v11501
  %v11534 = vcvt.s32.f32 %v11502
  %v11535 = vcvt.s32.f32 %v11503
  %v11536 = vcvt.s32.f32 %v11504
  %v11537 = vcvt.s32.f32 %v11505
  %v11538 = vcvt.s32.f32 %v11506
  %v11540 = vsel %vm6954, %v11507, 0
  %v11543 = vsel %vm6954, %v11508, 0
  %v11546 = vsel %vm6954, %v11509, 0
  %v11549 = vsel %vm6954, %v11510, 0
  %v11552 = vsel %vm6954, %v11511, 0
  %v11555 = vsel %vm6954, %v11512, 0
  %v11558 = vsel %vm6954, %v11513, 0
  %v11561 = vsel %vm6954, %v11514, 0
  %v11564 = vsel %vm6954, %v11515, 0
  %v11567 = vsel %vm6954, %v11516, 0
  %v11570 = vsel %vm6954, %v11517, 0
  %v11573 = vsel %vm6954, %v11518, 0
  %v11576 = vsel %vm6954, %v11519, 0
  %v11579 = vsel %vm6954, %v11520, 0
  %v11582 = vsel %vm6954, %v11521, 0
  %v11585 = vsel %vm6954, %v11522, 0
  %v11588 = vsel %vm6954, %v11523, 0
  %v11591 = vsel %vm6954, %v11524, 0
  %v11594 = vsel %vm6954, %v11525, 0
  %v11597 = vsel %vm6954, %v11526, 0
  %v11600 = vsel %vm6954, %v11527, 0
  %v11603 = vsel %vm6954, %v11528, 0
  %v11606 = vsel %vm6954, %v11529, 0
  %v11609 = vsel %vm6954, %v11530, 0
  %v11612 = vsel %vm6954, %v11531, 0
  %v11615 = vsel %vm6954, %v11532, 0
  %v11618 = vsel %vm6954, %v11533, 0
  %v11621 = vsel %vm6954, %v11534, 0
  %v11624 = vsel %vm6954, %v11535, 0
  %v11627 = vsel %vm6954, %v11536, 0
  %v11630 = vsel %vm6954, %v11537, 0
  %v11633 = vsel %vm6954, %v11538, 0
  %11635 = vmatprep.subr.mxu0 0.0
  %11636 = vmatpush1.msra.mxu0 %v6402
  %11637 = vmatprep.subr.mxu0 0.0
  %11638 = vmatpush1.msra.mxu0 %v6403
  %11639 = vmatprep.subr.mxu0 0.0
  %11640 = vmatpush1.msra.mxu0 %v6404
  %11641 = vmatprep.subr.mxu0 0.0
  %11642 = vmatpush1.msra.mxu0 %v6405
  %11643 = vmatprep.subr.mxu0 0.0
  %11644 = vmatpush1.msra.mxu0 %v6406
  %11645 = vmatprep.subr.mxu0 0.0
  %11646 = vmatpush1.msra.mxu0 %v6407
  %11647 = vmatprep.subr.mxu0 0.0
  %11648 = vmatpush1.msra.mxu0 %v6408
  %11649 = vmatprep.subr.mxu0 0.0
  %11650 = vmatpush1.msra.mxu0 %v6409
  %11651 = vmatprep.subr.mxu0 0.0
  %11652 = vmatpush1.msra.mxu0 0.0
  %11653 = vmatprep.subr.mxu0 0.0
  %11654 = vmatpush1.msra.mxu0 0.0
  %11655 = vmatprep.subr.mxu0 0.0
  %11656 = vmatpush1.msra.mxu0 0.0
  %11657 = vmatprep.subr.mxu0 0.0
  %11658 = vmatpush1.msra.mxu0 0.0
  %11659 = vmatprep.subr.mxu0 0.0
  %11660 = vmatpush1.msra.mxu0 0.0
  %11661 = vmatprep.subr.mxu0 0.0
  %11662 = vmatpush1.msra.mxu0 0.0
  %11663 = vmatprep.subr.mxu0 0.0
  %11664 = vmatpush1.msra.mxu0 0.0
  %11665 = vmatprep.subr.mxu0 0.0
  %11666 = vmatpush1.msra.mxu0 0.0
  %11667 = vmatprep.subr.mxu0 0.0
  %11668 = vmatpush1.msra.mxu0 0.0
  %11669 = vmatprep.subr.mxu0 0.0
  %11670 = vmatpush1.msra.mxu0 0.0
  %11671 = vmatprep.subr.mxu0 0.0
  %11672 = vmatpush1.msra.mxu0 0.0
  %11673 = vmatprep.subr.mxu0 0.0
  %11674 = vmatpush1.msra.mxu0 0.0
  %11675 = vmatprep.subr.mxu0 0.0
  %11676 = vmatpush1.msra.mxu0 0.0
  %11677 = vmatprep.subr.mxu0 0.0
  %11678 = vmatpush1.msra.mxu0 0.0
  %11679 = vmatprep.subr.mxu0 0.0
  %11680 = vmatpush1.msra.mxu0 0.0
  %11681 = vmatprep.subr.mxu0 0.0
  %11682 = vmatpush1.msra.mxu0 0.0
  %11683 = vmatprep.subr.mxu0 0.0
  %11684 = vmatpush1.msra.mxu0 0.0
  %11685 = vmatprep.subr.mxu0 0.0
  %11686 = vmatpush1.msra.mxu0 0.0
  %11687 = vmatprep.subr.mxu0 0.0
  %11688 = vmatpush1.msra.mxu0 0.0
  %11689 = vmatprep.subr.mxu0 0.0
  %11690 = vmatpush1.msra.mxu0 0.0
  %11691 = vmatprep.subr.mxu0 0.0
  %11692 = vmatpush1.msra.mxu0 0.0
  %11693 = vmatprep.subr.mxu0 0.0
  %11694 = vmatpush1.msra.mxu0 0.0
  %11695 = vmatprep.subr.mxu0 0.0
  %11696 = vmatpush1.msra.mxu0 0.0
  %11697 = vmatprep.subr.mxu0 0.0
  %11698 = vmatpush1.msra.mxu0 0.0
  %11699 = vmatprep.mubr.f32.mxu0 0.0
  %11700 = vmatmul.mubr.f32.gmra.mrb[0].mxu0 %v11540
  %v11701 = vpop.f32.mrb[0].mxu0
  %v11702 = vadd.f32 0.0, %v11701
  %v11703 = vpop.f32.mrb[0].mxu0
  %11704 = vmatprep.mubr.f32.mxu0 0.0
  %11705 = vmatmul.mubr.f32.gmra.mrb[0].mxu0 %v11543
  %v11706 = vpop.f32.mrb[0].mxu0
  %v11707 = vadd.f32 0.0, %v11706
  %v11708 = vpop.f32.mrb[0].mxu0
  %11709 = vmatprep.mubr.f32.mxu0 0.0
  %11710 = vmatmul.mubr.f32.gmra.mrb[0].mxu0 %v11546
  %v11711 = vpop.f32.mrb[0].mxu0
  %v11712 = vadd.f32 0.0, %v11711
  %v11713 = vpop.f32.mrb[0].mxu0
  %11714 = vmatprep.mubr.f32.mxu0 0.0
  %11715 = vmatmul.mubr.f32.gmra.mrb[0].mxu0 %v11549
  %v11716 = vpop.f32.mrb[0].mxu0
  %v11717 = vadd.f32 0.0, %v11716
  %v11718 = vpop.f32.mrb[0].mxu0
  %11719 = vmatprep.mubr.f32.mxu0 0.0
  %11720 = vmatmul.mubr.f32.gmra.mrb[0].mxu0 %v11552
  %v11721 = vpop.f32.mrb[0].mxu0
  %v11722 = vadd.f32 0.0, %v11721
  %v11723 = vpop.f32.mrb[0].mxu0
  %11724 = vmatprep.mubr.f32.mxu0 0.0
  %11725 = vmatmul.mubr.f32.gmra.mrb[0].mxu0 %v11555
  %v11726 = vpop.f32.mrb[0].mxu0
  %v11727 = vadd.f32 0.0, %v11726
  %v11728 = vpop.f32.mrb[0].mxu0
  %11729 = vmatprep.mubr.f32.mxu0 0.0
  %11730 = vmatmul.mubr.f32.gmra.mrb[0].mxu0 %v11558
  %v11731 = vpop.f32.mrb[0].mxu0
  %v11732 = vadd.f32 0.0, %v11731
  %v11733 = vpop.f32.mrb[0].mxu0
  %11734 = vmatprep.mubr.f32.mxu0 0.0
  %11735 = vmatmul.mubr.f32.gmra.mrb[0].mxu0 %v11561
  %v11736 = vpop.f32.mrb[0].mxu0
  %v11737 = vadd.f32 0.0, %v11736
  %v11738 = vpop.f32.mrb[0].mxu0
  %11739 = vmatprep.mubr.f32.mxu0 0.0
  %11740 = vmatmul.mubr.f32.gmra.mrb[0].mxu0 %v11564
  %v11741 = vpop.f32.mrb[0].mxu0
  %v11742 = vadd.f32 0.0, %v11741
  %v11743 = vpop.f32.mrb[0].mxu0
  %11744 = vmatprep.mubr.f32.mxu0 0.0
  %11745 = vmatmul.mubr.f32.gmra.mrb[0].mxu0 %v11567
  %v11746 = vpop.f32.mrb[0].mxu0
  %v11747 = vadd.f32 0.0, %v11746
  %v11748 = vpop.f32.mrb[0].mxu0
  %11749 = vmatprep.mubr.f32.mxu0 0.0
  %11750 = vmatmul.mubr.f32.gmra.mrb[0].mxu0 %v11570
  %v11751 = vpop.f32.mrb[0].mxu0
  %v11752 = vadd.f32 0.0, %v11751
  %v11753 = vpop.f32.mrb[0].mxu0
  %11754 = vmatprep.mubr.f32.mxu0 0.0
  %11755 = vmatmul.mubr.f32.gmra.mrb[0].mxu0 %v11573
  %v11756 = vpop.f32.mrb[0].mxu0
  %v11757 = vadd.f32 0.0, %v11756
  %v11758 = vpop.f32.mrb[0].mxu0
  %11759 = vmatprep.mubr.f32.mxu0 0.0
  %11760 = vmatmul.mubr.f32.gmra.mrb[0].mxu0 %v11576
  %v11761 = vpop.f32.mrb[0].mxu0
  %v11762 = vadd.f32 0.0, %v11761
  %v11763 = vpop.f32.mrb[0].mxu0
  %11764 = vmatprep.mubr.f32.mxu0 0.0
  %11765 = vmatmul.mubr.f32.gmra.mrb[0].mxu0 %v11579
  %v11766 = vpop.f32.mrb[0].mxu0
  %v11767 = vadd.f32 0.0, %v11766
  %v11768 = vpop.f32.mrb[0].mxu0
  %11769 = vmatprep.mubr.f32.mxu0 0.0
  %11770 = vmatmul.mubr.f32.gmra.mrb[0].mxu0 %v11582
  %v11771 = vpop.f32.mrb[0].mxu0
  %v11772 = vadd.f32 0.0, %v11771
  %v11773 = vpop.f32.mrb[0].mxu0
  %11774 = vmatprep.mubr.f32.mxu0 0.0
  %11775 = vmatmul.mubr.f32.gmra.mrb[0].mxu0 %v11585
  %v11776 = vpop.f32.mrb[0].mxu0
  %v11777 = vadd.f32 0.0, %v11776
  %v11778 = vpop.f32.mrb[0].mxu0
  %11779 = vmatprep.mubr.f32.mxu0 0.0
  %11780 = vmatmul.mubr.f32.gmra.mrb[0].mxu0 %v11588
  %v11781 = vpop.f32.mrb[0].mxu0
  %v11782 = vadd.f32 0.0, %v11781
  %v11783 = vpop.f32.mrb[0].mxu0
  %11784 = vmatprep.mubr.f32.mxu0 0.0
  %11785 = vmatmul.mubr.f32.gmra.mrb[0].mxu0 %v11591
  %v11786 = vpop.f32.mrb[0].mxu0
  %v11787 = vadd.f32 0.0, %v11786
  %v11788 = vpop.f32.mrb[0].mxu0
  %11789 = vmatprep.mubr.f32.mxu0 0.0
  %11790 = vmatmul.mubr.f32.gmra.mrb[0].mxu0 %v11594
  %v11791 = vpop.f32.mrb[0].mxu0
  %v11792 = vadd.f32 0.0, %v11791
  %v11793 = vpop.f32.mrb[0].mxu0
  %11794 = vmatprep.mubr.f32.mxu0 0.0
  %11795 = vmatmul.mubr.f32.gmra.mrb[0].mxu0 %v11597
  %v11796 = vpop.f32.mrb[0].mxu0
  %v11797 = vadd.f32 0.0, %v11796
  %v11798 = vpop.f32.mrb[0].mxu0
  %11799 = vmatprep.mubr.f32.mxu0 0.0
  %11800 = vmatmul.mubr.f32.gmra.mrb[0].mxu0 %v11600
  %v11801 = vpop.f32.mrb[0].mxu0
  %v11802 = vadd.f32 0.0, %v11801
  %v11803 = vpop.f32.mrb[0].mxu0
  %11804 = vmatprep.mubr.f32.mxu0 0.0
  %11805 = vmatmul.mubr.f32.gmra.mrb[0].mxu0 %v11603
  %v11806 = vpop.f32.mrb[0].mxu0
  %v11807 = vadd.f32 0.0, %v11806
  %v11808 = vpop.f32.mrb[0].mxu0
  %11809 = vmatprep.mubr.f32.mxu0 0.0
  %11810 = vmatmul.mubr.f32.gmra.mrb[0].mxu0 %v11606
  %v11811 = vpop.f32.mrb[0].mxu0
  %v11812 = vadd.f32 0.0, %v11811
  %v11813 = vpop.f32.mrb[0].mxu0
  %11814 = vmatprep.mubr.f32.mxu0 0.0
  %11815 = vmatmul.mubr.f32.gmra.mrb[0].mxu0 %v11609
  %v11816 = vpop.f32.mrb[0].mxu0
  %v11817 = vadd.f32 0.0, %v11816
  %v11818 = vpop.f32.mrb[0].mxu0
  %11819 = vmatprep.mubr.f32.mxu0 0.0
  %11820 = vmatmul.mubr.f32.gmra.mrb[0].mxu0 %v11612
  %v11821 = vpop.f32.mrb[0].mxu0
  %v11822 = vadd.f32 0.0, %v11821
  %v11823 = vpop.f32.mrb[0].mxu0
  %11824 = vmatprep.mubr.f32.mxu0 0.0
  %11825 = vmatmul.mubr.f32.gmra.mrb[0].mxu0 %v11615
  %v11826 = vpop.f32.mrb[0].mxu0
  %v11827 = vadd.f32 0.0, %v11826
  %v11828 = vpop.f32.mrb[0].mxu0
  %11829 = vmatprep.mubr.f32.mxu0 0.0
  %11830 = vmatmul.mubr.f32.gmra.mrb[0].mxu0 %v11618
  %v11831 = vpop.f32.mrb[0].mxu0
  %v11832 = vadd.f32 0.0, %v11831
  %v11833 = vpop.f32.mrb[0].mxu0
  %11834 = vmatprep.mubr.f32.mxu0 0.0
  %11835 = vmatmul.mubr.f32.gmra.mrb[0].mxu0 %v11621
  %v11836 = vpop.f32.mrb[0].mxu0
  %v11837 = vadd.f32 0.0, %v11836
  %v11838 = vpop.f32.mrb[0].mxu0
  %11839 = vmatprep.mubr.f32.mxu0 0.0
  %11840 = vmatmul.mubr.f32.gmra.mrb[0].mxu0 %v11624
  %v11841 = vpop.f32.mrb[0].mxu0
  %v11842 = vadd.f32 0.0, %v11841
  %v11843 = vpop.f32.mrb[0].mxu0
  %11844 = vmatprep.mubr.f32.mxu0 0.0
  %11845 = vmatmul.mubr.f32.gmra.mrb[0].mxu0 %v11627
  %v11846 = vpop.f32.mrb[0].mxu0
  %v11847 = vadd.f32 0.0, %v11846
  %v11848 = vpop.f32.mrb[0].mxu0
  %11849 = vmatprep.mubr.f32.mxu0 0.0
  %11850 = vmatmul.mubr.f32.gmra.mrb[0].mxu0 %v11630
  %v11851 = vpop.f32.mrb[0].mxu0
  %v11852 = vadd.f32 0.0, %v11851
  %v11853 = vpop.f32.mrb[0].mxu0
  %11854 = vmatprep.mubr.f32.mxu0 0.0
  %11855 = vmatmul.mubr.f32.gmra.mrb[0].mxu0 %v11633
  %v11856 = vpop.f32.mrb[0].mxu0
  %v11857 = vadd.f32 0.0, %v11856
  %v11858 = vpop.f32.mrb[0].mxu0
  %11859 = vdwg.mxu0
  %v11860 = vmax.f32 %v11283, %v11702
  %v11861 = vmax.f32 %v11284, %v11707
  %v11862 = vmax.f32 %v11285, %v11712
  %v11863 = vmax.f32 %v11286, %v11717
  %v11864 = vmax.f32 %v11287, %v11722
  %v11865 = vmax.f32 %v11288, %v11727
  %v11866 = vmax.f32 %v11289, %v11732
  %v11867 = vmax.f32 %v11290, %v11737
  %v11868 = vmax.f32 %v11291, %v11742
  %v11869 = vmax.f32 %v11292, %v11747
  %v11870 = vmax.f32 %v11293, %v11752
  %v11871 = vmax.f32 %v11294, %v11757
  %v11872 = vmax.f32 %v11295, %v11762
  %v11873 = vmax.f32 %v11296, %v11767
  %v11874 = vmax.f32 %v11297, %v11772
  %v11875 = vmax.f32 %v11298, %v11777
  %v11876 = vmax.f32 %v11299, %v11782
  %v11877 = vmax.f32 %v11300, %v11787
  %v11878 = vmax.f32 %v11301, %v11792
  %v11879 = vmax.f32 %v11302, %v11797
  %v11880 = vmax.f32 %v11303, %v11802
  %v11881 = vmax.f32 %v11304, %v11807
  %v11882 = vmax.f32 %v11305, %v11812
  %v11883 = vmax.f32 %v11306, %v11817
  %v11884 = vmax.f32 %v11307, %v11822
  %v11885 = vmax.f32 %v11308, %v11827
  %v11886 = vmax.f32 %v11309, %v11832
  %v11887 = vmax.f32 %v11310, %v11837
  %v11888 = vmax.f32 %v11311, %v11842
  %v11889 = vmax.f32 %v11312, %v11847
  %v11890 = vmax.f32 %v11313, %v11852
  %v11891 = vmax.f32 %v11314, %v11857
  %11892 = vset.pattern.permute.xlu0 11
  %11893 = vperm.xlu0 %11892, %v6698
  %v11894 = vpop.permute.xlu0 %11893
  %11895 = vset.pattern.permute.xlu0 11
  %11896 = vperm.xlu0 %11895, %v6699
  %v11897 = vpop.permute.xlu0 %11896
  %11898 = vset.pattern.permute.xlu0 11
  %11899 = vperm.xlu0 %11898, %v6700
  %v11900 = vpop.permute.xlu0 %11899
  %11901 = vset.pattern.permute.xlu0 11
  %11902 = vperm.xlu0 %11901, %v6701
  %v11903 = vpop.permute.xlu0 %11902
  %11904 = vset.pattern.permute.xlu0 11
  %11905 = vperm.xlu0 %11904, %v6702
  %v11906 = vpop.permute.xlu0 %11905
  %11907 = vset.pattern.permute.xlu0 11
  %11908 = vperm.xlu0 %11907, %v6703
  %v11909 = vpop.permute.xlu0 %11908
  %11910 = vset.pattern.permute.xlu0 11
  %11911 = vperm.xlu0 %11910, %v6704
  %v11912 = vpop.permute.xlu0 %11911
  %11913 = vset.pattern.permute.xlu0 11
  %11914 = vperm.xlu0 %11913, %v6705
  %v11915 = vpop.permute.xlu0 %11914
  %11916 = vset.pattern.permute.xlu0 11
  %11917 = vperm.xlu0 %11916, %v6706
  %v11918 = vpop.permute.xlu0 %11917
  %11919 = vset.pattern.permute.xlu0 11
  %11920 = vperm.xlu0 %11919, %v6707
  %v11921 = vpop.permute.xlu0 %11920
  %11922 = vset.pattern.permute.xlu0 11
  %11923 = vperm.xlu0 %11922, %v6708
  %v11924 = vpop.permute.xlu0 %11923
  %11925 = vset.pattern.permute.xlu0 11
  %11926 = vperm.xlu0 %11925, %v6709
  %v11927 = vpop.permute.xlu0 %11926
  %11928 = vset.pattern.permute.xlu0 11
  %11929 = vperm.xlu0 %11928, %v6710
  %v11930 = vpop.permute.xlu0 %11929
  %11931 = vset.pattern.permute.xlu0 11
  %11932 = vperm.xlu0 %11931, %v6711
  %v11933 = vpop.permute.xlu0 %11932
  %11934 = vset.pattern.permute.xlu0 11
  %11935 = vperm.xlu0 %11934, %v6712
  %v11936 = vpop.permute.xlu0 %11935
  %11937 = vset.pattern.permute.xlu0 11
  %11938 = vperm.xlu0 %11937, %v6713
  %v11939 = vpop.permute.xlu0 %11938
  %11940 = vset.pattern.permute.xlu0 11
  %11941 = vperm.xlu0 %11940, %v6714
  %v11942 = vpop.permute.xlu0 %11941
  %11943 = vset.pattern.permute.xlu0 11
  %11944 = vperm.xlu0 %11943, %v6715
  %v11945 = vpop.permute.xlu0 %11944
  %11946 = vset.pattern.permute.xlu0 11
  %11947 = vperm.xlu0 %11946, %v6716
  %v11948 = vpop.permute.xlu0 %11947
  %11949 = vset.pattern.permute.xlu0 11
  %11950 = vperm.xlu0 %11949, %v6717
  %v11951 = vpop.permute.xlu0 %11950
  %11952 = vset.pattern.permute.xlu0 11
  %11953 = vperm.xlu0 %11952, %v6718
  %v11954 = vpop.permute.xlu0 %11953
  %11955 = vset.pattern.permute.xlu0 11
  %11956 = vperm.xlu0 %11955, %v6719
  %v11957 = vpop.permute.xlu0 %11956
  %11958 = vset.pattern.permute.xlu0 11
  %11959 = vperm.xlu0 %11958, %v6720
  %v11960 = vpop.permute.xlu0 %11959
  %11961 = vset.pattern.permute.xlu0 11
  %11962 = vperm.xlu0 %11961, %v6721
  %v11963 = vpop.permute.xlu0 %11962
  %11964 = vset.pattern.permute.xlu0 11
  %11965 = vperm.xlu0 %11964, %v6722
  %v11966 = vpop.permute.xlu0 %11965
  %11967 = vset.pattern.permute.xlu0 11
  %11968 = vperm.xlu0 %11967, %v6723
  %v11969 = vpop.permute.xlu0 %11968
  %11970 = vset.pattern.permute.xlu0 11
  %11971 = vperm.xlu0 %11970, %v6724
  %v11972 = vpop.permute.xlu0 %11971
  %11973 = vset.pattern.permute.xlu0 11
  %11974 = vperm.xlu0 %11973, %v6725
  %v11975 = vpop.permute.xlu0 %11974
  %11976 = vset.pattern.permute.xlu0 11
  %11977 = vperm.xlu0 %11976, %v6726
  %v11978 = vpop.permute.xlu0 %11977
  %11979 = vset.pattern.permute.xlu0 11
  %11980 = vperm.xlu0 %11979, %v6727
  %v11981 = vpop.permute.xlu0 %11980
  %11982 = vset.pattern.permute.xlu0 11
  %11983 = vperm.xlu0 %11982, %v6728
  %v11984 = vpop.permute.xlu0 %11983
  %11985 = vset.pattern.permute.xlu0 11
  %11986 = vperm.xlu0 %11985, %v6729
  %v11987 = vpop.permute.xlu0 %11986
  %vm11988 = vcmp.eq.s32.totalorder %v55, %v11894
  %vm11989 = vcmp.eq.s32.totalorder %v55, %v11897
  %vm11990 = vcmp.eq.s32.totalorder %v55, %v11900
  %vm11991 = vcmp.eq.s32.totalorder %v55, %v11903
  %vm11992 = vcmp.eq.s32.totalorder %v55, %v11906
  %vm11993 = vcmp.eq.s32.totalorder %v55, %v11909
  %vm11994 = vcmp.eq.s32.totalorder %v55, %v11912
  %vm11995 = vcmp.eq.s32.totalorder %v55, %v11915
  %vm11996 = vcmp.eq.s32.totalorder %v55, %v11918
  %vm11997 = vcmp.eq.s32.totalorder %v55, %v11921
  %vm11998 = vcmp.eq.s32.totalorder %v55, %v11924
  %vm11999 = vcmp.eq.s32.totalorder %v55, %v11927
  %vm12000 = vcmp.eq.s32.totalorder %v55, %v11930
  %vm12001 = vcmp.eq.s32.totalorder %v55, %v11933
  %vm12002 = vcmp.eq.s32.totalorder %v55, %v11936
  %vm12003 = vcmp.eq.s32.totalorder %v55, %v11939
  %vm12004 = vcmp.eq.s32.totalorder %v55, %v11942
  %vm12005 = vcmp.eq.s32.totalorder %v55, %v11945
  %vm12006 = vcmp.eq.s32.totalorder %v55, %v11948
  %vm12007 = vcmp.eq.s32.totalorder %v55, %v11951
  %vm12008 = vcmp.eq.s32.totalorder %v55, %v11954
  %vm12009 = vcmp.eq.s32.totalorder %v55, %v11957
  %vm12010 = vcmp.eq.s32.totalorder %v55, %v11960
  %vm12011 = vcmp.eq.s32.totalorder %v55, %v11963
  %vm12012 = vcmp.eq.s32.totalorder %v55, %v11966
  %vm12013 = vcmp.eq.s32.totalorder %v55, %v11969
  %vm12014 = vcmp.eq.s32.totalorder %v55, %v11972
  %vm12015 = vcmp.eq.s32.totalorder %v55, %v11975
  %vm12016 = vcmp.eq.s32.totalorder %v55, %v11978
  %vm12017 = vcmp.eq.s32.totalorder %v55, %v11981
  %vm12018 = vcmp.eq.s32.totalorder %v55, %v11984
  %vm12019 = vcmp.eq.s32.totalorder %v55, %v11987
  %vm12020 = vmor %vm5953, %vm11988
  %vm12021 = vmor %vm5954, %vm11989
  %vm12022 = vmor %vm5955, %vm11990
  %vm12023 = vmor %vm5956, %vm11991
  %vm12024 = vmor %vm5957, %vm11992
  %vm12025 = vmor %vm5958, %vm11993
  %vm12026 = vmor %vm5959, %vm11994
  %vm12027 = vmor %vm5960, %vm11995
  %vm12028 = vmor %vm5961, %vm11996
  %vm12029 = vmor %vm5962, %vm11997
  %vm12030 = vmor %vm5963, %vm11998
  %vm12031 = vmor %vm5964, %vm11999
  %vm12032 = vmor %vm5965, %vm12000
  %vm12033 = vmor %vm5966, %vm12001
  %vm12034 = vmor %vm5967, %vm12002
  %vm12035 = vmor %vm5968, %vm12003
  %vm12036 = vmor %vm5969, %vm12004
  %vm12037 = vmor %vm5970, %vm12005
  %vm12038 = vmor %vm5971, %vm12006
  %vm12039 = vmor %vm5972, %vm12007
  %vm12040 = vmor %vm5973, %vm12008
  %vm12041 = vmor %vm5974, %vm12009
  %vm12042 = vmor %vm5975, %vm12010
  %vm12043 = vmor %vm5976, %vm12011
  %vm12044 = vmor %vm5977, %vm12012
  %vm12045 = vmor %vm5978, %vm12013
  %vm12046 = vmor %vm5979, %vm12014
  %vm12047 = vmor %vm5980, %vm12015
  %vm12048 = vmor %vm5981, %vm12016
  %vm12049 = vmor %vm5982, %vm12017
  %vm12050 = vmor %vm5983, %vm12018
  %vm12051 = vmor %vm5984, %vm12019
  %v12052 = vsel %vm12020, 1, 0
  %v12053 = vsel %vm12021, 1, 0
  %v12054 = vsel %vm12022, 1, 0
  %v12055 = vsel %vm12023, 1, 0
  %v12056 = vsel %vm12024, 1, 0
  %v12057 = vsel %vm12025, 1, 0
  %v12058 = vsel %vm12026, 1, 0
  %v12059 = vsel %vm12027, 1, 0
  %v12060 = vsel %vm12028, 1, 0
  %v12061 = vsel %vm12029, 1, 0
  %v12062 = vsel %vm12030, 1, 0
  %v12063 = vsel %vm12031, 1, 0
  %v12064 = vsel %vm12032, 1, 0
  %v12065 = vsel %vm12033, 1, 0
  %v12066 = vsel %vm12034, 1, 0
  %v12067 = vsel %vm12035, 1, 0
  %v12068 = vsel %vm12036, 1, 0
  %v12069 = vsel %vm12037, 1, 0
  %v12070 = vsel %vm12038, 1, 0
  %v12071 = vsel %vm12039, 1, 0
  %v12072 = vsel %vm12040, 1, 0
  %v12073 = vsel %vm12041, 1, 0
  %v12074 = vsel %vm12042, 1, 0
  %v12075 = vsel %vm12043, 1, 0
  %v12076 = vsel %vm12044, 1, 0
  %v12077 = vsel %vm12045, 1, 0
  %v12078 = vsel %vm12046, 1, 0
  %v12079 = vsel %vm12047, 1, 0
  %v12080 = vsel %vm12048, 1, 0
  %v12081 = vsel %vm12049, 1, 0
  %v12082 = vsel %vm12050, 1, 0
  %v12083 = vsel %vm12051, 1, 0
  %v12084 = vcvt.s32.f32 %v12052
  %v12085 = vcvt.s32.f32 %v12053
  %v12086 = vcvt.s32.f32 %v12054
  %v12087 = vcvt.s32.f32 %v12055
  %v12088 = vcvt.s32.f32 %v12056
  %v12089 = vcvt.s32.f32 %v12057
  %v12090 = vcvt.s32.f32 %v12058
  %v12091 = vcvt.s32.f32 %v12059
  %v12092 = vcvt.s32.f32 %v12060
  %v12093 = vcvt.s32.f32 %v12061
  %v12094 = vcvt.s32.f32 %v12062
  %v12095 = vcvt.s32.f32 %v12063
  %v12096 = vcvt.s32.f32 %v12064
  %v12097 = vcvt.s32.f32 %v12065
  %v12098 = vcvt.s32.f32 %v12066
  %v12099 = vcvt.s32.f32 %v12067
  %v12100 = vcvt.s32.f32 %v12068
  %v12101 = vcvt.s32.f32 %v12069
  %v12102 = vcvt.s32.f32 %v12070
  %v12103 = vcvt.s32.f32 %v12071
  %v12104 = vcvt.s32.f32 %v12072
  %v12105 = vcvt.s32.f32 %v12073
  %v12106 = vcvt.s32.f32 %v12074
  %v12107 = vcvt.s32.f32 %v12075
  %v12108 = vcvt.s32.f32 %v12076
  %v12109 = vcvt.s32.f32 %v12077
  %v12110 = vcvt.s32.f32 %v12078
  %v12111 = vcvt.s32.f32 %v12079
  %v12112 = vcvt.s32.f32 %v12080
  %v12113 = vcvt.s32.f32 %v12081
  %v12114 = vcvt.s32.f32 %v12082
  %v12115 = vcvt.s32.f32 %v12083
  %v12117 = vsel %vm6954, %v12084, 0
  %v12120 = vsel %vm6954, %v12085, 0
  %v12123 = vsel %vm6954, %v12086, 0
  %v12126 = vsel %vm6954, %v12087, 0
  %v12129 = vsel %vm6954, %v12088, 0
  %v12132 = vsel %vm6954, %v12089, 0
  %v12135 = vsel %vm6954, %v12090, 0
  %v12138 = vsel %vm6954, %v12091, 0
  %v12141 = vsel %vm6954, %v12092, 0
  %v12144 = vsel %vm6954, %v12093, 0
  %v12147 = vsel %vm6954, %v12094, 0
  %v12150 = vsel %vm6954, %v12095, 0
  %v12153 = vsel %vm6954, %v12096, 0
  %v12156 = vsel %vm6954, %v12097, 0
  %v12159 = vsel %vm6954, %v12098, 0
  %v12162 = vsel %vm6954, %v12099, 0
  %v12165 = vsel %vm6954, %v12100, 0
  %v12168 = vsel %vm6954, %v12101, 0
  %v12171 = vsel %vm6954, %v12102, 0
  %v12174 = vsel %vm6954, %v12103, 0
  %v12177 = vsel %vm6954, %v12104, 0
  %v12180 = vsel %vm6954, %v12105, 0
  %v12183 = vsel %vm6954, %v12106, 0
  %v12186 = vsel %vm6954, %v12107, 0
  %v12189 = vsel %vm6954, %v12108, 0
  %v12192 = vsel %vm6954, %v12109, 0
  %v12195 = vsel %vm6954, %v12110, 0
  %v12198 = vsel %vm6954, %v12111, 0
  %v12201 = vsel %vm6954, %v12112, 0
  %v12204 = vsel %vm6954, %v12113, 0
  %v12207 = vsel %vm6954, %v12114, 0
  %v12210 = vsel %vm6954, %v12115, 0
  %12212 = vmatprep.subr.mxu0 0.0
  %12213 = vmatpush1.msra.mxu0 %v6402
  %12214 = vmatprep.subr.mxu0 0.0
  %12215 = vmatpush1.msra.mxu0 %v6403
  %12216 = vmatprep.subr.mxu0 0.0
  %12217 = vmatpush1.msra.mxu0 %v6404
  %12218 = vmatprep.subr.mxu0 0.0
  %12219 = vmatpush1.msra.mxu0 %v6405
  %12220 = vmatprep.subr.mxu0 0.0
  %12221 = vmatpush1.msra.mxu0 %v6406
  %12222 = vmatprep.subr.mxu0 0.0
  %12223 = vmatpush1.msra.mxu0 %v6407
  %12224 = vmatprep.subr.mxu0 0.0
  %12225 = vmatpush1.msra.mxu0 %v6408
  %12226 = vmatprep.subr.mxu0 0.0
  %12227 = vmatpush1.msra.mxu0 %v6409
  %12228 = vmatprep.subr.mxu0 0.0
  %12229 = vmatpush1.msra.mxu0 0.0
  %12230 = vmatprep.subr.mxu0 0.0
  %12231 = vmatpush1.msra.mxu0 0.0
  %12232 = vmatprep.subr.mxu0 0.0
  %12233 = vmatpush1.msra.mxu0 0.0
  %12234 = vmatprep.subr.mxu0 0.0
  %12235 = vmatpush1.msra.mxu0 0.0
  %12236 = vmatprep.subr.mxu0 0.0
  %12237 = vmatpush1.msra.mxu0 0.0
  %12238 = vmatprep.subr.mxu0 0.0
  %12239 = vmatpush1.msra.mxu0 0.0
  %12240 = vmatprep.subr.mxu0 0.0
  %12241 = vmatpush1.msra.mxu0 0.0
  %12242 = vmatprep.subr.mxu0 0.0
  %12243 = vmatpush1.msra.mxu0 0.0
  %12244 = vmatprep.subr.mxu0 0.0
  %12245 = vmatpush1.msra.mxu0 0.0
  %12246 = vmatprep.subr.mxu0 0.0
  %12247 = vmatpush1.msra.mxu0 0.0
  %12248 = vmatprep.subr.mxu0 0.0
  %12249 = vmatpush1.msra.mxu0 0.0
  %12250 = vmatprep.subr.mxu0 0.0
  %12251 = vmatpush1.msra.mxu0 0.0
  %12252 = vmatprep.subr.mxu0 0.0
  %12253 = vmatpush1.msra.mxu0 0.0
  %12254 = vmatprep.subr.mxu0 0.0
  %12255 = vmatpush1.msra.mxu0 0.0
  %12256 = vmatprep.subr.mxu0 0.0
  %12257 = vmatpush1.msra.mxu0 0.0
  %12258 = vmatprep.subr.mxu0 0.0
  %12259 = vmatpush1.msra.mxu0 0.0
  %12260 = vmatprep.subr.mxu0 0.0
  %12261 = vmatpush1.msra.mxu0 0.0
  %12262 = vmatprep.subr.mxu0 0.0
  %12263 = vmatpush1.msra.mxu0 0.0
  %12264 = vmatprep.subr.mxu0 0.0
  %12265 = vmatpush1.msra.mxu0 0.0
  %12266 = vmatprep.subr.mxu0 0.0
  %12267 = vmatpush1.msra.mxu0 0.0
  %12268 = vmatprep.subr.mxu0 0.0
  %12269 = vmatpush1.msra.mxu0 0.0
  %12270 = vmatprep.subr.mxu0 0.0
  %12271 = vmatpush1.msra.mxu0 0.0
  %12272 = vmatprep.subr.mxu0 0.0
  %12273 = vmatpush1.msra.mxu0 0.0
  %12274 = vmatprep.subr.mxu0 0.0
  %12275 = vmatpush1.msra.mxu0 0.0
  %12276 = vmatprep.mubr.f32.mxu0 0.0
  %12277 = vmatmul.mubr.f32.gmra.mrb[0].mxu0 %v12117
  %v12278 = vpop.f32.mrb[0].mxu0
  %v12279 = vadd.f32 0.0, %v12278
  %v12280 = vpop.f32.mrb[0].mxu0
  %12281 = vmatprep.mubr.f32.mxu0 0.0
  %12282 = vmatmul.mubr.f32.gmra.mrb[0].mxu0 %v12120
  %v12283 = vpop.f32.mrb[0].mxu0
  %v12284 = vadd.f32 0.0, %v12283
  %v12285 = vpop.f32.mrb[0].mxu0
  %12286 = vmatprep.mubr.f32.mxu0 0.0
  %12287 = vmatmul.mubr.f32.gmra.mrb[0].mxu0 %v12123
  %v12288 = vpop.f32.mrb[0].mxu0
  %v12289 = vadd.f32 0.0, %v12288
  %v12290 = vpop.f32.mrb[0].mxu0
  %12291 = vmatprep.mubr.f32.mxu0 0.0
  %12292 = vmatmul.mubr.f32.gmra.mrb[0].mxu0 %v12126
  %v12293 = vpop.f32.mrb[0].mxu0
  %v12294 = vadd.f32 0.0, %v12293
  %v12295 = vpop.f32.mrb[0].mxu0
  %12296 = vmatprep.mubr.f32.mxu0 0.0
  %12297 = vmatmul.mubr.f32.gmra.mrb[0].mxu0 %v12129
  %v12298 = vpop.f32.mrb[0].mxu0
  %v12299 = vadd.f32 0.0, %v12298
  %v12300 = vpop.f32.mrb[0].mxu0
  %12301 = vmatprep.mubr.f32.mxu0 0.0
  %12302 = vmatmul.mubr.f32.gmra.mrb[0].mxu0 %v12132
  %v12303 = vpop.f32.mrb[0].mxu0
  %v12304 = vadd.f32 0.0, %v12303
  %v12305 = vpop.f32.mrb[0].mxu0
  %12306 = vmatprep.mubr.f32.mxu0 0.0
  %12307 = vmatmul.mubr.f32.gmra.mrb[0].mxu0 %v12135
  %v12308 = vpop.f32.mrb[0].mxu0
  %v12309 = vadd.f32 0.0, %v12308
  %v12310 = vpop.f32.mrb[0].mxu0
  %12311 = vmatprep.mubr.f32.mxu0 0.0
  %12312 = vmatmul.mubr.f32.gmra.mrb[0].mxu0 %v12138
  %v12313 = vpop.f32.mrb[0].mxu0
  %v12314 = vadd.f32 0.0, %v12313
  %v12315 = vpop.f32.mrb[0].mxu0
  %12316 = vmatprep.mubr.f32.mxu0 0.0
  %12317 = vmatmul.mubr.f32.gmra.mrb[0].mxu0 %v12141
  %v12318 = vpop.f32.mrb[0].mxu0
  %v12319 = vadd.f32 0.0, %v12318
  %v12320 = vpop.f32.mrb[0].mxu0
  %12321 = vmatprep.mubr.f32.mxu0 0.0
  %12322 = vmatmul.mubr.f32.gmra.mrb[0].mxu0 %v12144
  %v12323 = vpop.f32.mrb[0].mxu0
  %v12324 = vadd.f32 0.0, %v12323
  %v12325 = vpop.f32.mrb[0].mxu0
  %12326 = vmatprep.mubr.f32.mxu0 0.0
  %12327 = vmatmul.mubr.f32.gmra.mrb[0].mxu0 %v12147
  %v12328 = vpop.f32.mrb[0].mxu0
  %v12329 = vadd.f32 0.0, %v12328
  %v12330 = vpop.f32.mrb[0].mxu0
  %12331 = vmatprep.mubr.f32.mxu0 0.0
  %12332 = vmatmul.mubr.f32.gmra.mrb[0].mxu0 %v12150
  %v12333 = vpop.f32.mrb[0].mxu0
  %v12334 = vadd.f32 0.0, %v12333
  %v12335 = vpop.f32.mrb[0].mxu0
  %12336 = vmatprep.mubr.f32.mxu0 0.0
  %12337 = vmatmul.mubr.f32.gmra.mrb[0].mxu0 %v12153
  %v12338 = vpop.f32.mrb[0].mxu0
  %v12339 = vadd.f32 0.0, %v12338
  %v12340 = vpop.f32.mrb[0].mxu0
  %12341 = vmatprep.mubr.f32.mxu0 0.0
  %12342 = vmatmul.mubr.f32.gmra.mrb[0].mxu0 %v12156
  %v12343 = vpop.f32.mrb[0].mxu0
  %v12344 = vadd.f32 0.0, %v12343
  %v12345 = vpop.f32.mrb[0].mxu0
  %12346 = vmatprep.mubr.f32.mxu0 0.0
  %12347 = vmatmul.mubr.f32.gmra.mrb[0].mxu0 %v12159
  %v12348 = vpop.f32.mrb[0].mxu0
  %v12349 = vadd.f32 0.0, %v12348
  %v12350 = vpop.f32.mrb[0].mxu0
  %12351 = vmatprep.mubr.f32.mxu0 0.0
  %12352 = vmatmul.mubr.f32.gmra.mrb[0].mxu0 %v12162
  %v12353 = vpop.f32.mrb[0].mxu0
  %v12354 = vadd.f32 0.0, %v12353
  %v12355 = vpop.f32.mrb[0].mxu0
  %12356 = vmatprep.mubr.f32.mxu0 0.0
  %12357 = vmatmul.mubr.f32.gmra.mrb[0].mxu0 %v12165
  %v12358 = vpop.f32.mrb[0].mxu0
  %v12359 = vadd.f32 0.0, %v12358
  %v12360 = vpop.f32.mrb[0].mxu0
  %12361 = vmatprep.mubr.f32.mxu0 0.0
  %12362 = vmatmul.mubr.f32.gmra.mrb[0].mxu0 %v12168
  %v12363 = vpop.f32.mrb[0].mxu0
  %v12364 = vadd.f32 0.0, %v12363
  %v12365 = vpop.f32.mrb[0].mxu0
  %12366 = vmatprep.mubr.f32.mxu0 0.0
  %12367 = vmatmul.mubr.f32.gmra.mrb[0].mxu0 %v12171
  %v12368 = vpop.f32.mrb[0].mxu0
  %v12369 = vadd.f32 0.0, %v12368
  %v12370 = vpop.f32.mrb[0].mxu0
  %12371 = vmatprep.mubr.f32.mxu0 0.0
  %12372 = vmatmul.mubr.f32.gmra.mrb[0].mxu0 %v12174
  %v12373 = vpop.f32.mrb[0].mxu0
  %v12374 = vadd.f32 0.0, %v12373
  %v12375 = vpop.f32.mrb[0].mxu0
  %12376 = vmatprep.mubr.f32.mxu0 0.0
  %12377 = vmatmul.mubr.f32.gmra.mrb[0].mxu0 %v12177
  %v12378 = vpop.f32.mrb[0].mxu0
  %v12379 = vadd.f32 0.0, %v12378
  %v12380 = vpop.f32.mrb[0].mxu0
  %12381 = vmatprep.mubr.f32.mxu0 0.0
  %12382 = vmatmul.mubr.f32.gmra.mrb[0].mxu0 %v12180
  %v12383 = vpop.f32.mrb[0].mxu0
  %v12384 = vadd.f32 0.0, %v12383
  %v12385 = vpop.f32.mrb[0].mxu0
  %12386 = vmatprep.mubr.f32.mxu0 0.0
  %12387 = vmatmul.mubr.f32.gmra.mrb[0].mxu0 %v12183
  %v12388 = vpop.f32.mrb[0].mxu0
  %v12389 = vadd.f32 0.0, %v12388
  %v12390 = vpop.f32.mrb[0].mxu0
  %12391 = vmatprep.mubr.f32.mxu0 0.0
  %12392 = vmatmul.mubr.f32.gmra.mrb[0].mxu0 %v12186
  %v12393 = vpop.f32.mrb[0].mxu0
  %v12394 = vadd.f32 0.0, %v12393
  %v12395 = vpop.f32.mrb[0].mxu0
  %12396 = vmatprep.mubr.f32.mxu0 0.0
  %12397 = vmatmul.mubr.f32.gmra.mrb[0].mxu0 %v12189
  %v12398 = vpop.f32.mrb[0].mxu0
  %v12399 = vadd.f32 0.0, %v12398
  %v12400 = vpop.f32.mrb[0].mxu0
  %12401 = vmatprep.mubr.f32.mxu0 0.0
  %12402 = vmatmul.mubr.f32.gmra.mrb[0].mxu0 %v12192
  %v12403 = vpop.f32.mrb[0].mxu0
  %v12404 = vadd.f32 0.0, %v12403
  %v12405 = vpop.f32.mrb[0].mxu0
  %12406 = vmatprep.mubr.f32.mxu0 0.0
  %12407 = vmatmul.mubr.f32.gmra.mrb[0].mxu0 %v12195
  %v12408 = vpop.f32.mrb[0].mxu0
  %v12409 = vadd.f32 0.0, %v12408
  %v12410 = vpop.f32.mrb[0].mxu0
  %12411 = vmatprep.mubr.f32.mxu0 0.0
  %12412 = vmatmul.mubr.f32.gmra.mrb[0].mxu0 %v12198
  %v12413 = vpop.f32.mrb[0].mxu0
  %v12414 = vadd.f32 0.0, %v12413
  %v12415 = vpop.f32.mrb[0].mxu0
  %12416 = vmatprep.mubr.f32.mxu0 0.0
  %12417 = vmatmul.mubr.f32.gmra.mrb[0].mxu0 %v12201
  %v12418 = vpop.f32.mrb[0].mxu0
  %v12419 = vadd.f32 0.0, %v12418
  %v12420 = vpop.f32.mrb[0].mxu0
  %12421 = vmatprep.mubr.f32.mxu0 0.0
  %12422 = vmatmul.mubr.f32.gmra.mrb[0].mxu0 %v12204
  %v12423 = vpop.f32.mrb[0].mxu0
  %v12424 = vadd.f32 0.0, %v12423
  %v12425 = vpop.f32.mrb[0].mxu0
  %12426 = vmatprep.mubr.f32.mxu0 0.0
  %12427 = vmatmul.mubr.f32.gmra.mrb[0].mxu0 %v12207
  %v12428 = vpop.f32.mrb[0].mxu0
  %v12429 = vadd.f32 0.0, %v12428
  %v12430 = vpop.f32.mrb[0].mxu0
  %12431 = vmatprep.mubr.f32.mxu0 0.0
  %12432 = vmatmul.mubr.f32.gmra.mrb[0].mxu0 %v12210
  %v12433 = vpop.f32.mrb[0].mxu0
  %v12434 = vadd.f32 0.0, %v12433
  %v12435 = vpop.f32.mrb[0].mxu0
  %12436 = vdwg.mxu0
  %v12437 = vmax.f32 %v11860, %v12279
  %v12438 = vmax.f32 %v11861, %v12284
  %v12439 = vmax.f32 %v11862, %v12289
  %v12440 = vmax.f32 %v11863, %v12294
  %v12441 = vmax.f32 %v11864, %v12299
  %v12442 = vmax.f32 %v11865, %v12304
  %v12443 = vmax.f32 %v11866, %v12309
  %v12444 = vmax.f32 %v11867, %v12314
  %v12445 = vmax.f32 %v11868, %v12319
  %v12446 = vmax.f32 %v11869, %v12324
  %v12447 = vmax.f32 %v11870, %v12329
  %v12448 = vmax.f32 %v11871, %v12334
  %v12449 = vmax.f32 %v11872, %v12339
  %v12450 = vmax.f32 %v11873, %v12344
  %v12451 = vmax.f32 %v11874, %v12349
  %v12452 = vmax.f32 %v11875, %v12354
  %v12453 = vmax.f32 %v11876, %v12359
  %v12454 = vmax.f32 %v11877, %v12364
  %v12455 = vmax.f32 %v11878, %v12369
  %v12456 = vmax.f32 %v11879, %v12374
  %v12457 = vmax.f32 %v11880, %v12379
  %v12458 = vmax.f32 %v11881, %v12384
  %v12459 = vmax.f32 %v11882, %v12389
  %v12460 = vmax.f32 %v11883, %v12394
  %v12461 = vmax.f32 %v11884, %v12399
  %v12462 = vmax.f32 %v11885, %v12404
  %v12463 = vmax.f32 %v11886, %v12409
  %v12464 = vmax.f32 %v11887, %v12414
  %v12465 = vmax.f32 %v11888, %v12419
  %v12466 = vmax.f32 %v11889, %v12424
  %v12467 = vmax.f32 %v11890, %v12429
  %v12468 = vmax.f32 %v11891, %v12434
  %12501 = vrot.lane.b32.xlu0 %v12437, 8
  %v12502 = vpop.permute.xlu0 %12501
  %12503 = vrot.lane.b32.xlu0 %v12438, 8
  %v12504 = vpop.permute.xlu0 %12503
  %12505 = vrot.lane.b32.xlu0 %v12439, 8
  %v12506 = vpop.permute.xlu0 %12505
  %12507 = vrot.lane.b32.xlu0 %v12440, 8
  %v12508 = vpop.permute.xlu0 %12507
  %12509 = vrot.lane.b32.xlu0 %v12441, 8
  %v12510 = vpop.permute.xlu0 %12509
  %12511 = vrot.lane.b32.xlu0 %v12442, 8
  %v12512 = vpop.permute.xlu0 %12511
  %12513 = vrot.lane.b32.xlu0 %v12443, 8
  %v12514 = vpop.permute.xlu0 %12513
  %12515 = vrot.lane.b32.xlu0 %v12444, 8
  %v12516 = vpop.permute.xlu0 %12515
  %12517 = vrot.lane.b32.xlu0 %v12445, 8
  %v12518 = vpop.permute.xlu0 %12517
  %12519 = vrot.lane.b32.xlu0 %v12446, 8
  %v12520 = vpop.permute.xlu0 %12519
  %12521 = vrot.lane.b32.xlu0 %v12447, 8
  %v12522 = vpop.permute.xlu0 %12521
  %12523 = vrot.lane.b32.xlu0 %v12448, 8
  %v12524 = vpop.permute.xlu0 %12523
  %12525 = vrot.lane.b32.xlu0 %v12449, 8
  %v12526 = vpop.permute.xlu0 %12525
  %12527 = vrot.lane.b32.xlu0 %v12450, 8
  %v12528 = vpop.permute.xlu0 %12527
  %12529 = vrot.lane.b32.xlu0 %v12451, 8
  %v12530 = vpop.permute.xlu0 %12529
  %12531 = vrot.lane.b32.xlu0 %v12452, 8
  %v12532 = vpop.permute.xlu0 %12531
  %12533 = vrot.lane.b32.xlu0 %v12453, 8
  %v12534 = vpop.permute.xlu0 %12533
  %12535 = vrot.lane.b32.xlu0 %v12454, 8
  %v12536 = vpop.permute.xlu0 %12535
  %12537 = vrot.lane.b32.xlu0 %v12455, 8
  %v12538 = vpop.permute.xlu0 %12537
  %12539 = vrot.lane.b32.xlu0 %v12456, 8
  %v12540 = vpop.permute.xlu0 %12539
  %12541 = vrot.lane.b32.xlu0 %v12457, 8
  %v12542 = vpop.permute.xlu0 %12541
  %12543 = vrot.lane.b32.xlu0 %v12458, 8
  %v12544 = vpop.permute.xlu0 %12543
  %12545 = vrot.lane.b32.xlu0 %v12459, 8
  %v12546 = vpop.permute.xlu0 %12545
  %12547 = vrot.lane.b32.xlu0 %v12460, 8
  %v12548 = vpop.permute.xlu0 %12547
  %12549 = vrot.lane.b32.xlu0 %v12461, 8
  %v12550 = vpop.permute.xlu0 %12549
  %12551 = vrot.lane.b32.xlu0 %v12462, 8
  %v12552 = vpop.permute.xlu0 %12551
  %12553 = vrot.lane.b32.xlu0 %v12463, 8
  %v12554 = vpop.permute.xlu0 %12553
  %12555 = vrot.lane.b32.xlu0 %v12464, 8
  %v12556 = vpop.permute.xlu0 %12555
  %12557 = vrot.lane.b32.xlu0 %v12465, 8
  %v12558 = vpop.permute.xlu0 %12557
  %12559 = vrot.lane.b32.xlu0 %v12466, 8
  %v12560 = vpop.permute.xlu0 %12559
  %12561 = vrot.lane.b32.xlu0 %v12467, 8
  %v12562 = vpop.permute.xlu0 %12561
  %12563 = vrot.lane.b32.xlu0 %v12468, 8
  %v12564 = vpop.permute.xlu0 %12563
  %vm12597 = vcmask 64512
  %v12598 = vsel %vm12597, %v6370, %v12502
  %v12599 = vsel %vm12597, %v6371, %v12504
  %v12600 = vsel %vm12597, %v6372, %v12506
  %v12601 = vsel %vm12597, %v6373, %v12508
  %v12602 = vsel %vm12597, %v6374, %v12510
  %v12603 = vsel %vm12597, %v6375, %v12512
  %v12604 = vsel %vm12597, %v6376, %v12514
  %v12605 = vsel %vm12597, %v6377, %v12516
  %v12606 = vsel %vm12597, %v6378, %v12518
  %v12607 = vsel %vm12597, %v6379, %v12520
  %v12608 = vsel %vm12597, %v6380, %v12522
  %v12609 = vsel %vm12597, %v6381, %v12524
  %v12610 = vsel %vm12597, %v6382, %v12526
  %v12611 = vsel %vm12597, %v6383, %v12528
  %v12612 = vsel %vm12597, %v6384, %v12530
  %v12613 = vsel %vm12597, %v6385, %v12532
  %v12614 = vsel %vm12597, %v6386, %v12534
  %v12615 = vsel %vm12597, %v6387, %v12536
  %v12616 = vsel %vm12597, %v6388, %v12538
  %v12617 = vsel %vm12597, %v6389, %v12540
  %v12618 = vsel %vm12597, %v6390, %v12542
  %v12619 = vsel %vm12597, %v6391, %v12544
  %v12620 = vsel %vm12597, %v6392, %v12546
  %v12621 = vsel %vm12597, %v6393, %v12548
  %v12622 = vsel %vm12597, %v6394, %v12550
  %v12623 = vsel %vm12597, %v6395, %v12552
  %v12624 = vsel %vm12597, %v6396, %v12554
  %v12625 = vsel %vm12597, %v6397, %v12556
  %v12626 = vsel %vm12597, %v6398, %v12558
  %v12627 = vsel %vm12597, %v6399, %v12560
  %v12628 = vsel %vm12597, %v6400, %v12562
  %v12629 = vsel %vm12597, %v6401, %v12564
  %v12630 = vld [vmem:[%s3] sm:$0x1]
  %v12632 = vlaneseq
  %v12633 = vshrl.u32 %v12632, 7
  %v12634 = vsub.s32 0, %v12633
  %v12635 = vrot.slane %v12630, %v12634
  %v12637 = vadd.f32 %v12598, %v12635
  %v12638 = vadd.f32 %v12599, %v12635
  %v12639 = vadd.f32 %v12600, %v12635
  %v12640 = vadd.f32 %v12601, %v12635
  %v12641 = vadd.f32 %v12602, %v12635
  %v12642 = vadd.f32 %v12603, %v12635
  %v12643 = vadd.f32 %v12604, %v12635
  %v12644 = vadd.f32 %v12605, %v12635
  %v12645 = vadd.f32 %v12606, %v12635
  %v12646 = vadd.f32 %v12607, %v12635
  %v12647 = vadd.f32 %v12608, %v12635
  %v12648 = vadd.f32 %v12609, %v12635
  %v12649 = vadd.f32 %v12610, %v12635
  %v12650 = vadd.f32 %v12611, %v12635
  %v12651 = vadd.f32 %v12612, %v12635
  %v12652 = vadd.f32 %v12613, %v12635
  %v12653 = vadd.f32 %v12614, %v12635
  %v12654 = vadd.f32 %v12615, %v12635
  %v12655 = vadd.f32 %v12616, %v12635
  %v12656 = vadd.f32 %v12617, %v12635
  %v12657 = vadd.f32 %v12618, %v12635
  %v12658 = vadd.f32 %v12619, %v12635
  %v12659 = vadd.f32 %v12620, %v12635
  %v12660 = vadd.f32 %v12621, %v12635
  %v12661 = vadd.f32 %v12622, %v12635
  %v12662 = vadd.f32 %v12623, %v12635
  %v12663 = vadd.f32 %v12624, %v12635
  %v12664 = vadd.f32 %v12625, %v12635
  %v12665 = vadd.f32 %v12626, %v12635
  %v12666 = vadd.f32 %v12627, %v12635
  %v12667 = vadd.f32 %v12628, %v12635
  %v12668 = vadd.f32 %v12629, %v12635
  %v12669 = vmax.f32 %v12637, 0.0
  %v12670 = vmax.f32 %v12638, 0.0
  %v12671 = vmax.f32 %v12639, 0.0
  %v12672 = vmax.f32 %v12640, 0.0
  %v12673 = vmax.f32 %v12641, 0.0
  %v12674 = vmax.f32 %v12642, 0.0
  %v12675 = vmax.f32 %v12643, 0.0
  %v12676 = vmax.f32 %v12644, 0.0
  %v12677 = vmax.f32 %v12645, 0.0
  %v12678 = vmax.f32 %v12646, 0.0
  %v12679 = vmax.f32 %v12647, 0.0
  %v12680 = vmax.f32 %v12648, 0.0
  %v12681 = vmax.f32 %v12649, 0.0
  %v12682 = vmax.f32 %v12650, 0.0
  %v12683 = vmax.f32 %v12651, 0.0
  %v12684 = vmax.f32 %v12652, 0.0
  %v12685 = vmax.f32 %v12653, 0.0
  %v12686 = vmax.f32 %v12654, 0.0
  %v12687 = vmax.f32 %v12655, 0.0
  %v12688 = vmax.f32 %v12656, 0.0
  %v12689 = vmax.f32 %v12657, 0.0
  %v12690 = vmax.f32 %v12658, 0.0
  %v12691 = vmax.f32 %v12659, 0.0
  %v12692 = vmax.f32 %v12660, 0.0
  %v12693 = vmax.f32 %v12661, 0.0
  %v12694 = vmax.f32 %v12662, 0.0
  %v12695 = vmax.f32 %v12663, 0.0
  %v12696 = vmax.f32 %v12664, 0.0
  %v12697 = vmax.f32 %v12665, 0.0
  %v12698 = vmax.f32 %v12666, 0.0
  %v12699 = vmax.f32 %v12667, 0.0
  %v12700 = vmax.f32 %v12668, 0.0
  %vm12701 = vcmask 130048
  %12702 = vst.msk [vmem:[%s4] sm:$0xff] %vm12701, %v12669
  %12703 = vst.msk [vmem:[%s4 + $0x8] sm:$0xff] %vm12701, %v12670
  %12704 = vst.msk [vmem:[%s4 + $0x10] sm:$0xff] %vm12701, %v12671
  %12705 = vst.msk [vmem:[%s4 + $0x18] sm:$0xff] %vm12701, %v12672
  %12706 = vst.msk [vmem:[%s4 + $0x20] sm:$0xff] %vm12701, %v12673
  %12707 = vst.msk [vmem:[%s4 + $0x28] sm:$0xff] %vm12701, %v12674
  %12708 = vst.msk [vmem:[%s4 + $0x30] sm:$0xff] %vm12701, %v12675
  %12709 = vst.msk [vmem:[%s4 + $0x38] sm:$0xff] %vm12701, %v12676
  %12710 = vst.msk [vmem:[%s4 + $0x40] sm:$0xff] %vm12701, %v12677
  %12711 = vst.msk [vmem:[%s4 + $0x48] sm:$0xff] %vm12701, %v12678
  %12712 = vst.msk [vmem:[%s4 + $0x50] sm:$0xff] %vm12701, %v12679
  %12713 = vst.msk [vmem:[%s4 + $0x58] sm:$0xff] %vm12701, %v12680
  %12714 = vst.msk [vmem:[%s4 + $0x60] sm:$0xff] %vm12701, %v12681
  %12715 = vst.msk [vmem:[%s4 + $0x68] sm:$0xff] %vm12701, %v12682
  %12716 = vst.msk [vmem:[%s4 + $0x70] sm:$0xff] %vm12701, %v12683
  %12717 = vst.msk [vmem:[%s4 + $0x78] sm:$0xff] %vm12701, %v12684
  %12718 = vst.msk [vmem:[%s4 + $0x80] sm:$0xff] %vm12701, %v12685
  %12719 = vst.msk [vmem:[%s4 + $0x88] sm:$0xff] %vm12701, %v12686
  %12720 = vst.msk [vmem:[%s4 + $0x90] sm:$0xff] %vm12701, %v12687
  %12721 = vst.msk [vmem:[%s4 + $0x98] sm:$0xff] %vm12701, %v12688
  %12722 = vst.msk [vmem:[%s4 + $0xa0] sm:$0xff] %vm12701, %v12689
  %12723 = vst.msk [vmem:[%s4 + $0xa8] sm:$0xff] %vm12701, %v12690
  %12724 = vst.msk [vmem:[%s4 + $0xb0] sm:$0xff] %vm12701, %v12691
  %12725 = vst.msk [vmem:[%s4 + $0xb8] sm:$0xff] %vm12701, %v12692
  %12726 = vst.msk [vmem:[%s4 + $0xc0] sm:$0xff] %vm12701, %v12693
  %12727 = vst.msk [vmem:[%s4 + $0xc8] sm:$0xff] %vm12701, %v12694
  %12728 = vst.msk [vmem:[%s4 + $0xd0] sm:$0xff] %vm12701, %v12695
  %12729 = vst.msk [vmem:[%s4 + $0xd8] sm:$0xff] %vm12701, %v12696
  %12730 = vst.msk [vmem:[%s4 + $0xe0] sm:$0xff] %vm12701, %v12697
  %12731 = vst.msk [vmem:[%s4 + $0xe8] sm:$0xff] %vm12701, %v12698
  %12732 = vst.msk [vmem:[%s4 + $0xf0] sm:$0xff] %vm12701, %v12699
  %12733 = vst.msk [vmem:[%s4 + $0xf8] sm:$0xff] %vm12701, %v12700
  // Predicated region
  $region18: #{tpu_custom_call.1} parent=0 // pred_check
    _
  $region19: #{tpu_custom_call.1} parent=0 // pred_check_branch
    %12735 = sbr.rel (0) target = $region21
  $region20: #{tpu_custom_call.1} parent=0 // pred_region
    _
  $region21: #{tpu_custom_call.1} parent=0 // pred_fallthru
    _
  // Predicated region
  $region22: #{tpu_custom_call.1} parent=0 // pred_check
    _
  $region23: #{tpu_custom_call.1} parent=0 // pred_check_branch
    %12737 = sbr.rel (0) target = $region25
  $region24: #{tpu_custom_call.1} parent=0 // pred_region
    _
  $region25: #{tpu_custom_call.1} parent=0 // pred_fallthru
    _

</llo_original>
